<compile_context>
chip_gen: v7x
topology: tpu7x:2x2x1
jax: 0.10.0
libtpu: 0.0.40
codegen_flags: <defaults>
</compile_context>

<pallas_src>
import functools

import jax
import jax.numpy as jnp
from jax import lax
from jax.experimental import pallas as pl
from jax.experimental.pallas import tpu as pltpu


# ----------------------------- Pallas kernel --------------------------------
def _fused_mlp_kernel(*refs, n_layers, relu_flags, pool_ns, two_sources):
    """Fused pointwise-MLP chain (+ optional group-max pooling) on one row tile.

    refs layout:
      two_sources=True : (xa, xb, w0a, w0b, b0, w1, b1, ..., o_ref)
      two_sources=False: (x,  w0,  b0, w1, b1, ..., o_ref)

    Activations (any dtype) are cast to bf16 in-kernel (MXU operands); matmul
    accumulation and the bias/ReLU epilogue stay f32; the final store uses
    o_ref.dtype (bf16 for intermediate stages, f32 for the logits head).
    """
    o_ref = refs[-1]
    if two_sources:
        xa, xb = refs[0][...], refs[1][...]
        w0a, w0b, b0 = refs[2][...], refs[3][...], refs[4][...]
        # K-split first layer: replaces the wrapper-side concat of the two sources.
        y = (jnp.dot(xa.astype(jnp.bfloat16), w0a, preferred_element_type=jnp.float32)
             + jnp.dot(xb.astype(jnp.bfloat16), w0b, preferred_element_type=jnp.float32)
             + b0)
        pos = 5
    else:
        x = refs[0][...]
        w0, b0 = refs[1][...], refs[2][...]
        y = jnp.dot(x.astype(jnp.bfloat16), w0, preferred_element_type=jnp.float32) + b0
        pos = 3
    if relu_flags[0]:
        y = jnp.maximum(y, 0.0)

    for l in range(1, n_layers):
        w, b = refs[pos][...], refs[pos + 1][...]
        pos += 2
        y = jnp.dot(y.astype(jnp.bfloat16), w, preferred_element_type=jnp.float32) + b
        if relu_flags[l]:
            y = jnp.maximum(y, 0.0)

    if pool_ns > 1:
        tm, c = y.shape
        # consecutive `pool_ns` rows form one group -> max over the group axis.
        # TODO(synk): if a bundle dump shows a VMEM relayout here at ns=16/64,
        # replace with a log2(ns) tree of jnp.maximum over static row slices.
        y = jnp.max(y.reshape(tm // pool_ns, pool_ns, c), axis=1)

    o_ref[...] = y.astype(o_ref.dtype)


# Row-tile cap: v7x has 64 MiB physical VMEM (32 MiB scoped default); a 2048-row
# tile of a 384-wide bf16 input plus 256-wide f32 intermediates and bf16 output
# (double-buffered) stays well inside that on v5e/v6e/v7x while amortizing the
# ~0.35 us per-grid-step overhead at production point counts.
_MAX_TM = 2048


def _choose_tm(m, pool_ns=1, max_tm=_MAX_TM):
    """Row tile: full block for small stages, else the largest multiple of `unit`
    (16-row aligned for bf16 input AND pooled output) that divides M."""
    if m <= max_tm:
        return m                              # tiny tail stage: single block, grid=1
    unit = max(16, 16 * pool_ns)
    tm = (max_tm // unit) * unit
    while tm >= unit:
        if m % tm == 0:
            return tm
        tm -= unit
    return m                                  # fallback: full block


def fused_mlp(xs, layers, relu_flags, pool_ns=1, out_dtype=jnp.bfloat16):
    """xs: one or two arrays [M, c_i] -> [M // pool_ns, cout_last] in one pallas_call.

    Whole shared-MLP chain (Conv(k=1) + folded eval BN + ReLU) plus the optional
    group-max pooling is fused; intermediates never leave VMEM.
    """
    xs = tuple(xs)
    m = xs[0].shape[0]
    cout = layers[-1][0].shape[1]
    tm = _choose_tm(m, pool_ns)
    out_rows = m // pool_ns
    two_sources = len(xs) == 2

    in_specs, args = [], []
    for x in xs:
        in_specs.append(pl.BlockSpec((tm, x.shape[1]), lambda i: (i, 0)))
        args.append(x)

    def add_const(arr):                       # resident weight / bias operand
        in_specs.append(pl.BlockSpec(arr.shape, lambda i: (0, 0)))
        args.append(arr)

    w0, b0 = layers[0]
    if two_sources:
        ca = xs[0].shape[1]
        add_const(w0[:ca])                    # K-split first-layer weights
        add_const(w0[ca:])
    else:
        add_const(w0)
    add_const(b0)
    for (w, b) in layers[1:]:
        add_const(w)
        add_const(b)

    kernel = functools.partial(
        _fused_mlp_kernel,
        n_layers=len(layers),
        relu_flags=tuple(relu_flags),
        pool_ns=pool_ns,
        two_sources=two_sources,
    )

    flops = 2 * m * sum(int(w.shape[0]) * int(w.shape[1]) for w, _ in layers)
    bytes_accessed = (
        sum(int(x.size) * x.dtype.itemsize for x in xs)
        + sum(int(w.size) * 2 + int(b.size) * 4 for w, b in layers)
        + out_rows * cout * jnp.dtype(out_dtype).itemsize
    )

    return pl.pallas_call(
        kernel,
        out_shape=jax.ShapeDtypeStruct((out_rows, cout), out_dtype),
        grid=(m // tm,),
        in_specs=in_specs,
        out_specs=pl.BlockSpec((tm // pool_ns, cout), lambda i: (i, 0)),
        compiler_params=pltpu.CompilerParams(dimension_semantics=("parallel",)),
        cost_estimate=pl.CostEstimate(flops=flops, transcendentals=0,
                                      bytes_accessed=bytes_accessed),
    )(*args)


# -------------------- geometric ops (plain-JAX glue) -------------------------
# TODO(synk): furthest_point_sample / ball_query / three_nn are data-dependent
# sequential argmin / top-k + gather ops; they stay as JAX glue around the fused
# Pallas MLP kernels (see header note about a streaming Pallas version).
def square_distance(src, dst):
    # src: [B, S, 3], dst: [B, N, 3] -> squared pairwise distances [B, S, N]
    return (jnp.sum(src * src, -1)[:, :, None]
            + jnp.sum(dst * dst, -1)[:, None, :]
            - 2.0 * jnp.einsum("bsc,bnc->bsn", src, dst))


def farthest_point_sample(xyz, npoint):
    B, N, _ = xyz.shape
    b_idx = jnp.arange(B)

    def body(i, state):
        centroids, distance, farthest = state
        centroids = centroids.at[:, i].set(farthest)
        centroid = xyz[b_idx, farthest][:, None, :]            # [B, 1, 3]
        dist = jnp.sum((xyz - centroid) ** 2, axis=-1)         # [B, N]
        distance = jnp.minimum(distance, dist)
        farthest = jnp.argmax(distance, axis=-1).astype(jnp.int32)
        return centroids, distance, farthest

    centroids = jnp.zeros((B, npoint), dtype=jnp.int32)
    distance = jnp.full((B, N), 1e10, dtype=jnp.float32)
    farthest = jnp.zeros((B,), dtype=jnp.int32)  # CUDA impl starts from index 0
    centroids, _, _ = lax.fori_loop(0, npoint, body, (centroids, distance, farthest))
    return centroids


def ball_query(radius, nsample, xyz, new_xyz):
    # first `nsample` points (in index order) within `radius`; pad with first hit
    B, N, _ = xyz.shape
    sqrdists = square_distance(new_xyz, xyz)                   # [B, S, N]
    arange_n = jnp.arange(N, dtype=jnp.int32)
    keyed = jnp.where(sqrdists < radius * radius, arange_n[None, None, :], N)
    neg_top, _ = lax.top_k(-keyed, nsample)                    # k smallest, ascending
    sorted_idx = -neg_top
    first = sorted_idx[:, :, 0:1]
    return jnp.where(sorted_idx == N, first, sorted_idx).astype(jnp.int32)


# ----------------------------- model layers ----------------------------------
def set_abstraction(xyz, points, npoint, radius, nsample, layers):
    """PointNetSetAbstraction: sample_and_group + fused shared-MLP + group-max."""
    B = xyz.shape[0]
    b_idx = jnp.arange(B)
    fps_idx = farthest_point_sample(xyz, npoint)                     # [B, S]
    new_xyz = xyz[b_idx[:, None], fps_idx]                           # [B, S, 3]
    idx = ball_query(radius, nsample, xyz, new_xyz)                  # [B, S, ns]
    grouped_xyz = xyz[b_idx[:, None, None], idx]                     # [B, S, ns, 3]
    grouped_xyz_norm = grouped_xyz - new_xyz[:, :, None, :]          # f32
    grouped_points = points[b_idx[:, None, None], idx]               # [B, S, ns, D] (source dtype)

    m = B * npoint * nsample
    xa = grouped_xyz_norm.reshape(m, 3)
    xb = grouped_points.reshape(m, -1)
    pooled = fused_mlp((xa, xb), layers, (True,) * len(layers),
                       pool_ns=nsample, out_dtype=jnp.bfloat16)
    return new_xyz, pooled.reshape(B, npoint, -1)


def feature_propagation(unknown_xyz, known_xyz, unknown_points, known_points,
                        layers, relu_flags=None, out_dtype=jnp.bfloat16):
    """PointNetFeaturePropagation: 3-NN inverse-distance interp + fused shared MLP."""
    B, N, _ = unknown_xyz.shape
    b_idx = jnp.arange(B)
    sqrdists = square_distance(unknown_xyz, known_xyz)               # [B, N, S]
    neg_d, idx = lax.top_k(-sqrdists, 3)                             # 3 nearest, ascending
    dists = jnp.sqrt(jnp.maximum(-neg_d, 0.0))                       # Euclidean (three_nn)
    dist_recip = 1.0 / (dists + 1e-8)
    norm = jnp.sum(dist_recip, axis=2, keepdims=True)
    weight = (dist_recip / norm).astype(jnp.bfloat16)                # interp kept in bf16
    gathered = known_points[b_idx[:, None, None], idx].astype(jnp.bfloat16)
    interpolated = jnp.sum(gathered * weight[..., None], axis=2)     # [B, N, D2] bf16

    if relu_flags is None:
        relu_flags = (True,) * len(layers)
    xa = unknown_points.reshape(B * N, -1)
    xb = interpolated.reshape(B * N, -1)
    feat = fused_mlp((xa, xb), layers, relu_flags, out_dtype=out_dtype)
    return feat.reshape(B, N, -1)


# ----------------------------- parameters ------------------------------------
def init_conv_bn(key, cin, cout, use_bn=True, pad_to=None):
    ks = jax.random.split(key, 6)
    w = jax.random.normal(ks[0], (cin, cout), jnp.float32) / jnp.sqrt(cin)
    b = 0.01 * jax.random.normal(ks[1], (cout,), jnp.float32)
    if use_bn:
        gamma = 1.0 + 0.1 * jax.random.normal(ks[2], (cout,), jnp.float32)
        beta = 0.1 * jax.random.normal(ks[3], (cout,), jnp.float32)
        mean = 0.1 * jax.random.normal(ks[4], (cout,), jnp.float32)
        var = jnp.abs(1.0 + 0.1 * jax.random.normal(ks[5], (cout,), jnp.float32))
        scale = gamma / jnp.sqrt(var + 1e-5)
        bias = (b - mean) * scale + beta
        w = w * scale[None, :]            # fold eval-mode BN scale into the weights
    else:
        bias = b
    if pad_to is not None and pad_to > cout:
        # pad out-channels for lane-dense (128-wide) stores; extra lanes sliced off later
        w = jnp.pad(w, ((0, 0), (0, pad_to - cout)))
        bias = jnp.pad(bias, (0, pad_to - cout))
        cout = pad_to
    return (w.astype(jnp.bfloat16), bias.reshape(1, cout).astype(jnp.float32))


def init_mlp(key, cin, channels):
    params = []
    for cout in channels:
        key, sub = jax.random.split(key)
        params.append(init_conv_bn(sub, cin, cout))
        cin = cout
    return params


def init_pointnet2(key, num_classes):
    keys = jax.random.split(key, 10)
    return {
        "sa1": init_mlp(keys[0], 5 + 3, [64, 64, 128]),
        "sa2": init_mlp(keys[1], 128 + 3, [64, 64, 128]),
        "sa3": init_mlp(keys[2], 128 + 3, [128, 128, 256]),
        "sa4": init_mlp(keys[3], 256 + 3, [128, 128, 256]),
        "fp4": init_mlp(keys[4], 512, [256, 256]),
        "fp3": init_mlp(keys[5], 384, [256, 256]),
        "fp2": init_mlp(keys[6], 384, [128, 128]),
        "fp1": init_mlp(keys[7], 128 + 5, [128, 64]),
        "conv1": init_conv_bn(keys[8], 64, 64, use_bn=True),
        # conv2 has no BN; padded to 128 output lanes, real logits = first num_classes
        "conv2": init_conv_bn(keys[9], 64, num_classes, use_bn=False, pad_to=128),
    }


# Scaled-down hyper-parameters (original: npoint 16384/8192/4096/2048, nsample 16/16/64/64).
SA_CFG = [
    dict(npoint=32, radius=1.0, nsample=8),
    dict(npoint=16, radius=2.0, nsample=8),
    dict(npoint=8, radius=5.0, nsample=8),
    dict(npoint=4, radius=15.0, nsample=8),
]


def pointnet2_forward(params, xyz, num_classes):
    # xyz: [B, N, 8] = 3 coordinates + 5 per-point attributes (channels-last)
    l0_xyz = xyz[:, :, 0:3].astype(jnp.float32)
    l0_points = xyz[:, :, 3:].astype(jnp.float32)

    l1_xyz, l1_points = set_abstraction(l0_xyz, l0_points, layers=params["sa1"], **SA_CFG[0])
    l2_xyz, l2_points = set_abstraction(l1_xyz, l1_points, layers=params["sa2"], **SA_CFG[1])
    l3_xyz, l3_points = set_abstraction(l2_xyz, l2_points, layers=params["sa3"], **SA_CFG[2])
    l4_xyz, l4_points = set_abstraction(l3_xyz, l3_points, layers=params["sa4"], **SA_CFG[3])

    l3_points = feature_propagation(l3_xyz, l4_xyz, l3_points, l4_points, params["fp4"])
    l2_points = feature_propagation(l2_xyz, l3_xyz, l2_points, l3_points, params["fp3"])
    l1_points = feature_propagation(l1_xyz, l2_xyz, l1_points, l2_points, params["fp2"])

    # fp1 MLP + conv1/bn1/ReLU (+ Dropout: identity in eval) + conv2, all fused
    # into a single Pallas kernel with a 128-lane padded f32 output.
    # TODO(synk): Dropout(0.5) is identity in eval mode; not applied.
    head_layers = list(params["fp1"]) + [params["conv1"], params["conv2"]]
    head_relu = (True, True, True, False)
    logits = feature_propagation(l0_xyz, l1_xyz, l0_points, l1_points,
                                 head_layers, relu_flags=head_relu,
                                 out_dtype=jnp.float32)
    return logits[:, :, :num_classes]                    # [B, N, num_classes]


if __name__ == "__main__":
    key = jax.random.PRNGKey(0)
    pkey, xkey = jax.random.split(key)
    num_classes = 8
    params = init_pointnet2(pkey, num_classes)

    B, N = 2, 64
    xyz = jax.random.uniform(xkey, (B, N, 8), dtype=jnp.float32)

    fwd = jax.jit(functools.partial(pointnet2_forward, num_classes=num_classes))
    out = fwd(params, xyz)
    out = jax.block_until_ready(out)
    assert out.shape == (B, N, num_classes)
    assert bool(jnp.all(jnp.isfinite(out)))
    print("KERNEL_OK")
</pallas_src>

<mosaic_0001>
module attributes {stable_mosaic.version = 11 : i64} {
  func.func @_fused_mlp_kernel(%arg0: i32, %arg1: memref<512x3xf32, #tpu.memory_space<vmem>>, %arg2: memref<512x5xf32, #tpu.memory_space<vmem>>, %arg3: memref<3x64xbf16, #tpu.memory_space<vmem>>, %arg4: memref<5x64xbf16, #tpu.memory_space<vmem>>, %arg5: memref<1x64xf32, #tpu.memory_space<vmem>>, %arg6: memref<64x64xbf16, #tpu.memory_space<vmem>>, %arg7: memref<1x64xf32, #tpu.memory_space<vmem>>, %arg8: memref<64x128xbf16, #tpu.memory_space<vmem>>, %arg9: memref<1x128xf32, #tpu.memory_space<vmem>>, %arg10: memref<64x128xbf16, #tpu.memory_space<vmem>>) attributes {dimension_semantics = [#tpu.dimension_semantics<parallel>], iteration_bounds = array<i64: 1>, scalar_prefetch = 0 : i64, scratch_operands = 0 : i64, tpu.core_type = #tpu.core_type<tc>, window_params = [{transform_indices = @transform_0, window_bounds = array<i64: 512, 3>}, {transform_indices = @transform_1, window_bounds = array<i64: 512, 5>}, {pipeline_mode = #tpu.pipeline_mode<synchronous>, transform_indices = @transform_2, window_bounds = array<i64: 3, 64>}, {pipeline_mode = #tpu.pipeline_mode<synchronous>, transform_indices = @transform_3, window_bounds = array<i64: 5, 64>}, {pipeline_mode = #tpu.pipeline_mode<synchronous>, transform_indices = @transform_4, window_bounds = array<i64: 1, 64>}, {pipeline_mode = #tpu.pipeline_mode<synchronous>, transform_indices = @transform_5, window_bounds = array<i64: 64, 64>}, {pipeline_mode = #tpu.pipeline_mode<synchronous>, transform_indices = @transform_6, window_bounds = array<i64: 1, 64>}, {pipeline_mode = #tpu.pipeline_mode<synchronous>, transform_indices = @transform_7, window_bounds = array<i64: 64, 128>}, {pipeline_mode = #tpu.pipeline_mode<synchronous>, transform_indices = @transform_8, window_bounds = array<i64: 1, 128>}, {transform_indices = @transform_9, window_bounds = array<i64: 64, 128>}]} {
    %c0 = arith.constant 0 : index
    %c0_0 = arith.constant 0 : index
    %0 = vector.load %arg1[%c0, %c0_0] : memref<512x3xf32, #tpu.memory_space<vmem>>, vector<512x3xf32>
    %c0_1 = arith.constant 0 : index
    %c0_2 = arith.constant 0 : index
    %1 = vector.load %arg2[%c0_1, %c0_2] : memref<512x5xf32, #tpu.memory_space<vmem>>, vector<512x5xf32>
    %c0_3 = arith.constant 0 : index
    %c0_4 = arith.constant 0 : index
    %2 = vector.load %arg3[%c0_3, %c0_4] : memref<3x64xbf16, #tpu.memory_space<vmem>>, vector<3x64xbf16>
    %c0_5 = arith.constant 0 : index
    %c0_6 = arith.constant 0 : index
    %3 = vector.load %arg4[%c0_5, %c0_6] : memref<5x64xbf16, #tpu.memory_space<vmem>>, vector<5x64xbf16>
    %c0_7 = arith.constant 0 : index
    %c0_8 = arith.constant 0 : index
    %4 = vector.load %arg5[%c0_7, %c0_8] : memref<1x64xf32, #tpu.memory_space<vmem>>, vector<1x64xf32>
    %5 = arith.truncf %0 : vector<512x3xf32> to vector<512x3xbf16>
    %cst = arith.constant dense<0.000000e+00> : vector<512x64xf32>
    %6 = tpu.matmul %5, %2, %cst {dimension_numbers = #tpu.dot_dimension_numbers<[1], [0], [0], [1], [0, 0, 1, 1], [], []>} : vector<512x3xbf16>, vector<3x64xbf16>, vector<512x64xf32> -> vector<512x64xf32>
    %7 = arith.truncf %1 : vector<512x5xf32> to vector<512x5xbf16>
    %cst_9 = arith.constant dense<0.000000e+00> : vector<512x64xf32>
    %8 = tpu.matmul %7, %3, %cst_9 {dimension_numbers = #tpu.dot_dimension_numbers<[1], [0], [0], [1], [0, 0, 1, 1], [], []>} : vector<512x5xbf16>, vector<5x64xbf16>, vector<512x64xf32> -> vector<512x64xf32>
    %9 = arith.addf %6, %8 : vector<512x64xf32>
    %10 = vector.broadcast %4 : vector<1x64xf32> to vector<512x64xf32>
    %11 = arith.addf %9, %10 : vector<512x64xf32>
    %cst_10 = arith.constant 0.000000e+00 : f32
    %12 = vector.broadcast %cst_10 : f32 to vector<512x64xf32>
    %13 = arith.maximumf %11, %12 : vector<512x64xf32>
    %c0_11 = arith.constant 0 : index
    %c0_12 = arith.constant 0 : index
    %14 = vector.load %arg6[%c0_11, %c0_12] : memref<64x64xbf16, #tpu.memory_space<vmem>>, vector<64x64xbf16>
    %c0_13 = arith.constant 0 : index
    %c0_14 = arith.constant 0 : index
    %15 = vector.load %arg7[%c0_13, %c0_14] : memref<1x64xf32, #tpu.memory_space<vmem>>, vector<1x64xf32>
    %16 = arith.truncf %13 : vector<512x64xf32> to vector<512x64xbf16>
    %cst_15 = arith.constant dense<0.000000e+00> : vector<512x64xf32>
    %17 = tpu.matmul %16, %14, %cst_15 {dimension_numbers = #tpu.dot_dimension_numbers<[1], [0], [0], [1], [0, 0, 1, 1], [], []>} : vector<512x64xbf16>, vector<64x64xbf16>, vector<512x64xf32> -> vector<512x64xf32>
    %18 = vector.broadcast %15 : vector<1x64xf32> to vector<512x64xf32>
    %19 = arith.addf %17, %18 : vector<512x64xf32>
    %cst_16 = arith.constant 0.000000e+00 : f32
    %20 = vector.broadcast %cst_16 : f32 to vector<512x64xf32>
    %21 = arith.maximumf %19, %20 : vector<512x64xf32>
    %c0_17 = arith.constant 0 : index
    %c0_18 = arith.constant 0 : index
    %22 = vector.load %arg8[%c0_17, %c0_18] : memref<64x128xbf16, #tpu.memory_space<vmem>>, vector<64x128xbf16>
    %c0_19 = arith.constant 0 : index
    %c0_20 = arith.constant 0 : index
    %23 = vector.load %arg9[%c0_19, %c0_20] : memref<1x128xf32, #tpu.memory_space<vmem>>, vector<1x128xf32>
    %24 = arith.truncf %21 : vector<512x64xf32> to vector<512x64xbf16>
    %cst_21 = arith.constant dense<0.000000e+00> : vector<512x128xf32>
    %25 = tpu.matmul %24, %22, %cst_21 {dimension_numbers = #tpu.dot_dimension_numbers<[1], [0], [0], [1], [0, 0, 1, 1], [], []>} : vector<512x64xbf16>, vector<64x128xbf16>, vector<512x128xf32> -> vector<512x128xf32>
    %26 = vector.broadcast %23 : vector<1x128xf32> to vector<512x128xf32>
    %27 = arith.addf %25, %26 : vector<512x128xf32>
    %cst_22 = arith.constant 0.000000e+00 : f32
    %28 = vector.broadcast %cst_22 : f32 to vector<512x128xf32>
    %29 = arith.maximumf %27, %28 : vector<512x128xf32>
    %30 = vector.shape_cast %29 : vector<512x128xf32> to vector<64x8x128xf32>
    %cst_23 = arith.constant dense<0xFF800000> : vector<64x128xf32>
    %31 = vector.multi_reduction <maximumf>, %30, %cst_23 [1] : vector<64x8x128xf32> to vector<64x128xf32>
    %32 = arith.truncf %31 : vector<64x128xf32> to vector<64x128xbf16>
    %c0_24 = arith.constant 0 : index
    %c0_25 = arith.constant 0 : index
    %33 = vector.load %arg10[%c0_24, %c0_25] : memref<64x128xbf16, #tpu.memory_space<vmem>>, vector<64x128xbf16>
    tpu.vector_store %arg10[%c0_24, %c0_25], %32 {strides = array<i32>} : memref<64x128xbf16, #tpu.memory_space<vmem>>, vector<64x128xbf16>,
    return
  }
  func.func @transform_0(%arg0: i32) -> (i32, i32) {
    %c0_i32 = arith.constant 0 : i32
    %c0_i32_0 = arith.constant 0 : i32
    return %arg0, %c0_i32 : i32, i32
  }
  func.func @transform_1(%arg0: i32) -> (i32, i32) {
    %c0_i32 = arith.constant 0 : i32
    %c0_i32_0 = arith.constant 0 : i32
    return %arg0, %c0_i32 : i32, i32
  }
  func.func @transform_2(%arg0: i32) -> (i32, i32) {
    %c0_i32 = arith.constant 0 : i32
    %c0_i32_0 = arith.constant 0 : i32
    %c0_i32_1 = arith.constant 0 : i32
    return %c0_i32, %c0_i32_0 : i32, i32
  }
  func.func @transform_3(%arg0: i32) -> (i32, i32) {
    %c0_i32 = arith.constant 0 : i32
    %c0_i32_0 = arith.constant 0 : i32
    %c0_i32_1 = arith.constant 0 : i32
    return %c0_i32, %c0_i32_0 : i32, i32
  }
  func.func @transform_4(%arg0: i32) -> (i32, i32) {
    %c0_i32 = arith.constant 0 : i32
    %c0_i32_0 = arith.constant 0 : i32
    %c0_i32_1 = arith.constant 0 : i32
    return %c0_i32, %c0_i32_0 : i32, i32
  }
  func.func @transform_5(%arg0: i32) -> (i32, i32) {
    %c0_i32 = arith.constant 0 : i32
    %c0_i32_0 = arith.constant 0 : i32
    %c0_i32_1 = arith.constant 0 : i32
    return %c0_i32, %c0_i32_0 : i32, i32
  }
  func.func @transform_6(%arg0: i32) -> (i32, i32) {
    %c0_i32 = arith.constant 0 : i32
    %c0_i32_0 = arith.constant 0 : i32
    %c0_i32_1 = arith.constant 0 : i32
    return %c0_i32, %c0_i32_0 : i32, i32
  }
  func.func @transform_7(%arg0: i32) -> (i32, i32) {
    %c0_i32 = arith.constant 0 : i32
    %c0_i32_0 = arith.constant 0 : i32
    %c0_i32_1 = arith.constant 0 : i32
    return %c0_i32, %c0_i32_0 : i32, i32
  }
  func.func @transform_8(%arg0: i32) -> (i32, i32) {
    %c0_i32 = arith.constant 0 : i32
    %c0_i32_0 = arith.constant 0 : i32
    %c0_i32_1 = arith.constant 0 : i32
    return %c0_i32, %c0_i32_0 : i32, i32
  }
  func.func @transform_9(%arg0: i32) -> (i32, i32) {
    %c0_i32 = arith.constant 0 : i32
    %c0_i32_0 = arith.constant 0 : i32
    return %arg0, %c0_i32 : i32, i32
  }
}

module attributes {stable_mosaic.version = 11 : i64} {
  func.func @_fused_mlp_kernel(%arg0: i32, %arg1: memref<256x3xf32, #tpu.memory_space<vmem>>, %arg2: memref<256x128xbf16, #tpu.memory_space<vmem>>, %arg3: memref<3x64xbf16, #tpu.memory_space<vmem>>, %arg4: memref<128x64xbf16, #tpu.memory_space<vmem>>, %arg5: memref<1x64xf32, #tpu.memory_space<vmem>>, %arg6: memref<64x64xbf16, #tpu.memory_space<vmem>>, %arg7: memref<1x64xf32, #tpu.memory_space<vmem>>, %arg8: memref<64x128xbf16, #tpu.memory_space<vmem>>, %arg9: memref<1x128xf32, #tpu.memory_space<vmem>>, %arg10: memref<32x128xbf16, #tpu.memory_space<vmem>>) attributes {dimension_semantics = [#tpu.dimension_semantics<parallel>], iteration_bounds = array<i64: 1>, scalar_prefetch = 0 : i64, scratch_operands = 0 : i64, tpu.core_type = #tpu.core_type<tc>, window_params = [{transform_indices = @transform_0, window_bounds = array<i64: 256, 3>}, {transform_indices = @transform_1, window_bounds = array<i64: 256, 128>}, {pipeline_mode = #tpu.pipeline_mode<synchronous>, transform_indices = @transform_2, window_bounds = array<i64: 3, 64>}, {pipeline_mode = #tpu.pipeline_mode<synchronous>, transform_indices = @transform_3, window_bounds = array<i64: 128, 64>}, {pipeline_mode = #tpu.pipeline_mode<synchronous>, transform_indices = @transform_4, window_bounds = array<i64: 1, 64>}, {pipeline_mode = #tpu.pipeline_mode<synchronous>, transform_indices = @transform_5, window_bounds = array<i64: 64, 64>}, {pipeline_mode = #tpu.pipeline_mode<synchronous>, transform_indices = @transform_6, window_bounds = array<i64: 1, 64>}, {pipeline_mode = #tpu.pipeline_mode<synchronous>, transform_indices = @transform_7, window_bounds = array<i64: 64, 128>}, {pipeline_mode = #tpu.pipeline_mode<synchronous>, transform_indices = @transform_8, window_bounds = array<i64: 1, 128>}, {transform_indices = @transform_9, window_bounds = array<i64: 32, 128>}]} {
    %c0 = arith.constant 0 : index
    %c0_0 = arith.constant 0 : index
    %0 = vector.load %arg1[%c0, %c0_0] : memref<256x3xf32, #tpu.memory_space<vmem>>, vector<256x3xf32>
    %c0_1 = arith.constant 0 : index
    %c0_2 = arith.constant 0 : index
    %1 = vector.load %arg2[%c0_1, %c0_2] : memref<256x128xbf16, #tpu.memory_space<vmem>>, vector<256x128xbf16>
    %c0_3 = arith.constant 0 : index
    %c0_4 = arith.constant 0 : index
    %2 = vector.load %arg3[%c0_3, %c0_4] : memref<3x64xbf16, #tpu.memory_space<vmem>>, vector<3x64xbf16>
    %c0_5 = arith.constant 0 : index
    %c0_6 = arith.constant 0 : index
    %3 = vector.load %arg4[%c0_5, %c0_6] : memref<128x64xbf16, #tpu.memory_space<vmem>>, vector<128x64xbf16>
    %c0_7 = arith.constant 0 : index
    %c0_8 = arith.constant 0 : index
    %4 = vector.load %arg5[%c0_7, %c0_8] : memref<1x64xf32, #tpu.memory_space<vmem>>, vector<1x64xf32>
    %5 = arith.truncf %0 : vector<256x3xf32> to vector<256x3xbf16>
    %cst = arith.constant dense<0.000000e+00> : vector<256x64xf32>
    %6 = tpu.matmul %5, %2, %cst {dimension_numbers = #tpu.dot_dimension_numbers<[1], [0], [0], [1], [0, 0, 1, 1], [], []>} : vector<256x3xbf16>, vector<3x64xbf16>, vector<256x64xf32> -> vector<256x64xf32>
    %cst_9 = arith.constant dense<0.000000e+00> : vector<256x64xf32>
    %7 = tpu.matmul %1, %3, %cst_9 {dimension_numbers = #tpu.dot_dimension_numbers<[1], [0], [0], [1], [0, 0, 1, 1], [], []>} : vector<256x128xbf16>, vector<128x64xbf16>, vector<256x64xf32> -> vector<256x64xf32>
    %8 = arith.addf %6, %7 : vector<256x64xf32>
    %9 = vector.broadcast %4 : vector<1x64xf32> to vector<256x64xf32>
    %10 = arith.addf %8, %9 : vector<256x64xf32>
    %cst_10 = arith.constant 0.000000e+00 : f32
    %11 = vector.broadcast %cst_10 : f32 to vector<256x64xf32>
    %12 = arith.maximumf %10, %11 : vector<256x64xf32>
    %c0_11 = arith.constant 0 : index
    %c0_12 = arith.constant 0 : index
    %13 = vector.load %arg6[%c0_11, %c0_12] : memref<64x64xbf16, #tpu.memory_space<vmem>>, vector<64x64xbf16>
    %c0_13 = arith.constant 0 : index
    %c0_14 = arith.constant 0 : index
    %14 = vector.load %arg7[%c0_13, %c0_14] : memref<1x64xf32, #tpu.memory_space<vmem>>, vector<1x64xf32>
    %15 = arith.truncf %12 : vector<256x64xf32> to vector<256x64xbf16>
    %cst_15 = arith.constant dense<0.000000e+00> : vector<256x64xf32>
    %16 = tpu.matmul %15, %13, %cst_15 {dimension_numbers = #tpu.dot_dimension_numbers<[1], [0], [0], [1], [0, 0, 1, 1], [], []>} : vector<256x64xbf16>, vector<64x64xbf16>, vector<256x64xf32> -> vector<256x64xf32>
    %17 = vector.broadcast %14 : vector<1x64xf32> to vector<256x64xf32>
    %18 = arith.addf %16, %17 : vector<256x64xf32>
    %cst_16 = arith.constant 0.000000e+00 : f32
    %19 = vector.broadcast %cst_16 : f32 to vector<256x64xf32>
    %20 = arith.maximumf %18, %19 : vector<256x64xf32>
    %c0_17 = arith.constant 0 : index
    %c0_18 = arith.constant 0 : index
    %21 = vector.load %arg8[%c0_17, %c0_18] : memref<64x128xbf16, #tpu.memory_space<vmem>>, vector<64x128xbf16>
    %c0_19 = arith.constant 0 : index
    %c0_20 = arith.constant 0 : index
    %22 = vector.load %arg9[%c0_19, %c0_20] : memref<1x128xf32, #tpu.memory_space<vmem>>, vector<1x128xf32>
    %23 = arith.truncf %20 : vector<256x64xf32> to vector<256x64xbf16>
    %cst_21 = arith.constant dense<0.000000e+00> : vector<256x128xf32>
    %24 = tpu.matmul %23, %21, %cst_21 {dimension_numbers = #tpu.dot_dimension_numbers<[1], [0], [0], [1], [0, 0, 1, 1], [], []>} : vector<256x64xbf16>, vector<64x128xbf16>, vector<256x128xf32> -> vector<256x128xf32>
    %25 = vector.broadcast %22 : vector<1x128xf32> to vector<256x128xf32>
    %26 = arith.addf %24, %25 : vector<256x128xf32>
    %cst_22 = arith.constant 0.000000e+00 : f32
    %27 = vector.broadcast %cst_22 : f32 to vector<256x128xf32>
    %28 = arith.maximumf %26, %27 : vector<256x128xf32>
    %29 = vector.shape_cast %28 : vector<256x128xf32> to vector<32x8x128xf32>
    %cst_23 = arith.constant dense<0xFF800000> : vector<32x128xf32>
    %30 = vector.multi_reduction <maximumf>, %29, %cst_23 [1] : vector<32x8x128xf32> to vector<32x128xf32>
    %31 = arith.truncf %30 : vector<32x128xf32> to vector<32x128xbf16>
    %c0_24 = arith.constant 0 : index
    %c0_25 = arith.constant 0 : index
    %32 = vector.load %arg10[%c0_24, %c0_25] : memref<32x128xbf16, #tpu.memory_space<vmem>>, vector<32x128xbf16>
    tpu.vector_store %arg10[%c0_24, %c0_25], %31 {strides = array<i32>} : memref<32x128xbf16, #tpu.memory_space<vmem>>, vector<32x128xbf16>,
    return
  }
  func.func @transform_0(%arg0: i32) -> (i32, i32) {
    %c0_i32 = arith.constant 0 : i32
    %c0_i32_0 = arith.constant 0 : i32
    return %arg0, %c0_i32 : i32, i32
  }
  func.func @transform_1(%arg0: i32) -> (i32, i32) {
    %c0_i32 = arith.constant 0 : i32
    %c0_i32_0 = arith.constant 0 : i32
    return %arg0, %c0_i32 : i32, i32
  }
  func.func @transform_2(%arg0: i32) -> (i32, i32) {
    %c0_i32 = arith.constant 0 : i32
    %c0_i32_0 = arith.constant 0 : i32
    %c0_i32_1 = arith.constant 0 : i32
    return %c0_i32, %c0_i32_0 : i32, i32
  }
  func.func @transform_3(%arg0: i32) -> (i32, i32) {
    %c0_i32 = arith.constant 0 : i32
    %c0_i32_0 = arith.constant 0 : i32
    %c0_i32_1 = arith.constant 0 : i32
    return %c0_i32, %c0_i32_0 : i32, i32
  }
  func.func @transform_4(%arg0: i32) -> (i32, i32) {
    %c0_i32 = arith.constant 0 : i32
    %c0_i32_0 = arith.constant 0 : i32
    %c0_i32_1 = arith.constant 0 : i32
    return %c0_i32, %c0_i32_0 : i32, i32
  }
  func.func @transform_5(%arg0: i32) -> (i32, i32) {
    %c0_i32 = arith.constant 0 : i32
    %c0_i32_0 = arith.constant 0 : i32
    %c0_i32_1 = arith.constant 0 : i32
    return %c0_i32, %c0_i32_0 : i32, i32
  }
  func.func @transform_6(%arg0: i32) -> (i32, i32) {
    %c0_i32 = arith.constant 0 : i32
    %c0_i32_0 = arith.constant 0 : i32
    %c0_i32_1 = arith.constant 0 : i32
    return %c0_i32, %c0_i32_0 : i32, i32
  }
  func.func @transform_7(%arg0: i32) -> (i32, i32) {
    %c0_i32 = arith.constant 0 : i32
    %c0_i32_0 = arith.constant 0 : i32
    %c0_i32_1 = arith.constant 0 : i32
    return %c0_i32, %c0_i32_0 : i32, i32
  }
  func.func @transform_8(%arg0: i32) -> (i32, i32) {
    %c0_i32 = arith.constant 0 : i32
    %c0_i32_0 = arith.constant 0 : i32
    %c0_i32_1 = arith.constant 0 : i32
    return %c0_i32, %c0_i32_0 : i32, i32
  }
  func.func @transform_9(%arg0: i32) -> (i32, i32) {
    %c0_i32 = arith.constant 0 : i32
    %c0_i32_0 = arith.constant 0 : i32
    return %arg0, %c0_i32 : i32, i32
  }
}

module attributes {stable_mosaic.version = 11 : i64} {
  func.func @_fused_mlp_kernel(%arg0: i32, %arg1: memref<128x3xf32, #tpu.memory_space<vmem>>, %arg2: memref<128x128xbf16, #tpu.memory_space<vmem>>, %arg3: memref<3x128xbf16, #tpu.memory_space<vmem>>, %arg4: memref<128x128xbf16, #tpu.memory_space<vmem>>, %arg5: memref<1x128xf32, #tpu.memory_space<vmem>>, %arg6: memref<128x128xbf16, #tpu.memory_space<vmem>>, %arg7: memref<1x128xf32, #tpu.memory_space<vmem>>, %arg8: memref<128x256xbf16, #tpu.memory_space<vmem>>, %arg9: memref<1x256xf32, #tpu.memory_space<vmem>>, %arg10: memref<16x256xbf16, #tpu.memory_space<vmem>>) attributes {dimension_semantics = [#tpu.dimension_semantics<parallel>], iteration_bounds = array<i64: 1>, scalar_prefetch = 0 : i64, scratch_operands = 0 : i64, tpu.core_type = #tpu.core_type<tc>, window_params = [{transform_indices = @transform_0, window_bounds = array<i64: 128, 3>}, {transform_indices = @transform_1, window_bounds = array<i64: 128, 128>}, {pipeline_mode = #tpu.pipeline_mode<synchronous>, transform_indices = @transform_2, window_bounds = array<i64: 3, 128>}, {pipeline_mode = #tpu.pipeline_mode<synchronous>, transform_indices = @transform_3, window_bounds = array<i64: 128, 128>}, {pipeline_mode = #tpu.pipeline_mode<synchronous>, transform_indices = @transform_4, window_bounds = array<i64: 1, 128>}, {pipeline_mode = #tpu.pipeline_mode<synchronous>, transform_indices = @transform_5, window_bounds = array<i64: 128, 128>}, {pipeline_mode = #tpu.pipeline_mode<synchronous>, transform_indices = @transform_6, window_bounds = array<i64: 1, 128>}, {pipeline_mode = #tpu.pipeline_mode<synchronous>, transform_indices = @transform_7, window_bounds = array<i64: 128, 256>}, {pipeline_mode = #tpu.pipeline_mode<synchronous>, transform_indices = @transform_8, window_bounds = array<i64: 1, 256>}, {transform_indices = @transform_9, window_bounds = array<i64: 16, 256>}]} {
    %c0 = arith.constant 0 : index
    %c0_0 = arith.constant 0 : index
    %0 = vector.load %arg1[%c0, %c0_0] : memref<128x3xf32, #tpu.memory_space<vmem>>, vector<128x3xf32>
    %c0_1 = arith.constant 0 : index
    %c0_2 = arith.constant 0 : index
    %1 = vector.load %arg2[%c0_1, %c0_2] : memref<128x128xbf16, #tpu.memory_space<vmem>>, vector<128x128xbf16>
    %c0_3 = arith.constant 0 : index
    %c0_4 = arith.constant 0 : index
    %2 = vector.load %arg3[%c0_3, %c0_4] : memref<3x128xbf16, #tpu.memory_space<vmem>>, vector<3x128xbf16>
    %c0_5 = arith.constant 0 : index
    %c0_6 = arith.constant 0 : index
    %3 = vector.load %arg4[%c0_5, %c0_6] : memref<128x128xbf16, #tpu.memory_space<vmem>>, vector<128x128xbf16>
    %c0_7 = arith.constant 0 : index
    %c0_8 = arith.constant 0 : index
    %4 = vector.load %arg5[%c0_7, %c0_8] : memref<1x128xf32, #tpu.memory_space<vmem>>, vector<1x128xf32>
    %5 = arith.truncf %0 : vector<128x3xf32> to vector<128x3xbf16>
    %cst = arith.constant dense<0.000000e+00> : vector<128x128xf32>
    %6 = tpu.matmul %5, %2, %cst {dimension_numbers = #tpu.dot_dimension_numbers<[1], [0], [0], [1], [0, 0, 1, 1], [], []>} : vector<128x3xbf16>, vector<3x128xbf16>, vector<128x128xf32> -> vector<128x128xf32>
    %cst_9 = arith.constant dense<0.000000e+00> : vector<128x128xf32>
    %7 = tpu.matmul %1, %3, %cst_9 {dimension_numbers = #tpu.dot_dimension_numbers<[1], [0], [0], [1], [0, 0, 1, 1], [], []>} : vector<128x128xbf16>, vector<128x128xbf16>, vector<128x128xf32> -> vector<128x128xf32>
    %8 = arith.addf %6, %7 : vector<128x128xf32>
    %9 = vector.broadcast %4 : vector<1x128xf32> to vector<128x128xf32>
    %10 = arith.addf %8, %9 : vector<128x128xf32>
    %cst_10 = arith.constant 0.000000e+00 : f32
    %11 = vector.broadcast %cst_10 : f32 to vector<128x128xf32>
    %12 = arith.maximumf %10, %11 : vector<128x128xf32>
    %c0_11 = arith.constant 0 : index
    %c0_12 = arith.constant 0 : index
    %13 = vector.load %arg6[%c0_11, %c0_12] : memref<128x128xbf16, #tpu.memory_space<vmem>>, vector<128x128xbf16>
    %c0_13 = arith.constant 0 : index
    %c0_14 = arith.constant 0 : index
    %14 = vector.load %arg7[%c0_13, %c0_14] : memref<1x128xf32, #tpu.memory_space<vmem>>, vector<1x128xf32>
    %15 = arith.truncf %12 : vector<128x128xf32> to vector<128x128xbf16>
    %cst_15 = arith.constant dense<0.000000e+00> : vector<128x128xf32>
    %16 = tpu.matmul %15, %13, %cst_15 {dimension_numbers = #tpu.dot_dimension_numbers<[1], [0], [0], [1], [0, 0, 1, 1], [], []>} : vector<128x128xbf16>, vector<128x128xbf16>, vector<128x128xf32> -> vector<128x128xf32>
    %17 = vector.broadcast %14 : vector<1x128xf32> to vector<128x128xf32>
    %18 = arith.addf %16, %17 : vector<128x128xf32>
    %cst_16 = arith.constant 0.000000e+00 : f32
    %19 = vector.broadcast %cst_16 : f32 to vector<128x128xf32>
    %20 = arith.maximumf %18, %19 : vector<128x128xf32>
    %c0_17 = arith.constant 0 : index
    %c0_18 = arith.constant 0 : index
    %21 = vector.load %arg8[%c0_17, %c0_18] : memref<128x256xbf16, #tpu.memory_space<vmem>>, vector<128x256xbf16>
    %c0_19 = arith.constant 0 : index
    %c0_20 = arith.constant 0 : index
    %22 = vector.load %arg9[%c0_19, %c0_20] : memref<1x256xf32, #tpu.memory_space<vmem>>, vector<1x256xf32>
    %23 = arith.truncf %20 : vector<128x128xf32> to vector<128x128xbf16>
    %cst_21 = arith.constant dense<0.000000e+00> : vector<128x256xf32>
    %24 = tpu.matmul %23, %21, %cst_21 {dimension_numbers = #tpu.dot_dimension_numbers<[1], [0], [0], [1], [0, 0, 1, 1], [], []>} : vector<128x128xbf16>, vector<128x256xbf16>, vector<128x256xf32> -> vector<128x256xf32>
    %25 = vector.broadcast %22 : vector<1x256xf32> to vector<128x256xf32>
    %26 = arith.addf %24, %25 : vector<128x256xf32>
    %cst_22 = arith.constant 0.000000e+00 : f32
    %27 = vector.broadcast %cst_22 : f32 to vector<128x256xf32>
    %28 = arith.maximumf %26, %27 : vector<128x256xf32>
    %29 = vector.shape_cast %28 : vector<128x256xf32> to vector<16x8x256xf32>
    %cst_23 = arith.constant dense<0xFF800000> : vector<16x256xf32>
    %30 = vector.multi_reduction <maximumf>, %29, %cst_23 [1] : vector<16x8x256xf32> to vector<16x256xf32>
    %31 = arith.truncf %30 : vector<16x256xf32> to vector<16x256xbf16>
    %c0_24 = arith.constant 0 : index
    %c0_25 = arith.constant 0 : index
    %32 = vector.load %arg10[%c0_24, %c0_25] : memref<16x256xbf16, #tpu.memory_space<vmem>>, vector<16x256xbf16>
    tpu.vector_store %arg10[%c0_24, %c0_25], %31 {strides = array<i32>} : memref<16x256xbf16, #tpu.memory_space<vmem>>, vector<16x256xbf16>,
    return
  }
  func.func @transform_0(%arg0: i32) -> (i32, i32) {
    %c0_i32 = arith.constant 0 : i32
    %c0_i32_0 = arith.constant 0 : i32
    return %arg0, %c0_i32 : i32, i32
  }
  func.func @transform_1(%arg0: i32) -> (i32, i32) {
    %c0_i32 = arith.constant 0 : i32
    %c0_i32_0 = arith.constant 0 : i32
    return %arg0, %c0_i32 : i32, i32
  }
  func.func @transform_2(%arg0: i32) -> (i32, i32) {
    %c0_i32 = arith.constant 0 : i32
    %c0_i32_0 = arith.constant 0 : i32
    %c0_i32_1 = arith.constant 0 : i32
    return %c0_i32, %c0_i32_0 : i32, i32
  }
  func.func @transform_3(%arg0: i32) -> (i32, i32) {
    %c0_i32 = arith.constant 0 : i32
    %c0_i32_0 = arith.constant 0 : i32
    %c0_i32_1 = arith.constant 0 : i32
    return %c0_i32, %c0_i32_0 : i32, i32
  }
  func.func @transform_4(%arg0: i32) -> (i32, i32) {
    %c0_i32 = arith.constant 0 : i32
    %c0_i32_0 = arith.constant 0 : i32
    %c0_i32_1 = arith.constant 0 : i32
    return %c0_i32, %c0_i32_0 : i32, i32
  }
  func.func @transform_5(%arg0: i32) -> (i32, i32) {
    %c0_i32 = arith.constant 0 : i32
    %c0_i32_0 = arith.constant 0 : i32
    %c0_i32_1 = arith.constant 0 : i32
    return %c0_i32, %c0_i32_0 : i32, i32
  }
  func.func @transform_6(%arg0: i32) -> (i32, i32) {
    %c0_i32 = arith.constant 0 : i32
    %c0_i32_0 = arith.constant 0 : i32
    %c0_i32_1 = arith.constant 0 : i32
    return %c0_i32, %c0_i32_0 : i32, i32
  }
  func.func @transform_7(%arg0: i32) -> (i32, i32) {
    %c0_i32 = arith.constant 0 : i32
    %c0_i32_0 = arith.constant 0 : i32
    %c0_i32_1 = arith.constant 0 : i32
    return %c0_i32, %c0_i32_0 : i32, i32
  }
  func.func @transform_8(%arg0: i32) -> (i32, i32) {
    %c0_i32 = arith.constant 0 : i32
    %c0_i32_0 = arith.constant 0 : i32
    %c0_i32_1 = arith.constant 0 : i32
    return %c0_i32, %c0_i32_0 : i32, i32
  }
  func.func @transform_9(%arg0: i32) -> (i32, i32) {
    %c0_i32 = arith.constant 0 : i32
    %c0_i32_0 = arith.constant 0 : i32
    return %arg0, %c0_i32 : i32, i32
  }
}

module attributes {stable_mosaic.version = 11 : i64} {
  func.func @_fused_mlp_kernel(%arg0: i32, %arg1: memref<64x3xf32, #tpu.memory_space<vmem>>, %arg2: memref<64x256xbf16, #tpu.memory_space<vmem>>, %arg3: memref<3x128xbf16, #tpu.memory_space<vmem>>, %arg4: memref<256x128xbf16, #tpu.memory_space<vmem>>, %arg5: memref<1x128xf32, #tpu.memory_space<vmem>>, %arg6: memref<128x128xbf16, #tpu.memory_space<vmem>>, %arg7: memref<1x128xf32, #tpu.memory_space<vmem>>, %arg8: memref<128x256xbf16, #tpu.memory_space<vmem>>, %arg9: memref<1x256xf32, #tpu.memory_space<vmem>>, %arg10: memref<8x256xbf16, #tpu.memory_space<vmem>>) attributes {dimension_semantics = [#tpu.dimension_semantics<parallel>], iteration_bounds = array<i64: 1>, scalar_prefetch = 0 : i64, scratch_operands = 0 : i64, tpu.core_type = #tpu.core_type<tc>, window_params = [{transform_indices = @transform_0, window_bounds = array<i64: 64, 3>}, {transform_indices = @transform_1, window_bounds = array<i64: 64, 256>}, {pipeline_mode = #tpu.pipeline_mode<synchronous>, transform_indices = @transform_2, window_bounds = array<i64: 3, 128>}, {pipeline_mode = #tpu.pipeline_mode<synchronous>, transform_indices = @transform_3, window_bounds = array<i64: 256, 128>}, {pipeline_mode = #tpu.pipeline_mode<synchronous>, transform_indices = @transform_4, window_bounds = array<i64: 1, 128>}, {pipeline_mode = #tpu.pipeline_mode<synchronous>, transform_indices = @transform_5, window_bounds = array<i64: 128, 128>}, {pipeline_mode = #tpu.pipeline_mode<synchronous>, transform_indices = @transform_6, window_bounds = array<i64: 1, 128>}, {pipeline_mode = #tpu.pipeline_mode<synchronous>, transform_indices = @transform_7, window_bounds = array<i64: 128, 256>}, {pipeline_mode = #tpu.pipeline_mode<synchronous>, transform_indices = @transform_8, window_bounds = array<i64: 1, 256>}, {transform_indices = @transform_9, window_bounds = array<i64: 8, 256>}]} {
    %c0 = arith.constant 0 : index
    %c0_0 = arith.constant 0 : index
    %0 = vector.load %arg1[%c0, %c0_0] : memref<64x3xf32, #tpu.memory_space<vmem>>, vector<64x3xf32>
    %c0_1 = arith.constant 0 : index
    %c0_2 = arith.constant 0 : index
    %1 = vector.load %arg2[%c0_1, %c0_2] : memref<64x256xbf16, #tpu.memory_space<vmem>>, vector<64x256xbf16>
    %c0_3 = arith.constant 0 : index
    %c0_4 = arith.constant 0 : index
    %2 = vector.load %arg3[%c0_3, %c0_4] : memref<3x128xbf16, #tpu.memory_space<vmem>>, vector<3x128xbf16>
    %c0_5 = arith.constant 0 : index
    %c0_6 = arith.constant 0 : index
    %3 = vector.load %arg4[%c0_5, %c0_6] : memref<256x128xbf16, #tpu.memory_space<vmem>>, vector<256x128xbf16>
    %c0_7 = arith.constant 0 : index
    %c0_8 = arith.constant 0 : index
    %4 = vector.load %arg5[%c0_7, %c0_8] : memref<1x128xf32, #tpu.memory_space<vmem>>, vector<1x128xf32>
    %5 = arith.truncf %0 : vector<64x3xf32> to vector<64x3xbf16>
    %cst = arith.constant dense<0.000000e+00> : vector<64x128xf32>
    %6 = tpu.matmul %5, %2, %cst {dimension_numbers = #tpu.dot_dimension_numbers<[1], [0], [0], [1], [0, 0, 1, 1], [], []>} : vector<64x3xbf16>, vector<3x128xbf16>, vector<64x128xf32> -> vector<64x128xf32>
    %cst_9 = arith.constant dense<0.000000e+00> : vector<64x128xf32>
    %7 = tpu.matmul %1, %3, %cst_9 {dimension_numbers = #tpu.dot_dimension_numbers<[1], [0], [0], [1], [0, 0, 1, 1], [], []>} : vector<64x256xbf16>, vector<256x128xbf16>, vector<64x128xf32> -> vector<64x128xf32>
    %8 = arith.addf %6, %7 : vector<64x128xf32>
    %9 = vector.broadcast %4 : vector<1x128xf32> to vector<64x128xf32>
    %10 = arith.addf %8, %9 : vector<64x128xf32>
    %cst_10 = arith.constant 0.000000e+00 : f32
    %11 = vector.broadcast %cst_10 : f32 to vector<64x128xf32>
    %12 = arith.maximumf %10, %11 : vector<64x128xf32>
    %c0_11 = arith.constant 0 : index
    %c0_12 = arith.constant 0 : index
    %13 = vector.load %arg6[%c0_11, %c0_12] : memref<128x128xbf16, #tpu.memory_space<vmem>>, vector<128x128xbf16>
    %c0_13 = arith.constant 0 : index
    %c0_14 = arith.constant 0 : index
    %14 = vector.load %arg7[%c0_13, %c0_14] : memref<1x128xf32, #tpu.memory_space<vmem>>, vector<1x128xf32>
    %15 = arith.truncf %12 : vector<64x128xf32> to vector<64x128xbf16>
    %cst_15 = arith.constant dense<0.000000e+00> : vector<64x128xf32>
    %16 = tpu.matmul %15, %13, %cst_15 {dimension_numbers = #tpu.dot_dimension_numbers<[1], [0], [0], [1], [0, 0, 1, 1], [], []>} : vector<64x128xbf16>, vector<128x128xbf16>, vector<64x128xf32> -> vector<64x128xf32>
    %17 = vector.broadcast %14 : vector<1x128xf32> to vector<64x128xf32>
    %18 = arith.addf %16, %17 : vector<64x128xf32>
    %cst_16 = arith.constant 0.000000e+00 : f32
    %19 = vector.broadcast %cst_16 : f32 to vector<64x128xf32>
    %20 = arith.maximumf %18, %19 : vector<64x128xf32>
    %c0_17 = arith.constant 0 : index
    %c0_18 = arith.constant 0 : index
    %21 = vector.load %arg8[%c0_17, %c0_18] : memref<128x256xbf16, #tpu.memory_space<vmem>>, vector<128x256xbf16>
    %c0_19 = arith.constant 0 : index
    %c0_20 = arith.constant 0 : index
    %22 = vector.load %arg9[%c0_19, %c0_20] : memref<1x256xf32, #tpu.memory_space<vmem>>, vector<1x256xf32>
    %23 = arith.truncf %20 : vector<64x128xf32> to vector<64x128xbf16>
    %cst_21 = arith.constant dense<0.000000e+00> : vector<64x256xf32>
    %24 = tpu.matmul %23, %21, %cst_21 {dimension_numbers = #tpu.dot_dimension_numbers<[1], [0], [0], [1], [0, 0, 1, 1], [], []>} : vector<64x128xbf16>, vector<128x256xbf16>, vector<64x256xf32> -> vector<64x256xf32>
    %25 = vector.broadcast %22 : vector<1x256xf32> to vector<64x256xf32>
    %26 = arith.addf %24, %25 : vector<64x256xf32>
    %cst_22 = arith.constant 0.000000e+00 : f32
    %27 = vector.broadcast %cst_22 : f32 to vector<64x256xf32>
    %28 = arith.maximumf %26, %27 : vector<64x256xf32>
    %29 = vector.shape_cast %28 : vector<64x256xf32> to vector<8x8x256xf32>
    %cst_23 = arith.constant dense<0xFF800000> : vector<8x256xf32>
    %30 = vector.multi_reduction <maximumf>, %29, %cst_23 [1] : vector<8x8x256xf32> to vector<8x256xf32>
    %31 = arith.truncf %30 : vector<8x256xf32> to vector<8x256xbf16>
    %c0_24 = arith.constant 0 : index
    %c0_25 = arith.constant 0 : index
    %32 = vector.load %arg10[%c0_24, %c0_25] : memref<8x256xbf16, #tpu.memory_space<vmem>>, vector<8x256xbf16>
    tpu.vector_store %arg10[%c0_24, %c0_25], %31 {strides = array<i32>} : memref<8x256xbf16, #tpu.memory_space<vmem>>, vector<8x256xbf16>,
    return
  }
  func.func @transform_0(%arg0: i32) -> (i32, i32) {
    %c0_i32 = arith.constant 0 : i32
    %c0_i32_0 = arith.constant 0 : i32
    return %arg0, %c0_i32 : i32, i32
  }
  func.func @transform_1(%arg0: i32) -> (i32, i32) {
    %c0_i32 = arith.constant 0 : i32
    %c0_i32_0 = arith.constant 0 : i32
    return %arg0, %c0_i32 : i32, i32
  }
  func.func @transform_2(%arg0: i32) -> (i32, i32) {
    %c0_i32 = arith.constant 0 : i32
    %c0_i32_0 = arith.constant 0 : i32
    %c0_i32_1 = arith.constant 0 : i32
    return %c0_i32, %c0_i32_0 : i32, i32
  }
  func.func @transform_3(%arg0: i32) -> (i32, i32) {
    %c0_i32 = arith.constant 0 : i32
    %c0_i32_0 = arith.constant 0 : i32
    %c0_i32_1 = arith.constant 0 : i32
    return %c0_i32, %c0_i32_0 : i32, i32
  }
  func.func @transform_4(%arg0: i32) -> (i32, i32) {
    %c0_i32 = arith.constant 0 : i32
    %c0_i32_0 = arith.constant 0 : i32
    %c0_i32_1 = arith.constant 0 : i32
    return %c0_i32, %c0_i32_0 : i32, i32
  }
  func.func @transform_5(%arg0: i32) -> (i32, i32) {
    %c0_i32 = arith.constant 0 : i32
    %c0_i32_0 = arith.constant 0 : i32
    %c0_i32_1 = arith.constant 0 : i32
    return %c0_i32, %c0_i32_0 : i32, i32
  }
  func.func @transform_6(%arg0: i32) -> (i32, i32) {
    %c0_i32 = arith.constant 0 : i32
    %c0_i32_0 = arith.constant 0 : i32
    %c0_i32_1 = arith.constant 0 : i32
    return %c0_i32, %c0_i32_0 : i32, i32
  }
  func.func @transform_7(%arg0: i32) -> (i32, i32) {
    %c0_i32 = arith.constant 0 : i32
    %c0_i32_0 = arith.constant 0 : i32
    %c0_i32_1 = arith.constant 0 : i32
    return %c0_i32, %c0_i32_0 : i32, i32
  }
  func.func @transform_8(%arg0: i32) -> (i32, i32) {
    %c0_i32 = arith.constant 0 : i32
    %c0_i32_0 = arith.constant 0 : i32
    %c0_i32_1 = arith.constant 0 : i32
    return %c0_i32, %c0_i32_0 : i32, i32
  }
  func.func @transform_9(%arg0: i32) -> (i32, i32) {
    %c0_i32 = arith.constant 0 : i32
    %c0_i32_0 = arith.constant 0 : i32
    return %arg0, %c0_i32 : i32, i32
  }
}

module attributes {stable_mosaic.version = 11 : i64} {
  func.func @_fused_mlp_kernel(%arg0: i32, %arg1: memref<16x256xbf16, #tpu.memory_space<vmem>>, %arg2: memref<16x256xbf16, #tpu.memory_space<vmem>>, %arg3: memref<256x256xbf16, #tpu.memory_space<vmem>>, %arg4: memref<256x256xbf16, #tpu.memory_space<vmem>>, %arg5: memref<1x256xf32, #tpu.memory_space<vmem>>, %arg6: memref<256x256xbf16, #tpu.memory_space<vmem>>, %arg7: memref<1x256xf32, #tpu.memory_space<vmem>>, %arg8: memref<16x256xbf16, #tpu.memory_space<vmem>>) attributes {dimension_semantics = [#tpu.dimension_semantics<parallel>], iteration_bounds = array<i64: 1>, scalar_prefetch = 0 : i64, scratch_operands = 0 : i64, tpu.core_type = #tpu.core_type<tc>, window_params = [{transform_indices = @transform_0, window_bounds = array<i64: 16, 256>}, {transform_indices = @transform_1, window_bounds = array<i64: 16, 256>}, {pipeline_mode = #tpu.pipeline_mode<synchronous>, transform_indices = @transform_2, window_bounds = array<i64: 256, 256>}, {pipeline_mode = #tpu.pipeline_mode<synchronous>, transform_indices = @transform_3, window_bounds = array<i64: 256, 256>}, {pipeline_mode = #tpu.pipeline_mode<synchronous>, transform_indices = @transform_4, window_bounds = array<i64: 1, 256>}, {pipeline_mode = #tpu.pipeline_mode<synchronous>, transform_indices = @transform_5, window_bounds = array<i64: 256, 256>}, {pipeline_mode = #tpu.pipeline_mode<synchronous>, transform_indices = @transform_6, window_bounds = array<i64: 1, 256>}, {transform_indices = @transform_7, window_bounds = array<i64: 16, 256>}]} {
    %c0 = arith.constant 0 : index
    %c0_0 = arith.constant 0 : index
    %0 = vector.load %arg1[%c0, %c0_0] : memref<16x256xbf16, #tpu.memory_space<vmem>>, vector<16x256xbf16>
    %c0_1 = arith.constant 0 : index
    %c0_2 = arith.constant 0 : index
    %1 = vector.load %arg2[%c0_1, %c0_2] : memref<16x256xbf16, #tpu.memory_space<vmem>>, vector<16x256xbf16>
    %c0_3 = arith.constant 0 : index
    %c0_4 = arith.constant 0 : index
    %2 = vector.load %arg3[%c0_3, %c0_4] : memref<256x256xbf16, #tpu.memory_space<vmem>>, vector<256x256xbf16>
    %c0_5 = arith.constant 0 : index
    %c0_6 = arith.constant 0 : index
    %3 = vector.load %arg4[%c0_5, %c0_6] : memref<256x256xbf16, #tpu.memory_space<vmem>>, vector<256x256xbf16>
    %c0_7 = arith.constant 0 : index
    %c0_8 = arith.constant 0 : index
    %4 = vector.load %arg5[%c0_7, %c0_8] : memref<1x256xf32, #tpu.memory_space<vmem>>, vector<1x256xf32>
    %cst = arith.constant dense<0.000000e+00> : vector<16x256xf32>
    %5 = tpu.matmul %0, %2, %cst {dimension_numbers = #tpu.dot_dimension_numbers<[1], [0], [0], [1], [0, 0, 1, 1], [], []>} : vector<16x256xbf16>, vector<256x256xbf16>, vector<16x256xf32> -> vector<16x256xf32>
    %cst_9 = arith.constant dense<0.000000e+00> : vector<16x256xf32>
    %6 = tpu.matmul %1, %3, %cst_9 {dimension_numbers = #tpu.dot_dimension_numbers<[1], [0], [0], [1], [0, 0, 1, 1], [], []>} : vector<16x256xbf16>, vector<256x256xbf16>, vector<16x256xf32> -> vector<16x256xf32>
    %7 = arith.addf %5, %6 : vector<16x256xf32>
    %8 = vector.broadcast %4 : vector<1x256xf32> to vector<16x256xf32>
    %9 = arith.addf %7, %8 : vector<16x256xf32>
    %cst_10 = arith.constant 0.000000e+00 : f32
    %10 = vector.broadcast %cst_10 : f32 to vector<16x256xf32>
    %11 = arith.maximumf %9, %10 : vector<16x256xf32>
    %c0_11 = arith.constant 0 : index
    %c0_12 = arith.constant 0 : index
    %12 = vector.load %arg6[%c0_11, %c0_12] : memref<256x256xbf16, #tpu.memory_space<vmem>>, vector<256x256xbf16>
    %c0_13 = arith.constant 0 : index
    %c0_14 = arith.constant 0 : index
    %13 = vector.load %arg7[%c0_13, %c0_14] : memref<1x256xf32, #tpu.memory_space<vmem>>, vector<1x256xf32>
    %14 = arith.truncf %11 : vector<16x256xf32> to vector<16x256xbf16>
    %cst_15 = arith.constant dense<0.000000e+00> : vector<16x256xf32>
    %15 = tpu.matmul %14, %12, %cst_15 {dimension_numbers = #tpu.dot_dimension_numbers<[1], [0], [0], [1], [0, 0, 1, 1], [], []>} : vector<16x256xbf16>, vector<256x256xbf16>, vector<16x256xf32> -> vector<16x256xf32>
    %16 = vector.broadcast %13 : vector<1x256xf32> to vector<16x256xf32>
    %17 = arith.addf %15, %16 : vector<16x256xf32>
    %cst_16 = arith.constant 0.000000e+00 : f32
    %18 = vector.broadcast %cst_16 : f32 to vector<16x256xf32>
    %19 = arith.maximumf %17, %18 : vector<16x256xf32>
    %20 = arith.truncf %19 : vector<16x256xf32> to vector<16x256xbf16>
    %c0_17 = arith.constant 0 : index
    %c0_18 = arith.constant 0 : index
    %21 = vector.load %arg8[%c0_17, %c0_18] : memref<16x256xbf16, #tpu.memory_space<vmem>>, vector<16x256xbf16>
    tpu.vector_store %arg8[%c0_17, %c0_18], %20 {strides = array<i32>} : memref<16x256xbf16, #tpu.memory_space<vmem>>, vector<16x256xbf16>,
    return
  }
  func.func @transform_0(%arg0: i32) -> (i32, i32) {
    %c0_i32 = arith.constant 0 : i32
    %c0_i32_0 = arith.constant 0 : i32
    return %arg0, %c0_i32 : i32, i32
  }
  func.func @transform_1(%arg0: i32) -> (i32, i32) {
    %c0_i32 = arith.constant 0 : i32
    %c0_i32_0 = arith.constant 0 : i32
    return %arg0, %c0_i32 : i32, i32
  }
  func.func @transform_2(%arg0: i32) -> (i32, i32) {
    %c0_i32 = arith.constant 0 : i32
    %c0_i32_0 = arith.constant 0 : i32
    %c0_i32_1 = arith.constant 0 : i32
    return %c0_i32, %c0_i32_0 : i32, i32
  }
  func.func @transform_3(%arg0: i32) -> (i32, i32) {
    %c0_i32 = arith.constant 0 : i32
    %c0_i32_0 = arith.constant 0 : i32
    %c0_i32_1 = arith.constant 0 : i32
    return %c0_i32, %c0_i32_0 : i32, i32
  }
  func.func @transform_4(%arg0: i32) -> (i32, i32) {
    %c0_i32 = arith.constant 0 : i32
    %c0_i32_0 = arith.constant 0 : i32
    %c0_i32_1 = arith.constant 0 : i32
    return %c0_i32, %c0_i32_0 : i32, i32
  }
  func.func @transform_5(%arg0: i32) -> (i32, i32) {
    %c0_i32 = arith.constant 0 : i32
    %c0_i32_0 = arith.constant 0 : i32
    %c0_i32_1 = arith.constant 0 : i32
    return %c0_i32, %c0_i32_0 : i32, i32
  }
  func.func @transform_6(%arg0: i32) -> (i32, i32) {
    %c0_i32 = arith.constant 0 : i32
    %c0_i32_0 = arith.constant 0 : i32
    %c0_i32_1 = arith.constant 0 : i32
    return %c0_i32, %c0_i32_0 : i32, i32
  }
  func.func @transform_7(%arg0: i32) -> (i32, i32) {
    %c0_i32 = arith.constant 0 : i32
    %c0_i32_0 = arith.constant 0 : i32
    return %arg0, %c0_i32 : i32, i32
  }
}

module attributes {stable_mosaic.version = 11 : i64} {
  func.func @_fused_mlp_kernel(%arg0: i32, %arg1: memref<32x128xbf16, #tpu.memory_space<vmem>>, %arg2: memref<32x256xbf16, #tpu.memory_space<vmem>>, %arg3: memref<128x256xbf16, #tpu.memory_space<vmem>>, %arg4: memref<256x256xbf16, #tpu.memory_space<vmem>>, %arg5: memref<1x256xf32, #tpu.memory_space<vmem>>, %arg6: memref<256x256xbf16, #tpu.memory_space<vmem>>, %arg7: memref<1x256xf32, #tpu.memory_space<vmem>>, %arg8: memref<32x256xbf16, #tpu.memory_space<vmem>>) attributes {dimension_semantics = [#tpu.dimension_semantics<parallel>], iteration_bounds = array<i64: 1>, scalar_prefetch = 0 : i64, scratch_operands = 0 : i64, tpu.core_type = #tpu.core_type<tc>, window_params = [{transform_indices = @transform_0, window_bounds = array<i64: 32, 128>}, {transform_indices = @transform_1, window_bounds = array<i64: 32, 256>}, {pipeline_mode = #tpu.pipeline_mode<synchronous>, transform_indices = @transform_2, window_bounds = array<i64: 128, 256>}, {pipeline_mode = #tpu.pipeline_mode<synchronous>, transform_indices = @transform_3, window_bounds = array<i64: 256, 256>}, {pipeline_mode = #tpu.pipeline_mode<synchronous>, transform_indices = @transform_4, window_bounds = array<i64: 1, 256>}, {pipeline_mode = #tpu.pipeline_mode<synchronous>, transform_indices = @transform_5, window_bounds = array<i64: 256, 256>}, {pipeline_mode = #tpu.pipeline_mode<synchronous>, transform_indices = @transform_6, window_bounds = array<i64: 1, 256>}, {transform_indices = @transform_7, window_bounds = array<i64: 32, 256>}]} {
    %c0 = arith.constant 0 : index
    %c0_0 = arith.constant 0 : index
    %0 = vector.load %arg1[%c0, %c0_0] : memref<32x128xbf16, #tpu.memory_space<vmem>>, vector<32x128xbf16>
    %c0_1 = arith.constant 0 : index
    %c0_2 = arith.constant 0 : index
    %1 = vector.load %arg2[%c0_1, %c0_2] : memref<32x256xbf16, #tpu.memory_space<vmem>>, vector<32x256xbf16>
    %c0_3 = arith.constant 0 : index
    %c0_4 = arith.constant 0 : index
    %2 = vector.load %arg3[%c0_3, %c0_4] : memref<128x256xbf16, #tpu.memory_space<vmem>>, vector<128x256xbf16>
    %c0_5 = arith.constant 0 : index
    %c0_6 = arith.constant 0 : index
    %3 = vector.load %arg4[%c0_5, %c0_6] : memref<256x256xbf16, #tpu.memory_space<vmem>>, vector<256x256xbf16>
    %c0_7 = arith.constant 0 : index
    %c0_8 = arith.constant 0 : index
    %4 = vector.load %arg5[%c0_7, %c0_8] : memref<1x256xf32, #tpu.memory_space<vmem>>, vector<1x256xf32>
    %cst = arith.constant dense<0.000000e+00> : vector<32x256xf32>
    %5 = tpu.matmul %0, %2, %cst {dimension_numbers = #tpu.dot_dimension_numbers<[1], [0], [0], [1], [0, 0, 1, 1], [], []>} : vector<32x128xbf16>, vector<128x256xbf16>, vector<32x256xf32> -> vector<32x256xf32>
    %cst_9 = arith.constant dense<0.000000e+00> : vector<32x256xf32>
    %6 = tpu.matmul %1, %3, %cst_9 {dimension_numbers = #tpu.dot_dimension_numbers<[1], [0], [0], [1], [0, 0, 1, 1], [], []>} : vector<32x256xbf16>, vector<256x256xbf16>, vector<32x256xf32> -> vector<32x256xf32>
    %7 = arith.addf %5, %6 : vector<32x256xf32>
    %8 = vector.broadcast %4 : vector<1x256xf32> to vector<32x256xf32>
    %9 = arith.addf %7, %8 : vector<32x256xf32>
    %cst_10 = arith.constant 0.000000e+00 : f32
    %10 = vector.broadcast %cst_10 : f32 to vector<32x256xf32>
    %11 = arith.maximumf %9, %10 : vector<32x256xf32>
    %c0_11 = arith.constant 0 : index
    %c0_12 = arith.constant 0 : index
    %12 = vector.load %arg6[%c0_11, %c0_12] : memref<256x256xbf16, #tpu.memory_space<vmem>>, vector<256x256xbf16>
    %c0_13 = arith.constant 0 : index
    %c0_14 = arith.constant 0 : index
    %13 = vector.load %arg7[%c0_13, %c0_14] : memref<1x256xf32, #tpu.memory_space<vmem>>, vector<1x256xf32>
    %14 = arith.truncf %11 : vector<32x256xf32> to vector<32x256xbf16>
    %cst_15 = arith.constant dense<0.000000e+00> : vector<32x256xf32>
    %15 = tpu.matmul %14, %12, %cst_15 {dimension_numbers = #tpu.dot_dimension_numbers<[1], [0], [0], [1], [0, 0, 1, 1], [], []>} : vector<32x256xbf16>, vector<256x256xbf16>, vector<32x256xf32> -> vector<32x256xf32>
    %16 = vector.broadcast %13 : vector<1x256xf32> to vector<32x256xf32>
    %17 = arith.addf %15, %16 : vector<32x256xf32>
    %cst_16 = arith.constant 0.000000e+00 : f32
    %18 = vector.broadcast %cst_16 : f32 to vector<32x256xf32>
    %19 = arith.maximumf %17, %18 : vector<32x256xf32>
    %20 = arith.truncf %19 : vector<32x256xf32> to vector<32x256xbf16>
    %c0_17 = arith.constant 0 : index
    %c0_18 = arith.constant 0 : index
    %21 = vector.load %arg8[%c0_17, %c0_18] : memref<32x256xbf16, #tpu.memory_space<vmem>>, vector<32x256xbf16>
    tpu.vector_store %arg8[%c0_17, %c0_18], %20 {strides = array<i32>} : memref<32x256xbf16, #tpu.memory_space<vmem>>, vector<32x256xbf16>,
    return
  }
  func.func @transform_0(%arg0: i32) -> (i32, i32) {
    %c0_i32 = arith.constant 0 : i32
    %c0_i32_0 = arith.constant 0 : i32
    return %arg0, %c0_i32 : i32, i32
  }
  func.func @transform_1(%arg0: i32) -> (i32, i32) {
    %c0_i32 = arith.constant 0 : i32
    %c0_i32_0 = arith.constant 0 : i32
    return %arg0, %c0_i32 : i32, i32
  }
  func.func @transform_2(%arg0: i32) -> (i32, i32) {
    %c0_i32 = arith.constant 0 : i32
    %c0_i32_0 = arith.constant 0 : i32
    %c0_i32_1 = arith.constant 0 : i32
    return %c0_i32, %c0_i32_0 : i32, i32
  }
  func.func @transform_3(%arg0: i32) -> (i32, i32) {
    %c0_i32 = arith.constant 0 : i32
    %c0_i32_0 = arith.constant 0 : i32
    %c0_i32_1 = arith.constant 0 : i32
    return %c0_i32, %c0_i32_0 : i32, i32
  }
  func.func @transform_4(%arg0: i32) -> (i32, i32) {
    %c0_i32 = arith.constant 0 : i32
    %c0_i32_0 = arith.constant 0 : i32
    %c0_i32_1 = arith.constant 0 : i32
    return %c0_i32, %c0_i32_0 : i32, i32
  }
  func.func @transform_5(%arg0: i32) -> (i32, i32) {
    %c0_i32 = arith.constant 0 : i32
    %c0_i32_0 = arith.constant 0 : i32
    %c0_i32_1 = arith.constant 0 : i32
    return %c0_i32, %c0_i32_0 : i32, i32
  }
  func.func @transform_6(%arg0: i32) -> (i32, i32) {
    %c0_i32 = arith.constant 0 : i32
    %c0_i32_0 = arith.constant 0 : i32
    %c0_i32_1 = arith.constant 0 : i32
    return %c0_i32, %c0_i32_0 : i32, i32
  }
  func.func @transform_7(%arg0: i32) -> (i32, i32) {
    %c0_i32 = arith.constant 0 : i32
    %c0_i32_0 = arith.constant 0 : i32
    return %arg0, %c0_i32 : i32, i32
  }
}

module attributes {stable_mosaic.version = 11 : i64} {
  func.func @_fused_mlp_kernel(%arg0: i32, %arg1: memref<64x128xbf16, #tpu.memory_space<vmem>>, %arg2: memref<64x256xbf16, #tpu.memory_space<vmem>>, %arg3: memref<128x128xbf16, #tpu.memory_space<vmem>>, %arg4: memref<256x128xbf16, #tpu.memory_space<vmem>>, %arg5: memref<1x128xf32, #tpu.memory_space<vmem>>, %arg6: memref<128x128xbf16, #tpu.memory_space<vmem>>, %arg7: memref<1x128xf32, #tpu.memory_space<vmem>>, %arg8: memref<64x128xbf16, #tpu.memory_space<vmem>>) attributes {dimension_semantics = [#tpu.dimension_semantics<parallel>], iteration_bounds = array<i64: 1>, scalar_prefetch = 0 : i64, scratch_operands = 0 : i64, tpu.core_type = #tpu.core_type<tc>, window_params = [{transform_indices = @transform_0, window_bounds = array<i64: 64, 128>}, {transform_indices = @transform_1, window_bounds = array<i64: 64, 256>}, {pipeline_mode = #tpu.pipeline_mode<synchronous>, transform_indices = @transform_2, window_bounds = array<i64: 128, 128>}, {pipeline_mode = #tpu.pipeline_mode<synchronous>, transform_indices = @transform_3, window_bounds = array<i64: 256, 128>}, {pipeline_mode = #tpu.pipeline_mode<synchronous>, transform_indices = @transform_4, window_bounds = array<i64: 1, 128>}, {pipeline_mode = #tpu.pipeline_mode<synchronous>, transform_indices = @transform_5, window_bounds = array<i64: 128, 128>}, {pipeline_mode = #tpu.pipeline_mode<synchronous>, transform_indices = @transform_6, window_bounds = array<i64: 1, 128>}, {transform_indices = @transform_7, window_bounds = array<i64: 64, 128>}]} {
    %c0 = arith.constant 0 : index
    %c0_0 = arith.constant 0 : index
    %0 = vector.load %arg1[%c0, %c0_0] : memref<64x128xbf16, #tpu.memory_space<vmem>>, vector<64x128xbf16>
    %c0_1 = arith.constant 0 : index
    %c0_2 = arith.constant 0 : index
    %1 = vector.load %arg2[%c0_1, %c0_2] : memref<64x256xbf16, #tpu.memory_space<vmem>>, vector<64x256xbf16>
    %c0_3 = arith.constant 0 : index
    %c0_4 = arith.constant 0 : index
    %2 = vector.load %arg3[%c0_3, %c0_4] : memref<128x128xbf16, #tpu.memory_space<vmem>>, vector<128x128xbf16>
    %c0_5 = arith.constant 0 : index
    %c0_6 = arith.constant 0 : index
    %3 = vector.load %arg4[%c0_5, %c0_6] : memref<256x128xbf16, #tpu.memory_space<vmem>>, vector<256x128xbf16>
    %c0_7 = arith.constant 0 : index
    %c0_8 = arith.constant 0 : index
    %4 = vector.load %arg5[%c0_7, %c0_8] : memref<1x128xf32, #tpu.memory_space<vmem>>, vector<1x128xf32>
    %cst = arith.constant dense<0.000000e+00> : vector<64x128xf32>
    %5 = tpu.matmul %0, %2, %cst {dimension_numbers = #tpu.dot_dimension_numbers<[1], [0], [0], [1], [0, 0, 1, 1], [], []>} : vector<64x128xbf16>, vector<128x128xbf16>, vector<64x128xf32> -> vector<64x128xf32>
    %cst_9 = arith.constant dense<0.000000e+00> : vector<64x128xf32>
    %6 = tpu.matmul %1, %3, %cst_9 {dimension_numbers = #tpu.dot_dimension_numbers<[1], [0], [0], [1], [0, 0, 1, 1], [], []>} : vector<64x256xbf16>, vector<256x128xbf16>, vector<64x128xf32> -> vector<64x128xf32>
    %7 = arith.addf %5, %6 : vector<64x128xf32>
    %8 = vector.broadcast %4 : vector<1x128xf32> to vector<64x128xf32>
    %9 = arith.addf %7, %8 : vector<64x128xf32>
    %cst_10 = arith.constant 0.000000e+00 : f32
    %10 = vector.broadcast %cst_10 : f32 to vector<64x128xf32>
    %11 = arith.maximumf %9, %10 : vector<64x128xf32>
    %c0_11 = arith.constant 0 : index
    %c0_12 = arith.constant 0 : index
    %12 = vector.load %arg6[%c0_11, %c0_12] : memref<128x128xbf16, #tpu.memory_space<vmem>>, vector<128x128xbf16>
    %c0_13 = arith.constant 0 : index
    %c0_14 = arith.constant 0 : index
    %13 = vector.load %arg7[%c0_13, %c0_14] : memref<1x128xf32, #tpu.memory_space<vmem>>, vector<1x128xf32>
    %14 = arith.truncf %11 : vector<64x128xf32> to vector<64x128xbf16>
    %cst_15 = arith.constant dense<0.000000e+00> : vector<64x128xf32>
    %15 = tpu.matmul %14, %12, %cst_15 {dimension_numbers = #tpu.dot_dimension_numbers<[1], [0], [0], [1], [0, 0, 1, 1], [], []>} : vector<64x128xbf16>, vector<128x128xbf16>, vector<64x128xf32> -> vector<64x128xf32>
    %16 = vector.broadcast %13 : vector<1x128xf32> to vector<64x128xf32>
    %17 = arith.addf %15, %16 : vector<64x128xf32>
    %cst_16 = arith.constant 0.000000e+00 : f32
    %18 = vector.broadcast %cst_16 : f32 to vector<64x128xf32>
    %19 = arith.maximumf %17, %18 : vector<64x128xf32>
    %20 = arith.truncf %19 : vector<64x128xf32> to vector<64x128xbf16>
    %c0_17 = arith.constant 0 : index
    %c0_18 = arith.constant 0 : index
    %21 = vector.load %arg8[%c0_17, %c0_18] : memref<64x128xbf16, #tpu.memory_space<vmem>>, vector<64x128xbf16>
    tpu.vector_store %arg8[%c0_17, %c0_18], %20 {strides = array<i32>} : memref<64x128xbf16, #tpu.memory_space<vmem>>, vector<64x128xbf16>,
    return
  }
  func.func @transform_0(%arg0: i32) -> (i32, i32) {
    %c0_i32 = arith.constant 0 : i32
    %c0_i32_0 = arith.constant 0 : i32
    return %arg0, %c0_i32 : i32, i32
  }
  func.func @transform_1(%arg0: i32) -> (i32, i32) {
    %c0_i32 = arith.constant 0 : i32
    %c0_i32_0 = arith.constant 0 : i32
    return %arg0, %c0_i32 : i32, i32
  }
  func.func @transform_2(%arg0: i32) -> (i32, i32) {
    %c0_i32 = arith.constant 0 : i32
    %c0_i32_0 = arith.constant 0 : i32
    %c0_i32_1 = arith.constant 0 : i32
    return %c0_i32, %c0_i32_0 : i32, i32
  }
  func.func @transform_3(%arg0: i32) -> (i32, i32) {
    %c0_i32 = arith.constant 0 : i32
    %c0_i32_0 = arith.constant 0 : i32
    %c0_i32_1 = arith.constant 0 : i32
    return %c0_i32, %c0_i32_0 : i32, i32
  }
  func.func @transform_4(%arg0: i32) -> (i32, i32) {
    %c0_i32 = arith.constant 0 : i32
    %c0_i32_0 = arith.constant 0 : i32
    %c0_i32_1 = arith.constant 0 : i32
    return %c0_i32, %c0_i32_0 : i32, i32
  }
  func.func @transform_5(%arg0: i32) -> (i32, i32) {
    %c0_i32 = arith.constant 0 : i32
    %c0_i32_0 = arith.constant 0 : i32
    %c0_i32_1 = arith.constant 0 : i32
    return %c0_i32, %c0_i32_0 : i32, i32
  }
  func.func @transform_6(%arg0: i32) -> (i32, i32) {
    %c0_i32 = arith.constant 0 : i32
    %c0_i32_0 = arith.constant 0 : i32
    %c0_i32_1 = arith.constant 0 : i32
    return %c0_i32, %c0_i32_0 : i32, i32
  }
  func.func @transform_7(%arg0: i32) -> (i32, i32) {
    %c0_i32 = arith.constant 0 : i32
    %c0_i32_0 = arith.constant 0 : i32
    return %arg0, %c0_i32 : i32, i32
  }
}

module attributes {stable_mosaic.version = 11 : i64} {
  func.func @_fused_mlp_kernel(%arg0: i32, %arg1: memref<128x5xf32, #tpu.memory_space<vmem>>, %arg2: memref<128x128xbf16, #tpu.memory_space<vmem>>, %arg3: memref<5x128xbf16, #tpu.memory_space<vmem>>, %arg4: memref<128x128xbf16, #tpu.memory_space<vmem>>, %arg5: memref<1x128xf32, #tpu.memory_space<vmem>>, %arg6: memref<128x64xbf16, #tpu.memory_space<vmem>>, %arg7: memref<1x64xf32, #tpu.memory_space<vmem>>, %arg8: memref<64x64xbf16, #tpu.memory_space<vmem>>, %arg9: memref<1x64xf32, #tpu.memory_space<vmem>>, %arg10: memref<64x128xbf16, #tpu.memory_space<vmem>>, %arg11: memref<1x128xf32, #tpu.memory_space<vmem>>, %arg12: memref<128x128xf32, #tpu.memory_space<vmem>>) attributes {dimension_semantics = [#tpu.dimension_semantics<parallel>], iteration_bounds = array<i64: 1>, scalar_prefetch = 0 : i64, scratch_operands = 0 : i64, tpu.core_type = #tpu.core_type<tc>, window_params = [{transform_indices = @transform_0, window_bounds = array<i64: 128, 5>}, {transform_indices = @transform_1, window_bounds = array<i64: 128, 128>}, {pipeline_mode = #tpu.pipeline_mode<synchronous>, transform_indices = @transform_2, window_bounds = array<i64: 5, 128>}, {pipeline_mode = #tpu.pipeline_mode<synchronous>, transform_indices = @transform_3, window_bounds = array<i64: 128, 128>}, {pipeline_mode = #tpu.pipeline_mode<synchronous>, transform_indices = @transform_4, window_bounds = array<i64: 1, 128>}, {pipeline_mode = #tpu.pipeline_mode<synchronous>, transform_indices = @transform_5, window_bounds = array<i64: 128, 64>}, {pipeline_mode = #tpu.pipeline_mode<synchronous>, transform_indices = @transform_6, window_bounds = array<i64: 1, 64>}, {pipeline_mode = #tpu.pipeline_mode<synchronous>, transform_indices = @transform_7, window_bounds = array<i64: 64, 64>}, {pipeline_mode = #tpu.pipeline_mode<synchronous>, transform_indices = @transform_8, window_bounds = array<i64: 1, 64>}, {pipeline_mode = #tpu.pipeline_mode<synchronous>, transform_indices = @transform_9, window_bounds = array<i64: 64, 128>}, {pipeline_mode = #tpu.pipeline_mode<synchronous>, transform_indices = @transform_10, window_bounds = array<i64: 1, 128>}, {transform_indices = @transform_11, window_bounds = array<i64: 128, 128>}]} {
    %c0 = arith.constant 0 : index
    %c0_0 = arith.constant 0 : index
    %0 = vector.load %arg1[%c0, %c0_0] : memref<128x5xf32, #tpu.memory_space<vmem>>, vector<128x5xf32>
    %c0_1 = arith.constant 0 : index
    %c0_2 = arith.constant 0 : index
    %1 = vector.load %arg2[%c0_1, %c0_2] : memref<128x128xbf16, #tpu.memory_space<vmem>>, vector<128x128xbf16>
    %c0_3 = arith.constant 0 : index
    %c0_4 = arith.constant 0 : index
    %2 = vector.load %arg3[%c0_3, %c0_4] : memref<5x128xbf16, #tpu.memory_space<vmem>>, vector<5x128xbf16>
    %c0_5 = arith.constant 0 : index
    %c0_6 = arith.constant 0 : index
    %3 = vector.load %arg4[%c0_5, %c0_6] : memref<128x128xbf16, #tpu.memory_space<vmem>>, vector<128x128xbf16>
    %c0_7 = arith.constant 0 : index
    %c0_8 = arith.constant 0 : index
    %4 = vector.load %arg5[%c0_7, %c0_8] : memref<1x128xf32, #tpu.memory_space<vmem>>, vector<1x128xf32>
    %5 = arith.truncf %0 : vector<128x5xf32> to vector<128x5xbf16>
    %cst = arith.constant dense<0.000000e+00> : vector<128x128xf32>
    %6 = tpu.matmul %5, %2, %cst {dimension_numbers = #tpu.dot_dimension_numbers<[1], [0], [0], [1], [0, 0, 1, 1], [], []>} : vector<128x5xbf16>, vector<5x128xbf16>, vector<128x128xf32> -> vector<128x128xf32>
    %cst_9 = arith.constant dense<0.000000e+00> : vector<128x128xf32>
    %7 = tpu.matmul %1, %3, %cst_9 {dimension_numbers = #tpu.dot_dimension_numbers<[1], [0], [0], [1], [0, 0, 1, 1], [], []>} : vector<128x128xbf16>, vector<128x128xbf16>, vector<128x128xf32> -> vector<128x128xf32>
    %8 = arith.addf %6, %7 : vector<128x128xf32>
    %9 = vector.broadcast %4 : vector<1x128xf32> to vector<128x128xf32>
    %10 = arith.addf %8, %9 : vector<128x128xf32>
    %cst_10 = arith.constant 0.000000e+00 : f32
    %11 = vector.broadcast %cst_10 : f32 to vector<128x128xf32>
    %12 = arith.maximumf %10, %11 : vector<128x128xf32>
    %c0_11 = arith.constant 0 : index
    %c0_12 = arith.constant 0 : index
    %13 = vector.load %arg6[%c0_11, %c0_12] : memref<128x64xbf16, #tpu.memory_space<vmem>>, vector<128x64xbf16>
    %c0_13 = arith.constant 0 : index
    %c0_14 = arith.constant 0 : index
    %14 = vector.load %arg7[%c0_13, %c0_14] : memref<1x64xf32, #tpu.memory_space<vmem>>, vector<1x64xf32>
    %15 = arith.truncf %12 : vector<128x128xf32> to vector<128x128xbf16>
    %cst_15 = arith.constant dense<0.000000e+00> : vector<128x64xf32>
    %16 = tpu.matmul %15, %13, %cst_15 {dimension_numbers = #tpu.dot_dimension_numbers<[1], [0], [0], [1], [0, 0, 1, 1], [], []>} : vector<128x128xbf16>, vector<128x64xbf16>, vector<128x64xf32> -> vector<128x64xf32>
    %17 = vector.broadcast %14 : vector<1x64xf32> to vector<128x64xf32>
    %18 = arith.addf %16, %17 : vector<128x64xf32>
    %cst_16 = arith.constant 0.000000e+00 : f32
    %19 = vector.broadcast %cst_16 : f32 to vector<128x64xf32>
    %20 = arith.maximumf %18, %19 : vector<128x64xf32>
    %c0_17 = arith.constant 0 : index
    %c0_18 = arith.constant 0 : index
    %21 = vector.load %arg8[%c0_17, %c0_18] : memref<64x64xbf16, #tpu.memory_space<vmem>>, vector<64x64xbf16>
    %c0_19 = arith.constant 0 : index
    %c0_20 = arith.constant 0 : index
    %22 = vector.load %arg9[%c0_19, %c0_20] : memref<1x64xf32, #tpu.memory_space<vmem>>, vector<1x64xf32>
    %23 = arith.truncf %20 : vector<128x64xf32> to vector<128x64xbf16>
    %cst_21 = arith.constant dense<0.000000e+00> : vector<128x64xf32>
    %24 = tpu.matmul %23, %21, %cst_21 {dimension_numbers = #tpu.dot_dimension_numbers<[1], [0], [0], [1], [0, 0, 1, 1], [], []>} : vector<128x64xbf16>, vector<64x64xbf16>, vector<128x64xf32> -> vector<128x64xf32>
    %25 = vector.broadcast %22 : vector<1x64xf32> to vector<128x64xf32>
    %26 = arith.addf %24, %25 : vector<128x64xf32>
    %cst_22 = arith.constant 0.000000e+00 : f32
    %27 = vector.broadcast %cst_22 : f32 to vector<128x64xf32>
    %28 = arith.maximumf %26, %27 : vector<128x64xf32>
    %c0_23 = arith.constant 0 : index
    %c0_24 = arith.constant 0 : index
    %29 = vector.load %arg10[%c0_23, %c0_24] : memref<64x128xbf16, #tpu.memory_space<vmem>>, vector<64x128xbf16>
    %c0_25 = arith.constant 0 : index
    %c0_26 = arith.constant 0 : index
    %30 = vector.load %arg11[%c0_25, %c0_26] : memref<1x128xf32, #tpu.memory_space<vmem>>, vector<1x128xf32>
    %31 = arith.truncf %28 : vector<128x64xf32> to vector<128x64xbf16>
    %cst_27 = arith.constant dense<0.000000e+00> : vector<128x128xf32>
    %32 = tpu.matmul %31, %29, %cst_27 {dimension_numbers = #tpu.dot_dimension_numbers<[1], [0], [0], [1], [0, 0, 1, 1], [], []>} : vector<128x64xbf16>, vector<64x128xbf16>, vector<128x128xf32> -> vector<128x128xf32>
    %33 = vector.broadcast %30 : vector<1x128xf32> to vector<128x128xf32>
    %34 = arith.addf %32, %33 : vector<128x128xf32>
    %c0_28 = arith.constant 0 : index
    %c0_29 = arith.constant 0 : index
    %35 = vector.load %arg12[%c0_28, %c0_29] : memref<128x128xf32, #tpu.memory_space<vmem>>, vector<128x128xf32>
    tpu.vector_store %arg12[%c0_28, %c0_29], %34 {strides = array<i32>} : memref<128x128xf32, #tpu.memory_space<vmem>>, vector<128x128xf32>,
    return
  }
  func.func @transform_0(%arg0: i32) -> (i32, i32) {
    %c0_i32 = arith.constant 0 : i32
    %c0_i32_0 = arith.constant 0 : i32
    return %arg0, %c0_i32 : i32, i32
  }
  func.func @transform_1(%arg0: i32) -> (i32, i32) {
    %c0_i32 = arith.constant 0 : i32
    %c0_i32_0 = arith.constant 0 : i32
    return %arg0, %c0_i32 : i32, i32
  }
  func.func @transform_2(%arg0: i32) -> (i32, i32) {
    %c0_i32 = arith.constant 0 : i32
    %c0_i32_0 = arith.constant 0 : i32
    %c0_i32_1 = arith.constant 0 : i32
    return %c0_i32, %c0_i32_0 : i32, i32
  }
  func.func @transform_3(%arg0: i32) -> (i32, i32) {
    %c0_i32 = arith.constant 0 : i32
    %c0_i32_0 = arith.constant 0 : i32
    %c0_i32_1 = arith.constant 0 : i32
    return %c0_i32, %c0_i32_0 : i32, i32
  }
  func.func @transform_4(%arg0: i32) -> (i32, i32) {
    %c0_i32 = arith.constant 0 : i32
    %c0_i32_0 = arith.constant 0 : i32
    %c0_i32_1 = arith.constant 0 : i32
    return %c0_i32, %c0_i32_0 : i32, i32
  }
  func.func @transform_5(%arg0: i32) -> (i32, i32) {
    %c0_i32 = arith.constant 0 : i32
    %c0_i32_0 = arith.constant 0 : i32
    %c0_i32_1 = arith.constant 0 : i32
    return %c0_i32, %c0_i32_0 : i32, i32
  }
  func.func @transform_6(%arg0: i32) -> (i32, i32) {
    %c0_i32 = arith.constant 0 : i32
    %c0_i32_0 = arith.constant 0 : i32
    %c0_i32_1 = arith.constant 0 : i32
    return %c0_i32, %c0_i32_0 : i32, i32
  }
  func.func @transform_7(%arg0: i32) -> (i32, i32) {
    %c0_i32 = arith.constant 0 : i32
    %c0_i32_0 = arith.constant 0 : i32
    %c0_i32_1 = arith.constant 0 : i32
    return %c0_i32, %c0_i32_0 : i32, i32
  }
  func.func @transform_8(%arg0: i32) -> (i32, i32) {
    %c0_i32 = arith.constant 0 : i32
    %c0_i32_0 = arith.constant 0 : i32
    %c0_i32_1 = arith.constant 0 : i32
    return %c0_i32, %c0_i32_0 : i32, i32
  }
  func.func @transform_9(%arg0: i32) -> (i32, i32) {
    %c0_i32 = arith.constant 0 : i32
    %c0_i32_0 = arith.constant 0 : i32
    %c0_i32_1 = arith.constant 0 : i32
    return %c0_i32, %c0_i32_0 : i32, i32
  }
  func.func @transform_10(%arg0: i32) -> (i32, i32) {
    %c0_i32 = arith.constant 0 : i32
    %c0_i32_0 = arith.constant 0 : i32
    %c0_i32_1 = arith.constant 0 : i32
    return %c0_i32, %c0_i32_0 : i32, i32
  }
  func.func @transform_11(%arg0: i32) -> (i32, i32) {
    %c0_i32 = arith.constant 0 : i32
    %c0_i32_0 = arith.constant 0 : i32
    return %arg0, %c0_i32 : i32, i32
  }
}

</mosaic_0001>

<llo_original>
// kernel: custom-call.40
$region0: #{custom-call.40}
  %s0 = inlined_call_operand.vmem [shape: f32[2,64], index: 0, kind: output, shape index: {}]

// kernel: custom-call.41
$region0: #{custom-call.41}
  %s0 = inlined_call_operand.vmem [shape: f32[2,32], index: 0, kind: output, shape index: {}]

// kernel: pointnet2_forward.8
$region0: #{pointnet2_forward.8}
  #allocation0 [shape = 'u32[]', space=smem, size = 0x4, offset = 0x4, fixed_abs, tag = 'smem constant byte address 0x4 - core index']
  #allocation1 [shape = 'u32[144,128]{1,0:T(1,128)}', space=vmem, size = 0x12000, scoped, tag = 'internal scratch']
  %s0 = inlined_call_operand.vmem [shape: f32[512,3], index: 0, kind: input, shape index: {}]
  %s1 = inlined_call_operand.vmem [shape: f32[512,5], index: 1, kind: input, shape index: {}]
  %s2 = inlined_call_operand.vmem [shape: bf16[3,64], index: 2, kind: input, shape index: {}]
  %s3 = inlined_call_operand.vmem [shape: bf16[5,64], index: 3, kind: input, shape index: {}]
  %s4 = inlined_call_operand.vmem [shape: f32[1,64], index: 4, kind: input, shape index: {}]
  %s5 = inlined_call_operand.vmem [shape: bf16[64,64], index: 5, kind: input, shape index: {}]
  %s6 = inlined_call_operand.vmem [shape: f32[1,64], index: 6, kind: input, shape index: {}]
  %s7 = inlined_call_operand.vmem [shape: bf16[64,128], index: 7, kind: input, shape index: {}]
  %s8 = inlined_call_operand.vmem [shape: f32[1,128], index: 8, kind: input, shape index: {}]
  %s9 = inlined_call_operand.vmem [shape: bf16[64,128], index: 9, kind: output, shape index: {}]
  %s10 = sld [smem:[#allocation0]]
  $region46: #{pointnet2_forward.8} parent=0
    _
  %s12 = ssub.s32 1, %s10
  %s13 = scalar_select 0, %s12, %s10
  // Predicated region
  $region2: #{pointnet2_forward.8} parent=0 // pred_check
    _
  $region3: #{pointnet2_forward.8} parent=0 // pred_check_branch
    %15 = sbr.rel (0) target = $region5
  $region4: #{pointnet2_forward.8} parent=0 // pred_region
    _
  $region5: #{pointnet2_forward.8} parent=0 // pred_fallthru
    _
  // Predicated region
  $region6: #{pointnet2_forward.8} parent=0 // pred_check
    _
  $region7: #{pointnet2_forward.8} parent=0 // pred_check_branch
    %17 = sbr.rel (0) target = $region9
  $region8: #{pointnet2_forward.8} parent=0 // pred_region
    _
  $region9: #{pointnet2_forward.8} parent=0 // pred_fallthru
    _
  // Predicated region
  $region10: #{pointnet2_forward.8} parent=0 // pred_check
    _
  $region11: #{pointnet2_forward.8} parent=0 // pred_check_branch
    %19 = sbr.rel (0) target = $region13
  $region12: #{pointnet2_forward.8} parent=0 // pred_region
    _
  $region13: #{pointnet2_forward.8} parent=0 // pred_fallthru
    _
  // Predicated region
  $region14: #{pointnet2_forward.8} parent=0 // pred_check
    _
  $region15: #{pointnet2_forward.8} parent=0 // pred_check_branch
    %21 = sbr.rel (0) target = $region17
  $region16: #{pointnet2_forward.8} parent=0 // pred_region
    _
  $region17: #{pointnet2_forward.8} parent=0 // pred_fallthru
    _
  // Predicated region
  $region18: #{pointnet2_forward.8} parent=0 // pred_check
    _
  $region19: #{pointnet2_forward.8} parent=0 // pred_check_branch
    %23 = sbr.rel (0) target = $region21
  $region20: #{pointnet2_forward.8} parent=0 // pred_region
    _
  $region21: #{pointnet2_forward.8} parent=0 // pred_fallthru
    _
  // Predicated region
  $region22: #{pointnet2_forward.8} parent=0 // pred_check
    _
  $region23: #{pointnet2_forward.8} parent=0 // pred_check_branch
    %25 = sbr.rel (0) target = $region25
  $region24: #{pointnet2_forward.8} parent=0 // pred_region
    _
  $region25: #{pointnet2_forward.8} parent=0 // pred_fallthru
    _
  // Predicated region
  $region26: #{pointnet2_forward.8} parent=0 // pred_check
    _
  $region27: #{pointnet2_forward.8} parent=0 // pred_check_branch
    %27 = sbr.rel (0) target = $region29
  $region28: #{pointnet2_forward.8} parent=0 // pred_region
    _
  $region29: #{pointnet2_forward.8} parent=0 // pred_fallthru
    _
  // Predicated region
  $region30: #{pointnet2_forward.8} parent=0 // pred_check
    _
  $region31: #{pointnet2_forward.8} parent=0 // pred_check_branch
    %29 = sbr.rel (0) target = $region33
  $region32: #{pointnet2_forward.8} parent=0 // pred_region
    _
  $region33: #{pointnet2_forward.8} parent=0 // pred_fallthru
    _
  // Predicated region
  $region34: #{pointnet2_forward.8} parent=0 // pred_check
    _
  $region35: #{pointnet2_forward.8} parent=0 // pred_check_branch
    %31 = sbr.rel (0) target = $region37
  $region36: #{pointnet2_forward.8} parent=0 // pred_region
    _
  $region37: #{pointnet2_forward.8} parent=0 // pred_fallthru
    _
  %v33 = vld [vmem:[%s0] sm:$0xff]
  %v34 = vld [vmem:[%s0 + $0x8] sm:$0xff]
  %v35 = vld [vmem:[%s0 + $0x10] sm:$0xff]
  %v36 = vld [vmem:[%s0 + $0x18] sm:$0xff]
  %v37 = vld [vmem:[%s0 + $0x20] sm:$0xff]
  %v38 = vld [vmem:[%s0 + $0x28] sm:$0xff]
  %v39 = vld [vmem:[%s0 + $0x30] sm:$0xff]
  %v40 = vld [vmem:[%s0 + $0x38] sm:$0xff]
  %v41 = vld [vmem:[%s0 + $0x40] sm:$0xff]
  %v42 = vld [vmem:[%s0 + $0x48] sm:$0xff]
  %v43 = vld [vmem:[%s0 + $0x50] sm:$0xff]
  %v44 = vld [vmem:[%s0 + $0x58] sm:$0xff]
  %v45 = vld [vmem:[%s0 + $0x60] sm:$0xff]
  %v46 = vld [vmem:[%s0 + $0x68] sm:$0xff]
  %v47 = vld [vmem:[%s0 + $0x70] sm:$0xff]
  %v48 = vld [vmem:[%s0 + $0x78] sm:$0xff]
  %v49 = vld [vmem:[%s0 + $0x80] sm:$0xff]
  %v50 = vld [vmem:[%s0 + $0x88] sm:$0xff]
  %v51 = vld [vmem:[%s0 + $0x90] sm:$0xff]
  %v52 = vld [vmem:[%s0 + $0x98] sm:$0xff]
  %v53 = vld [vmem:[%s0 + $0xa0] sm:$0xff]
  %v54 = vld [vmem:[%s0 + $0xa8] sm:$0xff]
  %v55 = vld [vmem:[%s0 + $0xb0] sm:$0xff]
  %v56 = vld [vmem:[%s0 + $0xb8] sm:$0xff]
  %v57 = vld [vmem:[%s0 + $0xc0] sm:$0xff]
  %v58 = vld [vmem:[%s0 + $0xc8] sm:$0xff]
  %v59 = vld [vmem:[%s0 + $0xd0] sm:$0xff]
  %v60 = vld [vmem:[%s0 + $0xd8] sm:$0xff]
  %v61 = vld [vmem:[%s0 + $0xe0] sm:$0xff]
  %v62 = vld [vmem:[%s0 + $0xe8] sm:$0xff]
  %v63 = vld [vmem:[%s0 + $0xf0] sm:$0xff]
  %v64 = vld [vmem:[%s0 + $0xf8] sm:$0xff]
  %v65 = vld [vmem:[%s0 + $0x100] sm:$0xff]
  %v66 = vld [vmem:[%s0 + $0x108] sm:$0xff]
  %v67 = vld [vmem:[%s0 + $0x110] sm:$0xff]
  %v68 = vld [vmem:[%s0 + $0x118] sm:$0xff]
  %v69 = vld [vmem:[%s0 + $0x120] sm:$0xff]
  %v70 = vld [vmem:[%s0 + $0x128] sm:$0xff]
  %v71 = vld [vmem:[%s0 + $0x130] sm:$0xff]
  %v72 = vld [vmem:[%s0 + $0x138] sm:$0xff]
  %v73 = vld [vmem:[%s0 + $0x140] sm:$0xff]
  %v74 = vld [vmem:[%s0 + $0x148] sm:$0xff]
  %v75 = vld [vmem:[%s0 + $0x150] sm:$0xff]
  %v76 = vld [vmem:[%s0 + $0x158] sm:$0xff]
  %v77 = vld [vmem:[%s0 + $0x160] sm:$0xff]
  %v78 = vld [vmem:[%s0 + $0x168] sm:$0xff]
  %v79 = vld [vmem:[%s0 + $0x170] sm:$0xff]
  %v80 = vld [vmem:[%s0 + $0x178] sm:$0xff]
  %v81 = vld [vmem:[%s0 + $0x180] sm:$0xff]
  %v82 = vld [vmem:[%s0 + $0x188] sm:$0xff]
  %v83 = vld [vmem:[%s0 + $0x190] sm:$0xff]
  %v84 = vld [vmem:[%s0 + $0x198] sm:$0xff]
  %v85 = vld [vmem:[%s0 + $0x1a0] sm:$0xff]
  %v86 = vld [vmem:[%s0 + $0x1a8] sm:$0xff]
  %v87 = vld [vmem:[%s0 + $0x1b0] sm:$0xff]
  %v88 = vld [vmem:[%s0 + $0x1b8] sm:$0xff]
  %v89 = vld [vmem:[%s0 + $0x1c0] sm:$0xff]
  %v90 = vld [vmem:[%s0 + $0x1c8] sm:$0xff]
  %v91 = vld [vmem:[%s0 + $0x1d0] sm:$0xff]
  %v92 = vld [vmem:[%s0 + $0x1d8] sm:$0xff]
  %v93 = vld [vmem:[%s0 + $0x1e0] sm:$0xff]
  %v94 = vld [vmem:[%s0 + $0x1e8] sm:$0xff]
  %v95 = vld [vmem:[%s0 + $0x1f0] sm:$0xff]
  %v96 = vld [vmem:[%s0 + $0x1f8] sm:$0xff]
  %v97 = vld [vmem:[%s1] sm:$0xff]
  %v98 = vld [vmem:[%s1 + $0x8] sm:$0xff]
  %v99 = vld [vmem:[%s1 + $0x10] sm:$0xff]
  %v100 = vld [vmem:[%s1 + $0x18] sm:$0xff]
  %v101 = vld [vmem:[%s1 + $0x20] sm:$0xff]
  %v102 = vld [vmem:[%s1 + $0x28] sm:$0xff]
  %v103 = vld [vmem:[%s1 + $0x30] sm:$0xff]
  %v104 = vld [vmem:[%s1 + $0x38] sm:$0xff]
  %v105 = vld [vmem:[%s1 + $0x40] sm:$0xff]
  %v106 = vld [vmem:[%s1 + $0x48] sm:$0xff]
  %v107 = vld [vmem:[%s1 + $0x50] sm:$0xff]
  %v108 = vld [vmem:[%s1 + $0x58] sm:$0xff]
  %v109 = vld [vmem:[%s1 + $0x60] sm:$0xff]
  %v110 = vld [vmem:[%s1 + $0x68] sm:$0xff]
  %v111 = vld [vmem:[%s1 + $0x70] sm:$0xff]
  %v112 = vld [vmem:[%s1 + $0x78] sm:$0xff]
  %v113 = vld [vmem:[%s1 + $0x80] sm:$0xff]
  %v114 = vld [vmem:[%s1 + $0x88] sm:$0xff]
  %v115 = vld [vmem:[%s1 + $0x90] sm:$0xff]
  %v116 = vld [vmem:[%s1 + $0x98] sm:$0xff]
  %v117 = vld [vmem:[%s1 + $0xa0] sm:$0xff]
  %v118 = vld [vmem:[%s1 + $0xa8] sm:$0xff]
  %v119 = vld [vmem:[%s1 + $0xb0] sm:$0xff]
  %v120 = vld [vmem:[%s1 + $0xb8] sm:$0xff]
  %v121 = vld [vmem:[%s1 + $0xc0] sm:$0xff]
  %v122 = vld [vmem:[%s1 + $0xc8] sm:$0xff]
  %v123 = vld [vmem:[%s1 + $0xd0] sm:$0xff]
  %v124 = vld [vmem:[%s1 + $0xd8] sm:$0xff]
  %v125 = vld [vmem:[%s1 + $0xe0] sm:$0xff]
  %v126 = vld [vmem:[%s1 + $0xe8] sm:$0xff]
  %v127 = vld [vmem:[%s1 + $0xf0] sm:$0xff]
  %v128 = vld [vmem:[%s1 + $0xf8] sm:$0xff]
  %v129 = vld [vmem:[%s1 + $0x100] sm:$0xff]
  %v130 = vld [vmem:[%s1 + $0x108] sm:$0xff]
  %v131 = vld [vmem:[%s1 + $0x110] sm:$0xff]
  %v132 = vld [vmem:[%s1 + $0x118] sm:$0xff]
  %v133 = vld [vmem:[%s1 + $0x120] sm:$0xff]
  %v134 = vld [vmem:[%s1 + $0x128] sm:$0xff]
  %v135 = vld [vmem:[%s1 + $0x130] sm:$0xff]
  %v136 = vld [vmem:[%s1 + $0x138] sm:$0xff]
  %v137 = vld [vmem:[%s1 + $0x140] sm:$0xff]
  %v138 = vld [vmem:[%s1 + $0x148] sm:$0xff]
  %v139 = vld [vmem:[%s1 + $0x150] sm:$0xff]
  %v140 = vld [vmem:[%s1 + $0x158] sm:$0xff]
  %v141 = vld [vmem:[%s1 + $0x160] sm:$0xff]
  %v142 = vld [vmem:[%s1 + $0x168] sm:$0xff]
  %v143 = vld [vmem:[%s1 + $0x170] sm:$0xff]
  %v144 = vld [vmem:[%s1 + $0x178] sm:$0xff]
  %v145 = vld [vmem:[%s1 + $0x180] sm:$0xff]
  %v146 = vld [vmem:[%s1 + $0x188] sm:$0xff]
  %v147 = vld [vmem:[%s1 + $0x190] sm:$0xff]
  %v148 = vld [vmem:[%s1 + $0x198] sm:$0xff]
  %v149 = vld [vmem:[%s1 + $0x1a0] sm:$0xff]
  %v150 = vld [vmem:[%s1 + $0x1a8] sm:$0xff]
  %v151 = vld [vmem:[%s1 + $0x1b0] sm:$0xff]
  %v152 = vld [vmem:[%s1 + $0x1b8] sm:$0xff]
  %v153 = vld [vmem:[%s1 + $0x1c0] sm:$0xff]
  %v154 = vld [vmem:[%s1 + $0x1c8] sm:$0xff]
  %v155 = vld [vmem:[%s1 + $0x1d0] sm:$0xff]
  %v156 = vld [vmem:[%s1 + $0x1d8] sm:$0xff]
  %v157 = vld [vmem:[%s1 + $0x1e0] sm:$0xff]
  %v158 = vld [vmem:[%s1 + $0x1e8] sm:$0xff]
  %v159 = vld [vmem:[%s1 + $0x1f0] sm:$0xff]
  %v160 = vld [vmem:[%s1 + $0x1f8] sm:$0xff]
  %v161 = vld [vmem:[%s2] sm:$0x3]
  %v162 = vld [vmem:[%s3] sm:$0x7]
  %v163 = vld [vmem:[%s4] sm:$0x1]
  %v164 = vpack.c.bf16 %v34, %v33
  %v165 = vpack.c.bf16 %v36, %v35
  %v166 = vpack.c.bf16 %v38, %v37
  %v167 = vpack.c.bf16 %v40, %v39
  %v168 = vpack.c.bf16 %v42, %v41
  %v169 = vpack.c.bf16 %v44, %v43
  %v170 = vpack.c.bf16 %v46, %v45
  %v171 = vpack.c.bf16 %v48, %v47
  %v172 = vpack.c.bf16 %v50, %v49
  %v173 = vpack.c.bf16 %v52, %v51
  %v174 = vpack.c.bf16 %v54, %v53
  %v175 = vpack.c.bf16 %v56, %v55
  %v176 = vpack.c.bf16 %v58, %v57
  %v177 = vpack.c.bf16 %v60, %v59
  %v178 = vpack.c.bf16 %v62, %v61
  %v179 = vpack.c.bf16 %v64, %v63
  %v180 = vpack.c.bf16 %v66, %v65
  %v181 = vpack.c.bf16 %v68, %v67
  %v182 = vpack.c.bf16 %v70, %v69
  %v183 = vpack.c.bf16 %v72, %v71
  %v184 = vpack.c.bf16 %v74, %v73
  %v185 = vpack.c.bf16 %v76, %v75
  %v186 = vpack.c.bf16 %v78, %v77
  %v187 = vpack.c.bf16 %v80, %v79
  %v188 = vpack.c.bf16 %v82, %v81
  %v189 = vpack.c.bf16 %v84, %v83
  %v190 = vpack.c.bf16 %v86, %v85
  %v191 = vpack.c.bf16 %v88, %v87
  %v192 = vpack.c.bf16 %v90, %v89
  %v193 = vpack.c.bf16 %v92, %v91
  %v194 = vpack.c.bf16 %v94, %v93
  %v195 = vpack.c.bf16 %v96, %v95
  %v196 = vpack.c.bf16 %v98, %v97
  %v197 = vpack.c.bf16 %v100, %v99
  %v198 = vpack.c.bf16 %v102, %v101
  %v199 = vpack.c.bf16 %v104, %v103
  %v200 = vpack.c.bf16 %v106, %v105
  %v201 = vpack.c.bf16 %v108, %v107
  %v202 = vpack.c.bf16 %v110, %v109
  %v203 = vpack.c.bf16 %v112, %v111
  %v204 = vpack.c.bf16 %v114, %v113
  %v205 = vpack.c.bf16 %v116, %v115
  %v206 = vpack.c.bf16 %v118, %v117
  %v207 = vpack.c.bf16 %v120, %v119
  %v208 = vpack.c.bf16 %v122, %v121
  %v209 = vpack.c.bf16 %v124, %v123
  %v210 = vpack.c.bf16 %v126, %v125
  %v211 = vpack.c.bf16 %v128, %v127
  %v212 = vpack.c.bf16 %v130, %v129
  %v213 = vpack.c.bf16 %v132, %v131
  %v214 = vpack.c.bf16 %v134, %v133
  %v215 = vpack.c.bf16 %v136, %v135
  %v216 = vpack.c.bf16 %v138, %v137
  %v217 = vpack.c.bf16 %v140, %v139
  %v218 = vpack.c.bf16 %v142, %v141
  %v219 = vpack.c.bf16 %v144, %v143
  %v220 = vpack.c.bf16 %v146, %v145
  %v221 = vpack.c.bf16 %v148, %v147
  %v222 = vpack.c.bf16 %v150, %v149
  %v223 = vpack.c.bf16 %v152, %v151
  %v224 = vpack.c.bf16 %v154, %v153
  %v225 = vpack.c.bf16 %v156, %v155
  %v226 = vpack.c.bf16 %v158, %v157
  %v227 = vpack.c.bf16 %v160, %v159
  %vm228 = vcmask 39936
  %v230 = vsel %vm228, %v196, 0
  %v233 = vsel %vm228, %v197, 0
  %v236 = vsel %vm228, %v198, 0
  %v239 = vsel %vm228, %v199, 0
  %v242 = vsel %vm228, %v200, 0
  %v245 = vsel %vm228, %v201, 0
  %v248 = vsel %vm228, %v202, 0
  %v251 = vsel %vm228, %v203, 0
  %v254 = vsel %vm228, %v204, 0
  %v257 = vsel %vm228, %v205, 0
  %v260 = vsel %vm228, %v206, 0
  %v263 = vsel %vm228, %v207, 0
  %v266 = vsel %vm228, %v208, 0
  %v269 = vsel %vm228, %v209, 0
  %v272 = vsel %vm228, %v210, 0
  %v275 = vsel %vm228, %v211, 0
  %v278 = vsel %vm228, %v212, 0
  %v281 = vsel %vm228, %v213, 0
  %v284 = vsel %vm228, %v214, 0
  %v287 = vsel %vm228, %v215, 0
  %v290 = vsel %vm228, %v216, 0
  %v293 = vsel %vm228, %v217, 0
  %v296 = vsel %vm228, %v218, 0
  %v299 = vsel %vm228, %v219, 0
  %v302 = vsel %vm228, %v220, 0
  %v305 = vsel %vm228, %v221, 0
  %v308 = vsel %vm228, %v222, 0
  %v311 = vsel %vm228, %v223, 0
  %v314 = vsel %vm228, %v224, 0
  %v317 = vsel %vm228, %v225, 0
  %v320 = vsel %vm228, %v226, 0
  %v323 = vsel %vm228, %v227, 0
  %vm325 = vcmask 1041408
  %vm326 = vcmask 1042432
  %v327 = vsel %vm325, 4294967295, 65535
  %v328 = vsel %vm326, %v327, 0
  %v330 = vand.u32 %v162, %v328
  %332 = vmatprep.subr.bf16.mxu0 0
  %333 = vmatpush1.bf16.msra.mxu0 %v330
  %334 = vmatprep.subr.bf16.mxu0 0
  %335 = vmatpush1.bf16.msra.mxu0 0
  %336 = vmatprep.subr.bf16.mxu0 0
  %337 = vmatpush1.bf16.msra.mxu0 0
  %338 = vmatprep.subr.bf16.mxu0 0
  %339 = vmatpush1.bf16.msra.mxu0 0
  %340 = vmatprep.subr.bf16.mxu0 0
  %341 = vmatpush1.bf16.msra.mxu0 0
  %342 = vmatprep.subr.bf16.mxu0 0
  %343 = vmatpush1.bf16.msra.mxu0 0
  %344 = vmatprep.subr.bf16.mxu0 0
  %345 = vmatpush1.bf16.msra.mxu0 0
  %346 = vmatprep.subr.bf16.mxu0 0
  %347 = vmatpush1.bf16.msra.mxu0 0
  %348 = vmatprep.subr.bf16.mxu0 0
  %349 = vmatpush1.bf16.msra.mxu0 0
  %350 = vmatprep.subr.bf16.mxu0 0
  %351 = vmatpush1.bf16.msra.mxu0 0
  %352 = vmatprep.subr.bf16.mxu0 0
  %353 = vmatpush1.bf16.msra.mxu0 0
  %354 = vmatprep.subr.bf16.mxu0 0
  %355 = vmatpush1.bf16.msra.mxu0 0
  %356 = vmatprep.subr.bf16.mxu0 0
  %357 = vmatpush1.bf16.msra.mxu0 0
  %358 = vmatprep.subr.bf16.mxu0 0
  %359 = vmatpush1.bf16.msra.mxu0 0
  %360 = vmatprep.subr.bf16.mxu0 0
  %361 = vmatpush1.bf16.msra.mxu0 0
  %362 = vmatprep.subr.bf16.mxu0 0
  %363 = vmatpush1.bf16.msra.mxu0 0
  %364 = vmatprep.mubr.bf16.mxu0 0
  %365 = vmatmul.mubr.bf16.gmra.mrb[0].mxu0 %v230
  %v366 = vpop.f32.mrb[0].mxu0
  %v367 = vadd.f32 0.0, %v366
  %v368 = vpop.f32.mrb[0].mxu0
  %v369 = vpop.f32.mrb[0].mxu0
  %v370 = vadd.f32 0.0, %v369
  %v371 = vpop.f32.mrb[0].mxu0
  %372 = vmatprep.mubr.bf16.mxu0 0
  %373 = vmatmul.mubr.bf16.gmra.mrb[0].mxu0 %v233
  %v374 = vpop.f32.mrb[0].mxu0
  %v375 = vadd.f32 0.0, %v374
  %v376 = vpop.f32.mrb[0].mxu0
  %v377 = vpop.f32.mrb[0].mxu0
  %v378 = vadd.f32 0.0, %v377
  %v379 = vpop.f32.mrb[0].mxu0
  %380 = vmatprep.mubr.bf16.mxu0 0
  %381 = vmatmul.mubr.bf16.gmra.mrb[0].mxu0 %v236
  %v382 = vpop.f32.mrb[0].mxu0
  %v383 = vadd.f32 0.0, %v382
  %v384 = vpop.f32.mrb[0].mxu0
  %v385 = vpop.f32.mrb[0].mxu0
  %v386 = vadd.f32 0.0, %v385
  %v387 = vpop.f32.mrb[0].mxu0
  %388 = vmatprep.mubr.bf16.mxu0 0
  %389 = vmatmul.mubr.bf16.gmra.mrb[0].mxu0 %v239
  %v390 = vpop.f32.mrb[0].mxu0
  %v391 = vadd.f32 0.0, %v390
  %v392 = vpop.f32.mrb[0].mxu0
  %v393 = vpop.f32.mrb[0].mxu0
  %v394 = vadd.f32 0.0, %v393
  %v395 = vpop.f32.mrb[0].mxu0
  %396 = vmatprep.mubr.bf16.mxu0 0
  %397 = vmatmul.mubr.bf16.gmra.mrb[0].mxu0 %v242
  %v398 = vpop.f32.mrb[0].mxu0
  %v399 = vadd.f32 0.0, %v398
  %v400 = vpop.f32.mrb[0].mxu0
  %v401 = vpop.f32.mrb[0].mxu0
  %v402 = vadd.f32 0.0, %v401
  %v403 = vpop.f32.mrb[0].mxu0
  %404 = vmatprep.mubr.bf16.mxu0 0
  %405 = vmatmul.mubr.bf16.gmra.mrb[0].mxu0 %v245
  %v406 = vpop.f32.mrb[0].mxu0
  %v407 = vadd.f32 0.0, %v406
  %v408 = vpop.f32.mrb[0].mxu0
  %v409 = vpop.f32.mrb[0].mxu0
  %v410 = vadd.f32 0.0, %v409
  %v411 = vpop.f32.mrb[0].mxu0
  %412 = vmatprep.mubr.bf16.mxu0 0
  %413 = vmatmul.mubr.bf16.gmra.mrb[0].mxu0 %v248
  %v414 = vpop.f32.mrb[0].mxu0
  %v415 = vadd.f32 0.0, %v414
  %v416 = vpop.f32.mrb[0].mxu0
  %v417 = vpop.f32.mrb[0].mxu0
  %v418 = vadd.f32 0.0, %v417
  %v419 = vpop.f32.mrb[0].mxu0
  %420 = vmatprep.mubr.bf16.mxu0 0
  %421 = vmatmul.mubr.bf16.gmra.mrb[0].mxu0 %v251
  %v422 = vpop.f32.mrb[0].mxu0
  %v423 = vadd.f32 0.0, %v422
  %v424 = vpop.f32.mrb[0].mxu0
  %v425 = vpop.f32.mrb[0].mxu0
  %v426 = vadd.f32 0.0, %v425
  %v427 = vpop.f32.mrb[0].mxu0
  %428 = vmatprep.mubr.bf16.mxu0 0
  %429 = vmatmul.mubr.bf16.gmra.mrb[0].mxu0 %v254
  %v430 = vpop.f32.mrb[0].mxu0
  %v431 = vadd.f32 0.0, %v430
  %v432 = vpop.f32.mrb[0].mxu0
  %v433 = vpop.f32.mrb[0].mxu0
  %v434 = vadd.f32 0.0, %v433
  %v435 = vpop.f32.mrb[0].mxu0
  %436 = vmatprep.mubr.bf16.mxu0 0
  %437 = vmatmul.mubr.bf16.gmra.mrb[0].mxu0 %v257
  %v438 = vpop.f32.mrb[0].mxu0
  %v439 = vadd.f32 0.0, %v438
  %v440 = vpop.f32.mrb[0].mxu0
  %v441 = vpop.f32.mrb[0].mxu0
  %v442 = vadd.f32 0.0, %v441
  %v443 = vpop.f32.mrb[0].mxu0
  %444 = vmatprep.mubr.bf16.mxu0 0
  %445 = vmatmul.mubr.bf16.gmra.mrb[0].mxu0 %v260
  %v446 = vpop.f32.mrb[0].mxu0
  %v447 = vadd.f32 0.0, %v446
  %v448 = vpop.f32.mrb[0].mxu0
  %v449 = vpop.f32.mrb[0].mxu0
  %v450 = vadd.f32 0.0, %v449
  %v451 = vpop.f32.mrb[0].mxu0
  %452 = vmatprep.mubr.bf16.mxu0 0
  %453 = vmatmul.mubr.bf16.gmra.mrb[0].mxu0 %v263
  %v454 = vpop.f32.mrb[0].mxu0
  %v455 = vadd.f32 0.0, %v454
  %v456 = vpop.f32.mrb[0].mxu0
  %v457 = vpop.f32.mrb[0].mxu0
  %v458 = vadd.f32 0.0, %v457
  %v459 = vpop.f32.mrb[0].mxu0
  %460 = vmatprep.mubr.bf16.mxu0 0
  %461 = vmatmul.mubr.bf16.gmra.mrb[0].mxu0 %v266
  %v462 = vpop.f32.mrb[0].mxu0
  %v463 = vadd.f32 0.0, %v462
  %v464 = vpop.f32.mrb[0].mxu0
  %v465 = vpop.f32.mrb[0].mxu0
  %v466 = vadd.f32 0.0, %v465
  %v467 = vpop.f32.mrb[0].mxu0
  %468 = vmatprep.mubr.bf16.mxu0 0
  %469 = vmatmul.mubr.bf16.gmra.mrb[0].mxu0 %v269
  %v470 = vpop.f32.mrb[0].mxu0
  %v471 = vadd.f32 0.0, %v470
  %v472 = vpop.f32.mrb[0].mxu0
  %v473 = vpop.f32.mrb[0].mxu0
  %v474 = vadd.f32 0.0, %v473
  %v475 = vpop.f32.mrb[0].mxu0
  %476 = vmatprep.mubr.bf16.mxu0 0
  %477 = vmatmul.mubr.bf16.gmra.mrb[0].mxu0 %v272
  %v478 = vpop.f32.mrb[0].mxu0
  %v479 = vadd.f32 0.0, %v478
  %v480 = vpop.f32.mrb[0].mxu0
  %v481 = vpop.f32.mrb[0].mxu0
  %v482 = vadd.f32 0.0, %v481
  %v483 = vpop.f32.mrb[0].mxu0
  %484 = vmatprep.mubr.bf16.mxu0 0
  %485 = vmatmul.mubr.bf16.gmra.mrb[0].mxu0 %v275
  %v486 = vpop.f32.mrb[0].mxu0
  %v487 = vadd.f32 0.0, %v486
  %v488 = vpop.f32.mrb[0].mxu0
  %v489 = vpop.f32.mrb[0].mxu0
  %v490 = vadd.f32 0.0, %v489
  %v491 = vpop.f32.mrb[0].mxu0
  %492 = vmatprep.mubr.bf16.mxu0 0
  %493 = vmatmul.mubr.bf16.gmra.mrb[0].mxu0 %v278
  %v494 = vpop.f32.mrb[0].mxu0
  %v495 = vadd.f32 0.0, %v494
  %v496 = vpop.f32.mrb[0].mxu0
  %v497 = vpop.f32.mrb[0].mxu0
  %v498 = vadd.f32 0.0, %v497
  %v499 = vpop.f32.mrb[0].mxu0
  %500 = vmatprep.mubr.bf16.mxu0 0
  %501 = vmatmul.mubr.bf16.gmra.mrb[0].mxu0 %v281
  %v502 = vpop.f32.mrb[0].mxu0
  %v503 = vadd.f32 0.0, %v502
  %v504 = vpop.f32.mrb[0].mxu0
  %v505 = vpop.f32.mrb[0].mxu0
  %v506 = vadd.f32 0.0, %v505
  %v507 = vpop.f32.mrb[0].mxu0
  %508 = vmatprep.mubr.bf16.mxu0 0
  %509 = vmatmul.mubr.bf16.gmra.mrb[0].mxu0 %v284
  %v510 = vpop.f32.mrb[0].mxu0
  %v511 = vadd.f32 0.0, %v510
  %v512 = vpop.f32.mrb[0].mxu0
  %v513 = vpop.f32.mrb[0].mxu0
  %v514 = vadd.f32 0.0, %v513
  %v515 = vpop.f32.mrb[0].mxu0
  %516 = vmatprep.mubr.bf16.mxu0 0
  %517 = vmatmul.mubr.bf16.gmra.mrb[0].mxu0 %v287
  %v518 = vpop.f32.mrb[0].mxu0
  %v519 = vadd.f32 0.0, %v518
  %v520 = vpop.f32.mrb[0].mxu0
  %v521 = vpop.f32.mrb[0].mxu0
  %v522 = vadd.f32 0.0, %v521
  %v523 = vpop.f32.mrb[0].mxu0
  %524 = vmatprep.mubr.bf16.mxu0 0
  %525 = vmatmul.mubr.bf16.gmra.mrb[0].mxu0 %v290
  %v526 = vpop.f32.mrb[0].mxu0
  %v527 = vadd.f32 0.0, %v526
  %v528 = vpop.f32.mrb[0].mxu0
  %v529 = vpop.f32.mrb[0].mxu0
  %v530 = vadd.f32 0.0, %v529
  %v531 = vpop.f32.mrb[0].mxu0
  %532 = vmatprep.mubr.bf16.mxu0 0
  %533 = vmatmul.mubr.bf16.gmra.mrb[0].mxu0 %v293
  %v534 = vpop.f32.mrb[0].mxu0
  %v535 = vadd.f32 0.0, %v534
  %v536 = vpop.f32.mrb[0].mxu0
  %v537 = vpop.f32.mrb[0].mxu0
  %v538 = vadd.f32 0.0, %v537
  %v539 = vpop.f32.mrb[0].mxu0
  %540 = vmatprep.mubr.bf16.mxu0 0
  %541 = vmatmul.mubr.bf16.gmra.mrb[0].mxu0 %v296
  %v542 = vpop.f32.mrb[0].mxu0
  %v543 = vadd.f32 0.0, %v542
  %v544 = vpop.f32.mrb[0].mxu0
  %v545 = vpop.f32.mrb[0].mxu0
  %v546 = vadd.f32 0.0, %v545
  %v547 = vpop.f32.mrb[0].mxu0
  %548 = vmatprep.mubr.bf16.mxu0 0
  %549 = vmatmul.mubr.bf16.gmra.mrb[0].mxu0 %v299
  %v550 = vpop.f32.mrb[0].mxu0
  %v551 = vadd.f32 0.0, %v550
  %v552 = vpop.f32.mrb[0].mxu0
  %v553 = vpop.f32.mrb[0].mxu0
  %v554 = vadd.f32 0.0, %v553
  %v555 = vpop.f32.mrb[0].mxu0
  %556 = vmatprep.mubr.bf16.mxu0 0
  %557 = vmatmul.mubr.bf16.gmra.mrb[0].mxu0 %v302
  %v558 = vpop.f32.mrb[0].mxu0
  %v559 = vadd.f32 0.0, %v558
  %v560 = vpop.f32.mrb[0].mxu0
  %v561 = vpop.f32.mrb[0].mxu0
  %v562 = vadd.f32 0.0, %v561
  %v563 = vpop.f32.mrb[0].mxu0
  %564 = vmatprep.mubr.bf16.mxu0 0
  %565 = vmatmul.mubr.bf16.gmra.mrb[0].mxu0 %v305
  %v566 = vpop.f32.mrb[0].mxu0
  %v567 = vadd.f32 0.0, %v566
  %v568 = vpop.f32.mrb[0].mxu0
  %v569 = vpop.f32.mrb[0].mxu0
  %v570 = vadd.f32 0.0, %v569
  %v571 = vpop.f32.mrb[0].mxu0
  %572 = vmatprep.mubr.bf16.mxu0 0
  %573 = vmatmul.mubr.bf16.gmra.mrb[0].mxu0 %v308
  %v574 = vpop.f32.mrb[0].mxu0
  %v575 = vadd.f32 0.0, %v574
  %v576 = vpop.f32.mrb[0].mxu0
  %v577 = vpop.f32.mrb[0].mxu0
  %v578 = vadd.f32 0.0, %v577
  %v579 = vpop.f32.mrb[0].mxu0
  %580 = vmatprep.mubr.bf16.mxu0 0
  %581 = vmatmul.mubr.bf16.gmra.mrb[0].mxu0 %v311
  %v582 = vpop.f32.mrb[0].mxu0
  %v583 = vadd.f32 0.0, %v582
  %v584 = vpop.f32.mrb[0].mxu0
  %v585 = vpop.f32.mrb[0].mxu0
  %v586 = vadd.f32 0.0, %v585
  %v587 = vpop.f32.mrb[0].mxu0
  %588 = vmatprep.mubr.bf16.mxu0 0
  %589 = vmatmul.mubr.bf16.gmra.mrb[0].mxu0 %v314
  %v590 = vpop.f32.mrb[0].mxu0
  %v591 = vadd.f32 0.0, %v590
  %v592 = vpop.f32.mrb[0].mxu0
  %v593 = vpop.f32.mrb[0].mxu0
  %v594 = vadd.f32 0.0, %v593
  %v595 = vpop.f32.mrb[0].mxu0
  %596 = vmatprep.mubr.bf16.mxu0 0
  %597 = vmatmul.mubr.bf16.gmra.mrb[0].mxu0 %v317
  %v598 = vpop.f32.mrb[0].mxu0
  %v599 = vadd.f32 0.0, %v598
  %v600 = vpop.f32.mrb[0].mxu0
  %v601 = vpop.f32.mrb[0].mxu0
  %v602 = vadd.f32 0.0, %v601
  %v603 = vpop.f32.mrb[0].mxu0
  %604 = vmatprep.mubr.bf16.mxu0 0
  %605 = vmatmul.mubr.bf16.gmra.mrb[0].mxu0 %v320
  %v606 = vpop.f32.mrb[0].mxu0
  %v607 = vadd.f32 0.0, %v606
  %v608 = vpop.f32.mrb[0].mxu0
  %v609 = vpop.f32.mrb[0].mxu0
  %v610 = vadd.f32 0.0, %v609
  %v611 = vpop.f32.mrb[0].mxu0
  %612 = vmatprep.mubr.bf16.mxu0 0
  %613 = vmatmul.mubr.bf16.gmra.mrb[0].mxu0 %v323
  %v614 = vpop.f32.mrb[0].mxu0
  %v615 = vadd.f32 0.0, %v614
  %v616 = vpop.f32.mrb[0].mxu0
  %v617 = vpop.f32.mrb[0].mxu0
  %v618 = vadd.f32 0.0, %v617
  %v619 = vpop.f32.mrb[0].mxu0
  %620 = vdwg.mxu0
  %vm621 = vcmask 23552
  %v623 = vsel %vm621, %v164, 0
  %v626 = vsel %vm621, %v165, 0
  %v629 = vsel %vm621, %v166, 0
  %v632 = vsel %vm621, %v167, 0
  %v635 = vsel %vm621, %v168, 0
  %v638 = vsel %vm621, %v169, 0
  %v641 = vsel %vm621, %v170, 0
  %v644 = vsel %vm621, %v171, 0
  %v647 = vsel %vm621, %v172, 0
  %v650 = vsel %vm621, %v173, 0
  %v653 = vsel %vm621, %v174, 0
  %v656 = vsel %vm621, %v175, 0
  %v659 = vsel %vm621, %v176, 0
  %v662 = vsel %vm621, %v177, 0
  %v665 = vsel %vm621, %v178, 0
  %v668 = vsel %vm621, %v179, 0
  %v671 = vsel %vm621, %v180, 0
  %v674 = vsel %vm621, %v181, 0
  %v677 = vsel %vm621, %v182, 0
  %v680 = vsel %vm621, %v183, 0
  %v683 = vsel %vm621, %v184, 0
  %v686 = vsel %vm621, %v185, 0
  %v689 = vsel %vm621, %v186, 0
  %v692 = vsel %vm621, %v187, 0
  %v695 = vsel %vm621, %v188, 0
  %v698 = vsel %vm621, %v189, 0
  %v701 = vsel %vm621, %v190, 0
  %v704 = vsel %vm621, %v191, 0
  %v707 = vsel %vm621, %v192, 0
  %v710 = vsel %vm621, %v193, 0
  %v713 = vsel %vm621, %v194, 0
  %v716 = vsel %vm621, %v195, 0
  %vm718 = vcmask 1040384
  %v719 = vsel %vm718, 4294967295, 65535
  %v720 = vsel %vm325, %v719, 0
  %v722 = vand.u32 %v161, %v720
  %724 = vmatprep.subr.bf16.mxu0 0
  %725 = vmatpush1.bf16.msra.mxu0 %v722
  %726 = vmatprep.subr.bf16.mxu0 0
  %727 = vmatpush1.bf16.msra.mxu0 0
  %728 = vmatprep.subr.bf16.mxu0 0
  %729 = vmatpush1.bf16.msra.mxu0 0
  %730 = vmatprep.subr.bf16.mxu0 0
  %731 = vmatpush1.bf16.msra.mxu0 0
  %732 = vmatprep.subr.bf16.mxu0 0
  %733 = vmatpush1.bf16.msra.mxu0 0
  %734 = vmatprep.subr.bf16.mxu0 0
  %735 = vmatpush1.bf16.msra.mxu0 0
  %736 = vmatprep.subr.bf16.mxu0 0
  %737 = vmatpush1.bf16.msra.mxu0 0
  %738 = vmatprep.subr.bf16.mxu0 0
  %739 = vmatpush1.bf16.msra.mxu0 0
  %740 = vmatprep.subr.bf16.mxu0 0
  %741 = vmatpush1.bf16.msra.mxu0 0
  %742 = vmatprep.subr.bf16.mxu0 0
  %743 = vmatpush1.bf16.msra.mxu0 0
  %744 = vmatprep.subr.bf16.mxu0 0
  %745 = vmatpush1.bf16.msra.mxu0 0
  %746 = vmatprep.subr.bf16.mxu0 0
  %747 = vmatpush1.bf16.msra.mxu0 0
  %748 = vmatprep.subr.bf16.mxu0 0
  %749 = vmatpush1.bf16.msra.mxu0 0
  %750 = vmatprep.subr.bf16.mxu0 0
  %751 = vmatpush1.bf16.msra.mxu0 0
  %752 = vmatprep.subr.bf16.mxu0 0
  %753 = vmatpush1.bf16.msra.mxu0 0
  %754 = vmatprep.subr.bf16.mxu0 0
  %755 = vmatpush1.bf16.msra.mxu0 0
  %756 = vmatprep.mubr.bf16.mxu0 0
  %757 = vmatmul.mubr.bf16.gmra.mrb[0].mxu0 %v623
  %v758 = vpop.f32.mrb[0].mxu0
  %v759 = vadd.f32 %v367, %v758
  %v760 = vpop.f32.mrb[0].mxu0
  %v761 = vpop.f32.mrb[0].mxu0
  %v762 = vadd.f32 %v370, %v761
  %v763 = vpop.f32.mrb[0].mxu0
  %764 = vmatprep.mubr.bf16.mxu0 0
  %765 = vmatmul.mubr.bf16.gmra.mrb[0].mxu0 %v626
  %v766 = vpop.f32.mrb[0].mxu0
  %v767 = vadd.f32 %v375, %v766
  %v768 = vpop.f32.mrb[0].mxu0
  %v769 = vpop.f32.mrb[0].mxu0
  %v770 = vadd.f32 %v378, %v769
  %v771 = vpop.f32.mrb[0].mxu0
  %772 = vmatprep.mubr.bf16.mxu0 0
  %773 = vmatmul.mubr.bf16.gmra.mrb[0].mxu0 %v629
  %v774 = vpop.f32.mrb[0].mxu0
  %v775 = vadd.f32 %v383, %v774
  %v776 = vpop.f32.mrb[0].mxu0
  %v777 = vpop.f32.mrb[0].mxu0
  %v778 = vadd.f32 %v386, %v777
  %v779 = vpop.f32.mrb[0].mxu0
  %780 = vmatprep.mubr.bf16.mxu0 0
  %781 = vmatmul.mubr.bf16.gmra.mrb[0].mxu0 %v632
  %v782 = vpop.f32.mrb[0].mxu0
  %v783 = vadd.f32 %v391, %v782
  %v784 = vpop.f32.mrb[0].mxu0
  %v785 = vpop.f32.mrb[0].mxu0
  %v786 = vadd.f32 %v394, %v785
  %v787 = vpop.f32.mrb[0].mxu0
  %788 = vmatprep.mubr.bf16.mxu0 0
  %789 = vmatmul.mubr.bf16.gmra.mrb[0].mxu0 %v635
  %v790 = vpop.f32.mrb[0].mxu0
  %v791 = vadd.f32 %v399, %v790
  %v792 = vpop.f32.mrb[0].mxu0
  %v793 = vpop.f32.mrb[0].mxu0
  %v794 = vadd.f32 %v402, %v793
  %v795 = vpop.f32.mrb[0].mxu0
  %796 = vmatprep.mubr.bf16.mxu0 0
  %797 = vmatmul.mubr.bf16.gmra.mrb[0].mxu0 %v638
  %v798 = vpop.f32.mrb[0].mxu0
  %v799 = vadd.f32 %v407, %v798
  %v800 = vpop.f32.mrb[0].mxu0
  %v801 = vpop.f32.mrb[0].mxu0
  %v802 = vadd.f32 %v410, %v801
  %v803 = vpop.f32.mrb[0].mxu0
  %804 = vmatprep.mubr.bf16.mxu0 0
  %805 = vmatmul.mubr.bf16.gmra.mrb[0].mxu0 %v641
  %v806 = vpop.f32.mrb[0].mxu0
  %v807 = vadd.f32 %v415, %v806
  %v808 = vpop.f32.mrb[0].mxu0
  %v809 = vpop.f32.mrb[0].mxu0
  %v810 = vadd.f32 %v418, %v809
  %v811 = vpop.f32.mrb[0].mxu0
  %812 = vmatprep.mubr.bf16.mxu0 0
  %813 = vmatmul.mubr.bf16.gmra.mrb[0].mxu0 %v644
  %v814 = vpop.f32.mrb[0].mxu0
  %v815 = vadd.f32 %v423, %v814
  %v816 = vpop.f32.mrb[0].mxu0
  %v817 = vpop.f32.mrb[0].mxu0
  %v818 = vadd.f32 %v426, %v817
  %v819 = vpop.f32.mrb[0].mxu0
  %820 = vmatprep.mubr.bf16.mxu0 0
  %821 = vmatmul.mubr.bf16.gmra.mrb[0].mxu0 %v647
  %v822 = vpop.f32.mrb[0].mxu0
  %v823 = vadd.f32 %v431, %v822
  %v824 = vpop.f32.mrb[0].mxu0
  %v825 = vpop.f32.mrb[0].mxu0
  %v826 = vadd.f32 %v434, %v825
  %v827 = vpop.f32.mrb[0].mxu0
  %828 = vmatprep.mubr.bf16.mxu0 0
  %829 = vmatmul.mubr.bf16.gmra.mrb[0].mxu0 %v650
  %v830 = vpop.f32.mrb[0].mxu0
  %v831 = vadd.f32 %v439, %v830
  %v832 = vpop.f32.mrb[0].mxu0
  %v833 = vpop.f32.mrb[0].mxu0
  %v834 = vadd.f32 %v442, %v833
  %v835 = vpop.f32.mrb[0].mxu0
  %836 = vmatprep.mubr.bf16.mxu0 0
  %837 = vmatmul.mubr.bf16.gmra.mrb[0].mxu0 %v653
  %v838 = vpop.f32.mrb[0].mxu0
  %v839 = vadd.f32 %v447, %v838
  %v840 = vpop.f32.mrb[0].mxu0
  %v841 = vpop.f32.mrb[0].mxu0
  %v842 = vadd.f32 %v450, %v841
  %v843 = vpop.f32.mrb[0].mxu0
  %844 = vmatprep.mubr.bf16.mxu0 0
  %845 = vmatmul.mubr.bf16.gmra.mrb[0].mxu0 %v656
  %v846 = vpop.f32.mrb[0].mxu0
  %v847 = vadd.f32 %v455, %v846
  %v848 = vpop.f32.mrb[0].mxu0
  %v849 = vpop.f32.mrb[0].mxu0
  %v850 = vadd.f32 %v458, %v849
  %v851 = vpop.f32.mrb[0].mxu0
  %852 = vmatprep.mubr.bf16.mxu0 0
  %853 = vmatmul.mubr.bf16.gmra.mrb[0].mxu0 %v659
  %v854 = vpop.f32.mrb[0].mxu0
  %v855 = vadd.f32 %v463, %v854
  %v856 = vpop.f32.mrb[0].mxu0
  %v857 = vpop.f32.mrb[0].mxu0
  %v858 = vadd.f32 %v466, %v857
  %v859 = vpop.f32.mrb[0].mxu0
  %860 = vmatprep.mubr.bf16.mxu0 0
  %861 = vmatmul.mubr.bf16.gmra.mrb[0].mxu0 %v662
  %v862 = vpop.f32.mrb[0].mxu0
  %v863 = vadd.f32 %v471, %v862
  %v864 = vpop.f32.mrb[0].mxu0
  %v865 = vpop.f32.mrb[0].mxu0
  %v866 = vadd.f32 %v474, %v865
  %v867 = vpop.f32.mrb[0].mxu0
  %868 = vmatprep.mubr.bf16.mxu0 0
  %869 = vmatmul.mubr.bf16.gmra.mrb[0].mxu0 %v665
  %v870 = vpop.f32.mrb[0].mxu0
  %v871 = vadd.f32 %v479, %v870
  %v872 = vpop.f32.mrb[0].mxu0
  %v873 = vpop.f32.mrb[0].mxu0
  %v874 = vadd.f32 %v482, %v873
  %v875 = vpop.f32.mrb[0].mxu0
  %876 = vmatprep.mubr.bf16.mxu0 0
  %877 = vmatmul.mubr.bf16.gmra.mrb[0].mxu0 %v668
  %v878 = vpop.f32.mrb[0].mxu0
  %v879 = vadd.f32 %v487, %v878
  %v880 = vpop.f32.mrb[0].mxu0
  %v881 = vpop.f32.mrb[0].mxu0
  %v882 = vadd.f32 %v490, %v881
  %v883 = vpop.f32.mrb[0].mxu0
  %884 = vmatprep.mubr.bf16.mxu0 0
  %885 = vmatmul.mubr.bf16.gmra.mrb[0].mxu0 %v671
  %v886 = vpop.f32.mrb[0].mxu0
  %v887 = vadd.f32 %v495, %v886
  %v888 = vpop.f32.mrb[0].mxu0
  %v889 = vpop.f32.mrb[0].mxu0
  %v890 = vadd.f32 %v498, %v889
  %v891 = vpop.f32.mrb[0].mxu0
  %892 = vmatprep.mubr.bf16.mxu0 0
  %893 = vmatmul.mubr.bf16.gmra.mrb[0].mxu0 %v674
  %v894 = vpop.f32.mrb[0].mxu0
  %v895 = vadd.f32 %v503, %v894
  %v896 = vpop.f32.mrb[0].mxu0
  %v897 = vpop.f32.mrb[0].mxu0
  %v898 = vadd.f32 %v506, %v897
  %v899 = vpop.f32.mrb[0].mxu0
  %900 = vmatprep.mubr.bf16.mxu0 0
  %901 = vmatmul.mubr.bf16.gmra.mrb[0].mxu0 %v677
  %v902 = vpop.f32.mrb[0].mxu0
  %v903 = vadd.f32 %v511, %v902
  %v904 = vpop.f32.mrb[0].mxu0
  %v905 = vpop.f32.mrb[0].mxu0
  %v906 = vadd.f32 %v514, %v905
  %v907 = vpop.f32.mrb[0].mxu0
  %908 = vmatprep.mubr.bf16.mxu0 0
  %909 = vmatmul.mubr.bf16.gmra.mrb[0].mxu0 %v680
  %v910 = vpop.f32.mrb[0].mxu0
  %v911 = vadd.f32 %v519, %v910
  %v912 = vpop.f32.mrb[0].mxu0
  %v913 = vpop.f32.mrb[0].mxu0
  %v914 = vadd.f32 %v522, %v913
  %v915 = vpop.f32.mrb[0].mxu0
  %916 = vmatprep.mubr.bf16.mxu0 0
  %917 = vmatmul.mubr.bf16.gmra.mrb[0].mxu0 %v683
  %v918 = vpop.f32.mrb[0].mxu0
  %v919 = vadd.f32 %v527, %v918
  %v920 = vpop.f32.mrb[0].mxu0
  %v921 = vpop.f32.mrb[0].mxu0
  %v922 = vadd.f32 %v530, %v921
  %v923 = vpop.f32.mrb[0].mxu0
  %924 = vmatprep.mubr.bf16.mxu0 0
  %925 = vmatmul.mubr.bf16.gmra.mrb[0].mxu0 %v686
  %v926 = vpop.f32.mrb[0].mxu0
  %v927 = vadd.f32 %v535, %v926
  %v928 = vpop.f32.mrb[0].mxu0
  %v929 = vpop.f32.mrb[0].mxu0
  %v930 = vadd.f32 %v538, %v929
  %v931 = vpop.f32.mrb[0].mxu0
  %932 = vmatprep.mubr.bf16.mxu0 0
  %933 = vmatmul.mubr.bf16.gmra.mrb[0].mxu0 %v689
  %v934 = vpop.f32.mrb[0].mxu0
  %v935 = vadd.f32 %v543, %v934
  %v936 = vpop.f32.mrb[0].mxu0
  %v937 = vpop.f32.mrb[0].mxu0
  %v938 = vadd.f32 %v546, %v937
  %v939 = vpop.f32.mrb[0].mxu0
  %940 = vmatprep.mubr.bf16.mxu0 0
  %941 = vmatmul.mubr.bf16.gmra.mrb[0].mxu0 %v692
  %v942 = vpop.f32.mrb[0].mxu0
  %v943 = vadd.f32 %v551, %v942
  %v944 = vpop.f32.mrb[0].mxu0
  %v945 = vpop.f32.mrb[0].mxu0
  %v946 = vadd.f32 %v554, %v945
  %v947 = vpop.f32.mrb[0].mxu0
  %948 = vmatprep.mubr.bf16.mxu0 0
  %949 = vmatmul.mubr.bf16.gmra.mrb[0].mxu0 %v695
  %v950 = vpop.f32.mrb[0].mxu0
  %v951 = vadd.f32 %v559, %v950
  %v952 = vpop.f32.mrb[0].mxu0
  %v953 = vpop.f32.mrb[0].mxu0
  %v954 = vadd.f32 %v562, %v953
  %v955 = vpop.f32.mrb[0].mxu0
  %956 = vmatprep.mubr.bf16.mxu0 0
  %957 = vmatmul.mubr.bf16.gmra.mrb[0].mxu0 %v698
  %v958 = vpop.f32.mrb[0].mxu0
  %v959 = vadd.f32 %v567, %v958
  %v960 = vpop.f32.mrb[0].mxu0
  %v961 = vpop.f32.mrb[0].mxu0
  %v962 = vadd.f32 %v570, %v961
  %v963 = vpop.f32.mrb[0].mxu0
  %964 = vmatprep.mubr.bf16.mxu0 0
  %965 = vmatmul.mubr.bf16.gmra.mrb[0].mxu0 %v701
  %v966 = vpop.f32.mrb[0].mxu0
  %v967 = vadd.f32 %v575, %v966
  %v968 = vpop.f32.mrb[0].mxu0
  %v969 = vpop.f32.mrb[0].mxu0
  %v970 = vadd.f32 %v578, %v969
  %v971 = vpop.f32.mrb[0].mxu0
  %972 = vmatprep.mubr.bf16.mxu0 0
  %973 = vmatmul.mubr.bf16.gmra.mrb[0].mxu0 %v704
  %v974 = vpop.f32.mrb[0].mxu0
  %v975 = vadd.f32 %v583, %v974
  %v976 = vpop.f32.mrb[0].mxu0
  %v977 = vpop.f32.mrb[0].mxu0
  %v978 = vadd.f32 %v586, %v977
  %v979 = vpop.f32.mrb[0].mxu0
  %980 = vmatprep.mubr.bf16.mxu0 0
  %981 = vmatmul.mubr.bf16.gmra.mrb[0].mxu0 %v707
  %v982 = vpop.f32.mrb[0].mxu0
  %v983 = vadd.f32 %v591, %v982
  %v984 = vpop.f32.mrb[0].mxu0
  %v985 = vpop.f32.mrb[0].mxu0
  %v986 = vadd.f32 %v594, %v985
  %v987 = vpop.f32.mrb[0].mxu0
  %988 = vmatprep.mubr.bf16.mxu0 0
  %989 = vmatmul.mubr.bf16.gmra.mrb[0].mxu0 %v710
  %v990 = vpop.f32.mrb[0].mxu0
  %v991 = vadd.f32 %v599, %v990
  %v992 = vpop.f32.mrb[0].mxu0
  %v993 = vpop.f32.mrb[0].mxu0
  %v994 = vadd.f32 %v602, %v993
  %v995 = vpop.f32.mrb[0].mxu0
  %996 = vmatprep.mubr.bf16.mxu0 0
  %997 = vmatmul.mubr.bf16.gmra.mrb[0].mxu0 %v713
  %v998 = vpop.f32.mrb[0].mxu0
  %v999 = vadd.f32 %v607, %v998
  %v1000 = vpop.f32.mrb[0].mxu0
  %v1001 = vpop.f32.mrb[0].mxu0
  %v1002 = vadd.f32 %v610, %v1001
  %v1003 = vpop.f32.mrb[0].mxu0
  %1004 = vmatprep.mubr.bf16.mxu0 0
  %1005 = vmatmul.mubr.bf16.gmra.mrb[0].mxu0 %v716
  %v1006 = vpop.f32.mrb[0].mxu0
  %v1007 = vadd.f32 %v615, %v1006
  %v1008 = vpop.f32.mrb[0].mxu0
  %v1009 = vpop.f32.mrb[0].mxu0
  %v1010 = vadd.f32 %v618, %v1009
  %v1011 = vpop.f32.mrb[0].mxu0
  %1012 = vdwg.mxu0
  %v1014 = vlaneseq
  %v1015 = vshrl.u32 %v1014, 7
  %v1016 = vsub.s32 0, %v1015
  %v1017 = vrot.slane %v163, %v1016
  %v1019 = vadd.f32 %v759, %v1017
  %v1020 = vadd.f32 %v762, %v1017
  %v1021 = vadd.f32 %v767, %v1017
  %v1022 = vadd.f32 %v770, %v1017
  %v1023 = vadd.f32 %v775, %v1017
  %v1024 = vadd.f32 %v778, %v1017
  %v1025 = vadd.f32 %v783, %v1017
  %v1026 = vadd.f32 %v786, %v1017
  %v1027 = vadd.f32 %v791, %v1017
  %v1028 = vadd.f32 %v794, %v1017
  %v1029 = vadd.f32 %v799, %v1017
  %v1030 = vadd.f32 %v802, %v1017
  %v1031 = vadd.f32 %v807, %v1017
  %v1032 = vadd.f32 %v810, %v1017
  %v1033 = vadd.f32 %v815, %v1017
  %v1034 = vadd.f32 %v818, %v1017
  %v1035 = vadd.f32 %v823, %v1017
  %v1036 = vadd.f32 %v826, %v1017
  %v1037 = vadd.f32 %v831, %v1017
  %v1038 = vadd.f32 %v834, %v1017
  %v1039 = vadd.f32 %v839, %v1017
  %v1040 = vadd.f32 %v842, %v1017
  %v1041 = vadd.f32 %v847, %v1017
  %v1042 = vadd.f32 %v850, %v1017
  %v1043 = vadd.f32 %v855, %v1017
  %v1044 = vadd.f32 %v858, %v1017
  %v1045 = vadd.f32 %v863, %v1017
  %v1046 = vadd.f32 %v866, %v1017
  %v1047 = vadd.f32 %v871, %v1017
  %v1048 = vadd.f32 %v874, %v1017
  %v1049 = vadd.f32 %v879, %v1017
  %v1050 = vadd.f32 %v882, %v1017
  %v1051 = vadd.f32 %v887, %v1017
  %v1052 = vadd.f32 %v890, %v1017
  %v1053 = vadd.f32 %v895, %v1017
  %v1054 = vadd.f32 %v898, %v1017
  %v1055 = vadd.f32 %v903, %v1017
  %v1056 = vadd.f32 %v906, %v1017
  %v1057 = vadd.f32 %v911, %v1017
  %v1058 = vadd.f32 %v914, %v1017
  %v1059 = vadd.f32 %v919, %v1017
  %v1060 = vadd.f32 %v922, %v1017
  %v1061 = vadd.f32 %v927, %v1017
  %v1062 = vadd.f32 %v930, %v1017
  %v1063 = vadd.f32 %v935, %v1017
  %v1064 = vadd.f32 %v938, %v1017
  %v1065 = vadd.f32 %v943, %v1017
  %v1066 = vadd.f32 %v946, %v1017
  %v1067 = vadd.f32 %v951, %v1017
  %v1068 = vadd.f32 %v954, %v1017
  %v1069 = vadd.f32 %v959, %v1017
  %v1070 = vadd.f32 %v962, %v1017
  %v1071 = vadd.f32 %v967, %v1017
  %v1072 = vadd.f32 %v970, %v1017
  %v1073 = vadd.f32 %v975, %v1017
  %v1074 = vadd.f32 %v978, %v1017
  %v1075 = vadd.f32 %v983, %v1017
  %v1076 = vadd.f32 %v986, %v1017
  %v1077 = vadd.f32 %v991, %v1017
  %v1078 = vadd.f32 %v994, %v1017
  %v1079 = vadd.f32 %v999, %v1017
  %v1080 = vadd.f32 %v1002, %v1017
  %v1081 = vadd.f32 %v1007, %v1017
  %v1082 = vadd.f32 %v1010, %v1017
  %v1083 = vmax.f32 %v1019, 0.0
  %v1084 = vmax.f32 %v1020, 0.0
  %v1085 = vmax.f32 %v1021, 0.0
  %v1086 = vmax.f32 %v1022, 0.0
  %v1087 = vmax.f32 %v1023, 0.0
  %v1088 = vmax.f32 %v1024, 0.0
  %v1089 = vmax.f32 %v1025, 0.0
  %v1090 = vmax.f32 %v1026, 0.0
  %v1091 = vmax.f32 %v1027, 0.0
  %v1092 = vmax.f32 %v1028, 0.0
  %v1093 = vmax.f32 %v1029, 0.0
  %v1094 = vmax.f32 %v1030, 0.0
  %v1095 = vmax.f32 %v1031, 0.0
  %v1096 = vmax.f32 %v1032, 0.0
  %v1097 = vmax.f32 %v1033, 0.0
  %v1098 = vmax.f32 %v1034, 0.0
  %v1099 = vmax.f32 %v1035, 0.0
  %v1100 = vmax.f32 %v1036, 0.0
  %v1101 = vmax.f32 %v1037, 0.0
  %v1102 = vmax.f32 %v1038, 0.0
  %v1103 = vmax.f32 %v1039, 0.0
  %v1104 = vmax.f32 %v1040, 0.0
  %v1105 = vmax.f32 %v1041, 0.0
  %v1106 = vmax.f32 %v1042, 0.0
  %v1107 = vmax.f32 %v1043, 0.0
  %v1108 = vmax.f32 %v1044, 0.0
  %v1109 = vmax.f32 %v1045, 0.0
  %v1110 = vmax.f32 %v1046, 0.0
  %v1111 = vmax.f32 %v1047, 0.0
  %v1112 = vmax.f32 %v1048, 0.0
  %v1113 = vmax.f32 %v1049, 0.0
  %v1114 = vmax.f32 %v1050, 0.0
  %v1115 = vmax.f32 %v1051, 0.0
  %v1116 = vmax.f32 %v1052, 0.0
  %v1117 = vmax.f32 %v1053, 0.0
  %v1118 = vmax.f32 %v1054, 0.0
  %v1119 = vmax.f32 %v1055, 0.0
  %v1120 = vmax.f32 %v1056, 0.0
  %v1121 = vmax.f32 %v1057, 0.0
  %v1122 = vmax.f32 %v1058, 0.0
  %v1123 = vmax.f32 %v1059, 0.0
  %v1124 = vmax.f32 %v1060, 0.0
  %v1125 = vmax.f32 %v1061, 0.0
  %v1126 = vmax.f32 %v1062, 0.0
  %v1127 = vmax.f32 %v1063, 0.0
  %v1128 = vmax.f32 %v1064, 0.0
  %v1129 = vmax.f32 %v1065, 0.0
  %v1130 = vmax.f32 %v1066, 0.0
  %v1131 = vmax.f32 %v1067, 0.0
  %v1132 = vmax.f32 %v1068, 0.0
  %v1133 = vmax.f32 %v1069, 0.0
  %v1134 = vmax.f32 %v1070, 0.0
  %v1135 = vmax.f32 %v1071, 0.0
  %v1136 = vmax.f32 %v1072, 0.0
  %v1137 = vmax.f32 %v1073, 0.0
  %v1138 = vmax.f32 %v1074, 0.0
  %v1139 = vmax.f32 %v1075, 0.0
  %v1140 = vmax.f32 %v1076, 0.0
  %v1141 = vmax.f32 %v1077, 0.0
  %v1142 = vmax.f32 %v1078, 0.0
  %v1143 = vmax.f32 %v1079, 0.0
  %v1144 = vmax.f32 %v1080, 0.0
  %v1145 = vmax.f32 %v1081, 0.0
  %v1146 = vmax.f32 %v1082, 0.0
  %v1147 = vld [vmem:[%s5] sm:$0xf]
  %v1148 = vld [vmem:[%s5 + $0x4] sm:$0xf]
  %v1149 = vld [vmem:[%s5 + $0x8] sm:$0xf]
  %v1150 = vld [vmem:[%s5 + $0xc] sm:$0xf]
  %v1151 = vld [vmem:[%s5 + $0x10] sm:$0xf]
  %v1152 = vld [vmem:[%s5 + $0x14] sm:$0xf]
  %v1153 = vld [vmem:[%s5 + $0x18] sm:$0xf]
  %v1154 = vld [vmem:[%s5 + $0x1c] sm:$0xf]
  %v1155 = vld [vmem:[%s6] sm:$0x1]
  %v1156 = vpack.c.bf16 %v1084, %v1083
  %v1157 = vpack.c.bf16 %v1086, %v1085
  %v1158 = vpack.c.bf16 %v1088, %v1087
  %v1159 = vpack.c.bf16 %v1090, %v1089
  %v1160 = vpack.c.bf16 %v1092, %v1091
  %v1161 = vpack.c.bf16 %v1094, %v1093
  %v1162 = vpack.c.bf16 %v1096, %v1095
  %v1163 = vpack.c.bf16 %v1098, %v1097
  %v1164 = vpack.c.bf16 %v1100, %v1099
  %v1165 = vpack.c.bf16 %v1102, %v1101
  %v1166 = vpack.c.bf16 %v1104, %v1103
  %v1167 = vpack.c.bf16 %v1106, %v1105
  %v1168 = vpack.c.bf16 %v1108, %v1107
  %v1169 = vpack.c.bf16 %v1110, %v1109
  %v1170 = vpack.c.bf16 %v1112, %v1111
  %v1171 = vpack.c.bf16 %v1114, %v1113
  %v1172 = vpack.c.bf16 %v1116, %v1115
  %v1173 = vpack.c.bf16 %v1118, %v1117
  %v1174 = vpack.c.bf16 %v1120, %v1119
  %v1175 = vpack.c.bf16 %v1122, %v1121
  %v1176 = vpack.c.bf16 %v1124, %v1123
  %v1177 = vpack.c.bf16 %v1126, %v1125
  %v1178 = vpack.c.bf16 %v1128, %v1127
  %v1179 = vpack.c.bf16 %v1130, %v1129
  %v1180 = vpack.c.bf16 %v1132, %v1131
  %v1181 = vpack.c.bf16 %v1134, %v1133
  %v1182 = vpack.c.bf16 %v1136, %v1135
  %v1183 = vpack.c.bf16 %v1138, %v1137
  %v1184 = vpack.c.bf16 %v1140, %v1139
  %v1185 = vpack.c.bf16 %v1142, %v1141
  %v1186 = vpack.c.bf16 %v1144, %v1143
  %v1187 = vpack.c.bf16 %v1146, %v1145
  %v1189 = vlaneseq
  %v1190 = vshrl.u32 %v1189, 7
  %v1191 = vsub.s32 0, %v1190
  %v1192 = vrot.slane %v1155, %v1191
  %v1202 = vunpack.c.l.b16 %v1147
  %v1203 = vunpack.c.l.b16 %v1148
  %v1204 = vunpack.c.l.b16 %v1149
  %v1205 = vunpack.c.l.b16 %v1150
  %v1206 = vunpack.c.l.b16 %v1151
  %v1207 = vunpack.c.l.b16 %v1152
  %v1208 = vunpack.c.l.b16 %v1153
  %v1209 = vunpack.c.l.b16 %v1154
  %v1210 = vpack.c.b16 %v1203, %v1202
  %v1211 = vpack.c.b16 %v1205, %v1204
  %v1212 = vpack.c.b16 %v1207, %v1206
  %v1213 = vpack.c.b16 %v1209, %v1208
  %vm1218 = vcmask 523264
  %v1220 = vsel %vm1218, %v1156, 0
  %v1223 = vsel %vm1218, %v1157, 0
  %v1226 = vsel %vm1218, %v1158, 0
  %v1229 = vsel %vm1218, %v1159, 0
  %v1232 = vsel %vm1218, %v1160, 0
  %v1235 = vsel %vm1218, %v1161, 0
  %v1238 = vsel %vm1218, %v1162, 0
  %v1241 = vsel %vm1218, %v1163, 0
  %v1244 = vsel %vm1218, %v1164, 0
  %v1247 = vsel %vm1218, %v1165, 0
  %v1250 = vsel %vm1218, %v1166, 0
  %v1253 = vsel %vm1218, %v1167, 0
  %v1256 = vsel %vm1218, %v1168, 0
  %v1259 = vsel %vm1218, %v1169, 0
  %v1262 = vsel %vm1218, %v1170, 0
  %v1265 = vsel %vm1218, %v1171, 0
  %v1268 = vsel %vm1218, %v1172, 0
  %v1271 = vsel %vm1218, %v1173, 0
  %v1274 = vsel %vm1218, %v1174, 0
  %v1277 = vsel %vm1218, %v1175, 0
  %v1280 = vsel %vm1218, %v1176, 0
  %v1283 = vsel %vm1218, %v1177, 0
  %v1286 = vsel %vm1218, %v1178, 0
  %v1289 = vsel %vm1218, %v1179, 0
  %v1292 = vsel %vm1218, %v1180, 0
  %v1295 = vsel %vm1218, %v1181, 0
  %v1298 = vsel %vm1218, %v1182, 0
  %v1301 = vsel %vm1218, %v1183, 0
  %v1304 = vsel %vm1218, %v1184, 0
  %v1307 = vsel %vm1218, %v1185, 0
  %v1310 = vsel %vm1218, %v1186, 0
  %v1313 = vsel %vm1218, %v1187, 0
  %1315 = vmatprep.subr.bf16.mxu0 0
  %1316 = vmatpush1.bf16.msra.mxu0 %v1210
  %1317 = vmatprep.subr.bf16.mxu0 0
  %1318 = vmatpush1.bf16.msra.mxu0 %v1211
  %1319 = vmatprep.subr.bf16.mxu0 0
  %1320 = vmatpush1.bf16.msra.mxu0 %v1212
  %1321 = vmatprep.subr.bf16.mxu0 0
  %1322 = vmatpush1.bf16.msra.mxu0 %v1213
  %1323 = vmatprep.subr.bf16.mxu0 0
  %1324 = vmatpush1.bf16.msra.mxu0 0
  %1325 = vmatprep.subr.bf16.mxu0 0
  %1326 = vmatpush1.bf16.msra.mxu0 0
  %1327 = vmatprep.subr.bf16.mxu0 0
  %1328 = vmatpush1.bf16.msra.mxu0 0
  %1329 = vmatprep.subr.bf16.mxu0 0
  %1330 = vmatpush1.bf16.msra.mxu0 0
  %1331 = vmatprep.subr.bf16.mxu0 0
  %1332 = vmatpush1.bf16.msra.mxu0 0
  %1333 = vmatprep.subr.bf16.mxu0 0
  %1334 = vmatpush1.bf16.msra.mxu0 0
  %1335 = vmatprep.subr.bf16.mxu0 0
  %1336 = vmatpush1.bf16.msra.mxu0 0
  %1337 = vmatprep.subr.bf16.mxu0 0
  %1338 = vmatpush1.bf16.msra.mxu0 0
  %1339 = vmatprep.subr.bf16.mxu0 0
  %1340 = vmatpush1.bf16.msra.mxu0 0
  %1341 = vmatprep.subr.bf16.mxu0 0
  %1342 = vmatpush1.bf16.msra.mxu0 0
  %1343 = vmatprep.subr.bf16.mxu0 0
  %1344 = vmatpush1.bf16.msra.mxu0 0
  %1345 = vmatprep.subr.bf16.mxu0 0
  %1346 = vmatpush1.bf16.msra.mxu0 0
  %1347 = vmatprep.mubr.bf16.mxu0 0
  %1348 = vmatmul.mubr.bf16.gmra.mrb[0].mxu0 %v1220
  %v1349 = vpop.f32.mrb[0].mxu0
  %v1350 = vadd.f32 %v1192, %v1349
  %v1351 = vpop.f32.mrb[0].mxu0
  %v1352 = vpop.f32.mrb[0].mxu0
  %v1353 = vadd.f32 %v1192, %v1352
  %v1354 = vpop.f32.mrb[0].mxu0
  %1355 = vmatprep.mubr.bf16.mxu0 0
  %1356 = vmatmul.mubr.bf16.gmra.mrb[0].mxu0 %v1223
  %v1357 = vpop.f32.mrb[0].mxu0
  %v1358 = vadd.f32 %v1192, %v1357
  %v1359 = vpop.f32.mrb[0].mxu0
  %v1360 = vpop.f32.mrb[0].mxu0
  %v1361 = vadd.f32 %v1192, %v1360
  %v1362 = vpop.f32.mrb[0].mxu0
  %1363 = vmatprep.mubr.bf16.mxu0 0
  %1364 = vmatmul.mubr.bf16.gmra.mrb[0].mxu0 %v1226
  %v1365 = vpop.f32.mrb[0].mxu0
  %v1366 = vadd.f32 %v1192, %v1365
  %v1367 = vpop.f32.mrb[0].mxu0
  %v1368 = vpop.f32.mrb[0].mxu0
  %v1369 = vadd.f32 %v1192, %v1368
  %v1370 = vpop.f32.mrb[0].mxu0
  %1371 = vmatprep.mubr.bf16.mxu0 0
  %1372 = vmatmul.mubr.bf16.gmra.mrb[0].mxu0 %v1229
  %v1373 = vpop.f32.mrb[0].mxu0
  %v1374 = vadd.f32 %v1192, %v1373
  %v1375 = vpop.f32.mrb[0].mxu0
  %v1376 = vpop.f32.mrb[0].mxu0
  %v1377 = vadd.f32 %v1192, %v1376
  %v1378 = vpop.f32.mrb[0].mxu0
  %1379 = vmatprep.mubr.bf16.mxu0 0
  %1380 = vmatmul.mubr.bf16.gmra.mrb[0].mxu0 %v1232
  %v1381 = vpop.f32.mrb[0].mxu0
  %v1382 = vadd.f32 %v1192, %v1381
  %v1383 = vpop.f32.mrb[0].mxu0
  %v1384 = vpop.f32.mrb[0].mxu0
  %v1385 = vadd.f32 %v1192, %v1384
  %v1386 = vpop.f32.mrb[0].mxu0
  %1387 = vmatprep.mubr.bf16.mxu0 0
  %1388 = vmatmul.mubr.bf16.gmra.mrb[0].mxu0 %v1235
  %v1389 = vpop.f32.mrb[0].mxu0
  %v1390 = vadd.f32 %v1192, %v1389
  %v1391 = vpop.f32.mrb[0].mxu0
  %v1392 = vpop.f32.mrb[0].mxu0
  %v1393 = vadd.f32 %v1192, %v1392
  %v1394 = vpop.f32.mrb[0].mxu0
  %1395 = vmatprep.mubr.bf16.mxu0 0
  %1396 = vmatmul.mubr.bf16.gmra.mrb[0].mxu0 %v1238
  %v1397 = vpop.f32.mrb[0].mxu0
  %v1398 = vadd.f32 %v1192, %v1397
  %v1399 = vpop.f32.mrb[0].mxu0
  %v1400 = vpop.f32.mrb[0].mxu0
  %v1401 = vadd.f32 %v1192, %v1400
  %v1402 = vpop.f32.mrb[0].mxu0
  %1403 = vmatprep.mubr.bf16.mxu0 0
  %1404 = vmatmul.mubr.bf16.gmra.mrb[0].mxu0 %v1241
  %v1405 = vpop.f32.mrb[0].mxu0
  %v1406 = vadd.f32 %v1192, %v1405
  %v1407 = vpop.f32.mrb[0].mxu0
  %v1408 = vpop.f32.mrb[0].mxu0
  %v1409 = vadd.f32 %v1192, %v1408
  %v1410 = vpop.f32.mrb[0].mxu0
  %1411 = vmatprep.mubr.bf16.mxu0 0
  %1412 = vmatmul.mubr.bf16.gmra.mrb[0].mxu0 %v1244
  %v1413 = vpop.f32.mrb[0].mxu0
  %v1414 = vadd.f32 %v1192, %v1413
  %v1415 = vpop.f32.mrb[0].mxu0
  %v1416 = vpop.f32.mrb[0].mxu0
  %v1417 = vadd.f32 %v1192, %v1416
  %v1418 = vpop.f32.mrb[0].mxu0
  %1419 = vmatprep.mubr.bf16.mxu0 0
  %1420 = vmatmul.mubr.bf16.gmra.mrb[0].mxu0 %v1247
  %v1421 = vpop.f32.mrb[0].mxu0
  %v1422 = vadd.f32 %v1192, %v1421
  %v1423 = vpop.f32.mrb[0].mxu0
  %v1424 = vpop.f32.mrb[0].mxu0
  %v1425 = vadd.f32 %v1192, %v1424
  %v1426 = vpop.f32.mrb[0].mxu0
  %1427 = vmatprep.mubr.bf16.mxu0 0
  %1428 = vmatmul.mubr.bf16.gmra.mrb[0].mxu0 %v1250
  %v1429 = vpop.f32.mrb[0].mxu0
  %v1430 = vadd.f32 %v1192, %v1429
  %v1431 = vpop.f32.mrb[0].mxu0
  %v1432 = vpop.f32.mrb[0].mxu0
  %v1433 = vadd.f32 %v1192, %v1432
  %v1434 = vpop.f32.mrb[0].mxu0
  %1435 = vmatprep.mubr.bf16.mxu0 0
  %1436 = vmatmul.mubr.bf16.gmra.mrb[0].mxu0 %v1253
  %v1437 = vpop.f32.mrb[0].mxu0
  %v1438 = vadd.f32 %v1192, %v1437
  %v1439 = vpop.f32.mrb[0].mxu0
  %v1440 = vpop.f32.mrb[0].mxu0
  %v1441 = vadd.f32 %v1192, %v1440
  %v1442 = vpop.f32.mrb[0].mxu0
  %1443 = vmatprep.mubr.bf16.mxu0 0
  %1444 = vmatmul.mubr.bf16.gmra.mrb[0].mxu0 %v1256
  %v1445 = vpop.f32.mrb[0].mxu0
  %v1446 = vadd.f32 %v1192, %v1445
  %v1447 = vpop.f32.mrb[0].mxu0
  %v1448 = vpop.f32.mrb[0].mxu0
  %v1449 = vadd.f32 %v1192, %v1448
  %v1450 = vpop.f32.mrb[0].mxu0
  %1451 = vmatprep.mubr.bf16.mxu0 0
  %1452 = vmatmul.mubr.bf16.gmra.mrb[0].mxu0 %v1259
  %v1453 = vpop.f32.mrb[0].mxu0
  %v1454 = vadd.f32 %v1192, %v1453
  %v1455 = vpop.f32.mrb[0].mxu0
  %v1456 = vpop.f32.mrb[0].mxu0
  %v1457 = vadd.f32 %v1192, %v1456
  %v1458 = vpop.f32.mrb[0].mxu0
  %1459 = vmatprep.mubr.bf16.mxu0 0
  %1460 = vmatmul.mubr.bf16.gmra.mrb[0].mxu0 %v1262
  %v1461 = vpop.f32.mrb[0].mxu0
  %v1462 = vadd.f32 %v1192, %v1461
  %v1463 = vpop.f32.mrb[0].mxu0
  %v1464 = vpop.f32.mrb[0].mxu0
  %v1465 = vadd.f32 %v1192, %v1464
  %v1466 = vpop.f32.mrb[0].mxu0
  %1467 = vmatprep.mubr.bf16.mxu0 0
  %1468 = vmatmul.mubr.bf16.gmra.mrb[0].mxu0 %v1265
  %v1469 = vpop.f32.mrb[0].mxu0
  %v1470 = vadd.f32 %v1192, %v1469
  %v1471 = vpop.f32.mrb[0].mxu0
  %v1472 = vpop.f32.mrb[0].mxu0
  %v1473 = vadd.f32 %v1192, %v1472
  %v1474 = vpop.f32.mrb[0].mxu0
  %1475 = vmatprep.mubr.bf16.mxu0 0
  %1476 = vmatmul.mubr.bf16.gmra.mrb[0].mxu0 %v1268
  %v1477 = vpop.f32.mrb[0].mxu0
  %v1478 = vadd.f32 %v1192, %v1477
  %v1479 = vpop.f32.mrb[0].mxu0
  %v1480 = vpop.f32.mrb[0].mxu0
  %v1481 = vadd.f32 %v1192, %v1480
  %v1482 = vpop.f32.mrb[0].mxu0
  %1483 = vmatprep.mubr.bf16.mxu0 0
  %1484 = vmatmul.mubr.bf16.gmra.mrb[0].mxu0 %v1271
  %v1485 = vpop.f32.mrb[0].mxu0
  %v1486 = vadd.f32 %v1192, %v1485
  %v1487 = vpop.f32.mrb[0].mxu0
  %v1488 = vpop.f32.mrb[0].mxu0
  %v1489 = vadd.f32 %v1192, %v1488
  %v1490 = vpop.f32.mrb[0].mxu0
  %1491 = vmatprep.mubr.bf16.mxu0 0
  %1492 = vmatmul.mubr.bf16.gmra.mrb[0].mxu0 %v1274
  %v1493 = vpop.f32.mrb[0].mxu0
  %v1494 = vadd.f32 %v1192, %v1493
  %v1495 = vpop.f32.mrb[0].mxu0
  %v1496 = vpop.f32.mrb[0].mxu0
  %v1497 = vadd.f32 %v1192, %v1496
  %v1498 = vpop.f32.mrb[0].mxu0
  %1499 = vmatprep.mubr.bf16.mxu0 0
  %1500 = vmatmul.mubr.bf16.gmra.mrb[0].mxu0 %v1277
  %v1501 = vpop.f32.mrb[0].mxu0
  %v1502 = vadd.f32 %v1192, %v1501
  %v1503 = vpop.f32.mrb[0].mxu0
  %v1504 = vpop.f32.mrb[0].mxu0
  %v1505 = vadd.f32 %v1192, %v1504
  %v1506 = vpop.f32.mrb[0].mxu0
  %1507 = vmatprep.mubr.bf16.mxu0 0
  %1508 = vmatmul.mubr.bf16.gmra.mrb[0].mxu0 %v1280
  %v1509 = vpop.f32.mrb[0].mxu0
  %v1510 = vadd.f32 %v1192, %v1509
  %v1511 = vpop.f32.mrb[0].mxu0
  %v1512 = vpop.f32.mrb[0].mxu0
  %v1513 = vadd.f32 %v1192, %v1512
  %v1514 = vpop.f32.mrb[0].mxu0
  %1515 = vmatprep.mubr.bf16.mxu0 0
  %1516 = vmatmul.mubr.bf16.gmra.mrb[0].mxu0 %v1283
  %v1517 = vpop.f32.mrb[0].mxu0
  %v1518 = vadd.f32 %v1192, %v1517
  %v1519 = vpop.f32.mrb[0].mxu0
  %v1520 = vpop.f32.mrb[0].mxu0
  %v1521 = vadd.f32 %v1192, %v1520
  %v1522 = vpop.f32.mrb[0].mxu0
  %1523 = vmatprep.mubr.bf16.mxu0 0
  %1524 = vmatmul.mubr.bf16.gmra.mrb[0].mxu0 %v1286
  %v1525 = vpop.f32.mrb[0].mxu0
  %v1526 = vadd.f32 %v1192, %v1525
  %v1527 = vpop.f32.mrb[0].mxu0
  %v1528 = vpop.f32.mrb[0].mxu0
  %v1529 = vadd.f32 %v1192, %v1528
  %v1530 = vpop.f32.mrb[0].mxu0
  %1531 = vmatprep.mubr.bf16.mxu0 0
  %1532 = vmatmul.mubr.bf16.gmra.mrb[0].mxu0 %v1289
  %v1533 = vpop.f32.mrb[0].mxu0
  %v1534 = vadd.f32 %v1192, %v1533
  %v1535 = vpop.f32.mrb[0].mxu0
  %v1536 = vpop.f32.mrb[0].mxu0
  %v1537 = vadd.f32 %v1192, %v1536
  %v1538 = vpop.f32.mrb[0].mxu0
  %1539 = vmatprep.mubr.bf16.mxu0 0
  %1540 = vmatmul.mubr.bf16.gmra.mrb[0].mxu0 %v1292
  %v1541 = vpop.f32.mrb[0].mxu0
  %v1542 = vadd.f32 %v1192, %v1541
  %v1543 = vpop.f32.mrb[0].mxu0
  %v1544 = vpop.f32.mrb[0].mxu0
  %v1545 = vadd.f32 %v1192, %v1544
  %v1546 = vpop.f32.mrb[0].mxu0
  %1547 = vmatprep.mubr.bf16.mxu0 0
  %1548 = vmatmul.mubr.bf16.gmra.mrb[0].mxu0 %v1295
  %v1549 = vpop.f32.mrb[0].mxu0
  %v1550 = vadd.f32 %v1192, %v1549
  %v1551 = vpop.f32.mrb[0].mxu0
  %v1552 = vpop.f32.mrb[0].mxu0
  %v1553 = vadd.f32 %v1192, %v1552
  %v1554 = vpop.f32.mrb[0].mxu0
  %1555 = vmatprep.mubr.bf16.mxu0 0
  %1556 = vmatmul.mubr.bf16.gmra.mrb[0].mxu0 %v1298
  %v1557 = vpop.f32.mrb[0].mxu0
  %v1558 = vadd.f32 %v1192, %v1557
  %v1559 = vpop.f32.mrb[0].mxu0
  %v1560 = vpop.f32.mrb[0].mxu0
  %v1561 = vadd.f32 %v1192, %v1560
  %v1562 = vpop.f32.mrb[0].mxu0
  %1563 = vmatprep.mubr.bf16.mxu0 0
  %1564 = vmatmul.mubr.bf16.gmra.mrb[0].mxu0 %v1301
  %v1565 = vpop.f32.mrb[0].mxu0
  %v1566 = vadd.f32 %v1192, %v1565
  %v1567 = vpop.f32.mrb[0].mxu0
  %v1568 = vpop.f32.mrb[0].mxu0
  %v1569 = vadd.f32 %v1192, %v1568
  %v1570 = vpop.f32.mrb[0].mxu0
  %1571 = vmatprep.mubr.bf16.mxu0 0
  %1572 = vmatmul.mubr.bf16.gmra.mrb[0].mxu0 %v1304
  %v1573 = vpop.f32.mrb[0].mxu0
  %v1574 = vadd.f32 %v1192, %v1573
  %v1575 = vpop.f32.mrb[0].mxu0
  %v1576 = vpop.f32.mrb[0].mxu0
  %v1577 = vadd.f32 %v1192, %v1576
  %v1578 = vpop.f32.mrb[0].mxu0
  %1579 = vmatprep.mubr.bf16.mxu0 0
  %1580 = vmatmul.mubr.bf16.gmra.mrb[0].mxu0 %v1307
  %v1581 = vpop.f32.mrb[0].mxu0
  %v1582 = vadd.f32 %v1192, %v1581
  %v1583 = vpop.f32.mrb[0].mxu0
  %v1584 = vpop.f32.mrb[0].mxu0
  %v1585 = vadd.f32 %v1192, %v1584
  %v1586 = vpop.f32.mrb[0].mxu0
  %1587 = vmatprep.mubr.bf16.mxu0 0
  %1588 = vmatmul.mubr.bf16.gmra.mrb[0].mxu0 %v1310
  %v1589 = vpop.f32.mrb[0].mxu0
  %v1590 = vadd.f32 %v1192, %v1589
  %v1591 = vpop.f32.mrb[0].mxu0
  %v1592 = vpop.f32.mrb[0].mxu0
  %v1593 = vadd.f32 %v1192, %v1592
  %v1594 = vpop.f32.mrb[0].mxu0
  %1595 = vmatprep.mubr.bf16.mxu0 0
  %1596 = vmatmul.mubr.bf16.gmra.mrb[0].mxu0 %v1313
  %v1597 = vpop.f32.mrb[0].mxu0
  %v1598 = vadd.f32 %v1192, %v1597
  %v1599 = vpop.f32.mrb[0].mxu0
  %v1600 = vpop.f32.mrb[0].mxu0
  %v1601 = vadd.f32 %v1192, %v1600
  %v1602 = vpop.f32.mrb[0].mxu0
  %1603 = vdwg.mxu0
  %v1604 = vmax.f32 %v1350, 0.0
  %v1605 = vmax.f32 %v1353, 0.0
  %v1606 = vmax.f32 %v1358, 0.0
  %v1607 = vmax.f32 %v1361, 0.0
  %v1608 = vmax.f32 %v1366, 0.0
  %v1609 = vmax.f32 %v1369, 0.0
  %v1610 = vmax.f32 %v1374, 0.0
  %v1611 = vmax.f32 %v1377, 0.0
  %v1612 = vmax.f32 %v1382, 0.0
  %v1613 = vmax.f32 %v1385, 0.0
  %v1614 = vmax.f32 %v1390, 0.0
  %v1615 = vmax.f32 %v1393, 0.0
  %v1616 = vmax.f32 %v1398, 0.0
  %v1617 = vmax.f32 %v1401, 0.0
  %v1618 = vmax.f32 %v1406, 0.0
  %v1619 = vmax.f32 %v1409, 0.0
  %v1620 = vmax.f32 %v1414, 0.0
  %v1621 = vmax.f32 %v1417, 0.0
  %v1622 = vmax.f32 %v1422, 0.0
  %v1623 = vmax.f32 %v1425, 0.0
  %v1624 = vmax.f32 %v1430, 0.0
  %v1625 = vmax.f32 %v1433, 0.0
  %v1626 = vmax.f32 %v1438, 0.0
  %v1627 = vmax.f32 %v1441, 0.0
  %v1628 = vmax.f32 %v1446, 0.0
  %v1629 = vmax.f32 %v1449, 0.0
  %v1630 = vmax.f32 %v1454, 0.0
  %v1631 = vmax.f32 %v1457, 0.0
  %v1632 = vmax.f32 %v1462, 0.0
  %v1633 = vmax.f32 %v1465, 0.0
  %v1634 = vmax.f32 %v1470, 0.0
  %v1635 = vmax.f32 %v1473, 0.0
  %v1636 = vmax.f32 %v1478, 0.0
  %v1637 = vmax.f32 %v1481, 0.0
  %v1638 = vmax.f32 %v1486, 0.0
  %v1639 = vmax.f32 %v1489, 0.0
  %v1640 = vmax.f32 %v1494, 0.0
  %v1641 = vmax.f32 %v1497, 0.0
  %v1642 = vmax.f32 %v1502, 0.0
  %v1643 = vmax.f32 %v1505, 0.0
  %v1644 = vmax.f32 %v1510, 0.0
  %v1645 = vmax.f32 %v1513, 0.0
  %v1646 = vmax.f32 %v1518, 0.0
  %v1647 = vmax.f32 %v1521, 0.0
  %v1648 = vmax.f32 %v1526, 0.0
  %v1649 = vmax.f32 %v1529, 0.0
  %v1650 = vmax.f32 %v1534, 0.0
  %v1651 = vmax.f32 %v1537, 0.0
  %v1652 = vmax.f32 %v1542, 0.0
  %v1653 = vmax.f32 %v1545, 0.0
  %v1654 = vmax.f32 %v1550, 0.0
  %v1655 = vmax.f32 %v1553, 0.0
  %v1656 = vmax.f32 %v1558, 0.0
  %v1657 = vmax.f32 %v1561, 0.0
  %v1658 = vmax.f32 %v1566, 0.0
  %v1659 = vmax.f32 %v1569, 0.0
  %v1660 = vmax.f32 %v1574, 0.0
  %v1661 = vmax.f32 %v1577, 0.0
  %v1662 = vmax.f32 %v1582, 0.0
  %v1663 = vmax.f32 %v1585, 0.0
  %v1664 = vmax.f32 %v1590, 0.0
  %v1665 = vmax.f32 %v1593, 0.0
  %v1666 = vmax.f32 %v1598, 0.0
  %v1667 = vmax.f32 %v1601, 0.0
  %v1668 = vld [vmem:[%s7] sm:$0xf]
  %v1669 = vld [vmem:[%s7 + $0x4] sm:$0xf]
  %v1670 = vld [vmem:[%s7 + $0x8] sm:$0xf]
  %v1671 = vld [vmem:[%s7 + $0xc] sm:$0xf]
  %v1672 = vld [vmem:[%s7 + $0x10] sm:$0xf]
  %v1673 = vld [vmem:[%s7 + $0x14] sm:$0xf]
  %v1674 = vld [vmem:[%s7 + $0x18] sm:$0xf]
  %v1675 = vld [vmem:[%s7 + $0x1c] sm:$0xf]
  %v1676 = vld [vmem:[%s8] sm:$0x1]
  %v1677 = vpack.c.bf16 %v1605, %v1604
  %v1678 = vpack.c.bf16 %v1607, %v1606
  %v1679 = vpack.c.bf16 %v1609, %v1608
  %v1680 = vpack.c.bf16 %v1611, %v1610
  %v1681 = vpack.c.bf16 %v1613, %v1612
  %v1682 = vpack.c.bf16 %v1615, %v1614
  %v1683 = vpack.c.bf16 %v1617, %v1616
  %v1684 = vpack.c.bf16 %v1619, %v1618
  %v1685 = vpack.c.bf16 %v1621, %v1620
  %v1686 = vpack.c.bf16 %v1623, %v1622
  %v1687 = vpack.c.bf16 %v1625, %v1624
  %v1688 = vpack.c.bf16 %v1627, %v1626
  %v1689 = vpack.c.bf16 %v1629, %v1628
  %v1690 = vpack.c.bf16 %v1631, %v1630
  %v1691 = vpack.c.bf16 %v1633, %v1632
  %v1692 = vpack.c.bf16 %v1635, %v1634
  %v1693 = vpack.c.bf16 %v1637, %v1636
  %v1694 = vpack.c.bf16 %v1639, %v1638
  %v1695 = vpack.c.bf16 %v1641, %v1640
  %v1696 = vpack.c.bf16 %v1643, %v1642
  %v1697 = vpack.c.bf16 %v1645, %v1644
  %v1698 = vpack.c.bf16 %v1647, %v1646
  %v1699 = vpack.c.bf16 %v1649, %v1648
  %v1700 = vpack.c.bf16 %v1651, %v1650
  %v1701 = vpack.c.bf16 %v1653, %v1652
  %v1702 = vpack.c.bf16 %v1655, %v1654
  %v1703 = vpack.c.bf16 %v1657, %v1656
  %v1704 = vpack.c.bf16 %v1659, %v1658
  %v1705 = vpack.c.bf16 %v1661, %v1660
  %v1706 = vpack.c.bf16 %v1663, %v1662
  %v1707 = vpack.c.bf16 %v1665, %v1664
  %v1708 = vpack.c.bf16 %v1667, %v1666
  %v1710 = vlaneseq
  %v1711 = vshrl.u32 %v1710, 7
  %v1712 = vsub.s32 0, %v1711
  %v1713 = vrot.slane %v1676, %v1712
  %v1723 = vunpack.c.l.b16 %v1668
  %v1724 = vunpack.c.l.b16 %v1669
  %v1725 = vunpack.c.l.b16 %v1670
  %v1726 = vunpack.c.l.b16 %v1671
  %v1727 = vunpack.c.l.b16 %v1672
  %v1728 = vunpack.c.l.b16 %v1673
  %v1729 = vunpack.c.l.b16 %v1674
  %v1730 = vunpack.c.l.b16 %v1675
  %v1731 = vpack.c.b16 %v1724, %v1723
  %v1732 = vpack.c.b16 %v1726, %v1725
  %v1733 = vpack.c.b16 %v1728, %v1727
  %v1734 = vpack.c.b16 %v1730, %v1729
  %v1740 = vsel %vm1218, %v1677, 0
  %v1743 = vsel %vm1218, %v1678, 0
  %v1746 = vsel %vm1218, %v1679, 0
  %v1749 = vsel %vm1218, %v1680, 0
  %v1752 = vsel %vm1218, %v1681, 0
  %v1755 = vsel %vm1218, %v1682, 0
  %v1758 = vsel %vm1218, %v1683, 0
  %v1761 = vsel %vm1218, %v1684, 0
  %v1764 = vsel %vm1218, %v1685, 0
  %v1767 = vsel %vm1218, %v1686, 0
  %v1770 = vsel %vm1218, %v1687, 0
  %v1773 = vsel %vm1218, %v1688, 0
  %v1776 = vsel %vm1218, %v1689, 0
  %v1779 = vsel %vm1218, %v1690, 0
  %v1782 = vsel %vm1218, %v1691, 0
  %v1785 = vsel %vm1218, %v1692, 0
  %v1788 = vsel %vm1218, %v1693, 0
  %v1791 = vsel %vm1218, %v1694, 0
  %v1794 = vsel %vm1218, %v1695, 0
  %v1797 = vsel %vm1218, %v1696, 0
  %v1800 = vsel %vm1218, %v1697, 0
  %v1803 = vsel %vm1218, %v1698, 0
  %v1806 = vsel %vm1218, %v1699, 0
  %v1809 = vsel %vm1218, %v1700, 0
  %v1812 = vsel %vm1218, %v1701, 0
  %v1815 = vsel %vm1218, %v1702, 0
  %v1818 = vsel %vm1218, %v1703, 0
  %v1821 = vsel %vm1218, %v1704, 0
  %v1824 = vsel %vm1218, %v1705, 0
  %v1827 = vsel %vm1218, %v1706, 0
  %v1830 = vsel %vm1218, %v1707, 0
  %v1833 = vsel %vm1218, %v1708, 0
  %1835 = vmatprep.subr.bf16.mxu0 0
  %1836 = vmatpush1.bf16.msra.mxu0 %v1731
  %1837 = vmatprep.subr.bf16.mxu0 0
  %1838 = vmatpush1.bf16.msra.mxu0 %v1732
  %1839 = vmatprep.subr.bf16.mxu0 0
  %1840 = vmatpush1.bf16.msra.mxu0 %v1733
  %1841 = vmatprep.subr.bf16.mxu0 0
  %1842 = vmatpush1.bf16.msra.mxu0 %v1734
  %1843 = vmatprep.subr.bf16.mxu0 0
  %1844 = vmatpush1.bf16.msra.mxu0 0
  %1845 = vmatprep.subr.bf16.mxu0 0
  %1846 = vmatpush1.bf16.msra.mxu0 0
  %1847 = vmatprep.subr.bf16.mxu0 0
  %1848 = vmatpush1.bf16.msra.mxu0 0
  %1849 = vmatprep.subr.bf16.mxu0 0
  %1850 = vmatpush1.bf16.msra.mxu0 0
  %1851 = vmatprep.subr.bf16.mxu0 0
  %1852 = vmatpush1.bf16.msra.mxu0 0
  %1853 = vmatprep.subr.bf16.mxu0 0
  %1854 = vmatpush1.bf16.msra.mxu0 0
  %1855 = vmatprep.subr.bf16.mxu0 0
  %1856 = vmatpush1.bf16.msra.mxu0 0
  %1857 = vmatprep.subr.bf16.mxu0 0
  %1858 = vmatpush1.bf16.msra.mxu0 0
  %1859 = vmatprep.subr.bf16.mxu0 0
  %1860 = vmatpush1.bf16.msra.mxu0 0
  %1861 = vmatprep.subr.bf16.mxu0 0
  %1862 = vmatpush1.bf16.msra.mxu0 0
  %1863 = vmatprep.subr.bf16.mxu0 0
  %1864 = vmatpush1.bf16.msra.mxu0 0
  %1865 = vmatprep.subr.bf16.mxu0 0
  %1866 = vmatpush1.bf16.msra.mxu0 0
  %1867 = vmatprep.mubr.bf16.mxu0 0
  %1868 = vmatmul.mubr.bf16.gmra.mrb[0].mxu0 %v1740
  %v1869 = vpop.f32.mrb[0].mxu0
  %v1870 = vadd.f32 %v1713, %v1869
  %v1871 = vpop.f32.mrb[0].mxu0
  %v1872 = vpop.f32.mrb[0].mxu0
  %v1873 = vadd.f32 %v1713, %v1872
  %v1874 = vpop.f32.mrb[0].mxu0
  %1875 = vmatprep.mubr.bf16.mxu0 0
  %1876 = vmatmul.mubr.bf16.gmra.mrb[0].mxu0 %v1743
  %v1877 = vpop.f32.mrb[0].mxu0
  %v1878 = vadd.f32 %v1713, %v1877
  %v1879 = vpop.f32.mrb[0].mxu0
  %v1880 = vpop.f32.mrb[0].mxu0
  %v1881 = vadd.f32 %v1713, %v1880
  %v1882 = vpop.f32.mrb[0].mxu0
  %1883 = vmatprep.mubr.bf16.mxu0 0
  %1884 = vmatmul.mubr.bf16.gmra.mrb[0].mxu0 %v1746
  %v1885 = vpop.f32.mrb[0].mxu0
  %v1886 = vadd.f32 %v1713, %v1885
  %v1887 = vpop.f32.mrb[0].mxu0
  %v1888 = vpop.f32.mrb[0].mxu0
  %v1889 = vadd.f32 %v1713, %v1888
  %v1890 = vpop.f32.mrb[0].mxu0
  %1891 = vmatprep.mubr.bf16.mxu0 0
  %1892 = vmatmul.mubr.bf16.gmra.mrb[0].mxu0 %v1749
  %v1893 = vpop.f32.mrb[0].mxu0
  %v1894 = vadd.f32 %v1713, %v1893
  %v1895 = vpop.f32.mrb[0].mxu0
  %v1896 = vpop.f32.mrb[0].mxu0
  %v1897 = vadd.f32 %v1713, %v1896
  %v1898 = vpop.f32.mrb[0].mxu0
  %1899 = vmatprep.mubr.bf16.mxu0 0
  %1900 = vmatmul.mubr.bf16.gmra.mrb[0].mxu0 %v1752
  %v1901 = vpop.f32.mrb[0].mxu0
  %v1902 = vadd.f32 %v1713, %v1901
  %v1903 = vpop.f32.mrb[0].mxu0
  %v1904 = vpop.f32.mrb[0].mxu0
  %v1905 = vadd.f32 %v1713, %v1904
  %v1906 = vpop.f32.mrb[0].mxu0
  %1907 = vmatprep.mubr.bf16.mxu0 0
  %1908 = vmatmul.mubr.bf16.gmra.mrb[0].mxu0 %v1755
  %v1909 = vpop.f32.mrb[0].mxu0
  %v1910 = vadd.f32 %v1713, %v1909
  %v1911 = vpop.f32.mrb[0].mxu0
  %v1912 = vpop.f32.mrb[0].mxu0
  %v1913 = vadd.f32 %v1713, %v1912
  %v1914 = vpop.f32.mrb[0].mxu0
  %1915 = vmatprep.mubr.bf16.mxu0 0
  %1916 = vmatmul.mubr.bf16.gmra.mrb[0].mxu0 %v1758
  %v1917 = vpop.f32.mrb[0].mxu0
  %v1918 = vadd.f32 %v1713, %v1917
  %v1919 = vpop.f32.mrb[0].mxu0
  %v1920 = vpop.f32.mrb[0].mxu0
  %v1921 = vadd.f32 %v1713, %v1920
  %v1922 = vpop.f32.mrb[0].mxu0
  %1923 = vmatprep.mubr.bf16.mxu0 0
  %1924 = vmatmul.mubr.bf16.gmra.mrb[0].mxu0 %v1761
  %v1925 = vpop.f32.mrb[0].mxu0
  %v1926 = vadd.f32 %v1713, %v1925
  %v1927 = vpop.f32.mrb[0].mxu0
  %v1928 = vpop.f32.mrb[0].mxu0
  %v1929 = vadd.f32 %v1713, %v1928
  %v1930 = vpop.f32.mrb[0].mxu0
  %1931 = vmatprep.mubr.bf16.mxu0 0
  %1932 = vmatmul.mubr.bf16.gmra.mrb[0].mxu0 %v1764
  %v1933 = vpop.f32.mrb[0].mxu0
  %v1934 = vadd.f32 %v1713, %v1933
  %v1935 = vpop.f32.mrb[0].mxu0
  %v1936 = vpop.f32.mrb[0].mxu0
  %v1937 = vadd.f32 %v1713, %v1936
  %v1938 = vpop.f32.mrb[0].mxu0
  %1939 = vmatprep.mubr.bf16.mxu0 0
  %1940 = vmatmul.mubr.bf16.gmra.mrb[0].mxu0 %v1767
  %v1941 = vpop.f32.mrb[0].mxu0
  %v1942 = vadd.f32 %v1713, %v1941
  %v1943 = vpop.f32.mrb[0].mxu0
  %v1944 = vpop.f32.mrb[0].mxu0
  %v1945 = vadd.f32 %v1713, %v1944
  %v1946 = vpop.f32.mrb[0].mxu0
  %1947 = vmatprep.mubr.bf16.mxu0 0
  %1948 = vmatmul.mubr.bf16.gmra.mrb[0].mxu0 %v1770
  %v1949 = vpop.f32.mrb[0].mxu0
  %v1950 = vadd.f32 %v1713, %v1949
  %v1951 = vpop.f32.mrb[0].mxu0
  %v1952 = vpop.f32.mrb[0].mxu0
  %v1953 = vadd.f32 %v1713, %v1952
  %v1954 = vpop.f32.mrb[0].mxu0
  %1955 = vmatprep.mubr.bf16.mxu0 0
  %1956 = vmatmul.mubr.bf16.gmra.mrb[0].mxu0 %v1773
  %v1957 = vpop.f32.mrb[0].mxu0
  %v1958 = vadd.f32 %v1713, %v1957
  %v1959 = vpop.f32.mrb[0].mxu0
  %v1960 = vpop.f32.mrb[0].mxu0
  %v1961 = vadd.f32 %v1713, %v1960
  %v1962 = vpop.f32.mrb[0].mxu0
  %1963 = vmatprep.mubr.bf16.mxu0 0
  %1964 = vmatmul.mubr.bf16.gmra.mrb[0].mxu0 %v1776
  %v1965 = vpop.f32.mrb[0].mxu0
  %v1966 = vadd.f32 %v1713, %v1965
  %v1967 = vpop.f32.mrb[0].mxu0
  %v1968 = vpop.f32.mrb[0].mxu0
  %v1969 = vadd.f32 %v1713, %v1968
  %v1970 = vpop.f32.mrb[0].mxu0
  %1971 = vmatprep.mubr.bf16.mxu0 0
  %1972 = vmatmul.mubr.bf16.gmra.mrb[0].mxu0 %v1779
  %v1973 = vpop.f32.mrb[0].mxu0
  %v1974 = vadd.f32 %v1713, %v1973
  %v1975 = vpop.f32.mrb[0].mxu0
  %v1976 = vpop.f32.mrb[0].mxu0
  %v1977 = vadd.f32 %v1713, %v1976
  %v1978 = vpop.f32.mrb[0].mxu0
  %1979 = vmatprep.mubr.bf16.mxu0 0
  %1980 = vmatmul.mubr.bf16.gmra.mrb[0].mxu0 %v1782
  %v1981 = vpop.f32.mrb[0].mxu0
  %v1982 = vadd.f32 %v1713, %v1981
  %v1983 = vpop.f32.mrb[0].mxu0
  %v1984 = vpop.f32.mrb[0].mxu0
  %v1985 = vadd.f32 %v1713, %v1984
  %v1986 = vpop.f32.mrb[0].mxu0
  %1987 = vmatprep.mubr.bf16.mxu0 0
  %1988 = vmatmul.mubr.bf16.gmra.mrb[0].mxu0 %v1785
  %v1989 = vpop.f32.mrb[0].mxu0
  %v1990 = vadd.f32 %v1713, %v1989
  %v1991 = vpop.f32.mrb[0].mxu0
  %v1992 = vpop.f32.mrb[0].mxu0
  %v1993 = vadd.f32 %v1713, %v1992
  %v1994 = vpop.f32.mrb[0].mxu0
  %1995 = vmatprep.mubr.bf16.mxu0 0
  %1996 = vmatmul.mubr.bf16.gmra.mrb[0].mxu0 %v1788
  %v1997 = vpop.f32.mrb[0].mxu0
  %v1998 = vadd.f32 %v1713, %v1997
  %v1999 = vpop.f32.mrb[0].mxu0
  %v2000 = vpop.f32.mrb[0].mxu0
  %v2001 = vadd.f32 %v1713, %v2000
  %v2002 = vpop.f32.mrb[0].mxu0
  %2003 = vmatprep.mubr.bf16.mxu0 0
  %2004 = vmatmul.mubr.bf16.gmra.mrb[0].mxu0 %v1791
  %v2005 = vpop.f32.mrb[0].mxu0
  %v2006 = vadd.f32 %v1713, %v2005
  %v2007 = vpop.f32.mrb[0].mxu0
  %v2008 = vpop.f32.mrb[0].mxu0
  %v2009 = vadd.f32 %v1713, %v2008
  %v2010 = vpop.f32.mrb[0].mxu0
  %2011 = vmatprep.mubr.bf16.mxu0 0
  %2012 = vmatmul.mubr.bf16.gmra.mrb[0].mxu0 %v1794
  %v2013 = vpop.f32.mrb[0].mxu0
  %v2014 = vadd.f32 %v1713, %v2013
  %v2015 = vpop.f32.mrb[0].mxu0
  %v2016 = vpop.f32.mrb[0].mxu0
  %v2017 = vadd.f32 %v1713, %v2016
  %v2018 = vpop.f32.mrb[0].mxu0
  %2019 = vmatprep.mubr.bf16.mxu0 0
  %2020 = vmatmul.mubr.bf16.gmra.mrb[0].mxu0 %v1797
  %v2021 = vpop.f32.mrb[0].mxu0
  %v2022 = vadd.f32 %v1713, %v2021
  %v2023 = vpop.f32.mrb[0].mxu0
  %v2024 = vpop.f32.mrb[0].mxu0
  %v2025 = vadd.f32 %v1713, %v2024
  %v2026 = vpop.f32.mrb[0].mxu0
  %2027 = vmatprep.mubr.bf16.mxu0 0
  %2028 = vmatmul.mubr.bf16.gmra.mrb[0].mxu0 %v1800
  %v2029 = vpop.f32.mrb[0].mxu0
  %v2030 = vadd.f32 %v1713, %v2029
  %v2031 = vpop.f32.mrb[0].mxu0
  %v2032 = vpop.f32.mrb[0].mxu0
  %v2033 = vadd.f32 %v1713, %v2032
  %v2034 = vpop.f32.mrb[0].mxu0
  %2035 = vmatprep.mubr.bf16.mxu0 0
  %2036 = vmatmul.mubr.bf16.gmra.mrb[0].mxu0 %v1803
  %v2037 = vpop.f32.mrb[0].mxu0
  %v2038 = vadd.f32 %v1713, %v2037
  %v2039 = vpop.f32.mrb[0].mxu0
  %v2040 = vpop.f32.mrb[0].mxu0
  %v2041 = vadd.f32 %v1713, %v2040
  %v2042 = vpop.f32.mrb[0].mxu0
  %2043 = vmatprep.mubr.bf16.mxu0 0
  %2044 = vmatmul.mubr.bf16.gmra.mrb[0].mxu0 %v1806
  %v2045 = vpop.f32.mrb[0].mxu0
  %v2046 = vadd.f32 %v1713, %v2045
  %v2047 = vpop.f32.mrb[0].mxu0
  %v2048 = vpop.f32.mrb[0].mxu0
  %v2049 = vadd.f32 %v1713, %v2048
  %v2050 = vpop.f32.mrb[0].mxu0
  %2051 = vmatprep.mubr.bf16.mxu0 0
  %2052 = vmatmul.mubr.bf16.gmra.mrb[0].mxu0 %v1809
  %v2053 = vpop.f32.mrb[0].mxu0
  %v2054 = vadd.f32 %v1713, %v2053
  %v2055 = vpop.f32.mrb[0].mxu0
  %v2056 = vpop.f32.mrb[0].mxu0
  %v2057 = vadd.f32 %v1713, %v2056
  %v2058 = vpop.f32.mrb[0].mxu0
  %2059 = vmatprep.mubr.bf16.mxu0 0
  %2060 = vmatmul.mubr.bf16.gmra.mrb[0].mxu0 %v1812
  %v2061 = vpop.f32.mrb[0].mxu0
  %v2062 = vadd.f32 %v1713, %v2061
  %v2063 = vpop.f32.mrb[0].mxu0
  %v2064 = vpop.f32.mrb[0].mxu0
  %v2065 = vadd.f32 %v1713, %v2064
  %v2066 = vpop.f32.mrb[0].mxu0
  %2067 = vmatprep.mubr.bf16.mxu0 0
  %2068 = vmatmul.mubr.bf16.gmra.mrb[0].mxu0 %v1815
  %v2069 = vpop.f32.mrb[0].mxu0
  %v2070 = vadd.f32 %v1713, %v2069
  %v2071 = vpop.f32.mrb[0].mxu0
  %v2072 = vpop.f32.mrb[0].mxu0
  %v2073 = vadd.f32 %v1713, %v2072
  %v2074 = vpop.f32.mrb[0].mxu0
  %2075 = vmatprep.mubr.bf16.mxu0 0
  %2076 = vmatmul.mubr.bf16.gmra.mrb[0].mxu0 %v1818
  %v2077 = vpop.f32.mrb[0].mxu0
  %v2078 = vadd.f32 %v1713, %v2077
  %v2079 = vpop.f32.mrb[0].mxu0
  %v2080 = vpop.f32.mrb[0].mxu0
  %v2081 = vadd.f32 %v1713, %v2080
  %v2082 = vpop.f32.mrb[0].mxu0
  %2083 = vmatprep.mubr.bf16.mxu0 0
  %2084 = vmatmul.mubr.bf16.gmra.mrb[0].mxu0 %v1821
  %v2085 = vpop.f32.mrb[0].mxu0
  %v2086 = vadd.f32 %v1713, %v2085
  %v2087 = vpop.f32.mrb[0].mxu0
  %v2088 = vpop.f32.mrb[0].mxu0
  %v2089 = vadd.f32 %v1713, %v2088
  %v2090 = vpop.f32.mrb[0].mxu0
  %2091 = vmatprep.mubr.bf16.mxu0 0
  %2092 = vmatmul.mubr.bf16.gmra.mrb[0].mxu0 %v1824
  %v2093 = vpop.f32.mrb[0].mxu0
  %v2094 = vadd.f32 %v1713, %v2093
  %v2095 = vpop.f32.mrb[0].mxu0
  %v2096 = vpop.f32.mrb[0].mxu0
  %v2097 = vadd.f32 %v1713, %v2096
  %v2098 = vpop.f32.mrb[0].mxu0
  %2099 = vmatprep.mubr.bf16.mxu0 0
  %2100 = vmatmul.mubr.bf16.gmra.mrb[0].mxu0 %v1827
  %v2101 = vpop.f32.mrb[0].mxu0
  %v2102 = vadd.f32 %v1713, %v2101
  %v2103 = vpop.f32.mrb[0].mxu0
  %v2104 = vpop.f32.mrb[0].mxu0
  %v2105 = vadd.f32 %v1713, %v2104
  %v2106 = vpop.f32.mrb[0].mxu0
  %2107 = vmatprep.mubr.bf16.mxu0 0
  %2108 = vmatmul.mubr.bf16.gmra.mrb[0].mxu0 %v1830
  %v2109 = vpop.f32.mrb[0].mxu0
  %v2110 = vadd.f32 %v1713, %v2109
  %v2111 = vpop.f32.mrb[0].mxu0
  %v2112 = vpop.f32.mrb[0].mxu0
  %v2113 = vadd.f32 %v1713, %v2112
  %v2114 = vpop.f32.mrb[0].mxu0
  %2115 = vmatprep.mubr.bf16.mxu0 0
  %2116 = vmatmul.mubr.bf16.gmra.mrb[0].mxu0 %v1833
  %v2117 = vpop.f32.mrb[0].mxu0
  %v2118 = vadd.f32 %v1713, %v2117
  %v2119 = vpop.f32.mrb[0].mxu0
  %v2120 = vpop.f32.mrb[0].mxu0
  %v2121 = vadd.f32 %v1713, %v2120
  %v2122 = vpop.f32.mrb[0].mxu0
  %2123 = vdwg.mxu0
  %v2124 = vmax.f32 %v1870, 0.0
  %v2125 = vmax.f32 %v1873, 0.0
  %v2126 = vmax.f32 %v1878, 0.0
  %v2127 = vmax.f32 %v1881, 0.0
  %v2128 = vmax.f32 %v1886, 0.0
  %v2129 = vmax.f32 %v1889, 0.0
  %v2130 = vmax.f32 %v1894, 0.0
  %v2131 = vmax.f32 %v1897, 0.0
  %v2132 = vmax.f32 %v1902, 0.0
  %v2133 = vmax.f32 %v1905, 0.0
  %v2134 = vmax.f32 %v1910, 0.0
  %v2135 = vmax.f32 %v1913, 0.0
  %v2136 = vmax.f32 %v1918, 0.0
  %v2137 = vmax.f32 %v1921, 0.0
  %v2138 = vmax.f32 %v1926, 0.0
  %v2139 = vmax.f32 %v1929, 0.0
  %v2140 = vmax.f32 %v1934, 0.0
  %v2141 = vmax.f32 %v1937, 0.0
  %v2142 = vmax.f32 %v1942, 0.0
  %v2143 = vmax.f32 %v1945, 0.0
  %v2144 = vmax.f32 %v1950, 0.0
  %v2145 = vmax.f32 %v1953, 0.0
  %v2146 = vmax.f32 %v1958, 0.0
  %v2147 = vmax.f32 %v1961, 0.0
  %v2148 = vmax.f32 %v1966, 0.0
  %v2149 = vmax.f32 %v1969, 0.0
  %v2150 = vmax.f32 %v1974, 0.0
  %v2151 = vmax.f32 %v1977, 0.0
  %v2152 = vmax.f32 %v1982, 0.0
  %v2153 = vmax.f32 %v1985, 0.0
  %v2154 = vmax.f32 %v1990, 0.0
  %v2155 = vmax.f32 %v1993, 0.0
  %v2156 = vmax.f32 %v1998, 0.0
  %v2157 = vmax.f32 %v2001, 0.0
  %v2158 = vmax.f32 %v2006, 0.0
  %v2159 = vmax.f32 %v2009, 0.0
  %v2160 = vmax.f32 %v2014, 0.0
  %v2161 = vmax.f32 %v2017, 0.0
  %v2162 = vmax.f32 %v2022, 0.0
  %v2163 = vmax.f32 %v2025, 0.0
  %v2164 = vmax.f32 %v2030, 0.0
  %v2165 = vmax.f32 %v2033, 0.0
  %v2166 = vmax.f32 %v2038, 0.0
  %v2167 = vmax.f32 %v2041, 0.0
  %v2168 = vmax.f32 %v2046, 0.0
  %v2169 = vmax.f32 %v2049, 0.0
  %v2170 = vmax.f32 %v2054, 0.0
  %v2171 = vmax.f32 %v2057, 0.0
  %v2172 = vmax.f32 %v2062, 0.0
  %v2173 = vmax.f32 %v2065, 0.0
  %v2174 = vmax.f32 %v2070, 0.0
  %v2175 = vmax.f32 %v2073, 0.0
  %v2176 = vmax.f32 %v2078, 0.0
  %v2177 = vmax.f32 %v2081, 0.0
  %v2178 = vmax.f32 %v2086, 0.0
  %v2179 = vmax.f32 %v2089, 0.0
  %v2180 = vmax.f32 %v2094, 0.0
  %v2181 = vmax.f32 %v2097, 0.0
  %v2182 = vmax.f32 %v2102, 0.0
  %v2183 = vmax.f32 %v2105, 0.0
  %v2184 = vmax.f32 %v2110, 0.0
  %v2185 = vmax.f32 %v2113, 0.0
  %v2186 = vmax.f32 %v2118, 0.0
  %v2187 = vmax.f32 %v2121, 0.0
  %v2188 = vrot.slane %v2124, 4
  %v2189 = vmax.f32 %v2124, %v2188
  %v2190 = vrot.slane %v2189, 2
  %v2191 = vmax.f32 %v2189, %v2190
  %v2192 = vrot.slane %v2191, 1
  %v2193 = vmax.f32 %v2191, %v2192
  %v2194 = vrot.slane %v2125, 4
  %v2195 = vmax.f32 %v2125, %v2194
  %v2196 = vrot.slane %v2195, 2
  %v2197 = vmax.f32 %v2195, %v2196
  %v2198 = vrot.slane %v2197, 1
  %v2199 = vmax.f32 %v2197, %v2198
  %v2200 = vrot.slane %v2126, 4
  %v2201 = vmax.f32 %v2126, %v2200
  %v2202 = vrot.slane %v2201, 2
  %v2203 = vmax.f32 %v2201, %v2202
  %v2204 = vrot.slane %v2203, 1
  %v2205 = vmax.f32 %v2203, %v2204
  %v2206 = vrot.slane %v2127, 4
  %v2207 = vmax.f32 %v2127, %v2206
  %v2208 = vrot.slane %v2207, 2
  %v2209 = vmax.f32 %v2207, %v2208
  %v2210 = vrot.slane %v2209, 1
  %v2211 = vmax.f32 %v2209, %v2210
  %v2212 = vrot.slane %v2128, 4
  %v2213 = vmax.f32 %v2128, %v2212
  %v2214 = vrot.slane %v2213, 2
  %v2215 = vmax.f32 %v2213, %v2214
  %v2216 = vrot.slane %v2215, 1
  %v2217 = vmax.f32 %v2215, %v2216
  %v2218 = vrot.slane %v2129, 4
  %v2219 = vmax.f32 %v2129, %v2218
  %v2220 = vrot.slane %v2219, 2
  %v2221 = vmax.f32 %v2219, %v2220
  %v2222 = vrot.slane %v2221, 1
  %v2223 = vmax.f32 %v2221, %v2222
  %v2224 = vrot.slane %v2130, 4
  %v2225 = vmax.f32 %v2130, %v2224
  %v2226 = vrot.slane %v2225, 2
  %v2227 = vmax.f32 %v2225, %v2226
  %v2228 = vrot.slane %v2227, 1
  %v2229 = vmax.f32 %v2227, %v2228
  %v2230 = vrot.slane %v2131, 4
  %v2231 = vmax.f32 %v2131, %v2230
  %v2232 = vrot.slane %v2231, 2
  %v2233 = vmax.f32 %v2231, %v2232
  %v2234 = vrot.slane %v2233, 1
  %v2235 = vmax.f32 %v2233, %v2234
  %v2236 = vrot.slane %v2132, 4
  %v2237 = vmax.f32 %v2132, %v2236
  %v2238 = vrot.slane %v2237, 2
  %v2239 = vmax.f32 %v2237, %v2238
  %v2240 = vrot.slane %v2239, 1
  %v2241 = vmax.f32 %v2239, %v2240
  %v2242 = vrot.slane %v2133, 4
  %v2243 = vmax.f32 %v2133, %v2242
  %v2244 = vrot.slane %v2243, 2
  %v2245 = vmax.f32 %v2243, %v2244
  %v2246 = vrot.slane %v2245, 1
  %v2247 = vmax.f32 %v2245, %v2246
  %v2248 = vrot.slane %v2134, 4
  %v2249 = vmax.f32 %v2134, %v2248
  %v2250 = vrot.slane %v2249, 2
  %v2251 = vmax.f32 %v2249, %v2250
  %v2252 = vrot.slane %v2251, 1
  %v2253 = vmax.f32 %v2251, %v2252
  %v2254 = vrot.slane %v2135, 4
  %v2255 = vmax.f32 %v2135, %v2254
  %v2256 = vrot.slane %v2255, 2
  %v2257 = vmax.f32 %v2255, %v2256
  %v2258 = vrot.slane %v2257, 1
  %v2259 = vmax.f32 %v2257, %v2258
  %v2260 = vrot.slane %v2136, 4
  %v2261 = vmax.f32 %v2136, %v2260
  %v2262 = vrot.slane %v2261, 2
  %v2263 = vmax.f32 %v2261, %v2262
  %v2264 = vrot.slane %v2263, 1
  %v2265 = vmax.f32 %v2263, %v2264
  %v2266 = vrot.slane %v2137, 4
  %v2267 = vmax.f32 %v2137, %v2266
  %v2268 = vrot.slane %v2267, 2
  %v2269 = vmax.f32 %v2267, %v2268
  %v2270 = vrot.slane %v2269, 1
  %v2271 = vmax.f32 %v2269, %v2270
  %v2272 = vrot.slane %v2138, 4
  %v2273 = vmax.f32 %v2138, %v2272
  %v2274 = vrot.slane %v2273, 2
  %v2275 = vmax.f32 %v2273, %v2274
  %v2276 = vrot.slane %v2275, 1
  %v2277 = vmax.f32 %v2275, %v2276
  %v2278 = vrot.slane %v2139, 4
  %v2279 = vmax.f32 %v2139, %v2278
  %v2280 = vrot.slane %v2279, 2
  %v2281 = vmax.f32 %v2279, %v2280
  %v2282 = vrot.slane %v2281, 1
  %v2283 = vmax.f32 %v2281, %v2282
  %v2284 = vrot.slane %v2140, 4
  %v2285 = vmax.f32 %v2140, %v2284
  %v2286 = vrot.slane %v2285, 2
  %v2287 = vmax.f32 %v2285, %v2286
  %v2288 = vrot.slane %v2287, 1
  %v2289 = vmax.f32 %v2287, %v2288
  %v2290 = vrot.slane %v2141, 4
  %v2291 = vmax.f32 %v2141, %v2290
  %v2292 = vrot.slane %v2291, 2
  %v2293 = vmax.f32 %v2291, %v2292
  %v2294 = vrot.slane %v2293, 1
  %v2295 = vmax.f32 %v2293, %v2294
  %v2296 = vrot.slane %v2142, 4
  %v2297 = vmax.f32 %v2142, %v2296
  %v2298 = vrot.slane %v2297, 2
  %v2299 = vmax.f32 %v2297, %v2298
  %v2300 = vrot.slane %v2299, 1
  %v2301 = vmax.f32 %v2299, %v2300
  %v2302 = vrot.slane %v2143, 4
  %v2303 = vmax.f32 %v2143, %v2302
  %v2304 = vrot.slane %v2303, 2
  %v2305 = vmax.f32 %v2303, %v2304
  %v2306 = vrot.slane %v2305, 1
  %v2307 = vmax.f32 %v2305, %v2306
  %v2308 = vrot.slane %v2144, 4
  %v2309 = vmax.f32 %v2144, %v2308
  %v2310 = vrot.slane %v2309, 2
  %v2311 = vmax.f32 %v2309, %v2310
  %v2312 = vrot.slane %v2311, 1
  %v2313 = vmax.f32 %v2311, %v2312
  %v2314 = vrot.slane %v2145, 4
  %v2315 = vmax.f32 %v2145, %v2314
  %v2316 = vrot.slane %v2315, 2
  %v2317 = vmax.f32 %v2315, %v2316
  %v2318 = vrot.slane %v2317, 1
  %v2319 = vmax.f32 %v2317, %v2318
  %v2320 = vrot.slane %v2146, 4
  %v2321 = vmax.f32 %v2146, %v2320
  %v2322 = vrot.slane %v2321, 2
  %v2323 = vmax.f32 %v2321, %v2322
  %v2324 = vrot.slane %v2323, 1
  %v2325 = vmax.f32 %v2323, %v2324
  %v2326 = vrot.slane %v2147, 4
  %v2327 = vmax.f32 %v2147, %v2326
  %v2328 = vrot.slane %v2327, 2
  %v2329 = vmax.f32 %v2327, %v2328
  %v2330 = vrot.slane %v2329, 1
  %v2331 = vmax.f32 %v2329, %v2330
  %v2332 = vrot.slane %v2148, 4
  %v2333 = vmax.f32 %v2148, %v2332
  %v2334 = vrot.slane %v2333, 2
  %v2335 = vmax.f32 %v2333, %v2334
  %v2336 = vrot.slane %v2335, 1
  %v2337 = vmax.f32 %v2335, %v2336
  %v2338 = vrot.slane %v2149, 4
  %v2339 = vmax.f32 %v2149, %v2338
  %v2340 = vrot.slane %v2339, 2
  %v2341 = vmax.f32 %v2339, %v2340
  %v2342 = vrot.slane %v2341, 1
  %v2343 = vmax.f32 %v2341, %v2342
  %v2344 = vrot.slane %v2150, 4
  %v2345 = vmax.f32 %v2150, %v2344
  %v2346 = vrot.slane %v2345, 2
  %v2347 = vmax.f32 %v2345, %v2346
  %v2348 = vrot.slane %v2347, 1
  %v2349 = vmax.f32 %v2347, %v2348
  %v2350 = vrot.slane %v2151, 4
  %v2351 = vmax.f32 %v2151, %v2350
  %v2352 = vrot.slane %v2351, 2
  %v2353 = vmax.f32 %v2351, %v2352
  %v2354 = vrot.slane %v2353, 1
  %v2355 = vmax.f32 %v2353, %v2354
  %v2356 = vrot.slane %v2152, 4
  %v2357 = vmax.f32 %v2152, %v2356
  %v2358 = vrot.slane %v2357, 2
  %v2359 = vmax.f32 %v2357, %v2358
  %v2360 = vrot.slane %v2359, 1
  %v2361 = vmax.f32 %v2359, %v2360
  %v2362 = vrot.slane %v2153, 4
  %v2363 = vmax.f32 %v2153, %v2362
  %v2364 = vrot.slane %v2363, 2
  %v2365 = vmax.f32 %v2363, %v2364
  %v2366 = vrot.slane %v2365, 1
  %v2367 = vmax.f32 %v2365, %v2366
  %v2368 = vrot.slane %v2154, 4
  %v2369 = vmax.f32 %v2154, %v2368
  %v2370 = vrot.slane %v2369, 2
  %v2371 = vmax.f32 %v2369, %v2370
  %v2372 = vrot.slane %v2371, 1
  %v2373 = vmax.f32 %v2371, %v2372
  %v2374 = vrot.slane %v2155, 4
  %v2375 = vmax.f32 %v2155, %v2374
  %v2376 = vrot.slane %v2375, 2
  %v2377 = vmax.f32 %v2375, %v2376
  %v2378 = vrot.slane %v2377, 1
  %v2379 = vmax.f32 %v2377, %v2378
  %v2380 = vrot.slane %v2156, 4
  %v2381 = vmax.f32 %v2156, %v2380
  %v2382 = vrot.slane %v2381, 2
  %v2383 = vmax.f32 %v2381, %v2382
  %v2384 = vrot.slane %v2383, 1
  %v2385 = vmax.f32 %v2383, %v2384
  %v2386 = vrot.slane %v2157, 4
  %v2387 = vmax.f32 %v2157, %v2386
  %v2388 = vrot.slane %v2387, 2
  %v2389 = vmax.f32 %v2387, %v2388
  %v2390 = vrot.slane %v2389, 1
  %v2391 = vmax.f32 %v2389, %v2390
  %v2392 = vrot.slane %v2158, 4
  %v2393 = vmax.f32 %v2158, %v2392
  %v2394 = vrot.slane %v2393, 2
  %v2395 = vmax.f32 %v2393, %v2394
  %v2396 = vrot.slane %v2395, 1
  %v2397 = vmax.f32 %v2395, %v2396
  %v2398 = vrot.slane %v2159, 4
  %v2399 = vmax.f32 %v2159, %v2398
  %v2400 = vrot.slane %v2399, 2
  %v2401 = vmax.f32 %v2399, %v2400
  %v2402 = vrot.slane %v2401, 1
  %v2403 = vmax.f32 %v2401, %v2402
  %v2404 = vrot.slane %v2160, 4
  %v2405 = vmax.f32 %v2160, %v2404
  %v2406 = vrot.slane %v2405, 2
  %v2407 = vmax.f32 %v2405, %v2406
  %v2408 = vrot.slane %v2407, 1
  %v2409 = vmax.f32 %v2407, %v2408
  %v2410 = vrot.slane %v2161, 4
  %v2411 = vmax.f32 %v2161, %v2410
  %v2412 = vrot.slane %v2411, 2
  %v2413 = vmax.f32 %v2411, %v2412
  %v2414 = vrot.slane %v2413, 1
  %v2415 = vmax.f32 %v2413, %v2414
  %v2416 = vrot.slane %v2162, 4
  %v2417 = vmax.f32 %v2162, %v2416
  %v2418 = vrot.slane %v2417, 2
  %v2419 = vmax.f32 %v2417, %v2418
  %v2420 = vrot.slane %v2419, 1
  %v2421 = vmax.f32 %v2419, %v2420
  %v2422 = vrot.slane %v2163, 4
  %v2423 = vmax.f32 %v2163, %v2422
  %v2424 = vrot.slane %v2423, 2
  %v2425 = vmax.f32 %v2423, %v2424
  %v2426 = vrot.slane %v2425, 1
  %v2427 = vmax.f32 %v2425, %v2426
  %v2428 = vrot.slane %v2164, 4
  %v2429 = vmax.f32 %v2164, %v2428
  %v2430 = vrot.slane %v2429, 2
  %v2431 = vmax.f32 %v2429, %v2430
  %v2432 = vrot.slane %v2431, 1
  %v2433 = vmax.f32 %v2431, %v2432
  %v2434 = vrot.slane %v2165, 4
  %v2435 = vmax.f32 %v2165, %v2434
  %v2436 = vrot.slane %v2435, 2
  %v2437 = vmax.f32 %v2435, %v2436
  %v2438 = vrot.slane %v2437, 1
  %v2439 = vmax.f32 %v2437, %v2438
  %v2440 = vrot.slane %v2166, 4
  %v2441 = vmax.f32 %v2166, %v2440
  %v2442 = vrot.slane %v2441, 2
  %v2443 = vmax.f32 %v2441, %v2442
  %v2444 = vrot.slane %v2443, 1
  %v2445 = vmax.f32 %v2443, %v2444
  %v2446 = vrot.slane %v2167, 4
  %v2447 = vmax.f32 %v2167, %v2446
  %v2448 = vrot.slane %v2447, 2
  %v2449 = vmax.f32 %v2447, %v2448
  %v2450 = vrot.slane %v2449, 1
  %v2451 = vmax.f32 %v2449, %v2450
  %v2452 = vrot.slane %v2168, 4
  %v2453 = vmax.f32 %v2168, %v2452
  %v2454 = vrot.slane %v2453, 2
  %v2455 = vmax.f32 %v2453, %v2454
  %v2456 = vrot.slane %v2455, 1
  %v2457 = vmax.f32 %v2455, %v2456
  %v2458 = vrot.slane %v2169, 4
  %v2459 = vmax.f32 %v2169, %v2458
  %v2460 = vrot.slane %v2459, 2
  %v2461 = vmax.f32 %v2459, %v2460
  %v2462 = vrot.slane %v2461, 1
  %v2463 = vmax.f32 %v2461, %v2462
  %v2464 = vrot.slane %v2170, 4
  %v2465 = vmax.f32 %v2170, %v2464
  %v2466 = vrot.slane %v2465, 2
  %v2467 = vmax.f32 %v2465, %v2466
  %v2468 = vrot.slane %v2467, 1
  %v2469 = vmax.f32 %v2467, %v2468
  %v2470 = vrot.slane %v2171, 4
  %v2471 = vmax.f32 %v2171, %v2470
  %v2472 = vrot.slane %v2471, 2
  %v2473 = vmax.f32 %v2471, %v2472
  %v2474 = vrot.slane %v2473, 1
  %v2475 = vmax.f32 %v2473, %v2474
  %v2476 = vrot.slane %v2172, 4
  %v2477 = vmax.f32 %v2172, %v2476
  %v2478 = vrot.slane %v2477, 2
  %v2479 = vmax.f32 %v2477, %v2478
  %v2480 = vrot.slane %v2479, 1
  %v2481 = vmax.f32 %v2479, %v2480
  %v2482 = vrot.slane %v2173, 4
  %v2483 = vmax.f32 %v2173, %v2482
  %v2484 = vrot.slane %v2483, 2
  %v2485 = vmax.f32 %v2483, %v2484
  %v2486 = vrot.slane %v2485, 1
  %v2487 = vmax.f32 %v2485, %v2486
  %v2488 = vrot.slane %v2174, 4
  %v2489 = vmax.f32 %v2174, %v2488
  %v2490 = vrot.slane %v2489, 2
  %v2491 = vmax.f32 %v2489, %v2490
  %v2492 = vrot.slane %v2491, 1
  %v2493 = vmax.f32 %v2491, %v2492
  %v2494 = vrot.slane %v2175, 4
  %v2495 = vmax.f32 %v2175, %v2494
  %v2496 = vrot.slane %v2495, 2
  %v2497 = vmax.f32 %v2495, %v2496
  %v2498 = vrot.slane %v2497, 1
  %v2499 = vmax.f32 %v2497, %v2498
  %v2500 = vrot.slane %v2176, 4
  %v2501 = vmax.f32 %v2176, %v2500
  %v2502 = vrot.slane %v2501, 2
  %v2503 = vmax.f32 %v2501, %v2502
  %v2504 = vrot.slane %v2503, 1
  %v2505 = vmax.f32 %v2503, %v2504
  %v2506 = vrot.slane %v2177, 4
  %v2507 = vmax.f32 %v2177, %v2506
  %v2508 = vrot.slane %v2507, 2
  %v2509 = vmax.f32 %v2507, %v2508
  %v2510 = vrot.slane %v2509, 1
  %v2511 = vmax.f32 %v2509, %v2510
  %v2512 = vrot.slane %v2178, 4
  %v2513 = vmax.f32 %v2178, %v2512
  %v2514 = vrot.slane %v2513, 2
  %v2515 = vmax.f32 %v2513, %v2514
  %v2516 = vrot.slane %v2515, 1
  %v2517 = vmax.f32 %v2515, %v2516
  %v2518 = vrot.slane %v2179, 4
  %v2519 = vmax.f32 %v2179, %v2518
  %v2520 = vrot.slane %v2519, 2
  %v2521 = vmax.f32 %v2519, %v2520
  %v2522 = vrot.slane %v2521, 1
  %v2523 = vmax.f32 %v2521, %v2522
  %v2524 = vrot.slane %v2180, 4
  %v2525 = vmax.f32 %v2180, %v2524
  %v2526 = vrot.slane %v2525, 2
  %v2527 = vmax.f32 %v2525, %v2526
  %v2528 = vrot.slane %v2527, 1
  %v2529 = vmax.f32 %v2527, %v2528
  %v2530 = vrot.slane %v2181, 4
  %v2531 = vmax.f32 %v2181, %v2530
  %v2532 = vrot.slane %v2531, 2
  %v2533 = vmax.f32 %v2531, %v2532
  %v2534 = vrot.slane %v2533, 1
  %v2535 = vmax.f32 %v2533, %v2534
  %v2536 = vrot.slane %v2182, 4
  %v2537 = vmax.f32 %v2182, %v2536
  %v2538 = vrot.slane %v2537, 2
  %v2539 = vmax.f32 %v2537, %v2538
  %v2540 = vrot.slane %v2539, 1
  %v2541 = vmax.f32 %v2539, %v2540
  %v2542 = vrot.slane %v2183, 4
  %v2543 = vmax.f32 %v2183, %v2542
  %v2544 = vrot.slane %v2543, 2
  %v2545 = vmax.f32 %v2543, %v2544
  %v2546 = vrot.slane %v2545, 1
  %v2547 = vmax.f32 %v2545, %v2546
  %v2548 = vrot.slane %v2184, 4
  %v2549 = vmax.f32 %v2184, %v2548
  %v2550 = vrot.slane %v2549, 2
  %v2551 = vmax.f32 %v2549, %v2550
  %v2552 = vrot.slane %v2551, 1
  %v2553 = vmax.f32 %v2551, %v2552
  %v2554 = vrot.slane %v2185, 4
  %v2555 = vmax.f32 %v2185, %v2554
  %v2556 = vrot.slane %v2555, 2
  %v2557 = vmax.f32 %v2555, %v2556
  %v2558 = vrot.slane %v2557, 1
  %v2559 = vmax.f32 %v2557, %v2558
  %v2560 = vrot.slane %v2186, 4
  %v2561 = vmax.f32 %v2186, %v2560
  %v2562 = vrot.slane %v2561, 2
  %v2563 = vmax.f32 %v2561, %v2562
  %v2564 = vrot.slane %v2563, 1
  %v2565 = vmax.f32 %v2563, %v2564
  %v2566 = vrot.slane %v2187, 4
  %v2567 = vmax.f32 %v2187, %v2566
  %v2568 = vrot.slane %v2567, 2
  %v2569 = vmax.f32 %v2567, %v2568
  %v2570 = vrot.slane %v2569, 1
  %v2571 = vmax.f32 %v2569, %v2570
  %v2572 = vpack.c.bf16 %v2193, %v2193
  %v2573 = vpack.c.bf16 %v2199, %v2199
  %v2574 = vpack.c.bf16 %v2205, %v2205
  %v2575 = vpack.c.bf16 %v2211, %v2211
  %v2576 = vpack.c.bf16 %v2217, %v2217
  %v2577 = vpack.c.bf16 %v2223, %v2223
  %v2578 = vpack.c.bf16 %v2229, %v2229
  %v2579 = vpack.c.bf16 %v2235, %v2235
  %v2580 = vpack.c.bf16 %v2241, %v2241
  %v2581 = vpack.c.bf16 %v2247, %v2247
  %v2582 = vpack.c.bf16 %v2253, %v2253
  %v2583 = vpack.c.bf16 %v2259, %v2259
  %v2584 = vpack.c.bf16 %v2265, %v2265
  %v2585 = vpack.c.bf16 %v2271, %v2271
  %v2586 = vpack.c.bf16 %v2277, %v2277
  %v2587 = vpack.c.bf16 %v2283, %v2283
  %v2588 = vpack.c.bf16 %v2289, %v2289
  %v2589 = vpack.c.bf16 %v2295, %v2295
  %v2590 = vpack.c.bf16 %v2301, %v2301
  %v2591 = vpack.c.bf16 %v2307, %v2307
  %v2592 = vpack.c.bf16 %v2313, %v2313
  %v2593 = vpack.c.bf16 %v2319, %v2319
  %v2594 = vpack.c.bf16 %v2325, %v2325
  %v2595 = vpack.c.bf16 %v2331, %v2331
  %v2596 = vpack.c.bf16 %v2337, %v2337
  %v2597 = vpack.c.bf16 %v2343, %v2343
  %v2598 = vpack.c.bf16 %v2349, %v2349
  %v2599 = vpack.c.bf16 %v2355, %v2355
  %v2600 = vpack.c.bf16 %v2361, %v2361
  %v2601 = vpack.c.bf16 %v2367, %v2367
  %v2602 = vpack.c.bf16 %v2373, %v2373
  %v2603 = vpack.c.bf16 %v2379, %v2379
  %v2604 = vpack.c.bf16 %v2385, %v2385
  %v2605 = vpack.c.bf16 %v2391, %v2391
  %v2606 = vpack.c.bf16 %v2397, %v2397
  %v2607 = vpack.c.bf16 %v2403, %v2403
  %v2608 = vpack.c.bf16 %v2409, %v2409
  %v2609 = vpack.c.bf16 %v2415, %v2415
  %v2610 = vpack.c.bf16 %v2421, %v2421
  %v2611 = vpack.c.bf16 %v2427, %v2427
  %v2612 = vpack.c.bf16 %v2433, %v2433
  %v2613 = vpack.c.bf16 %v2439, %v2439
  %v2614 = vpack.c.bf16 %v2445, %v2445
  %v2615 = vpack.c.bf16 %v2451, %v2451
  %v2616 = vpack.c.bf16 %v2457, %v2457
  %v2617 = vpack.c.bf16 %v2463, %v2463
  %v2618 = vpack.c.bf16 %v2469, %v2469
  %v2619 = vpack.c.bf16 %v2475, %v2475
  %v2620 = vpack.c.bf16 %v2481, %v2481
  %v2621 = vpack.c.bf16 %v2487, %v2487
  %v2622 = vpack.c.bf16 %v2493, %v2493
  %v2623 = vpack.c.bf16 %v2499, %v2499
  %v2624 = vpack.c.bf16 %v2505, %v2505
  %v2625 = vpack.c.bf16 %v2511, %v2511
  %v2626 = vpack.c.bf16 %v2517, %v2517
  %v2627 = vpack.c.bf16 %v2523, %v2523
  %v2628 = vpack.c.bf16 %v2529, %v2529
  %v2629 = vpack.c.bf16 %v2535, %v2535
  %v2630 = vpack.c.bf16 %v2541, %v2541
  %v2631 = vpack.c.bf16 %v2547, %v2547
  %v2632 = vpack.c.bf16 %v2553, %v2553
  %v2633 = vpack.c.bf16 %v2559, %v2559
  %v2634 = vpack.c.bf16 %v2565, %v2565
  %v2635 = vpack.c.bf16 %v2571, %v2571
  %v2700 = vunpack.c.l.b16 %v2572
  %v2701 = vunpack.c.l.b16 %v2573
  %v2702 = vunpack.c.l.b16 %v2574
  %v2703 = vunpack.c.l.b16 %v2575
  %v2704 = vunpack.c.l.b16 %v2576
  %v2705 = vunpack.c.l.b16 %v2577
  %v2706 = vunpack.c.l.b16 %v2578
  %v2707 = vunpack.c.l.b16 %v2579
  %v2708 = vunpack.c.l.b16 %v2580
  %v2709 = vunpack.c.l.b16 %v2581
  %v2710 = vunpack.c.l.b16 %v2582
  %v2711 = vunpack.c.l.b16 %v2583
  %v2712 = vunpack.c.l.b16 %v2584
  %v2713 = vunpack.c.l.b16 %v2585
  %v2714 = vunpack.c.l.b16 %v2586
  %v2715 = vunpack.c.l.b16 %v2587
  %v2716 = vunpack.c.l.b16 %v2588
  %v2717 = vunpack.c.l.b16 %v2589
  %v2718 = vunpack.c.l.b16 %v2590
  %v2719 = vunpack.c.l.b16 %v2591
  %v2720 = vunpack.c.l.b16 %v2592
  %v2721 = vunpack.c.l.b16 %v2593
  %v2722 = vunpack.c.l.b16 %v2594
  %v2723 = vunpack.c.l.b16 %v2595
  %v2724 = vunpack.c.l.b16 %v2596
  %v2725 = vunpack.c.l.b16 %v2597
  %v2726 = vunpack.c.l.b16 %v2598
  %v2727 = vunpack.c.l.b16 %v2599
  %v2728 = vunpack.c.l.b16 %v2600
  %v2729 = vunpack.c.l.b16 %v2601
  %v2730 = vunpack.c.l.b16 %v2602
  %v2731 = vunpack.c.l.b16 %v2603
  %v2732 = vunpack.c.l.b16 %v2604
  %v2733 = vunpack.c.l.b16 %v2605
  %v2734 = vunpack.c.l.b16 %v2606
  %v2735 = vunpack.c.l.b16 %v2607
  %v2736 = vunpack.c.l.b16 %v2608
  %v2737 = vunpack.c.l.b16 %v2609
  %v2738 = vunpack.c.l.b16 %v2610
  %v2739 = vunpack.c.l.b16 %v2611
  %v2740 = vunpack.c.l.b16 %v2612
  %v2741 = vunpack.c.l.b16 %v2613
  %v2742 = vunpack.c.l.b16 %v2614
  %v2743 = vunpack.c.l.b16 %v2615
  %v2744 = vunpack.c.l.b16 %v2616
  %v2745 = vunpack.c.l.b16 %v2617
  %v2746 = vunpack.c.l.b16 %v2618
  %v2747 = vunpack.c.l.b16 %v2619
  %v2748 = vunpack.c.l.b16 %v2620
  %v2749 = vunpack.c.l.b16 %v2621
  %v2750 = vunpack.c.l.b16 %v2622
  %v2751 = vunpack.c.l.b16 %v2623
  %v2752 = vunpack.c.l.b16 %v2624
  %v2753 = vunpack.c.l.b16 %v2625
  %v2754 = vunpack.c.l.b16 %v2626
  %v2755 = vunpack.c.l.b16 %v2627
  %v2756 = vunpack.c.l.b16 %v2628
  %v2757 = vunpack.c.l.b16 %v2629
  %v2758 = vunpack.c.l.b16 %v2630
  %v2759 = vunpack.c.l.b16 %v2631
  %v2760 = vunpack.c.l.b16 %v2632
  %v2761 = vunpack.c.l.b16 %v2633
  %v2762 = vunpack.c.l.b16 %v2634
  %v2763 = vunpack.c.l.b16 %v2635
  %v2764 = vpack.c.b16 %v2700, %v2700
  %v2765 = vpack.c.b16 %v2701, %v2701
  %v2766 = vpack.c.b16 %v2702, %v2702
  %v2767 = vpack.c.b16 %v2703, %v2703
  %v2768 = vpack.c.b16 %v2704, %v2704
  %v2769 = vpack.c.b16 %v2705, %v2705
  %v2770 = vpack.c.b16 %v2706, %v2706
  %v2771 = vpack.c.b16 %v2707, %v2707
  %v2772 = vpack.c.b16 %v2708, %v2708
  %v2773 = vpack.c.b16 %v2709, %v2709
  %v2774 = vpack.c.b16 %v2710, %v2710
  %v2775 = vpack.c.b16 %v2711, %v2711
  %v2776 = vpack.c.b16 %v2712, %v2712
  %v2777 = vpack.c.b16 %v2713, %v2713
  %v2778 = vpack.c.b16 %v2714, %v2714
  %v2779 = vpack.c.b16 %v2715, %v2715
  %v2780 = vpack.c.b16 %v2716, %v2716
  %v2781 = vpack.c.b16 %v2717, %v2717
  %v2782 = vpack.c.b16 %v2718, %v2718
  %v2783 = vpack.c.b16 %v2719, %v2719
  %v2784 = vpack.c.b16 %v2720, %v2720
  %v2785 = vpack.c.b16 %v2721, %v2721
  %v2786 = vpack.c.b16 %v2722, %v2722
  %v2787 = vpack.c.b16 %v2723, %v2723
  %v2788 = vpack.c.b16 %v2724, %v2724
  %v2789 = vpack.c.b16 %v2725, %v2725
  %v2790 = vpack.c.b16 %v2726, %v2726
  %v2791 = vpack.c.b16 %v2727, %v2727
  %v2792 = vpack.c.b16 %v2728, %v2728
  %v2793 = vpack.c.b16 %v2729, %v2729
  %v2794 = vpack.c.b16 %v2730, %v2730
  %v2795 = vpack.c.b16 %v2731, %v2731
  %v2796 = vpack.c.b16 %v2732, %v2732
  %v2797 = vpack.c.b16 %v2733, %v2733
  %v2798 = vpack.c.b16 %v2734, %v2734
  %v2799 = vpack.c.b16 %v2735, %v2735
  %v2800 = vpack.c.b16 %v2736, %v2736
  %v2801 = vpack.c.b16 %v2737, %v2737
  %v2802 = vpack.c.b16 %v2738, %v2738
  %v2803 = vpack.c.b16 %v2739, %v2739
  %v2804 = vpack.c.b16 %v2740, %v2740
  %v2805 = vpack.c.b16 %v2741, %v2741
  %v2806 = vpack.c.b16 %v2742, %v2742
  %v2807 = vpack.c.b16 %v2743, %v2743
  %v2808 = vpack.c.b16 %v2744, %v2744
  %v2809 = vpack.c.b16 %v2745, %v2745
  %v2810 = vpack.c.b16 %v2746, %v2746
  %v2811 = vpack.c.b16 %v2747, %v2747
  %v2812 = vpack.c.b16 %v2748, %v2748
  %v2813 = vpack.c.b16 %v2749, %v2749
  %v2814 = vpack.c.b16 %v2750, %v2750
  %v2815 = vpack.c.b16 %v2751, %v2751
  %v2816 = vpack.c.b16 %v2752, %v2752
  %v2817 = vpack.c.b16 %v2753, %v2753
  %v2818 = vpack.c.b16 %v2754, %v2754
  %v2819 = vpack.c.b16 %v2755, %v2755
  %v2820 = vpack.c.b16 %v2756, %v2756
  %v2821 = vpack.c.b16 %v2757, %v2757
  %v2822 = vpack.c.b16 %v2758, %v2758
  %v2823 = vpack.c.b16 %v2759, %v2759
  %v2824 = vpack.c.b16 %v2760, %v2760
  %v2825 = vpack.c.b16 %v2761, %v2761
  %v2826 = vpack.c.b16 %v2762, %v2762
  %v2827 = vpack.c.b16 %v2763, %v2763
  %v2828 = vunpack.c.l.b16 %v2764
  %v2829 = vunpack.c.l.b16 %v2765
  %v2830 = vunpack.c.l.b16 %v2766
  %v2831 = vunpack.c.l.b16 %v2767
  %v2832 = vunpack.c.l.b16 %v2768
  %v2833 = vunpack.c.l.b16 %v2769
  %v2834 = vunpack.c.l.b16 %v2770
  %v2835 = vunpack.c.l.b16 %v2771
  %v2836 = vunpack.c.l.b16 %v2772
  %v2837 = vunpack.c.l.b16 %v2773
  %v2838 = vunpack.c.l.b16 %v2774
  %v2839 = vunpack.c.l.b16 %v2775
  %v2840 = vunpack.c.l.b16 %v2776
  %v2841 = vunpack.c.l.b16 %v2777
  %v2842 = vunpack.c.l.b16 %v2778
  %v2843 = vunpack.c.l.b16 %v2779
  %v2844 = vunpack.c.l.b16 %v2780
  %v2845 = vunpack.c.l.b16 %v2781
  %v2846 = vunpack.c.l.b16 %v2782
  %v2847 = vunpack.c.l.b16 %v2783
  %v2848 = vunpack.c.l.b16 %v2784
  %v2849 = vunpack.c.l.b16 %v2785
  %v2850 = vunpack.c.l.b16 %v2786
  %v2851 = vunpack.c.l.b16 %v2787
  %v2852 = vunpack.c.l.b16 %v2788
  %v2853 = vunpack.c.l.b16 %v2789
  %v2854 = vunpack.c.l.b16 %v2790
  %v2855 = vunpack.c.l.b16 %v2791
  %v2856 = vunpack.c.l.b16 %v2792
  %v2857 = vunpack.c.l.b16 %v2793
  %v2858 = vunpack.c.l.b16 %v2794
  %v2859 = vunpack.c.l.b16 %v2795
  %v2860 = vunpack.c.l.b16 %v2796
  %v2861 = vunpack.c.l.b16 %v2797
  %v2862 = vunpack.c.l.b16 %v2798
  %v2863 = vunpack.c.l.b16 %v2799
  %v2864 = vunpack.c.l.b16 %v2800
  %v2865 = vunpack.c.l.b16 %v2801
  %v2866 = vunpack.c.l.b16 %v2802
  %v2867 = vunpack.c.l.b16 %v2803
  %v2868 = vunpack.c.l.b16 %v2804
  %v2869 = vunpack.c.l.b16 %v2805
  %v2870 = vunpack.c.l.b16 %v2806
  %v2871 = vunpack.c.l.b16 %v2807
  %v2872 = vunpack.c.l.b16 %v2808
  %v2873 = vunpack.c.l.b16 %v2809
  %v2874 = vunpack.c.l.b16 %v2810
  %v2875 = vunpack.c.l.b16 %v2811
  %v2876 = vunpack.c.l.b16 %v2812
  %v2877 = vunpack.c.l.b16 %v2813
  %v2878 = vunpack.c.l.b16 %v2814
  %v2879 = vunpack.c.l.b16 %v2815
  %v2880 = vunpack.c.l.b16 %v2816
  %v2881 = vunpack.c.l.b16 %v2817
  %v2882 = vunpack.c.l.b16 %v2818
  %v2883 = vunpack.c.l.b16 %v2819
  %v2884 = vunpack.c.l.b16 %v2820
  %v2885 = vunpack.c.l.b16 %v2821
  %v2886 = vunpack.c.l.b16 %v2822
  %v2887 = vunpack.c.l.b16 %v2823
  %v2888 = vunpack.c.l.b16 %v2824
  %v2889 = vunpack.c.l.b16 %v2825
  %v2890 = vunpack.c.l.b16 %v2826
  %v2891 = vunpack.c.l.b16 %v2827
  %vm2892 = vcmask 1041409
  %v2893 = vsel %vm2892, %v2829, %v2828
  %vm2894 = vcmask 1042434
  %v2895 = vsel %vm2894, %v2830, %v2893
  %vm2896 = vcmask 1043459
  %v2897 = vsel %vm2896, %v2831, %v2895
  %vm2898 = vcmask 1044484
  %v2899 = vsel %vm2898, %v2832, %v2897
  %vm2900 = vcmask 1045509
  %v2901 = vsel %vm2900, %v2833, %v2899
  %vm2902 = vcmask 1046534
  %v2903 = vsel %vm2902, %v2834, %v2901
  %vm2904 = vcmask 1047559
  %v2905 = vsel %vm2904, %v2835, %v2903
  %v2906 = vsel %vm2892, %v2837, %v2836
  %v2907 = vsel %vm2894, %v2838, %v2906
  %v2908 = vsel %vm2896, %v2839, %v2907
  %v2909 = vsel %vm2898, %v2840, %v2908
  %v2910 = vsel %vm2900, %v2841, %v2909
  %v2911 = vsel %vm2902, %v2842, %v2910
  %v2912 = vsel %vm2904, %v2843, %v2911
  %v2913 = vsel %vm2892, %v2845, %v2844
  %v2914 = vsel %vm2894, %v2846, %v2913
  %v2915 = vsel %vm2896, %v2847, %v2914
  %v2916 = vsel %vm2898, %v2848, %v2915
  %v2917 = vsel %vm2900, %v2849, %v2916
  %v2918 = vsel %vm2902, %v2850, %v2917
  %v2919 = vsel %vm2904, %v2851, %v2918
  %v2920 = vsel %vm2892, %v2853, %v2852
  %v2921 = vsel %vm2894, %v2854, %v2920
  %v2922 = vsel %vm2896, %v2855, %v2921
  %v2923 = vsel %vm2898, %v2856, %v2922
  %v2924 = vsel %vm2900, %v2857, %v2923
  %v2925 = vsel %vm2902, %v2858, %v2924
  %v2926 = vsel %vm2904, %v2859, %v2925
  %v2927 = vsel %vm2892, %v2861, %v2860
  %v2928 = vsel %vm2894, %v2862, %v2927
  %v2929 = vsel %vm2896, %v2863, %v2928
  %v2930 = vsel %vm2898, %v2864, %v2929
  %v2931 = vsel %vm2900, %v2865, %v2930
  %v2932 = vsel %vm2902, %v2866, %v2931
  %v2933 = vsel %vm2904, %v2867, %v2932
  %v2934 = vsel %vm2892, %v2869, %v2868
  %v2935 = vsel %vm2894, %v2870, %v2934
  %v2936 = vsel %vm2896, %v2871, %v2935
  %v2937 = vsel %vm2898, %v2872, %v2936
  %v2938 = vsel %vm2900, %v2873, %v2937
  %v2939 = vsel %vm2902, %v2874, %v2938
  %v2940 = vsel %vm2904, %v2875, %v2939
  %v2941 = vsel %vm2892, %v2877, %v2876
  %v2942 = vsel %vm2894, %v2878, %v2941
  %v2943 = vsel %vm2896, %v2879, %v2942
  %v2944 = vsel %vm2898, %v2880, %v2943
  %v2945 = vsel %vm2900, %v2881, %v2944
  %v2946 = vsel %vm2902, %v2882, %v2945
  %v2947 = vsel %vm2904, %v2883, %v2946
  %v2948 = vsel %vm2892, %v2885, %v2884
  %v2949 = vsel %vm2894, %v2886, %v2948
  %v2950 = vsel %vm2896, %v2887, %v2949
  %v2951 = vsel %vm2898, %v2888, %v2950
  %v2952 = vsel %vm2900, %v2889, %v2951
  %v2953 = vsel %vm2902, %v2890, %v2952
  %v2954 = vsel %vm2904, %v2891, %v2953
  %v2955 = vpack.c.b16 %v2905, %v2905
  %v2956 = vpack.c.b16 %v2912, %v2912
  %v2957 = vpack.c.b16 %v2919, %v2919
  %v2958 = vpack.c.b16 %v2926, %v2926
  %v2959 = vpack.c.b16 %v2933, %v2933
  %v2960 = vpack.c.b16 %v2940, %v2940
  %v2961 = vpack.c.b16 %v2947, %v2947
  %v2962 = vpack.c.b16 %v2954, %v2954
  %2971 = vst [vmem:[%s9] sm:$0xf] %v2955
  %2972 = vst [vmem:[%s9 + $0x4] sm:$0xf] %v2956
  %2973 = vst [vmem:[%s9 + $0x8] sm:$0xf] %v2957
  %2974 = vst [vmem:[%s9 + $0xc] sm:$0xf] %v2958
  %2975 = vst [vmem:[%s9 + $0x10] sm:$0xf] %v2959
  %2976 = vst [vmem:[%s9 + $0x14] sm:$0xf] %v2960
  %2977 = vst [vmem:[%s9 + $0x18] sm:$0xf] %v2961
  %2978 = vst [vmem:[%s9 + $0x1c] sm:$0xf] %v2962
  // Predicated region
  $region38: #{pointnet2_forward.8} parent=0 // pred_check
    _
  $region39: #{pointnet2_forward.8} parent=0 // pred_check_branch
    %2980 = sbr.rel (0) target = $region41
  $region40: #{pointnet2_forward.8} parent=0 // pred_region
    _
  $region41: #{pointnet2_forward.8} parent=0 // pred_fallthru
    _
  // Predicated region
  $region42: #{pointnet2_forward.8} parent=0 // pred_check
    _
  $region43: #{pointnet2_forward.8} parent=0 // pred_check_branch
    %2982 = sbr.rel (0) target = $region45
  $region44: #{pointnet2_forward.8} parent=0 // pred_region
    _
  $region45: #{pointnet2_forward.8} parent=0 // pred_fallthru
    _

// kernel: custom-call.42
$region0: #{custom-call.42}
  %s0 = inlined_call_operand.vmem [shape: f32[2,16], index: 0, kind: output, shape index: {}]

// kernel: pointnet2_forward.9
$region0: #{pointnet2_forward.9}
  #allocation0 [shape = 'u32[]', space=smem, size = 0x4, offset = 0x4, fixed_abs, tag = 'smem constant byte address 0x4 - core index']
  #allocation1 [shape = 'u32[144,128]{1,0:T(1,128)}', space=vmem, size = 0x12000, scoped, tag = 'internal scratch']
  %s0 = inlined_call_operand.vmem [shape: f32[256,3], index: 0, kind: input, shape index: {}]
  %s1 = inlined_call_operand.vmem [shape: bf16[256,128], index: 1, kind: input, shape index: {}]
  %s2 = inlined_call_operand.vmem [shape: bf16[3,64], index: 2, kind: input, shape index: {}]
  %s3 = inlined_call_operand.vmem [shape: bf16[128,64], index: 3, kind: input, shape index: {}]
  %s4 = inlined_call_operand.vmem [shape: f32[1,64], index: 4, kind: input, shape index: {}]
  %s5 = inlined_call_operand.vmem [shape: bf16[64,64], index: 5, kind: input, shape index: {}]
  %s6 = inlined_call_operand.vmem [shape: f32[1,64], index: 6, kind: input, shape index: {}]
  %s7 = inlined_call_operand.vmem [shape: bf16[64,128], index: 7, kind: input, shape index: {}]
  %s8 = inlined_call_operand.vmem [shape: f32[1,128], index: 8, kind: input, shape index: {}]
  %s9 = inlined_call_operand.vmem [shape: bf16[32,128], index: 9, kind: output, shape index: {}]
  %s10 = sld [smem:[#allocation0]]
  $region46: #{pointnet2_forward.9} parent=0
    _
  %s12 = ssub.s32 1, %s10
  %s13 = scalar_select 0, %s12, %s10
  // Predicated region
  $region2: #{pointnet2_forward.9} parent=0 // pred_check
    _
  $region3: #{pointnet2_forward.9} parent=0 // pred_check_branch
    %15 = sbr.rel (0) target = $region5
  $region4: #{pointnet2_forward.9} parent=0 // pred_region
    _
  $region5: #{pointnet2_forward.9} parent=0 // pred_fallthru
    _
  // Predicated region
  $region6: #{pointnet2_forward.9} parent=0 // pred_check
    _
  $region7: #{pointnet2_forward.9} parent=0 // pred_check_branch
    %17 = sbr.rel (0) target = $region9
  $region8: #{pointnet2_forward.9} parent=0 // pred_region
    _
  $region9: #{pointnet2_forward.9} parent=0 // pred_fallthru
    _
  // Predicated region
  $region10: #{pointnet2_forward.9} parent=0 // pred_check
    _
  $region11: #{pointnet2_forward.9} parent=0 // pred_check_branch
    %19 = sbr.rel (0) target = $region13
  $region12: #{pointnet2_forward.9} parent=0 // pred_region
    _
  $region13: #{pointnet2_forward.9} parent=0 // pred_fallthru
    _
  // Predicated region
  $region14: #{pointnet2_forward.9} parent=0 // pred_check
    _
  $region15: #{pointnet2_forward.9} parent=0 // pred_check_branch
    %21 = sbr.rel (0) target = $region17
  $region16: #{pointnet2_forward.9} parent=0 // pred_region
    _
  $region17: #{pointnet2_forward.9} parent=0 // pred_fallthru
    _
  // Predicated region
  $region18: #{pointnet2_forward.9} parent=0 // pred_check
    _
  $region19: #{pointnet2_forward.9} parent=0 // pred_check_branch
    %23 = sbr.rel (0) target = $region21
  $region20: #{pointnet2_forward.9} parent=0 // pred_region
    _
  $region21: #{pointnet2_forward.9} parent=0 // pred_fallthru
    _
  // Predicated region
  $region22: #{pointnet2_forward.9} parent=0 // pred_check
    _
  $region23: #{pointnet2_forward.9} parent=0 // pred_check_branch
    %25 = sbr.rel (0) target = $region25
  $region24: #{pointnet2_forward.9} parent=0 // pred_region
    _
  $region25: #{pointnet2_forward.9} parent=0 // pred_fallthru
    _
  // Predicated region
  $region26: #{pointnet2_forward.9} parent=0 // pred_check
    _
  $region27: #{pointnet2_forward.9} parent=0 // pred_check_branch
    %27 = sbr.rel (0) target = $region29
  $region28: #{pointnet2_forward.9} parent=0 // pred_region
    _
  $region29: #{pointnet2_forward.9} parent=0 // pred_fallthru
    _
  // Predicated region
  $region30: #{pointnet2_forward.9} parent=0 // pred_check
    _
  $region31: #{pointnet2_forward.9} parent=0 // pred_check_branch
    %29 = sbr.rel (0) target = $region33
  $region32: #{pointnet2_forward.9} parent=0 // pred_region
    _
  $region33: #{pointnet2_forward.9} parent=0 // pred_fallthru
    _
  // Predicated region
  $region34: #{pointnet2_forward.9} parent=0 // pred_check
    _
  $region35: #{pointnet2_forward.9} parent=0 // pred_check_branch
    %31 = sbr.rel (0) target = $region37
  $region36: #{pointnet2_forward.9} parent=0 // pred_region
    _
  $region37: #{pointnet2_forward.9} parent=0 // pred_fallthru
    _
  %v33 = vld [vmem:[%s0] sm:$0xff]
  %v34 = vld [vmem:[%s0 + $0x8] sm:$0xff]
  %v35 = vld [vmem:[%s0 + $0x10] sm:$0xff]
  %v36 = vld [vmem:[%s0 + $0x18] sm:$0xff]
  %v37 = vld [vmem:[%s0 + $0x20] sm:$0xff]
  %v38 = vld [vmem:[%s0 + $0x28] sm:$0xff]
  %v39 = vld [vmem:[%s0 + $0x30] sm:$0xff]
  %v40 = vld [vmem:[%s0 + $0x38] sm:$0xff]
  %v41 = vld [vmem:[%s0 + $0x40] sm:$0xff]
  %v42 = vld [vmem:[%s0 + $0x48] sm:$0xff]
  %v43 = vld [vmem:[%s0 + $0x50] sm:$0xff]
  %v44 = vld [vmem:[%s0 + $0x58] sm:$0xff]
  %v45 = vld [vmem:[%s0 + $0x60] sm:$0xff]
  %v46 = vld [vmem:[%s0 + $0x68] sm:$0xff]
  %v47 = vld [vmem:[%s0 + $0x70] sm:$0xff]
  %v48 = vld [vmem:[%s0 + $0x78] sm:$0xff]
  %v49 = vld [vmem:[%s0 + $0x80] sm:$0xff]
  %v50 = vld [vmem:[%s0 + $0x88] sm:$0xff]
  %v51 = vld [vmem:[%s0 + $0x90] sm:$0xff]
  %v52 = vld [vmem:[%s0 + $0x98] sm:$0xff]
  %v53 = vld [vmem:[%s0 + $0xa0] sm:$0xff]
  %v54 = vld [vmem:[%s0 + $0xa8] sm:$0xff]
  %v55 = vld [vmem:[%s0 + $0xb0] sm:$0xff]
  %v56 = vld [vmem:[%s0 + $0xb8] sm:$0xff]
  %v57 = vld [vmem:[%s0 + $0xc0] sm:$0xff]
  %v58 = vld [vmem:[%s0 + $0xc8] sm:$0xff]
  %v59 = vld [vmem:[%s0 + $0xd0] sm:$0xff]
  %v60 = vld [vmem:[%s0 + $0xd8] sm:$0xff]
  %v61 = vld [vmem:[%s0 + $0xe0] sm:$0xff]
  %v62 = vld [vmem:[%s0 + $0xe8] sm:$0xff]
  %v63 = vld [vmem:[%s0 + $0xf0] sm:$0xff]
  %v64 = vld [vmem:[%s0 + $0xf8] sm:$0xff]
  %v65 = vld [vmem:[%s1] sm:$0xf]
  %v66 = vld [vmem:[%s1 + $0x4] sm:$0xf]
  %v67 = vld [vmem:[%s1 + $0x8] sm:$0xf]
  %v68 = vld [vmem:[%s1 + $0xc] sm:$0xf]
  %v69 = vld [vmem:[%s1 + $0x10] sm:$0xf]
  %v70 = vld [vmem:[%s1 + $0x14] sm:$0xf]
  %v71 = vld [vmem:[%s1 + $0x18] sm:$0xf]
  %v72 = vld [vmem:[%s1 + $0x1c] sm:$0xf]
  %v73 = vld [vmem:[%s1 + $0x20] sm:$0xf]
  %v74 = vld [vmem:[%s1 + $0x24] sm:$0xf]
  %v75 = vld [vmem:[%s1 + $0x28] sm:$0xf]
  %v76 = vld [vmem:[%s1 + $0x2c] sm:$0xf]
  %v77 = vld [vmem:[%s1 + $0x30] sm:$0xf]
  %v78 = vld [vmem:[%s1 + $0x34] sm:$0xf]
  %v79 = vld [vmem:[%s1 + $0x38] sm:$0xf]
  %v80 = vld [vmem:[%s1 + $0x3c] sm:$0xf]
  %v81 = vld [vmem:[%s1 + $0x40] sm:$0xf]
  %v82 = vld [vmem:[%s1 + $0x44] sm:$0xf]
  %v83 = vld [vmem:[%s1 + $0x48] sm:$0xf]
  %v84 = vld [vmem:[%s1 + $0x4c] sm:$0xf]
  %v85 = vld [vmem:[%s1 + $0x50] sm:$0xf]
  %v86 = vld [vmem:[%s1 + $0x54] sm:$0xf]
  %v87 = vld [vmem:[%s1 + $0x58] sm:$0xf]
  %v88 = vld [vmem:[%s1 + $0x5c] sm:$0xf]
  %v89 = vld [vmem:[%s1 + $0x60] sm:$0xf]
  %v90 = vld [vmem:[%s1 + $0x64] sm:$0xf]
  %v91 = vld [vmem:[%s1 + $0x68] sm:$0xf]
  %v92 = vld [vmem:[%s1 + $0x6c] sm:$0xf]
  %v93 = vld [vmem:[%s1 + $0x70] sm:$0xf]
  %v94 = vld [vmem:[%s1 + $0x74] sm:$0xf]
  %v95 = vld [vmem:[%s1 + $0x78] sm:$0xf]
  %v96 = vld [vmem:[%s1 + $0x7c] sm:$0xf]
  %v97 = vld [vmem:[%s2] sm:$0x3]
  %v98 = vld [vmem:[%s3] sm:$0xf]
  %v99 = vld [vmem:[%s3 + $0x4] sm:$0xf]
  %v100 = vld [vmem:[%s3 + $0x8] sm:$0xf]
  %v101 = vld [vmem:[%s3 + $0xc] sm:$0xf]
  %v102 = vld [vmem:[%s3 + $0x10] sm:$0xf]
  %v103 = vld [vmem:[%s3 + $0x14] sm:$0xf]
  %v104 = vld [vmem:[%s3 + $0x18] sm:$0xf]
  %v105 = vld [vmem:[%s3 + $0x1c] sm:$0xf]
  %v106 = vld [vmem:[%s3 + $0x20] sm:$0xf]
  %v107 = vld [vmem:[%s3 + $0x24] sm:$0xf]
  %v108 = vld [vmem:[%s3 + $0x28] sm:$0xf]
  %v109 = vld [vmem:[%s3 + $0x2c] sm:$0xf]
  %v110 = vld [vmem:[%s3 + $0x30] sm:$0xf]
  %v111 = vld [vmem:[%s3 + $0x34] sm:$0xf]
  %v112 = vld [vmem:[%s3 + $0x38] sm:$0xf]
  %v113 = vld [vmem:[%s3 + $0x3c] sm:$0xf]
  %v114 = vld [vmem:[%s4] sm:$0x1]
  %v115 = vpack.c.bf16 %v34, %v33
  %v116 = vpack.c.bf16 %v36, %v35
  %v117 = vpack.c.bf16 %v38, %v37
  %v118 = vpack.c.bf16 %v40, %v39
  %v119 = vpack.c.bf16 %v42, %v41
  %v120 = vpack.c.bf16 %v44, %v43
  %v121 = vpack.c.bf16 %v46, %v45
  %v122 = vpack.c.bf16 %v48, %v47
  %v123 = vpack.c.bf16 %v50, %v49
  %v124 = vpack.c.bf16 %v52, %v51
  %v125 = vpack.c.bf16 %v54, %v53
  %v126 = vpack.c.bf16 %v56, %v55
  %v127 = vpack.c.bf16 %v58, %v57
  %v128 = vpack.c.bf16 %v60, %v59
  %v129 = vpack.c.bf16 %v62, %v61
  %v130 = vpack.c.bf16 %v64, %v63
  %v163 = vunpack.c.l.b16 %v65
  %v164 = vunpack.c.l.b16 %v66
  %v165 = vunpack.c.l.b16 %v67
  %v166 = vunpack.c.l.b16 %v68
  %v167 = vunpack.c.l.b16 %v69
  %v168 = vunpack.c.l.b16 %v70
  %v169 = vunpack.c.l.b16 %v71
  %v170 = vunpack.c.l.b16 %v72
  %v171 = vunpack.c.l.b16 %v73
  %v172 = vunpack.c.l.b16 %v74
  %v173 = vunpack.c.l.b16 %v75
  %v174 = vunpack.c.l.b16 %v76
  %v175 = vunpack.c.l.b16 %v77
  %v176 = vunpack.c.l.b16 %v78
  %v177 = vunpack.c.l.b16 %v79
  %v178 = vunpack.c.l.b16 %v80
  %v179 = vunpack.c.l.b16 %v81
  %v180 = vunpack.c.l.b16 %v82
  %v181 = vunpack.c.l.b16 %v83
  %v182 = vunpack.c.l.b16 %v84
  %v183 = vunpack.c.l.b16 %v85
  %v184 = vunpack.c.l.b16 %v86
  %v185 = vunpack.c.l.b16 %v87
  %v186 = vunpack.c.l.b16 %v88
  %v187 = vunpack.c.l.b16 %v89
  %v188 = vunpack.c.l.b16 %v90
  %v189 = vunpack.c.l.b16 %v91
  %v190 = vunpack.c.l.b16 %v92
  %v191 = vunpack.c.l.b16 %v93
  %v192 = vunpack.c.l.b16 %v94
  %v193 = vunpack.c.l.b16 %v95
  %v194 = vunpack.c.l.b16 %v96
  %v195 = vpack.c.b16 %v164, %v163
  %v196 = vpack.c.b16 %v166, %v165
  %v197 = vpack.c.b16 %v168, %v167
  %v198 = vpack.c.b16 %v170, %v169
  %v199 = vpack.c.b16 %v172, %v171
  %v200 = vpack.c.b16 %v174, %v173
  %v201 = vpack.c.b16 %v176, %v175
  %v202 = vpack.c.b16 %v178, %v177
  %v203 = vpack.c.b16 %v180, %v179
  %v204 = vpack.c.b16 %v182, %v181
  %v205 = vpack.c.b16 %v184, %v183
  %v206 = vpack.c.b16 %v186, %v185
  %v207 = vpack.c.b16 %v188, %v187
  %v208 = vpack.c.b16 %v190, %v189
  %v209 = vpack.c.b16 %v192, %v191
  %v210 = vpack.c.b16 %v194, %v193
  %v243 = vunpack.c.l.b16 %v98
  %v244 = vunpack.c.l.b16 %v99
  %v245 = vunpack.c.l.b16 %v100
  %v246 = vunpack.c.l.b16 %v101
  %v247 = vunpack.c.l.b16 %v102
  %v248 = vunpack.c.l.b16 %v103
  %v249 = vunpack.c.l.b16 %v104
  %v250 = vunpack.c.l.b16 %v105
  %v251 = vunpack.c.l.b16 %v106
  %v252 = vunpack.c.l.b16 %v107
  %v253 = vunpack.c.l.b16 %v108
  %v254 = vunpack.c.l.b16 %v109
  %v255 = vunpack.c.l.b16 %v110
  %v256 = vunpack.c.l.b16 %v111
  %v257 = vunpack.c.l.b16 %v112
  %v258 = vunpack.c.l.b16 %v113
  %v259 = vpack.c.b16 %v244, %v243
  %v260 = vpack.c.b16 %v246, %v245
  %v261 = vpack.c.b16 %v248, %v247
  %v262 = vpack.c.b16 %v250, %v249
  %v263 = vpack.c.b16 %v252, %v251
  %v264 = vpack.c.b16 %v254, %v253
  %v265 = vpack.c.b16 %v256, %v255
  %v266 = vpack.c.b16 %v258, %v257
  %275 = vmatprep.subr.bf16.mxu0 0
  %276 = vmatpush1.bf16.msra.mxu0 %v259
  %277 = vmatprep.subr.bf16.mxu0 0
  %278 = vmatpush1.bf16.msra.mxu0 %v260
  %279 = vmatprep.subr.bf16.mxu0 0
  %280 = vmatpush1.bf16.msra.mxu0 %v261
  %281 = vmatprep.subr.bf16.mxu0 0
  %282 = vmatpush1.bf16.msra.mxu0 %v262
  %283 = vmatprep.subr.bf16.mxu0 0
  %284 = vmatpush1.bf16.msra.mxu0 %v263
  %285 = vmatprep.subr.bf16.mxu0 0
  %286 = vmatpush1.bf16.msra.mxu0 %v264
  %287 = vmatprep.subr.bf16.mxu0 0
  %288 = vmatpush1.bf16.msra.mxu0 %v265
  %289 = vmatprep.subr.bf16.mxu0 0
  %290 = vmatpush1.bf16.msra.mxu0 %v266
  %291 = vmatprep.subr.bf16.mxu0 0
  %292 = vmatpush1.bf16.msra.mxu0 0
  %293 = vmatprep.subr.bf16.mxu0 0
  %294 = vmatpush1.bf16.msra.mxu0 0
  %295 = vmatprep.subr.bf16.mxu0 0
  %296 = vmatpush1.bf16.msra.mxu0 0
  %297 = vmatprep.subr.bf16.mxu0 0
  %298 = vmatpush1.bf16.msra.mxu0 0
  %299 = vmatprep.subr.bf16.mxu0 0
  %300 = vmatpush1.bf16.msra.mxu0 0
  %301 = vmatprep.subr.bf16.mxu0 0
  %302 = vmatpush1.bf16.msra.mxu0 0
  %303 = vmatprep.subr.bf16.mxu0 0
  %304 = vmatpush1.bf16.msra.mxu0 0
  %305 = vmatprep.subr.bf16.mxu0 0
  %306 = vmatpush1.bf16.msra.mxu0 0
  %307 = vmatprep.mubr.bf16.mxu0 0
  %308 = vmatmul.mubr.bf16.gmra.mrb[0].mxu0 %v195
  %v309 = vpop.f32.mrb[0].mxu0
  %v310 = vadd.f32 0.0, %v309
  %v311 = vpop.f32.mrb[0].mxu0
  %v312 = vpop.f32.mrb[0].mxu0
  %v313 = vadd.f32 0.0, %v312
  %v314 = vpop.f32.mrb[0].mxu0
  %315 = vmatprep.mubr.bf16.mxu0 0
  %316 = vmatmul.mubr.bf16.gmra.mrb[0].mxu0 %v196
  %v317 = vpop.f32.mrb[0].mxu0
  %v318 = vadd.f32 0.0, %v317
  %v319 = vpop.f32.mrb[0].mxu0
  %v320 = vpop.f32.mrb[0].mxu0
  %v321 = vadd.f32 0.0, %v320
  %v322 = vpop.f32.mrb[0].mxu0
  %323 = vmatprep.mubr.bf16.mxu0 0
  %324 = vmatmul.mubr.bf16.gmra.mrb[0].mxu0 %v197
  %v325 = vpop.f32.mrb[0].mxu0
  %v326 = vadd.f32 0.0, %v325
  %v327 = vpop.f32.mrb[0].mxu0
  %v328 = vpop.f32.mrb[0].mxu0
  %v329 = vadd.f32 0.0, %v328
  %v330 = vpop.f32.mrb[0].mxu0
  %331 = vmatprep.mubr.bf16.mxu0 0
  %332 = vmatmul.mubr.bf16.gmra.mrb[0].mxu0 %v198
  %v333 = vpop.f32.mrb[0].mxu0
  %v334 = vadd.f32 0.0, %v333
  %v335 = vpop.f32.mrb[0].mxu0
  %v336 = vpop.f32.mrb[0].mxu0
  %v337 = vadd.f32 0.0, %v336
  %v338 = vpop.f32.mrb[0].mxu0
  %339 = vmatprep.mubr.bf16.mxu0 0
  %340 = vmatmul.mubr.bf16.gmra.mrb[0].mxu0 %v199
  %v341 = vpop.f32.mrb[0].mxu0
  %v342 = vadd.f32 0.0, %v341
  %v343 = vpop.f32.mrb[0].mxu0
  %v344 = vpop.f32.mrb[0].mxu0
  %v345 = vadd.f32 0.0, %v344
  %v346 = vpop.f32.mrb[0].mxu0
  %347 = vmatprep.mubr.bf16.mxu0 0
  %348 = vmatmul.mubr.bf16.gmra.mrb[0].mxu0 %v200
  %v349 = vpop.f32.mrb[0].mxu0
  %v350 = vadd.f32 0.0, %v349
  %v351 = vpop.f32.mrb[0].mxu0
  %v352 = vpop.f32.mrb[0].mxu0
  %v353 = vadd.f32 0.0, %v352
  %v354 = vpop.f32.mrb[0].mxu0
  %355 = vmatprep.mubr.bf16.mxu0 0
  %356 = vmatmul.mubr.bf16.gmra.mrb[0].mxu0 %v201
  %v357 = vpop.f32.mrb[0].mxu0
  %v358 = vadd.f32 0.0, %v357
  %v359 = vpop.f32.mrb[0].mxu0
  %v360 = vpop.f32.mrb[0].mxu0
  %v361 = vadd.f32 0.0, %v360
  %v362 = vpop.f32.mrb[0].mxu0
  %363 = vmatprep.mubr.bf16.mxu0 0
  %364 = vmatmul.mubr.bf16.gmra.mrb[0].mxu0 %v202
  %v365 = vpop.f32.mrb[0].mxu0
  %v366 = vadd.f32 0.0, %v365
  %v367 = vpop.f32.mrb[0].mxu0
  %v368 = vpop.f32.mrb[0].mxu0
  %v369 = vadd.f32 0.0, %v368
  %v370 = vpop.f32.mrb[0].mxu0
  %371 = vmatprep.mubr.bf16.mxu0 0
  %372 = vmatmul.mubr.bf16.gmra.mrb[0].mxu0 %v203
  %v373 = vpop.f32.mrb[0].mxu0
  %v374 = vadd.f32 0.0, %v373
  %v375 = vpop.f32.mrb[0].mxu0
  %v376 = vpop.f32.mrb[0].mxu0
  %v377 = vadd.f32 0.0, %v376
  %v378 = vpop.f32.mrb[0].mxu0
  %379 = vmatprep.mubr.bf16.mxu0 0
  %380 = vmatmul.mubr.bf16.gmra.mrb[0].mxu0 %v204
  %v381 = vpop.f32.mrb[0].mxu0
  %v382 = vadd.f32 0.0, %v381
  %v383 = vpop.f32.mrb[0].mxu0
  %v384 = vpop.f32.mrb[0].mxu0
  %v385 = vadd.f32 0.0, %v384
  %v386 = vpop.f32.mrb[0].mxu0
  %387 = vmatprep.mubr.bf16.mxu0 0
  %388 = vmatmul.mubr.bf16.gmra.mrb[0].mxu0 %v205
  %v389 = vpop.f32.mrb[0].mxu0
  %v390 = vadd.f32 0.0, %v389
  %v391 = vpop.f32.mrb[0].mxu0
  %v392 = vpop.f32.mrb[0].mxu0
  %v393 = vadd.f32 0.0, %v392
  %v394 = vpop.f32.mrb[0].mxu0
  %395 = vmatprep.mubr.bf16.mxu0 0
  %396 = vmatmul.mubr.bf16.gmra.mrb[0].mxu0 %v206
  %v397 = vpop.f32.mrb[0].mxu0
  %v398 = vadd.f32 0.0, %v397
  %v399 = vpop.f32.mrb[0].mxu0
  %v400 = vpop.f32.mrb[0].mxu0
  %v401 = vadd.f32 0.0, %v400
  %v402 = vpop.f32.mrb[0].mxu0
  %403 = vmatprep.mubr.bf16.mxu0 0
  %404 = vmatmul.mubr.bf16.gmra.mrb[0].mxu0 %v207
  %v405 = vpop.f32.mrb[0].mxu0
  %v406 = vadd.f32 0.0, %v405
  %v407 = vpop.f32.mrb[0].mxu0
  %v408 = vpop.f32.mrb[0].mxu0
  %v409 = vadd.f32 0.0, %v408
  %v410 = vpop.f32.mrb[0].mxu0
  %411 = vmatprep.mubr.bf16.mxu0 0
  %412 = vmatmul.mubr.bf16.gmra.mrb[0].mxu0 %v208
  %v413 = vpop.f32.mrb[0].mxu0
  %v414 = vadd.f32 0.0, %v413
  %v415 = vpop.f32.mrb[0].mxu0
  %v416 = vpop.f32.mrb[0].mxu0
  %v417 = vadd.f32 0.0, %v416
  %v418 = vpop.f32.mrb[0].mxu0
  %419 = vmatprep.mubr.bf16.mxu0 0
  %420 = vmatmul.mubr.bf16.gmra.mrb[0].mxu0 %v209
  %v421 = vpop.f32.mrb[0].mxu0
  %v422 = vadd.f32 0.0, %v421
  %v423 = vpop.f32.mrb[0].mxu0
  %v424 = vpop.f32.mrb[0].mxu0
  %v425 = vadd.f32 0.0, %v424
  %v426 = vpop.f32.mrb[0].mxu0
  %427 = vmatprep.mubr.bf16.mxu0 0
  %428 = vmatmul.mubr.bf16.gmra.mrb[0].mxu0 %v210
  %v429 = vpop.f32.mrb[0].mxu0
  %v430 = vadd.f32 0.0, %v429
  %v431 = vpop.f32.mrb[0].mxu0
  %v432 = vpop.f32.mrb[0].mxu0
  %v433 = vadd.f32 0.0, %v432
  %v434 = vpop.f32.mrb[0].mxu0
  %435 = vdwg.mxu0
  %vm436 = vcmask 23552
  %v438 = vsel %vm436, %v115, 0
  %v441 = vsel %vm436, %v116, 0
  %v444 = vsel %vm436, %v117, 0
  %v447 = vsel %vm436, %v118, 0
  %v450 = vsel %vm436, %v119, 0
  %v453 = vsel %vm436, %v120, 0
  %v456 = vsel %vm436, %v121, 0
  %v459 = vsel %vm436, %v122, 0
  %v462 = vsel %vm436, %v123, 0
  %v465 = vsel %vm436, %v124, 0
  %v468 = vsel %vm436, %v125, 0
  %v471 = vsel %vm436, %v126, 0
  %v474 = vsel %vm436, %v127, 0
  %v477 = vsel %vm436, %v128, 0
  %v480 = vsel %vm436, %v129, 0
  %v483 = vsel %vm436, %v130, 0
  %vm485 = vcmask 1040384
  %vm486 = vcmask 1041408
  %v487 = vsel %vm485, 4294967295, 65535
  %v488 = vsel %vm486, %v487, 0
  %v490 = vand.u32 %v97, %v488
  %492 = vmatprep.subr.bf16.mxu0 0
  %493 = vmatpush1.bf16.msra.mxu0 %v490
  %494 = vmatprep.subr.bf16.mxu0 0
  %495 = vmatpush1.bf16.msra.mxu0 0
  %496 = vmatprep.subr.bf16.mxu0 0
  %497 = vmatpush1.bf16.msra.mxu0 0
  %498 = vmatprep.subr.bf16.mxu0 0
  %499 = vmatpush1.bf16.msra.mxu0 0
  %500 = vmatprep.subr.bf16.mxu0 0
  %501 = vmatpush1.bf16.msra.mxu0 0
  %502 = vmatprep.subr.bf16.mxu0 0
  %503 = vmatpush1.bf16.msra.mxu0 0
  %504 = vmatprep.subr.bf16.mxu0 0
  %505 = vmatpush1.bf16.msra.mxu0 0
  %506 = vmatprep.subr.bf16.mxu0 0
  %507 = vmatpush1.bf16.msra.mxu0 0
  %508 = vmatprep.subr.bf16.mxu0 0
  %509 = vmatpush1.bf16.msra.mxu0 0
  %510 = vmatprep.subr.bf16.mxu0 0
  %511 = vmatpush1.bf16.msra.mxu0 0
  %512 = vmatprep.subr.bf16.mxu0 0
  %513 = vmatpush1.bf16.msra.mxu0 0
  %514 = vmatprep.subr.bf16.mxu0 0
  %515 = vmatpush1.bf16.msra.mxu0 0
  %516 = vmatprep.subr.bf16.mxu0 0
  %517 = vmatpush1.bf16.msra.mxu0 0
  %518 = vmatprep.subr.bf16.mxu0 0
  %519 = vmatpush1.bf16.msra.mxu0 0
  %520 = vmatprep.subr.bf16.mxu0 0
  %521 = vmatpush1.bf16.msra.mxu0 0
  %522 = vmatprep.subr.bf16.mxu0 0
  %523 = vmatpush1.bf16.msra.mxu0 0
  %524 = vmatprep.mubr.bf16.mxu0 0
  %525 = vmatmul.mubr.bf16.gmra.mrb[0].mxu0 %v438
  %v526 = vpop.f32.mrb[0].mxu0
  %v527 = vadd.f32 %v310, %v526
  %v528 = vpop.f32.mrb[0].mxu0
  %v529 = vpop.f32.mrb[0].mxu0
  %v530 = vadd.f32 %v313, %v529
  %v531 = vpop.f32.mrb[0].mxu0
  %532 = vmatprep.mubr.bf16.mxu0 0
  %533 = vmatmul.mubr.bf16.gmra.mrb[0].mxu0 %v441
  %v534 = vpop.f32.mrb[0].mxu0
  %v535 = vadd.f32 %v318, %v534
  %v536 = vpop.f32.mrb[0].mxu0
  %v537 = vpop.f32.mrb[0].mxu0
  %v538 = vadd.f32 %v321, %v537
  %v539 = vpop.f32.mrb[0].mxu0
  %540 = vmatprep.mubr.bf16.mxu0 0
  %541 = vmatmul.mubr.bf16.gmra.mrb[0].mxu0 %v444
  %v542 = vpop.f32.mrb[0].mxu0
  %v543 = vadd.f32 %v326, %v542
  %v544 = vpop.f32.mrb[0].mxu0
  %v545 = vpop.f32.mrb[0].mxu0
  %v546 = vadd.f32 %v329, %v545
  %v547 = vpop.f32.mrb[0].mxu0
  %548 = vmatprep.mubr.bf16.mxu0 0
  %549 = vmatmul.mubr.bf16.gmra.mrb[0].mxu0 %v447
  %v550 = vpop.f32.mrb[0].mxu0
  %v551 = vadd.f32 %v334, %v550
  %v552 = vpop.f32.mrb[0].mxu0
  %v553 = vpop.f32.mrb[0].mxu0
  %v554 = vadd.f32 %v337, %v553
  %v555 = vpop.f32.mrb[0].mxu0
  %556 = vmatprep.mubr.bf16.mxu0 0
  %557 = vmatmul.mubr.bf16.gmra.mrb[0].mxu0 %v450
  %v558 = vpop.f32.mrb[0].mxu0
  %v559 = vadd.f32 %v342, %v558
  %v560 = vpop.f32.mrb[0].mxu0
  %v561 = vpop.f32.mrb[0].mxu0
  %v562 = vadd.f32 %v345, %v561
  %v563 = vpop.f32.mrb[0].mxu0
  %564 = vmatprep.mubr.bf16.mxu0 0
  %565 = vmatmul.mubr.bf16.gmra.mrb[0].mxu0 %v453
  %v566 = vpop.f32.mrb[0].mxu0
  %v567 = vadd.f32 %v350, %v566
  %v568 = vpop.f32.mrb[0].mxu0
  %v569 = vpop.f32.mrb[0].mxu0
  %v570 = vadd.f32 %v353, %v569
  %v571 = vpop.f32.mrb[0].mxu0
  %572 = vmatprep.mubr.bf16.mxu0 0
  %573 = vmatmul.mubr.bf16.gmra.mrb[0].mxu0 %v456
  %v574 = vpop.f32.mrb[0].mxu0
  %v575 = vadd.f32 %v358, %v574
  %v576 = vpop.f32.mrb[0].mxu0
  %v577 = vpop.f32.mrb[0].mxu0
  %v578 = vadd.f32 %v361, %v577
  %v579 = vpop.f32.mrb[0].mxu0
  %580 = vmatprep.mubr.bf16.mxu0 0
  %581 = vmatmul.mubr.bf16.gmra.mrb[0].mxu0 %v459
  %v582 = vpop.f32.mrb[0].mxu0
  %v583 = vadd.f32 %v366, %v582
  %v584 = vpop.f32.mrb[0].mxu0
  %v585 = vpop.f32.mrb[0].mxu0
  %v586 = vadd.f32 %v369, %v585
  %v587 = vpop.f32.mrb[0].mxu0
  %588 = vmatprep.mubr.bf16.mxu0 0
  %589 = vmatmul.mubr.bf16.gmra.mrb[0].mxu0 %v462
  %v590 = vpop.f32.mrb[0].mxu0
  %v591 = vadd.f32 %v374, %v590
  %v592 = vpop.f32.mrb[0].mxu0
  %v593 = vpop.f32.mrb[0].mxu0
  %v594 = vadd.f32 %v377, %v593
  %v595 = vpop.f32.mrb[0].mxu0
  %596 = vmatprep.mubr.bf16.mxu0 0
  %597 = vmatmul.mubr.bf16.gmra.mrb[0].mxu0 %v465
  %v598 = vpop.f32.mrb[0].mxu0
  %v599 = vadd.f32 %v382, %v598
  %v600 = vpop.f32.mrb[0].mxu0
  %v601 = vpop.f32.mrb[0].mxu0
  %v602 = vadd.f32 %v385, %v601
  %v603 = vpop.f32.mrb[0].mxu0
  %604 = vmatprep.mubr.bf16.mxu0 0
  %605 = vmatmul.mubr.bf16.gmra.mrb[0].mxu0 %v468
  %v606 = vpop.f32.mrb[0].mxu0
  %v607 = vadd.f32 %v390, %v606
  %v608 = vpop.f32.mrb[0].mxu0
  %v609 = vpop.f32.mrb[0].mxu0
  %v610 = vadd.f32 %v393, %v609
  %v611 = vpop.f32.mrb[0].mxu0
  %612 = vmatprep.mubr.bf16.mxu0 0
  %613 = vmatmul.mubr.bf16.gmra.mrb[0].mxu0 %v471
  %v614 = vpop.f32.mrb[0].mxu0
  %v615 = vadd.f32 %v398, %v614
  %v616 = vpop.f32.mrb[0].mxu0
  %v617 = vpop.f32.mrb[0].mxu0
  %v618 = vadd.f32 %v401, %v617
  %v619 = vpop.f32.mrb[0].mxu0
  %620 = vmatprep.mubr.bf16.mxu0 0
  %621 = vmatmul.mubr.bf16.gmra.mrb[0].mxu0 %v474
  %v622 = vpop.f32.mrb[0].mxu0
  %v623 = vadd.f32 %v406, %v622
  %v624 = vpop.f32.mrb[0].mxu0
  %v625 = vpop.f32.mrb[0].mxu0
  %v626 = vadd.f32 %v409, %v625
  %v627 = vpop.f32.mrb[0].mxu0
  %628 = vmatprep.mubr.bf16.mxu0 0
  %629 = vmatmul.mubr.bf16.gmra.mrb[0].mxu0 %v477
  %v630 = vpop.f32.mrb[0].mxu0
  %v631 = vadd.f32 %v414, %v630
  %v632 = vpop.f32.mrb[0].mxu0
  %v633 = vpop.f32.mrb[0].mxu0
  %v634 = vadd.f32 %v417, %v633
  %v635 = vpop.f32.mrb[0].mxu0
  %636 = vmatprep.mubr.bf16.mxu0 0
  %637 = vmatmul.mubr.bf16.gmra.mrb[0].mxu0 %v480
  %v638 = vpop.f32.mrb[0].mxu0
  %v639 = vadd.f32 %v422, %v638
  %v640 = vpop.f32.mrb[0].mxu0
  %v641 = vpop.f32.mrb[0].mxu0
  %v642 = vadd.f32 %v425, %v641
  %v643 = vpop.f32.mrb[0].mxu0
  %644 = vmatprep.mubr.bf16.mxu0 0
  %645 = vmatmul.mubr.bf16.gmra.mrb[0].mxu0 %v483
  %v646 = vpop.f32.mrb[0].mxu0
  %v647 = vadd.f32 %v430, %v646
  %v648 = vpop.f32.mrb[0].mxu0
  %v649 = vpop.f32.mrb[0].mxu0
  %v650 = vadd.f32 %v433, %v649
  %v651 = vpop.f32.mrb[0].mxu0
  %652 = vdwg.mxu0
  %v654 = vlaneseq
  %v655 = vshrl.u32 %v654, 7
  %v656 = vsub.s32 0, %v655
  %v657 = vrot.slane %v114, %v656
  %v659 = vadd.f32 %v527, %v657
  %v660 = vadd.f32 %v530, %v657
  %v661 = vadd.f32 %v535, %v657
  %v662 = vadd.f32 %v538, %v657
  %v663 = vadd.f32 %v543, %v657
  %v664 = vadd.f32 %v546, %v657
  %v665 = vadd.f32 %v551, %v657
  %v666 = vadd.f32 %v554, %v657
  %v667 = vadd.f32 %v559, %v657
  %v668 = vadd.f32 %v562, %v657
  %v669 = vadd.f32 %v567, %v657
  %v670 = vadd.f32 %v570, %v657
  %v671 = vadd.f32 %v575, %v657
  %v672 = vadd.f32 %v578, %v657
  %v673 = vadd.f32 %v583, %v657
  %v674 = vadd.f32 %v586, %v657
  %v675 = vadd.f32 %v591, %v657
  %v676 = vadd.f32 %v594, %v657
  %v677 = vadd.f32 %v599, %v657
  %v678 = vadd.f32 %v602, %v657
  %v679 = vadd.f32 %v607, %v657
  %v680 = vadd.f32 %v610, %v657
  %v681 = vadd.f32 %v615, %v657
  %v682 = vadd.f32 %v618, %v657
  %v683 = vadd.f32 %v623, %v657
  %v684 = vadd.f32 %v626, %v657
  %v685 = vadd.f32 %v631, %v657
  %v686 = vadd.f32 %v634, %v657
  %v687 = vadd.f32 %v639, %v657
  %v688 = vadd.f32 %v642, %v657
  %v689 = vadd.f32 %v647, %v657
  %v690 = vadd.f32 %v650, %v657
  %v691 = vmax.f32 %v659, 0.0
  %v692 = vmax.f32 %v660, 0.0
  %v693 = vmax.f32 %v661, 0.0
  %v694 = vmax.f32 %v662, 0.0
  %v695 = vmax.f32 %v663, 0.0
  %v696 = vmax.f32 %v664, 0.0
  %v697 = vmax.f32 %v665, 0.0
  %v698 = vmax.f32 %v666, 0.0
  %v699 = vmax.f32 %v667, 0.0
  %v700 = vmax.f32 %v668, 0.0
  %v701 = vmax.f32 %v669, 0.0
  %v702 = vmax.f32 %v670, 0.0
  %v703 = vmax.f32 %v671, 0.0
  %v704 = vmax.f32 %v672, 0.0
  %v705 = vmax.f32 %v673, 0.0
  %v706 = vmax.f32 %v674, 0.0
  %v707 = vmax.f32 %v675, 0.0
  %v708 = vmax.f32 %v676, 0.0
  %v709 = vmax.f32 %v677, 0.0
  %v710 = vmax.f32 %v678, 0.0
  %v711 = vmax.f32 %v679, 0.0
  %v712 = vmax.f32 %v680, 0.0
  %v713 = vmax.f32 %v681, 0.0
  %v714 = vmax.f32 %v682, 0.0
  %v715 = vmax.f32 %v683, 0.0
  %v716 = vmax.f32 %v684, 0.0
  %v717 = vmax.f32 %v685, 0.0
  %v718 = vmax.f32 %v686, 0.0
  %v719 = vmax.f32 %v687, 0.0
  %v720 = vmax.f32 %v688, 0.0
  %v721 = vmax.f32 %v689, 0.0
  %v722 = vmax.f32 %v690, 0.0
  %v723 = vld [vmem:[%s5] sm:$0xf]
  %v724 = vld [vmem:[%s5 + $0x4] sm:$0xf]
  %v725 = vld [vmem:[%s5 + $0x8] sm:$0xf]
  %v726 = vld [vmem:[%s5 + $0xc] sm:$0xf]
  %v727 = vld [vmem:[%s5 + $0x10] sm:$0xf]
  %v728 = vld [vmem:[%s5 + $0x14] sm:$0xf]
  %v729 = vld [vmem:[%s5 + $0x18] sm:$0xf]
  %v730 = vld [vmem:[%s5 + $0x1c] sm:$0xf]
  %v731 = vld [vmem:[%s6] sm:$0x1]
  %v732 = vpack.c.bf16 %v692, %v691
  %v733 = vpack.c.bf16 %v694, %v693
  %v734 = vpack.c.bf16 %v696, %v695
  %v735 = vpack.c.bf16 %v698, %v697
  %v736 = vpack.c.bf16 %v700, %v699
  %v737 = vpack.c.bf16 %v702, %v701
  %v738 = vpack.c.bf16 %v704, %v703
  %v739 = vpack.c.bf16 %v706, %v705
  %v740 = vpack.c.bf16 %v708, %v707
  %v741 = vpack.c.bf16 %v710, %v709
  %v742 = vpack.c.bf16 %v712, %v711
  %v743 = vpack.c.bf16 %v714, %v713
  %v744 = vpack.c.bf16 %v716, %v715
  %v745 = vpack.c.bf16 %v718, %v717
  %v746 = vpack.c.bf16 %v720, %v719
  %v747 = vpack.c.bf16 %v722, %v721
  %v749 = vlaneseq
  %v750 = vshrl.u32 %v749, 7
  %v751 = vsub.s32 0, %v750
  %v752 = vrot.slane %v731, %v751
  %v762 = vunpack.c.l.b16 %v723
  %v763 = vunpack.c.l.b16 %v724
  %v764 = vunpack.c.l.b16 %v725
  %v765 = vunpack.c.l.b16 %v726
  %v766 = vunpack.c.l.b16 %v727
  %v767 = vunpack.c.l.b16 %v728
  %v768 = vunpack.c.l.b16 %v729
  %v769 = vunpack.c.l.b16 %v730
  %v770 = vpack.c.b16 %v763, %v762
  %v771 = vpack.c.b16 %v765, %v764
  %v772 = vpack.c.b16 %v767, %v766
  %v773 = vpack.c.b16 %v769, %v768
  %vm778 = vcmask 523264
  %v780 = vsel %vm778, %v732, 0
  %v783 = vsel %vm778, %v733, 0
  %v786 = vsel %vm778, %v734, 0
  %v789 = vsel %vm778, %v735, 0
  %v792 = vsel %vm778, %v736, 0
  %v795 = vsel %vm778, %v737, 0
  %v798 = vsel %vm778, %v738, 0
  %v801 = vsel %vm778, %v739, 0
  %v804 = vsel %vm778, %v740, 0
  %v807 = vsel %vm778, %v741, 0
  %v810 = vsel %vm778, %v742, 0
  %v813 = vsel %vm778, %v743, 0
  %v816 = vsel %vm778, %v744, 0
  %v819 = vsel %vm778, %v745, 0
  %v822 = vsel %vm778, %v746, 0
  %v825 = vsel %vm778, %v747, 0
  %827 = vmatprep.subr.bf16.mxu0 0
  %828 = vmatpush1.bf16.msra.mxu0 %v770
  %829 = vmatprep.subr.bf16.mxu0 0
  %830 = vmatpush1.bf16.msra.mxu0 %v771
  %831 = vmatprep.subr.bf16.mxu0 0
  %832 = vmatpush1.bf16.msra.mxu0 %v772
  %833 = vmatprep.subr.bf16.mxu0 0
  %834 = vmatpush1.bf16.msra.mxu0 %v773
  %835 = vmatprep.subr.bf16.mxu0 0
  %836 = vmatpush1.bf16.msra.mxu0 0
  %837 = vmatprep.subr.bf16.mxu0 0
  %838 = vmatpush1.bf16.msra.mxu0 0
  %839 = vmatprep.subr.bf16.mxu0 0
  %840 = vmatpush1.bf16.msra.mxu0 0
  %841 = vmatprep.subr.bf16.mxu0 0
  %842 = vmatpush1.bf16.msra.mxu0 0
  %843 = vmatprep.subr.bf16.mxu0 0
  %844 = vmatpush1.bf16.msra.mxu0 0
  %845 = vmatprep.subr.bf16.mxu0 0
  %846 = vmatpush1.bf16.msra.mxu0 0
  %847 = vmatprep.subr.bf16.mxu0 0
  %848 = vmatpush1.bf16.msra.mxu0 0
  %849 = vmatprep.subr.bf16.mxu0 0
  %850 = vmatpush1.bf16.msra.mxu0 0
  %851 = vmatprep.subr.bf16.mxu0 0
  %852 = vmatpush1.bf16.msra.mxu0 0
  %853 = vmatprep.subr.bf16.mxu0 0
  %854 = vmatpush1.bf16.msra.mxu0 0
  %855 = vmatprep.subr.bf16.mxu0 0
  %856 = vmatpush1.bf16.msra.mxu0 0
  %857 = vmatprep.subr.bf16.mxu0 0
  %858 = vmatpush1.bf16.msra.mxu0 0
  %859 = vmatprep.mubr.bf16.mxu0 0
  %860 = vmatmul.mubr.bf16.gmra.mrb[0].mxu0 %v780
  %v861 = vpop.f32.mrb[0].mxu0
  %v862 = vadd.f32 %v752, %v861
  %v863 = vpop.f32.mrb[0].mxu0
  %v864 = vpop.f32.mrb[0].mxu0
  %v865 = vadd.f32 %v752, %v864
  %v866 = vpop.f32.mrb[0].mxu0
  %867 = vmatprep.mubr.bf16.mxu0 0
  %868 = vmatmul.mubr.bf16.gmra.mrb[0].mxu0 %v783
  %v869 = vpop.f32.mrb[0].mxu0
  %v870 = vadd.f32 %v752, %v869
  %v871 = vpop.f32.mrb[0].mxu0
  %v872 = vpop.f32.mrb[0].mxu0
  %v873 = vadd.f32 %v752, %v872
  %v874 = vpop.f32.mrb[0].mxu0
  %875 = vmatprep.mubr.bf16.mxu0 0
  %876 = vmatmul.mubr.bf16.gmra.mrb[0].mxu0 %v786
  %v877 = vpop.f32.mrb[0].mxu0
  %v878 = vadd.f32 %v752, %v877
  %v879 = vpop.f32.mrb[0].mxu0
  %v880 = vpop.f32.mrb[0].mxu0
  %v881 = vadd.f32 %v752, %v880
  %v882 = vpop.f32.mrb[0].mxu0
  %883 = vmatprep.mubr.bf16.mxu0 0
  %884 = vmatmul.mubr.bf16.gmra.mrb[0].mxu0 %v789
  %v885 = vpop.f32.mrb[0].mxu0
  %v886 = vadd.f32 %v752, %v885
  %v887 = vpop.f32.mrb[0].mxu0
  %v888 = vpop.f32.mrb[0].mxu0
  %v889 = vadd.f32 %v752, %v888
  %v890 = vpop.f32.mrb[0].mxu0
  %891 = vmatprep.mubr.bf16.mxu0 0
  %892 = vmatmul.mubr.bf16.gmra.mrb[0].mxu0 %v792
  %v893 = vpop.f32.mrb[0].mxu0
  %v894 = vadd.f32 %v752, %v893
  %v895 = vpop.f32.mrb[0].mxu0
  %v896 = vpop.f32.mrb[0].mxu0
  %v897 = vadd.f32 %v752, %v896
  %v898 = vpop.f32.mrb[0].mxu0
  %899 = vmatprep.mubr.bf16.mxu0 0
  %900 = vmatmul.mubr.bf16.gmra.mrb[0].mxu0 %v795
  %v901 = vpop.f32.mrb[0].mxu0
  %v902 = vadd.f32 %v752, %v901
  %v903 = vpop.f32.mrb[0].mxu0
  %v904 = vpop.f32.mrb[0].mxu0
  %v905 = vadd.f32 %v752, %v904
  %v906 = vpop.f32.mrb[0].mxu0
  %907 = vmatprep.mubr.bf16.mxu0 0
  %908 = vmatmul.mubr.bf16.gmra.mrb[0].mxu0 %v798
  %v909 = vpop.f32.mrb[0].mxu0
  %v910 = vadd.f32 %v752, %v909
  %v911 = vpop.f32.mrb[0].mxu0
  %v912 = vpop.f32.mrb[0].mxu0
  %v913 = vadd.f32 %v752, %v912
  %v914 = vpop.f32.mrb[0].mxu0
  %915 = vmatprep.mubr.bf16.mxu0 0
  %916 = vmatmul.mubr.bf16.gmra.mrb[0].mxu0 %v801
  %v917 = vpop.f32.mrb[0].mxu0
  %v918 = vadd.f32 %v752, %v917
  %v919 = vpop.f32.mrb[0].mxu0
  %v920 = vpop.f32.mrb[0].mxu0
  %v921 = vadd.f32 %v752, %v920
  %v922 = vpop.f32.mrb[0].mxu0
  %923 = vmatprep.mubr.bf16.mxu0 0
  %924 = vmatmul.mubr.bf16.gmra.mrb[0].mxu0 %v804
  %v925 = vpop.f32.mrb[0].mxu0
  %v926 = vadd.f32 %v752, %v925
  %v927 = vpop.f32.mrb[0].mxu0
  %v928 = vpop.f32.mrb[0].mxu0
  %v929 = vadd.f32 %v752, %v928
  %v930 = vpop.f32.mrb[0].mxu0
  %931 = vmatprep.mubr.bf16.mxu0 0
  %932 = vmatmul.mubr.bf16.gmra.mrb[0].mxu0 %v807
  %v933 = vpop.f32.mrb[0].mxu0
  %v934 = vadd.f32 %v752, %v933
  %v935 = vpop.f32.mrb[0].mxu0
  %v936 = vpop.f32.mrb[0].mxu0
  %v937 = vadd.f32 %v752, %v936
  %v938 = vpop.f32.mrb[0].mxu0
  %939 = vmatprep.mubr.bf16.mxu0 0
  %940 = vmatmul.mubr.bf16.gmra.mrb[0].mxu0 %v810
  %v941 = vpop.f32.mrb[0].mxu0
  %v942 = vadd.f32 %v752, %v941
  %v943 = vpop.f32.mrb[0].mxu0
  %v944 = vpop.f32.mrb[0].mxu0
  %v945 = vadd.f32 %v752, %v944
  %v946 = vpop.f32.mrb[0].mxu0
  %947 = vmatprep.mubr.bf16.mxu0 0
  %948 = vmatmul.mubr.bf16.gmra.mrb[0].mxu0 %v813
  %v949 = vpop.f32.mrb[0].mxu0
  %v950 = vadd.f32 %v752, %v949
  %v951 = vpop.f32.mrb[0].mxu0
  %v952 = vpop.f32.mrb[0].mxu0
  %v953 = vadd.f32 %v752, %v952
  %v954 = vpop.f32.mrb[0].mxu0
  %955 = vmatprep.mubr.bf16.mxu0 0
  %956 = vmatmul.mubr.bf16.gmra.mrb[0].mxu0 %v816
  %v957 = vpop.f32.mrb[0].mxu0
  %v958 = vadd.f32 %v752, %v957
  %v959 = vpop.f32.mrb[0].mxu0
  %v960 = vpop.f32.mrb[0].mxu0
  %v961 = vadd.f32 %v752, %v960
  %v962 = vpop.f32.mrb[0].mxu0
  %963 = vmatprep.mubr.bf16.mxu0 0
  %964 = vmatmul.mubr.bf16.gmra.mrb[0].mxu0 %v819
  %v965 = vpop.f32.mrb[0].mxu0
  %v966 = vadd.f32 %v752, %v965
  %v967 = vpop.f32.mrb[0].mxu0
  %v968 = vpop.f32.mrb[0].mxu0
  %v969 = vadd.f32 %v752, %v968
  %v970 = vpop.f32.mrb[0].mxu0
  %971 = vmatprep.mubr.bf16.mxu0 0
  %972 = vmatmul.mubr.bf16.gmra.mrb[0].mxu0 %v822
  %v973 = vpop.f32.mrb[0].mxu0
  %v974 = vadd.f32 %v752, %v973
  %v975 = vpop.f32.mrb[0].mxu0
  %v976 = vpop.f32.mrb[0].mxu0
  %v977 = vadd.f32 %v752, %v976
  %v978 = vpop.f32.mrb[0].mxu0
  %979 = vmatprep.mubr.bf16.mxu0 0
  %980 = vmatmul.mubr.bf16.gmra.mrb[0].mxu0 %v825
  %v981 = vpop.f32.mrb[0].mxu0
  %v982 = vadd.f32 %v752, %v981
  %v983 = vpop.f32.mrb[0].mxu0
  %v984 = vpop.f32.mrb[0].mxu0
  %v985 = vadd.f32 %v752, %v984
  %v986 = vpop.f32.mrb[0].mxu0
  %987 = vdwg.mxu0
  %v988 = vmax.f32 %v862, 0.0
  %v989 = vmax.f32 %v865, 0.0
  %v990 = vmax.f32 %v870, 0.0
  %v991 = vmax.f32 %v873, 0.0
  %v992 = vmax.f32 %v878, 0.0
  %v993 = vmax.f32 %v881, 0.0
  %v994 = vmax.f32 %v886, 0.0
  %v995 = vmax.f32 %v889, 0.0
  %v996 = vmax.f32 %v894, 0.0
  %v997 = vmax.f32 %v897, 0.0
  %v998 = vmax.f32 %v902, 0.0
  %v999 = vmax.f32 %v905, 0.0
  %v1000 = vmax.f32 %v910, 0.0
  %v1001 = vmax.f32 %v913, 0.0
  %v1002 = vmax.f32 %v918, 0.0
  %v1003 = vmax.f32 %v921, 0.0
  %v1004 = vmax.f32 %v926, 0.0
  %v1005 = vmax.f32 %v929, 0.0
  %v1006 = vmax.f32 %v934, 0.0
  %v1007 = vmax.f32 %v937, 0.0
  %v1008 = vmax.f32 %v942, 0.0
  %v1009 = vmax.f32 %v945, 0.0
  %v1010 = vmax.f32 %v950, 0.0
  %v1011 = vmax.f32 %v953, 0.0
  %v1012 = vmax.f32 %v958, 0.0
  %v1013 = vmax.f32 %v961, 0.0
  %v1014 = vmax.f32 %v966, 0.0
  %v1015 = vmax.f32 %v969, 0.0
  %v1016 = vmax.f32 %v974, 0.0
  %v1017 = vmax.f32 %v977, 0.0
  %v1018 = vmax.f32 %v982, 0.0
  %v1019 = vmax.f32 %v985, 0.0
  %v1020 = vld [vmem:[%s7] sm:$0xf]
  %v1021 = vld [vmem:[%s7 + $0x4] sm:$0xf]
  %v1022 = vld [vmem:[%s7 + $0x8] sm:$0xf]
  %v1023 = vld [vmem:[%s7 + $0xc] sm:$0xf]
  %v1024 = vld [vmem:[%s7 + $0x10] sm:$0xf]
  %v1025 = vld [vmem:[%s7 + $0x14] sm:$0xf]
  %v1026 = vld [vmem:[%s7 + $0x18] sm:$0xf]
  %v1027 = vld [vmem:[%s7 + $0x1c] sm:$0xf]
  %v1028 = vld [vmem:[%s8] sm:$0x1]
  %v1029 = vpack.c.bf16 %v989, %v988
  %v1030 = vpack.c.bf16 %v991, %v990
  %v1031 = vpack.c.bf16 %v993, %v992
  %v1032 = vpack.c.bf16 %v995, %v994
  %v1033 = vpack.c.bf16 %v997, %v996
  %v1034 = vpack.c.bf16 %v999, %v998
  %v1035 = vpack.c.bf16 %v1001, %v1000
  %v1036 = vpack.c.bf16 %v1003, %v1002
  %v1037 = vpack.c.bf16 %v1005, %v1004
  %v1038 = vpack.c.bf16 %v1007, %v1006
  %v1039 = vpack.c.bf16 %v1009, %v1008
  %v1040 = vpack.c.bf16 %v1011, %v1010
  %v1041 = vpack.c.bf16 %v1013, %v1012
  %v1042 = vpack.c.bf16 %v1015, %v1014
  %v1043 = vpack.c.bf16 %v1017, %v1016
  %v1044 = vpack.c.bf16 %v1019, %v1018
  %v1046 = vlaneseq
  %v1047 = vshrl.u32 %v1046, 7
  %v1048 = vsub.s32 0, %v1047
  %v1049 = vrot.slane %v1028, %v1048
  %v1059 = vunpack.c.l.b16 %v1020
  %v1060 = vunpack.c.l.b16 %v1021
  %v1061 = vunpack.c.l.b16 %v1022
  %v1062 = vunpack.c.l.b16 %v1023
  %v1063 = vunpack.c.l.b16 %v1024
  %v1064 = vunpack.c.l.b16 %v1025
  %v1065 = vunpack.c.l.b16 %v1026
  %v1066 = vunpack.c.l.b16 %v1027
  %v1067 = vpack.c.b16 %v1060, %v1059
  %v1068 = vpack.c.b16 %v1062, %v1061
  %v1069 = vpack.c.b16 %v1064, %v1063
  %v1070 = vpack.c.b16 %v1066, %v1065
  %v1076 = vsel %vm778, %v1029, 0
  %v1079 = vsel %vm778, %v1030, 0
  %v1082 = vsel %vm778, %v1031, 0
  %v1085 = vsel %vm778, %v1032, 0
  %v1088 = vsel %vm778, %v1033, 0
  %v1091 = vsel %vm778, %v1034, 0
  %v1094 = vsel %vm778, %v1035, 0
  %v1097 = vsel %vm778, %v1036, 0
  %v1100 = vsel %vm778, %v1037, 0
  %v1103 = vsel %vm778, %v1038, 0
  %v1106 = vsel %vm778, %v1039, 0
  %v1109 = vsel %vm778, %v1040, 0
  %v1112 = vsel %vm778, %v1041, 0
  %v1115 = vsel %vm778, %v1042, 0
  %v1118 = vsel %vm778, %v1043, 0
  %v1121 = vsel %vm778, %v1044, 0
  %1123 = vmatprep.subr.bf16.mxu0 0
  %1124 = vmatpush1.bf16.msra.mxu0 %v1067
  %1125 = vmatprep.subr.bf16.mxu0 0
  %1126 = vmatpush1.bf16.msra.mxu0 %v1068
  %1127 = vmatprep.subr.bf16.mxu0 0
  %1128 = vmatpush1.bf16.msra.mxu0 %v1069
  %1129 = vmatprep.subr.bf16.mxu0 0
  %1130 = vmatpush1.bf16.msra.mxu0 %v1070
  %1131 = vmatprep.subr.bf16.mxu0 0
  %1132 = vmatpush1.bf16.msra.mxu0 0
  %1133 = vmatprep.subr.bf16.mxu0 0
  %1134 = vmatpush1.bf16.msra.mxu0 0
  %1135 = vmatprep.subr.bf16.mxu0 0
  %1136 = vmatpush1.bf16.msra.mxu0 0
  %1137 = vmatprep.subr.bf16.mxu0 0
  %1138 = vmatpush1.bf16.msra.mxu0 0
  %1139 = vmatprep.subr.bf16.mxu0 0
  %1140 = vmatpush1.bf16.msra.mxu0 0
  %1141 = vmatprep.subr.bf16.mxu0 0
  %1142 = vmatpush1.bf16.msra.mxu0 0
  %1143 = vmatprep.subr.bf16.mxu0 0
  %1144 = vmatpush1.bf16.msra.mxu0 0
  %1145 = vmatprep.subr.bf16.mxu0 0
  %1146 = vmatpush1.bf16.msra.mxu0 0
  %1147 = vmatprep.subr.bf16.mxu0 0
  %1148 = vmatpush1.bf16.msra.mxu0 0
  %1149 = vmatprep.subr.bf16.mxu0 0
  %1150 = vmatpush1.bf16.msra.mxu0 0
  %1151 = vmatprep.subr.bf16.mxu0 0
  %1152 = vmatpush1.bf16.msra.mxu0 0
  %1153 = vmatprep.subr.bf16.mxu0 0
  %1154 = vmatpush1.bf16.msra.mxu0 0
  %1155 = vmatprep.mubr.bf16.mxu0 0
  %1156 = vmatmul.mubr.bf16.gmra.mrb[0].mxu0 %v1076
  %v1157 = vpop.f32.mrb[0].mxu0
  %v1158 = vadd.f32 %v1049, %v1157
  %v1159 = vpop.f32.mrb[0].mxu0
  %v1160 = vpop.f32.mrb[0].mxu0
  %v1161 = vadd.f32 %v1049, %v1160
  %v1162 = vpop.f32.mrb[0].mxu0
  %1163 = vmatprep.mubr.bf16.mxu0 0
  %1164 = vmatmul.mubr.bf16.gmra.mrb[0].mxu0 %v1079
  %v1165 = vpop.f32.mrb[0].mxu0
  %v1166 = vadd.f32 %v1049, %v1165
  %v1167 = vpop.f32.mrb[0].mxu0
  %v1168 = vpop.f32.mrb[0].mxu0
  %v1169 = vadd.f32 %v1049, %v1168
  %v1170 = vpop.f32.mrb[0].mxu0
  %1171 = vmatprep.mubr.bf16.mxu0 0
  %1172 = vmatmul.mubr.bf16.gmra.mrb[0].mxu0 %v1082
  %v1173 = vpop.f32.mrb[0].mxu0
  %v1174 = vadd.f32 %v1049, %v1173
  %v1175 = vpop.f32.mrb[0].mxu0
  %v1176 = vpop.f32.mrb[0].mxu0
  %v1177 = vadd.f32 %v1049, %v1176
  %v1178 = vpop.f32.mrb[0].mxu0
  %1179 = vmatprep.mubr.bf16.mxu0 0
  %1180 = vmatmul.mubr.bf16.gmra.mrb[0].mxu0 %v1085
  %v1181 = vpop.f32.mrb[0].mxu0
  %v1182 = vadd.f32 %v1049, %v1181
  %v1183 = vpop.f32.mrb[0].mxu0
  %v1184 = vpop.f32.mrb[0].mxu0
  %v1185 = vadd.f32 %v1049, %v1184
  %v1186 = vpop.f32.mrb[0].mxu0
  %1187 = vmatprep.mubr.bf16.mxu0 0
  %1188 = vmatmul.mubr.bf16.gmra.mrb[0].mxu0 %v1088
  %v1189 = vpop.f32.mrb[0].mxu0
  %v1190 = vadd.f32 %v1049, %v1189
  %v1191 = vpop.f32.mrb[0].mxu0
  %v1192 = vpop.f32.mrb[0].mxu0
  %v1193 = vadd.f32 %v1049, %v1192
  %v1194 = vpop.f32.mrb[0].mxu0
  %1195 = vmatprep.mubr.bf16.mxu0 0
  %1196 = vmatmul.mubr.bf16.gmra.mrb[0].mxu0 %v1091
  %v1197 = vpop.f32.mrb[0].mxu0
  %v1198 = vadd.f32 %v1049, %v1197
  %v1199 = vpop.f32.mrb[0].mxu0
  %v1200 = vpop.f32.mrb[0].mxu0
  %v1201 = vadd.f32 %v1049, %v1200
  %v1202 = vpop.f32.mrb[0].mxu0
  %1203 = vmatprep.mubr.bf16.mxu0 0
  %1204 = vmatmul.mubr.bf16.gmra.mrb[0].mxu0 %v1094
  %v1205 = vpop.f32.mrb[0].mxu0
  %v1206 = vadd.f32 %v1049, %v1205
  %v1207 = vpop.f32.mrb[0].mxu0
  %v1208 = vpop.f32.mrb[0].mxu0
  %v1209 = vadd.f32 %v1049, %v1208
  %v1210 = vpop.f32.mrb[0].mxu0
  %1211 = vmatprep.mubr.bf16.mxu0 0
  %1212 = vmatmul.mubr.bf16.gmra.mrb[0].mxu0 %v1097
  %v1213 = vpop.f32.mrb[0].mxu0
  %v1214 = vadd.f32 %v1049, %v1213
  %v1215 = vpop.f32.mrb[0].mxu0
  %v1216 = vpop.f32.mrb[0].mxu0
  %v1217 = vadd.f32 %v1049, %v1216
  %v1218 = vpop.f32.mrb[0].mxu0
  %1219 = vmatprep.mubr.bf16.mxu0 0
  %1220 = vmatmul.mubr.bf16.gmra.mrb[0].mxu0 %v1100
  %v1221 = vpop.f32.mrb[0].mxu0
  %v1222 = vadd.f32 %v1049, %v1221
  %v1223 = vpop.f32.mrb[0].mxu0
  %v1224 = vpop.f32.mrb[0].mxu0
  %v1225 = vadd.f32 %v1049, %v1224
  %v1226 = vpop.f32.mrb[0].mxu0
  %1227 = vmatprep.mubr.bf16.mxu0 0
  %1228 = vmatmul.mubr.bf16.gmra.mrb[0].mxu0 %v1103
  %v1229 = vpop.f32.mrb[0].mxu0
  %v1230 = vadd.f32 %v1049, %v1229
  %v1231 = vpop.f32.mrb[0].mxu0
  %v1232 = vpop.f32.mrb[0].mxu0
  %v1233 = vadd.f32 %v1049, %v1232
  %v1234 = vpop.f32.mrb[0].mxu0
  %1235 = vmatprep.mubr.bf16.mxu0 0
  %1236 = vmatmul.mubr.bf16.gmra.mrb[0].mxu0 %v1106
  %v1237 = vpop.f32.mrb[0].mxu0
  %v1238 = vadd.f32 %v1049, %v1237
  %v1239 = vpop.f32.mrb[0].mxu0
  %v1240 = vpop.f32.mrb[0].mxu0
  %v1241 = vadd.f32 %v1049, %v1240
  %v1242 = vpop.f32.mrb[0].mxu0
  %1243 = vmatprep.mubr.bf16.mxu0 0
  %1244 = vmatmul.mubr.bf16.gmra.mrb[0].mxu0 %v1109
  %v1245 = vpop.f32.mrb[0].mxu0
  %v1246 = vadd.f32 %v1049, %v1245
  %v1247 = vpop.f32.mrb[0].mxu0
  %v1248 = vpop.f32.mrb[0].mxu0
  %v1249 = vadd.f32 %v1049, %v1248
  %v1250 = vpop.f32.mrb[0].mxu0
  %1251 = vmatprep.mubr.bf16.mxu0 0
  %1252 = vmatmul.mubr.bf16.gmra.mrb[0].mxu0 %v1112
  %v1253 = vpop.f32.mrb[0].mxu0
  %v1254 = vadd.f32 %v1049, %v1253
  %v1255 = vpop.f32.mrb[0].mxu0
  %v1256 = vpop.f32.mrb[0].mxu0
  %v1257 = vadd.f32 %v1049, %v1256
  %v1258 = vpop.f32.mrb[0].mxu0
  %1259 = vmatprep.mubr.bf16.mxu0 0
  %1260 = vmatmul.mubr.bf16.gmra.mrb[0].mxu0 %v1115
  %v1261 = vpop.f32.mrb[0].mxu0
  %v1262 = vadd.f32 %v1049, %v1261
  %v1263 = vpop.f32.mrb[0].mxu0
  %v1264 = vpop.f32.mrb[0].mxu0
  %v1265 = vadd.f32 %v1049, %v1264
  %v1266 = vpop.f32.mrb[0].mxu0
  %1267 = vmatprep.mubr.bf16.mxu0 0
  %1268 = vmatmul.mubr.bf16.gmra.mrb[0].mxu0 %v1118
  %v1269 = vpop.f32.mrb[0].mxu0
  %v1270 = vadd.f32 %v1049, %v1269
  %v1271 = vpop.f32.mrb[0].mxu0
  %v1272 = vpop.f32.mrb[0].mxu0
  %v1273 = vadd.f32 %v1049, %v1272
  %v1274 = vpop.f32.mrb[0].mxu0
  %1275 = vmatprep.mubr.bf16.mxu0 0
  %1276 = vmatmul.mubr.bf16.gmra.mrb[0].mxu0 %v1121
  %v1277 = vpop.f32.mrb[0].mxu0
  %v1278 = vadd.f32 %v1049, %v1277
  %v1279 = vpop.f32.mrb[0].mxu0
  %v1280 = vpop.f32.mrb[0].mxu0
  %v1281 = vadd.f32 %v1049, %v1280
  %v1282 = vpop.f32.mrb[0].mxu0
  %1283 = vdwg.mxu0
  %v1284 = vmax.f32 %v1158, 0.0
  %v1285 = vmax.f32 %v1161, 0.0
  %v1286 = vmax.f32 %v1166, 0.0
  %v1287 = vmax.f32 %v1169, 0.0
  %v1288 = vmax.f32 %v1174, 0.0
  %v1289 = vmax.f32 %v1177, 0.0
  %v1290 = vmax.f32 %v1182, 0.0
  %v1291 = vmax.f32 %v1185, 0.0
  %v1292 = vmax.f32 %v1190, 0.0
  %v1293 = vmax.f32 %v1193, 0.0
  %v1294 = vmax.f32 %v1198, 0.0
  %v1295 = vmax.f32 %v1201, 0.0
  %v1296 = vmax.f32 %v1206, 0.0
  %v1297 = vmax.f32 %v1209, 0.0
  %v1298 = vmax.f32 %v1214, 0.0
  %v1299 = vmax.f32 %v1217, 0.0
  %v1300 = vmax.f32 %v1222, 0.0
  %v1301 = vmax.f32 %v1225, 0.0
  %v1302 = vmax.f32 %v1230, 0.0
  %v1303 = vmax.f32 %v1233, 0.0
  %v1304 = vmax.f32 %v1238, 0.0
  %v1305 = vmax.f32 %v1241, 0.0
  %v1306 = vmax.f32 %v1246, 0.0
  %v1307 = vmax.f32 %v1249, 0.0
  %v1308 = vmax.f32 %v1254, 0.0
  %v1309 = vmax.f32 %v1257, 0.0
  %v1310 = vmax.f32 %v1262, 0.0
  %v1311 = vmax.f32 %v1265, 0.0
  %v1312 = vmax.f32 %v1270, 0.0
  %v1313 = vmax.f32 %v1273, 0.0
  %v1314 = vmax.f32 %v1278, 0.0
  %v1315 = vmax.f32 %v1281, 0.0
  %v1316 = vrot.slane %v1284, 4
  %v1317 = vmax.f32 %v1284, %v1316
  %v1318 = vrot.slane %v1317, 2
  %v1319 = vmax.f32 %v1317, %v1318
  %v1320 = vrot.slane %v1319, 1
  %v1321 = vmax.f32 %v1319, %v1320
  %v1322 = vrot.slane %v1285, 4
  %v1323 = vmax.f32 %v1285, %v1322
  %v1324 = vrot.slane %v1323, 2
  %v1325 = vmax.f32 %v1323, %v1324
  %v1326 = vrot.slane %v1325, 1
  %v1327 = vmax.f32 %v1325, %v1326
  %v1328 = vrot.slane %v1286, 4
  %v1329 = vmax.f32 %v1286, %v1328
  %v1330 = vrot.slane %v1329, 2
  %v1331 = vmax.f32 %v1329, %v1330
  %v1332 = vrot.slane %v1331, 1
  %v1333 = vmax.f32 %v1331, %v1332
  %v1334 = vrot.slane %v1287, 4
  %v1335 = vmax.f32 %v1287, %v1334
  %v1336 = vrot.slane %v1335, 2
  %v1337 = vmax.f32 %v1335, %v1336
  %v1338 = vrot.slane %v1337, 1
  %v1339 = vmax.f32 %v1337, %v1338
  %v1340 = vrot.slane %v1288, 4
  %v1341 = vmax.f32 %v1288, %v1340
  %v1342 = vrot.slane %v1341, 2
  %v1343 = vmax.f32 %v1341, %v1342
  %v1344 = vrot.slane %v1343, 1
  %v1345 = vmax.f32 %v1343, %v1344
  %v1346 = vrot.slane %v1289, 4
  %v1347 = vmax.f32 %v1289, %v1346
  %v1348 = vrot.slane %v1347, 2
  %v1349 = vmax.f32 %v1347, %v1348
  %v1350 = vrot.slane %v1349, 1
  %v1351 = vmax.f32 %v1349, %v1350
  %v1352 = vrot.slane %v1290, 4
  %v1353 = vmax.f32 %v1290, %v1352
  %v1354 = vrot.slane %v1353, 2
  %v1355 = vmax.f32 %v1353, %v1354
  %v1356 = vrot.slane %v1355, 1
  %v1357 = vmax.f32 %v1355, %v1356
  %v1358 = vrot.slane %v1291, 4
  %v1359 = vmax.f32 %v1291, %v1358
  %v1360 = vrot.slane %v1359, 2
  %v1361 = vmax.f32 %v1359, %v1360
  %v1362 = vrot.slane %v1361, 1
  %v1363 = vmax.f32 %v1361, %v1362
  %v1364 = vrot.slane %v1292, 4
  %v1365 = vmax.f32 %v1292, %v1364
  %v1366 = vrot.slane %v1365, 2
  %v1367 = vmax.f32 %v1365, %v1366
  %v1368 = vrot.slane %v1367, 1
  %v1369 = vmax.f32 %v1367, %v1368
  %v1370 = vrot.slane %v1293, 4
  %v1371 = vmax.f32 %v1293, %v1370
  %v1372 = vrot.slane %v1371, 2
  %v1373 = vmax.f32 %v1371, %v1372
  %v1374 = vrot.slane %v1373, 1
  %v1375 = vmax.f32 %v1373, %v1374
  %v1376 = vrot.slane %v1294, 4
  %v1377 = vmax.f32 %v1294, %v1376
  %v1378 = vrot.slane %v1377, 2
  %v1379 = vmax.f32 %v1377, %v1378
  %v1380 = vrot.slane %v1379, 1
  %v1381 = vmax.f32 %v1379, %v1380
  %v1382 = vrot.slane %v1295, 4
  %v1383 = vmax.f32 %v1295, %v1382
  %v1384 = vrot.slane %v1383, 2
  %v1385 = vmax.f32 %v1383, %v1384
  %v1386 = vrot.slane %v1385, 1
  %v1387 = vmax.f32 %v1385, %v1386
  %v1388 = vrot.slane %v1296, 4
  %v1389 = vmax.f32 %v1296, %v1388
  %v1390 = vrot.slane %v1389, 2
  %v1391 = vmax.f32 %v1389, %v1390
  %v1392 = vrot.slane %v1391, 1
  %v1393 = vmax.f32 %v1391, %v1392
  %v1394 = vrot.slane %v1297, 4
  %v1395 = vmax.f32 %v1297, %v1394
  %v1396 = vrot.slane %v1395, 2
  %v1397 = vmax.f32 %v1395, %v1396
  %v1398 = vrot.slane %v1397, 1
  %v1399 = vmax.f32 %v1397, %v1398
  %v1400 = vrot.slane %v1298, 4
  %v1401 = vmax.f32 %v1298, %v1400
  %v1402 = vrot.slane %v1401, 2
  %v1403 = vmax.f32 %v1401, %v1402
  %v1404 = vrot.slane %v1403, 1
  %v1405 = vmax.f32 %v1403, %v1404
  %v1406 = vrot.slane %v1299, 4
  %v1407 = vmax.f32 %v1299, %v1406
  %v1408 = vrot.slane %v1407, 2
  %v1409 = vmax.f32 %v1407, %v1408
  %v1410 = vrot.slane %v1409, 1
  %v1411 = vmax.f32 %v1409, %v1410
  %v1412 = vrot.slane %v1300, 4
  %v1413 = vmax.f32 %v1300, %v1412
  %v1414 = vrot.slane %v1413, 2
  %v1415 = vmax.f32 %v1413, %v1414
  %v1416 = vrot.slane %v1415, 1
  %v1417 = vmax.f32 %v1415, %v1416
  %v1418 = vrot.slane %v1301, 4
  %v1419 = vmax.f32 %v1301, %v1418
  %v1420 = vrot.slane %v1419, 2
  %v1421 = vmax.f32 %v1419, %v1420
  %v1422 = vrot.slane %v1421, 1
  %v1423 = vmax.f32 %v1421, %v1422
  %v1424 = vrot.slane %v1302, 4
  %v1425 = vmax.f32 %v1302, %v1424
  %v1426 = vrot.slane %v1425, 2
  %v1427 = vmax.f32 %v1425, %v1426
  %v1428 = vrot.slane %v1427, 1
  %v1429 = vmax.f32 %v1427, %v1428
  %v1430 = vrot.slane %v1303, 4
  %v1431 = vmax.f32 %v1303, %v1430
  %v1432 = vrot.slane %v1431, 2
  %v1433 = vmax.f32 %v1431, %v1432
  %v1434 = vrot.slane %v1433, 1
  %v1435 = vmax.f32 %v1433, %v1434
  %v1436 = vrot.slane %v1304, 4
  %v1437 = vmax.f32 %v1304, %v1436
  %v1438 = vrot.slane %v1437, 2
  %v1439 = vmax.f32 %v1437, %v1438
  %v1440 = vrot.slane %v1439, 1
  %v1441 = vmax.f32 %v1439, %v1440
  %v1442 = vrot.slane %v1305, 4
  %v1443 = vmax.f32 %v1305, %v1442
  %v1444 = vrot.slane %v1443, 2
  %v1445 = vmax.f32 %v1443, %v1444
  %v1446 = vrot.slane %v1445, 1
  %v1447 = vmax.f32 %v1445, %v1446
  %v1448 = vrot.slane %v1306, 4
  %v1449 = vmax.f32 %v1306, %v1448
  %v1450 = vrot.slane %v1449, 2
  %v1451 = vmax.f32 %v1449, %v1450
  %v1452 = vrot.slane %v1451, 1
  %v1453 = vmax.f32 %v1451, %v1452
  %v1454 = vrot.slane %v1307, 4
  %v1455 = vmax.f32 %v1307, %v1454
  %v1456 = vrot.slane %v1455, 2
  %v1457 = vmax.f32 %v1455, %v1456
  %v1458 = vrot.slane %v1457, 1
  %v1459 = vmax.f32 %v1457, %v1458
  %v1460 = vrot.slane %v1308, 4
  %v1461 = vmax.f32 %v1308, %v1460
  %v1462 = vrot.slane %v1461, 2
  %v1463 = vmax.f32 %v1461, %v1462
  %v1464 = vrot.slane %v1463, 1
  %v1465 = vmax.f32 %v1463, %v1464
  %v1466 = vrot.slane %v1309, 4
  %v1467 = vmax.f32 %v1309, %v1466
  %v1468 = vrot.slane %v1467, 2
  %v1469 = vmax.f32 %v1467, %v1468
  %v1470 = vrot.slane %v1469, 1
  %v1471 = vmax.f32 %v1469, %v1470
  %v1472 = vrot.slane %v1310, 4
  %v1473 = vmax.f32 %v1310, %v1472
  %v1474 = vrot.slane %v1473, 2
  %v1475 = vmax.f32 %v1473, %v1474
  %v1476 = vrot.slane %v1475, 1
  %v1477 = vmax.f32 %v1475, %v1476
  %v1478 = vrot.slane %v1311, 4
  %v1479 = vmax.f32 %v1311, %v1478
  %v1480 = vrot.slane %v1479, 2
  %v1481 = vmax.f32 %v1479, %v1480
  %v1482 = vrot.slane %v1481, 1
  %v1483 = vmax.f32 %v1481, %v1482
  %v1484 = vrot.slane %v1312, 4
  %v1485 = vmax.f32 %v1312, %v1484
  %v1486 = vrot.slane %v1485, 2
  %v1487 = vmax.f32 %v1485, %v1486
  %v1488 = vrot.slane %v1487, 1
  %v1489 = vmax.f32 %v1487, %v1488
  %v1490 = vrot.slane %v1313, 4
  %v1491 = vmax.f32 %v1313, %v1490
  %v1492 = vrot.slane %v1491, 2
  %v1493 = vmax.f32 %v1491, %v1492
  %v1494 = vrot.slane %v1493, 1
  %v1495 = vmax.f32 %v1493, %v1494
  %v1496 = vrot.slane %v1314, 4
  %v1497 = vmax.f32 %v1314, %v1496
  %v1498 = vrot.slane %v1497, 2
  %v1499 = vmax.f32 %v1497, %v1498
  %v1500 = vrot.slane %v1499, 1
  %v1501 = vmax.f32 %v1499, %v1500
  %v1502 = vrot.slane %v1315, 4
  %v1503 = vmax.f32 %v1315, %v1502
  %v1504 = vrot.slane %v1503, 2
  %v1505 = vmax.f32 %v1503, %v1504
  %v1506 = vrot.slane %v1505, 1
  %v1507 = vmax.f32 %v1505, %v1506
  %v1508 = vpack.c.bf16 %v1321, %v1321
  %v1509 = vpack.c.bf16 %v1327, %v1327
  %v1510 = vpack.c.bf16 %v1333, %v1333
  %v1511 = vpack.c.bf16 %v1339, %v1339
  %v1512 = vpack.c.bf16 %v1345, %v1345
  %v1513 = vpack.c.bf16 %v1351, %v1351
  %v1514 = vpack.c.bf16 %v1357, %v1357
  %v1515 = vpack.c.bf16 %v1363, %v1363
  %v1516 = vpack.c.bf16 %v1369, %v1369
  %v1517 = vpack.c.bf16 %v1375, %v1375
  %v1518 = vpack.c.bf16 %v1381, %v1381
  %v1519 = vpack.c.bf16 %v1387, %v1387
  %v1520 = vpack.c.bf16 %v1393, %v1393
  %v1521 = vpack.c.bf16 %v1399, %v1399
  %v1522 = vpack.c.bf16 %v1405, %v1405
  %v1523 = vpack.c.bf16 %v1411, %v1411
  %v1524 = vpack.c.bf16 %v1417, %v1417
  %v1525 = vpack.c.bf16 %v1423, %v1423
  %v1526 = vpack.c.bf16 %v1429, %v1429
  %v1527 = vpack.c.bf16 %v1435, %v1435
  %v1528 = vpack.c.bf16 %v1441, %v1441
  %v1529 = vpack.c.bf16 %v1447, %v1447
  %v1530 = vpack.c.bf16 %v1453, %v1453
  %v1531 = vpack.c.bf16 %v1459, %v1459
  %v1532 = vpack.c.bf16 %v1465, %v1465
  %v1533 = vpack.c.bf16 %v1471, %v1471
  %v1534 = vpack.c.bf16 %v1477, %v1477
  %v1535 = vpack.c.bf16 %v1483, %v1483
  %v1536 = vpack.c.bf16 %v1489, %v1489
  %v1537 = vpack.c.bf16 %v1495, %v1495
  %v1538 = vpack.c.bf16 %v1501, %v1501
  %v1539 = vpack.c.bf16 %v1507, %v1507
  %v1572 = vunpack.c.l.b16 %v1508
  %v1573 = vunpack.c.l.b16 %v1509
  %v1574 = vunpack.c.l.b16 %v1510
  %v1575 = vunpack.c.l.b16 %v1511
  %v1576 = vunpack.c.l.b16 %v1512
  %v1577 = vunpack.c.l.b16 %v1513
  %v1578 = vunpack.c.l.b16 %v1514
  %v1579 = vunpack.c.l.b16 %v1515
  %v1580 = vunpack.c.l.b16 %v1516
  %v1581 = vunpack.c.l.b16 %v1517
  %v1582 = vunpack.c.l.b16 %v1518
  %v1583 = vunpack.c.l.b16 %v1519
  %v1584 = vunpack.c.l.b16 %v1520
  %v1585 = vunpack.c.l.b16 %v1521
  %v1586 = vunpack.c.l.b16 %v1522
  %v1587 = vunpack.c.l.b16 %v1523
  %v1588 = vunpack.c.l.b16 %v1524
  %v1589 = vunpack.c.l.b16 %v1525
  %v1590 = vunpack.c.l.b16 %v1526
  %v1591 = vunpack.c.l.b16 %v1527
  %v1592 = vunpack.c.l.b16 %v1528
  %v1593 = vunpack.c.l.b16 %v1529
  %v1594 = vunpack.c.l.b16 %v1530
  %v1595 = vunpack.c.l.b16 %v1531
  %v1596 = vunpack.c.l.b16 %v1532
  %v1597 = vunpack.c.l.b16 %v1533
  %v1598 = vunpack.c.l.b16 %v1534
  %v1599 = vunpack.c.l.b16 %v1535
  %v1600 = vunpack.c.l.b16 %v1536
  %v1601 = vunpack.c.l.b16 %v1537
  %v1602 = vunpack.c.l.b16 %v1538
  %v1603 = vunpack.c.l.b16 %v1539
  %v1604 = vpack.c.b16 %v1572, %v1572
  %v1605 = vpack.c.b16 %v1573, %v1573
  %v1606 = vpack.c.b16 %v1574, %v1574
  %v1607 = vpack.c.b16 %v1575, %v1575
  %v1608 = vpack.c.b16 %v1576, %v1576
  %v1609 = vpack.c.b16 %v1577, %v1577
  %v1610 = vpack.c.b16 %v1578, %v1578
  %v1611 = vpack.c.b16 %v1579, %v1579
  %v1612 = vpack.c.b16 %v1580, %v1580
  %v1613 = vpack.c.b16 %v1581, %v1581
  %v1614 = vpack.c.b16 %v1582, %v1582
  %v1615 = vpack.c.b16 %v1583, %v1583
  %v1616 = vpack.c.b16 %v1584, %v1584
  %v1617 = vpack.c.b16 %v1585, %v1585
  %v1618 = vpack.c.b16 %v1586, %v1586
  %v1619 = vpack.c.b16 %v1587, %v1587
  %v1620 = vpack.c.b16 %v1588, %v1588
  %v1621 = vpack.c.b16 %v1589, %v1589
  %v1622 = vpack.c.b16 %v1590, %v1590
  %v1623 = vpack.c.b16 %v1591, %v1591
  %v1624 = vpack.c.b16 %v1592, %v1592
  %v1625 = vpack.c.b16 %v1593, %v1593
  %v1626 = vpack.c.b16 %v1594, %v1594
  %v1627 = vpack.c.b16 %v1595, %v1595
  %v1628 = vpack.c.b16 %v1596, %v1596
  %v1629 = vpack.c.b16 %v1597, %v1597
  %v1630 = vpack.c.b16 %v1598, %v1598
  %v1631 = vpack.c.b16 %v1599, %v1599
  %v1632 = vpack.c.b16 %v1600, %v1600
  %v1633 = vpack.c.b16 %v1601, %v1601
  %v1634 = vpack.c.b16 %v1602, %v1602
  %v1635 = vpack.c.b16 %v1603, %v1603
  %v1636 = vunpack.c.l.b16 %v1604
  %v1637 = vunpack.c.l.b16 %v1605
  %v1638 = vunpack.c.l.b16 %v1606
  %v1639 = vunpack.c.l.b16 %v1607
  %v1640 = vunpack.c.l.b16 %v1608
  %v1641 = vunpack.c.l.b16 %v1609
  %v1642 = vunpack.c.l.b16 %v1610
  %v1643 = vunpack.c.l.b16 %v1611
  %v1644 = vunpack.c.l.b16 %v1612
  %v1645 = vunpack.c.l.b16 %v1613
  %v1646 = vunpack.c.l.b16 %v1614
  %v1647 = vunpack.c.l.b16 %v1615
  %v1648 = vunpack.c.l.b16 %v1616
  %v1649 = vunpack.c.l.b16 %v1617
  %v1650 = vunpack.c.l.b16 %v1618
  %v1651 = vunpack.c.l.b16 %v1619
  %v1652 = vunpack.c.l.b16 %v1620
  %v1653 = vunpack.c.l.b16 %v1621
  %v1654 = vunpack.c.l.b16 %v1622
  %v1655 = vunpack.c.l.b16 %v1623
  %v1656 = vunpack.c.l.b16 %v1624
  %v1657 = vunpack.c.l.b16 %v1625
  %v1658 = vunpack.c.l.b16 %v1626
  %v1659 = vunpack.c.l.b16 %v1627
  %v1660 = vunpack.c.l.b16 %v1628
  %v1661 = vunpack.c.l.b16 %v1629
  %v1662 = vunpack.c.l.b16 %v1630
  %v1663 = vunpack.c.l.b16 %v1631
  %v1664 = vunpack.c.l.b16 %v1632
  %v1665 = vunpack.c.l.b16 %v1633
  %v1666 = vunpack.c.l.b16 %v1634
  %v1667 = vunpack.c.l.b16 %v1635
  %vm1668 = vcmask 1041409
  %v1669 = vsel %vm1668, %v1637, %v1636
  %vm1670 = vcmask 1042434
  %v1671 = vsel %vm1670, %v1638, %v1669
  %vm1672 = vcmask 1043459
  %v1673 = vsel %vm1672, %v1639, %v1671
  %vm1674 = vcmask 1044484
  %v1675 = vsel %vm1674, %v1640, %v1673
  %vm1676 = vcmask 1045509
  %v1677 = vsel %vm1676, %v1641, %v1675
  %vm1678 = vcmask 1046534
  %v1679 = vsel %vm1678, %v1642, %v1677
  %vm1680 = vcmask 1047559
  %v1681 = vsel %vm1680, %v1643, %v1679
  %v1682 = vsel %vm1668, %v1645, %v1644
  %v1683 = vsel %vm1670, %v1646, %v1682
  %v1684 = vsel %vm1672, %v1647, %v1683
  %v1685 = vsel %vm1674, %v1648, %v1684
  %v1686 = vsel %vm1676, %v1649, %v1685
  %v1687 = vsel %vm1678, %v1650, %v1686
  %v1688 = vsel %vm1680, %v1651, %v1687
  %v1689 = vsel %vm1668, %v1653, %v1652
  %v1690 = vsel %vm1670, %v1654, %v1689
  %v1691 = vsel %vm1672, %v1655, %v1690
  %v1692 = vsel %vm1674, %v1656, %v1691
  %v1693 = vsel %vm1676, %v1657, %v1692
  %v1694 = vsel %vm1678, %v1658, %v1693
  %v1695 = vsel %vm1680, %v1659, %v1694
  %v1696 = vsel %vm1668, %v1661, %v1660
  %v1697 = vsel %vm1670, %v1662, %v1696
  %v1698 = vsel %vm1672, %v1663, %v1697
  %v1699 = vsel %vm1674, %v1664, %v1698
  %v1700 = vsel %vm1676, %v1665, %v1699
  %v1701 = vsel %vm1678, %v1666, %v1700
  %v1702 = vsel %vm1680, %v1667, %v1701
  %v1703 = vpack.c.b16 %v1681, %v1681
  %v1704 = vpack.c.b16 %v1688, %v1688
  %v1705 = vpack.c.b16 %v1695, %v1695
  %v1706 = vpack.c.b16 %v1702, %v1702
  %1711 = vst [vmem:[%s9] sm:$0xf] %v1703
  %1712 = vst [vmem:[%s9 + $0x4] sm:$0xf] %v1704
  %1713 = vst [vmem:[%s9 + $0x8] sm:$0xf] %v1705
  %1714 = vst [vmem:[%s9 + $0xc] sm:$0xf] %v1706
  // Predicated region
  $region38: #{pointnet2_forward.9} parent=0 // pred_check
    _
  $region39: #{pointnet2_forward.9} parent=0 // pred_check_branch
    %1716 = sbr.rel (0) target = $region41
  $region40: #{pointnet2_forward.9} parent=0 // pred_region
    _
  $region41: #{pointnet2_forward.9} parent=0 // pred_fallthru
    _
  // Predicated region
  $region42: #{pointnet2_forward.9} parent=0 // pred_check
    _
  $region43: #{pointnet2_forward.9} parent=0 // pred_check_branch
    %1718 = sbr.rel (0) target = $region45
  $region44: #{pointnet2_forward.9} parent=0 // pred_region
    _
  $region45: #{pointnet2_forward.9} parent=0 // pred_fallthru
    _

// kernel: custom-call.43
$region0: #{custom-call.43}
  %s0 = inlined_call_operand.vmem [shape: f32[2,8], index: 0, kind: output, shape index: {}]

// kernel: pointnet2_forward.10
$region0: #{pointnet2_forward.10}
  #allocation0 [shape = 'u32[]', space=smem, size = 0x4, offset = 0x4, fixed_abs, tag = 'smem constant byte address 0x4 - core index']
  #allocation1 [shape = 'u32[144,128]{1,0:T(1,128)}', space=vmem, size = 0x12000, scoped, tag = 'internal scratch']
  %s0 = inlined_call_operand.vmem [shape: f32[128,3], index: 0, kind: input, shape index: {}]
  %s1 = inlined_call_operand.vmem [shape: bf16[128,128], index: 1, kind: input, shape index: {}]
  %s2 = inlined_call_operand.vmem [shape: bf16[3,128], index: 2, kind: input, shape index: {}]
  %s3 = inlined_call_operand.vmem [shape: bf16[128,128], index: 3, kind: input, shape index: {}]
  %s4 = inlined_call_operand.vmem [shape: f32[1,128], index: 4, kind: input, shape index: {}]
  %s5 = inlined_call_operand.vmem [shape: bf16[128,128], index: 5, kind: input, shape index: {}]
  %s6 = inlined_call_operand.vmem [shape: f32[1,128], index: 6, kind: input, shape index: {}]
  %s7 = inlined_call_operand.vmem [shape: bf16[128,256], index: 7, kind: input, shape index: {}]
  %s8 = inlined_call_operand.vmem [shape: f32[1,256], index: 8, kind: input, shape index: {}]
  %s9 = inlined_call_operand.vmem [shape: bf16[16,256], index: 9, kind: output, shape index: {}]
  %s10 = sld [smem:[#allocation0]]
  $region46: #{pointnet2_forward.10} parent=0
    _
  %s12 = ssub.s32 1, %s10
  %s13 = scalar_select 0, %s12, %s10
  // Predicated region
  $region2: #{pointnet2_forward.10} parent=0 // pred_check
    _
  $region3: #{pointnet2_forward.10} parent=0 // pred_check_branch
    %15 = sbr.rel (0) target = $region5
  $region4: #{pointnet2_forward.10} parent=0 // pred_region
    _
  $region5: #{pointnet2_forward.10} parent=0 // pred_fallthru
    _
  // Predicated region
  $region6: #{pointnet2_forward.10} parent=0 // pred_check
    _
  $region7: #{pointnet2_forward.10} parent=0 // pred_check_branch
    %17 = sbr.rel (0) target = $region9
  $region8: #{pointnet2_forward.10} parent=0 // pred_region
    _
  $region9: #{pointnet2_forward.10} parent=0 // pred_fallthru
    _
  // Predicated region
  $region10: #{pointnet2_forward.10} parent=0 // pred_check
    _
  $region11: #{pointnet2_forward.10} parent=0 // pred_check_branch
    %19 = sbr.rel (0) target = $region13
  $region12: #{pointnet2_forward.10} parent=0 // pred_region
    _
  $region13: #{pointnet2_forward.10} parent=0 // pred_fallthru
    _
  // Predicated region
  $region14: #{pointnet2_forward.10} parent=0 // pred_check
    _
  $region15: #{pointnet2_forward.10} parent=0 // pred_check_branch
    %21 = sbr.rel (0) target = $region17
  $region16: #{pointnet2_forward.10} parent=0 // pred_region
    _
  $region17: #{pointnet2_forward.10} parent=0 // pred_fallthru
    _
  // Predicated region
  $region18: #{pointnet2_forward.10} parent=0 // pred_check
    _
  $region19: #{pointnet2_forward.10} parent=0 // pred_check_branch
    %23 = sbr.rel (0) target = $region21
  $region20: #{pointnet2_forward.10} parent=0 // pred_region
    _
  $region21: #{pointnet2_forward.10} parent=0 // pred_fallthru
    _
  // Predicated region
  $region22: #{pointnet2_forward.10} parent=0 // pred_check
    _
  $region23: #{pointnet2_forward.10} parent=0 // pred_check_branch
    %25 = sbr.rel (0) target = $region25
  $region24: #{pointnet2_forward.10} parent=0 // pred_region
    _
  $region25: #{pointnet2_forward.10} parent=0 // pred_fallthru
    _
  // Predicated region
  $region26: #{pointnet2_forward.10} parent=0 // pred_check
    _
  $region27: #{pointnet2_forward.10} parent=0 // pred_check_branch
    %27 = sbr.rel (0) target = $region29
  $region28: #{pointnet2_forward.10} parent=0 // pred_region
    _
  $region29: #{pointnet2_forward.10} parent=0 // pred_fallthru
    _
  // Predicated region
  $region30: #{pointnet2_forward.10} parent=0 // pred_check
    _
  $region31: #{pointnet2_forward.10} parent=0 // pred_check_branch
    %29 = sbr.rel (0) target = $region33
  $region32: #{pointnet2_forward.10} parent=0 // pred_region
    _
  $region33: #{pointnet2_forward.10} parent=0 // pred_fallthru
    _
  // Predicated region
  $region34: #{pointnet2_forward.10} parent=0 // pred_check
    _
  $region35: #{pointnet2_forward.10} parent=0 // pred_check_branch
    %31 = sbr.rel (0) target = $region37
  $region36: #{pointnet2_forward.10} parent=0 // pred_region
    _
  $region37: #{pointnet2_forward.10} parent=0 // pred_fallthru
    _
  %v33 = vld [vmem:[%s0] sm:$0xff]
  %v34 = vld [vmem:[%s0 + $0x8] sm:$0xff]
  %v35 = vld [vmem:[%s0 + $0x10] sm:$0xff]
  %v36 = vld [vmem:[%s0 + $0x18] sm:$0xff]
  %v37 = vld [vmem:[%s0 + $0x20] sm:$0xff]
  %v38 = vld [vmem:[%s0 + $0x28] sm:$0xff]
  %v39 = vld [vmem:[%s0 + $0x30] sm:$0xff]
  %v40 = vld [vmem:[%s0 + $0x38] sm:$0xff]
  %v41 = vld [vmem:[%s0 + $0x40] sm:$0xff]
  %v42 = vld [vmem:[%s0 + $0x48] sm:$0xff]
  %v43 = vld [vmem:[%s0 + $0x50] sm:$0xff]
  %v44 = vld [vmem:[%s0 + $0x58] sm:$0xff]
  %v45 = vld [vmem:[%s0 + $0x60] sm:$0xff]
  %v46 = vld [vmem:[%s0 + $0x68] sm:$0xff]
  %v47 = vld [vmem:[%s0 + $0x70] sm:$0xff]
  %v48 = vld [vmem:[%s0 + $0x78] sm:$0xff]
  %v49 = vld [vmem:[%s1] sm:$0xf]
  %v50 = vld [vmem:[%s1 + $0x4] sm:$0xf]
  %v51 = vld [vmem:[%s1 + $0x8] sm:$0xf]
  %v52 = vld [vmem:[%s1 + $0xc] sm:$0xf]
  %v53 = vld [vmem:[%s1 + $0x10] sm:$0xf]
  %v54 = vld [vmem:[%s1 + $0x14] sm:$0xf]
  %v55 = vld [vmem:[%s1 + $0x18] sm:$0xf]
  %v56 = vld [vmem:[%s1 + $0x1c] sm:$0xf]
  %v57 = vld [vmem:[%s1 + $0x20] sm:$0xf]
  %v58 = vld [vmem:[%s1 + $0x24] sm:$0xf]
  %v59 = vld [vmem:[%s1 + $0x28] sm:$0xf]
  %v60 = vld [vmem:[%s1 + $0x2c] sm:$0xf]
  %v61 = vld [vmem:[%s1 + $0x30] sm:$0xf]
  %v62 = vld [vmem:[%s1 + $0x34] sm:$0xf]
  %v63 = vld [vmem:[%s1 + $0x38] sm:$0xf]
  %v64 = vld [vmem:[%s1 + $0x3c] sm:$0xf]
  %v65 = vld [vmem:[%s2] sm:$0x3]
  %v66 = vld [vmem:[%s3] sm:$0xf]
  %v67 = vld [vmem:[%s3 + $0x4] sm:$0xf]
  %v68 = vld [vmem:[%s3 + $0x8] sm:$0xf]
  %v69 = vld [vmem:[%s3 + $0xc] sm:$0xf]
  %v70 = vld [vmem:[%s3 + $0x10] sm:$0xf]
  %v71 = vld [vmem:[%s3 + $0x14] sm:$0xf]
  %v72 = vld [vmem:[%s3 + $0x18] sm:$0xf]
  %v73 = vld [vmem:[%s3 + $0x1c] sm:$0xf]
  %v74 = vld [vmem:[%s3 + $0x20] sm:$0xf]
  %v75 = vld [vmem:[%s3 + $0x24] sm:$0xf]
  %v76 = vld [vmem:[%s3 + $0x28] sm:$0xf]
  %v77 = vld [vmem:[%s3 + $0x2c] sm:$0xf]
  %v78 = vld [vmem:[%s3 + $0x30] sm:$0xf]
  %v79 = vld [vmem:[%s3 + $0x34] sm:$0xf]
  %v80 = vld [vmem:[%s3 + $0x38] sm:$0xf]
  %v81 = vld [vmem:[%s3 + $0x3c] sm:$0xf]
  %v82 = vld [vmem:[%s4] sm:$0x1]
  %v83 = vpack.c.bf16 %v34, %v33
  %v84 = vpack.c.bf16 %v36, %v35
  %v85 = vpack.c.bf16 %v38, %v37
  %v86 = vpack.c.bf16 %v40, %v39
  %v87 = vpack.c.bf16 %v42, %v41
  %v88 = vpack.c.bf16 %v44, %v43
  %v89 = vpack.c.bf16 %v46, %v45
  %v90 = vpack.c.bf16 %v48, %v47
  %v107 = vunpack.c.l.b16 %v49
  %v108 = vunpack.c.l.b16 %v50
  %v109 = vunpack.c.l.b16 %v51
  %v110 = vunpack.c.l.b16 %v52
  %v111 = vunpack.c.l.b16 %v53
  %v112 = vunpack.c.l.b16 %v54
  %v113 = vunpack.c.l.b16 %v55
  %v114 = vunpack.c.l.b16 %v56
  %v115 = vunpack.c.l.b16 %v57
  %v116 = vunpack.c.l.b16 %v58
  %v117 = vunpack.c.l.b16 %v59
  %v118 = vunpack.c.l.b16 %v60
  %v119 = vunpack.c.l.b16 %v61
  %v120 = vunpack.c.l.b16 %v62
  %v121 = vunpack.c.l.b16 %v63
  %v122 = vunpack.c.l.b16 %v64
  %v123 = vpack.c.b16 %v108, %v107
  %v124 = vpack.c.b16 %v110, %v109
  %v125 = vpack.c.b16 %v112, %v111
  %v126 = vpack.c.b16 %v114, %v113
  %v127 = vpack.c.b16 %v116, %v115
  %v128 = vpack.c.b16 %v118, %v117
  %v129 = vpack.c.b16 %v120, %v119
  %v130 = vpack.c.b16 %v122, %v121
  %v155 = vunpack.c.l.b16 %v66
  %v156 = vunpack.c.l.b16 %v67
  %v157 = vunpack.c.l.b16 %v68
  %v158 = vunpack.c.l.b16 %v69
  %v159 = vunpack.c.l.b16 %v70
  %v160 = vunpack.c.l.b16 %v71
  %v161 = vunpack.c.l.b16 %v72
  %v162 = vunpack.c.l.b16 %v73
  %v163 = vunpack.c.l.b16 %v74
  %v164 = vunpack.c.l.b16 %v75
  %v165 = vunpack.c.l.b16 %v76
  %v166 = vunpack.c.l.b16 %v77
  %v167 = vunpack.c.l.b16 %v78
  %v168 = vunpack.c.l.b16 %v79
  %v169 = vunpack.c.l.b16 %v80
  %v170 = vunpack.c.l.b16 %v81
  %v171 = vpack.c.b16 %v156, %v155
  %v172 = vpack.c.b16 %v158, %v157
  %v173 = vpack.c.b16 %v160, %v159
  %v174 = vpack.c.b16 %v162, %v161
  %v175 = vpack.c.b16 %v164, %v163
  %v176 = vpack.c.b16 %v166, %v165
  %v177 = vpack.c.b16 %v168, %v167
  %v178 = vpack.c.b16 %v170, %v169
  %187 = vmatprep.subr.bf16.mxu0 0
  %188 = vmatpush1.bf16.msra.mxu0 %v171
  %189 = vmatprep.subr.bf16.mxu0 0
  %190 = vmatpush1.bf16.msra.mxu0 %v172
  %191 = vmatprep.subr.bf16.mxu0 0
  %192 = vmatpush1.bf16.msra.mxu0 %v173
  %193 = vmatprep.subr.bf16.mxu0 0
  %194 = vmatpush1.bf16.msra.mxu0 %v174
  %195 = vmatprep.subr.bf16.mxu0 0
  %196 = vmatpush1.bf16.msra.mxu0 %v175
  %197 = vmatprep.subr.bf16.mxu0 0
  %198 = vmatpush1.bf16.msra.mxu0 %v176
  %199 = vmatprep.subr.bf16.mxu0 0
  %200 = vmatpush1.bf16.msra.mxu0 %v177
  %201 = vmatprep.subr.bf16.mxu0 0
  %202 = vmatpush1.bf16.msra.mxu0 %v178
  %203 = vmatprep.subr.bf16.mxu0 0
  %204 = vmatpush1.bf16.msra.mxu0 0
  %205 = vmatprep.subr.bf16.mxu0 0
  %206 = vmatpush1.bf16.msra.mxu0 0
  %207 = vmatprep.subr.bf16.mxu0 0
  %208 = vmatpush1.bf16.msra.mxu0 0
  %209 = vmatprep.subr.bf16.mxu0 0
  %210 = vmatpush1.bf16.msra.mxu0 0
  %211 = vmatprep.subr.bf16.mxu0 0
  %212 = vmatpush1.bf16.msra.mxu0 0
  %213 = vmatprep.subr.bf16.mxu0 0
  %214 = vmatpush1.bf16.msra.mxu0 0
  %215 = vmatprep.subr.bf16.mxu0 0
  %216 = vmatpush1.bf16.msra.mxu0 0
  %217 = vmatprep.subr.bf16.mxu0 0
  %218 = vmatpush1.bf16.msra.mxu0 0
  %219 = vmatprep.mubr.bf16.mxu0 0
  %220 = vmatmul.mubr.bf16.gmra.mrb[0].mxu0 %v123
  %v221 = vpop.f32.mrb[0].mxu0
  %v222 = vadd.f32 0.0, %v221
  %v223 = vpop.f32.mrb[0].mxu0
  %v224 = vpop.f32.mrb[0].mxu0
  %v225 = vadd.f32 0.0, %v224
  %v226 = vpop.f32.mrb[0].mxu0
  %227 = vmatprep.mubr.bf16.mxu0 0
  %228 = vmatmul.mubr.bf16.gmra.mrb[0].mxu0 %v124
  %v229 = vpop.f32.mrb[0].mxu0
  %v230 = vadd.f32 0.0, %v229
  %v231 = vpop.f32.mrb[0].mxu0
  %v232 = vpop.f32.mrb[0].mxu0
  %v233 = vadd.f32 0.0, %v232
  %v234 = vpop.f32.mrb[0].mxu0
  %235 = vmatprep.mubr.bf16.mxu0 0
  %236 = vmatmul.mubr.bf16.gmra.mrb[0].mxu0 %v125
  %v237 = vpop.f32.mrb[0].mxu0
  %v238 = vadd.f32 0.0, %v237
  %v239 = vpop.f32.mrb[0].mxu0
  %v240 = vpop.f32.mrb[0].mxu0
  %v241 = vadd.f32 0.0, %v240
  %v242 = vpop.f32.mrb[0].mxu0
  %243 = vmatprep.mubr.bf16.mxu0 0
  %244 = vmatmul.mubr.bf16.gmra.mrb[0].mxu0 %v126
  %v245 = vpop.f32.mrb[0].mxu0
  %v246 = vadd.f32 0.0, %v245
  %v247 = vpop.f32.mrb[0].mxu0
  %v248 = vpop.f32.mrb[0].mxu0
  %v249 = vadd.f32 0.0, %v248
  %v250 = vpop.f32.mrb[0].mxu0
  %251 = vmatprep.mubr.bf16.mxu0 0
  %252 = vmatmul.mubr.bf16.gmra.mrb[0].mxu0 %v127
  %v253 = vpop.f32.mrb[0].mxu0
  %v254 = vadd.f32 0.0, %v253
  %v255 = vpop.f32.mrb[0].mxu0
  %v256 = vpop.f32.mrb[0].mxu0
  %v257 = vadd.f32 0.0, %v256
  %v258 = vpop.f32.mrb[0].mxu0
  %259 = vmatprep.mubr.bf16.mxu0 0
  %260 = vmatmul.mubr.bf16.gmra.mrb[0].mxu0 %v128
  %v261 = vpop.f32.mrb[0].mxu0
  %v262 = vadd.f32 0.0, %v261
  %v263 = vpop.f32.mrb[0].mxu0
  %v264 = vpop.f32.mrb[0].mxu0
  %v265 = vadd.f32 0.0, %v264
  %v266 = vpop.f32.mrb[0].mxu0
  %267 = vmatprep.mubr.bf16.mxu0 0
  %268 = vmatmul.mubr.bf16.gmra.mrb[0].mxu0 %v129
  %v269 = vpop.f32.mrb[0].mxu0
  %v270 = vadd.f32 0.0, %v269
  %v271 = vpop.f32.mrb[0].mxu0
  %v272 = vpop.f32.mrb[0].mxu0
  %v273 = vadd.f32 0.0, %v272
  %v274 = vpop.f32.mrb[0].mxu0
  %275 = vmatprep.mubr.bf16.mxu0 0
  %276 = vmatmul.mubr.bf16.gmra.mrb[0].mxu0 %v130
  %v277 = vpop.f32.mrb[0].mxu0
  %v278 = vadd.f32 0.0, %v277
  %v279 = vpop.f32.mrb[0].mxu0
  %v280 = vpop.f32.mrb[0].mxu0
  %v281 = vadd.f32 0.0, %v280
  %v282 = vpop.f32.mrb[0].mxu0
  %283 = vdwg.mxu0
  %vm284 = vcmask 23552
  %v286 = vsel %vm284, %v83, 0
  %v289 = vsel %vm284, %v84, 0
  %v292 = vsel %vm284, %v85, 0
  %v295 = vsel %vm284, %v86, 0
  %v298 = vsel %vm284, %v87, 0
  %v301 = vsel %vm284, %v88, 0
  %v304 = vsel %vm284, %v89, 0
  %v307 = vsel %vm284, %v90, 0
  %vm309 = vcmask 1040384
  %vm310 = vcmask 1041408
  %v311 = vsel %vm309, 4294967295, 65535
  %v312 = vsel %vm310, %v311, 0
  %v314 = vand.u32 %v65, %v312
  %316 = vmatprep.subr.bf16.mxu0 0
  %317 = vmatpush1.bf16.msra.mxu0 %v314
  %318 = vmatprep.subr.bf16.mxu0 0
  %319 = vmatpush1.bf16.msra.mxu0 0
  %320 = vmatprep.subr.bf16.mxu0 0
  %321 = vmatpush1.bf16.msra.mxu0 0
  %322 = vmatprep.subr.bf16.mxu0 0
  %323 = vmatpush1.bf16.msra.mxu0 0
  %324 = vmatprep.subr.bf16.mxu0 0
  %325 = vmatpush1.bf16.msra.mxu0 0
  %326 = vmatprep.subr.bf16.mxu0 0
  %327 = vmatpush1.bf16.msra.mxu0 0
  %328 = vmatprep.subr.bf16.mxu0 0
  %329 = vmatpush1.bf16.msra.mxu0 0
  %330 = vmatprep.subr.bf16.mxu0 0
  %331 = vmatpush1.bf16.msra.mxu0 0
  %332 = vmatprep.subr.bf16.mxu0 0
  %333 = vmatpush1.bf16.msra.mxu0 0
  %334 = vmatprep.subr.bf16.mxu0 0
  %335 = vmatpush1.bf16.msra.mxu0 0
  %336 = vmatprep.subr.bf16.mxu0 0
  %337 = vmatpush1.bf16.msra.mxu0 0
  %338 = vmatprep.subr.bf16.mxu0 0
  %339 = vmatpush1.bf16.msra.mxu0 0
  %340 = vmatprep.subr.bf16.mxu0 0
  %341 = vmatpush1.bf16.msra.mxu0 0
  %342 = vmatprep.subr.bf16.mxu0 0
  %343 = vmatpush1.bf16.msra.mxu0 0
  %344 = vmatprep.subr.bf16.mxu0 0
  %345 = vmatpush1.bf16.msra.mxu0 0
  %346 = vmatprep.subr.bf16.mxu0 0
  %347 = vmatpush1.bf16.msra.mxu0 0
  %348 = vmatprep.mubr.bf16.mxu0 0
  %349 = vmatmul.mubr.bf16.gmra.mrb[0].mxu0 %v286
  %v350 = vpop.f32.mrb[0].mxu0
  %v351 = vadd.f32 %v222, %v350
  %v352 = vpop.f32.mrb[0].mxu0
  %v353 = vpop.f32.mrb[0].mxu0
  %v354 = vadd.f32 %v225, %v353
  %v355 = vpop.f32.mrb[0].mxu0
  %356 = vmatprep.mubr.bf16.mxu0 0
  %357 = vmatmul.mubr.bf16.gmra.mrb[0].mxu0 %v289
  %v358 = vpop.f32.mrb[0].mxu0
  %v359 = vadd.f32 %v230, %v358
  %v360 = vpop.f32.mrb[0].mxu0
  %v361 = vpop.f32.mrb[0].mxu0
  %v362 = vadd.f32 %v233, %v361
  %v363 = vpop.f32.mrb[0].mxu0
  %364 = vmatprep.mubr.bf16.mxu0 0
  %365 = vmatmul.mubr.bf16.gmra.mrb[0].mxu0 %v292
  %v366 = vpop.f32.mrb[0].mxu0
  %v367 = vadd.f32 %v238, %v366
  %v368 = vpop.f32.mrb[0].mxu0
  %v369 = vpop.f32.mrb[0].mxu0
  %v370 = vadd.f32 %v241, %v369
  %v371 = vpop.f32.mrb[0].mxu0
  %372 = vmatprep.mubr.bf16.mxu0 0
  %373 = vmatmul.mubr.bf16.gmra.mrb[0].mxu0 %v295
  %v374 = vpop.f32.mrb[0].mxu0
  %v375 = vadd.f32 %v246, %v374
  %v376 = vpop.f32.mrb[0].mxu0
  %v377 = vpop.f32.mrb[0].mxu0
  %v378 = vadd.f32 %v249, %v377
  %v379 = vpop.f32.mrb[0].mxu0
  %380 = vmatprep.mubr.bf16.mxu0 0
  %381 = vmatmul.mubr.bf16.gmra.mrb[0].mxu0 %v298
  %v382 = vpop.f32.mrb[0].mxu0
  %v383 = vadd.f32 %v254, %v382
  %v384 = vpop.f32.mrb[0].mxu0
  %v385 = vpop.f32.mrb[0].mxu0
  %v386 = vadd.f32 %v257, %v385
  %v387 = vpop.f32.mrb[0].mxu0
  %388 = vmatprep.mubr.bf16.mxu0 0
  %389 = vmatmul.mubr.bf16.gmra.mrb[0].mxu0 %v301
  %v390 = vpop.f32.mrb[0].mxu0
  %v391 = vadd.f32 %v262, %v390
  %v392 = vpop.f32.mrb[0].mxu0
  %v393 = vpop.f32.mrb[0].mxu0
  %v394 = vadd.f32 %v265, %v393
  %v395 = vpop.f32.mrb[0].mxu0
  %396 = vmatprep.mubr.bf16.mxu0 0
  %397 = vmatmul.mubr.bf16.gmra.mrb[0].mxu0 %v304
  %v398 = vpop.f32.mrb[0].mxu0
  %v399 = vadd.f32 %v270, %v398
  %v400 = vpop.f32.mrb[0].mxu0
  %v401 = vpop.f32.mrb[0].mxu0
  %v402 = vadd.f32 %v273, %v401
  %v403 = vpop.f32.mrb[0].mxu0
  %404 = vmatprep.mubr.bf16.mxu0 0
  %405 = vmatmul.mubr.bf16.gmra.mrb[0].mxu0 %v307
  %v406 = vpop.f32.mrb[0].mxu0
  %v407 = vadd.f32 %v278, %v406
  %v408 = vpop.f32.mrb[0].mxu0
  %v409 = vpop.f32.mrb[0].mxu0
  %v410 = vadd.f32 %v281, %v409
  %v411 = vpop.f32.mrb[0].mxu0
  %412 = vdwg.mxu0
  %v414 = vlaneseq
  %v415 = vshrl.u32 %v414, 7
  %v416 = vsub.s32 0, %v415
  %v417 = vrot.slane %v82, %v416
  %v419 = vadd.f32 %v351, %v417
  %v420 = vadd.f32 %v354, %v417
  %v421 = vadd.f32 %v359, %v417
  %v422 = vadd.f32 %v362, %v417
  %v423 = vadd.f32 %v367, %v417
  %v424 = vadd.f32 %v370, %v417
  %v425 = vadd.f32 %v375, %v417
  %v426 = vadd.f32 %v378, %v417
  %v427 = vadd.f32 %v383, %v417
  %v428 = vadd.f32 %v386, %v417
  %v429 = vadd.f32 %v391, %v417
  %v430 = vadd.f32 %v394, %v417
  %v431 = vadd.f32 %v399, %v417
  %v432 = vadd.f32 %v402, %v417
  %v433 = vadd.f32 %v407, %v417
  %v434 = vadd.f32 %v410, %v417
  %v435 = vmax.f32 %v419, 0.0
  %v436 = vmax.f32 %v420, 0.0
  %v437 = vmax.f32 %v421, 0.0
  %v438 = vmax.f32 %v422, 0.0
  %v439 = vmax.f32 %v423, 0.0
  %v440 = vmax.f32 %v424, 0.0
  %v441 = vmax.f32 %v425, 0.0
  %v442 = vmax.f32 %v426, 0.0
  %v443 = vmax.f32 %v427, 0.0
  %v444 = vmax.f32 %v428, 0.0
  %v445 = vmax.f32 %v429, 0.0
  %v446 = vmax.f32 %v430, 0.0
  %v447 = vmax.f32 %v431, 0.0
  %v448 = vmax.f32 %v432, 0.0
  %v449 = vmax.f32 %v433, 0.0
  %v450 = vmax.f32 %v434, 0.0
  %v451 = vld [vmem:[%s5] sm:$0xf]
  %v452 = vld [vmem:[%s5 + $0x4] sm:$0xf]
  %v453 = vld [vmem:[%s5 + $0x8] sm:$0xf]
  %v454 = vld [vmem:[%s5 + $0xc] sm:$0xf]
  %v455 = vld [vmem:[%s5 + $0x10] sm:$0xf]
  %v456 = vld [vmem:[%s5 + $0x14] sm:$0xf]
  %v457 = vld [vmem:[%s5 + $0x18] sm:$0xf]
  %v458 = vld [vmem:[%s5 + $0x1c] sm:$0xf]
  %v459 = vld [vmem:[%s5 + $0x20] sm:$0xf]
  %v460 = vld [vmem:[%s5 + $0x24] sm:$0xf]
  %v461 = vld [vmem:[%s5 + $0x28] sm:$0xf]
  %v462 = vld [vmem:[%s5 + $0x2c] sm:$0xf]
  %v463 = vld [vmem:[%s5 + $0x30] sm:$0xf]
  %v464 = vld [vmem:[%s5 + $0x34] sm:$0xf]
  %v465 = vld [vmem:[%s5 + $0x38] sm:$0xf]
  %v466 = vld [vmem:[%s5 + $0x3c] sm:$0xf]
  %v467 = vld [vmem:[%s6] sm:$0x1]
  %v468 = vpack.c.bf16 %v436, %v435
  %v469 = vpack.c.bf16 %v438, %v437
  %v470 = vpack.c.bf16 %v440, %v439
  %v471 = vpack.c.bf16 %v442, %v441
  %v472 = vpack.c.bf16 %v444, %v443
  %v473 = vpack.c.bf16 %v446, %v445
  %v474 = vpack.c.bf16 %v448, %v447
  %v475 = vpack.c.bf16 %v450, %v449
  %v477 = vlaneseq
  %v478 = vshrl.u32 %v477, 7
  %v479 = vsub.s32 0, %v478
  %v480 = vrot.slane %v467, %v479
  %v498 = vunpack.c.l.b16 %v451
  %v499 = vunpack.c.l.b16 %v452
  %v500 = vunpack.c.l.b16 %v453
  %v501 = vunpack.c.l.b16 %v454
  %v502 = vunpack.c.l.b16 %v455
  %v503 = vunpack.c.l.b16 %v456
  %v504 = vunpack.c.l.b16 %v457
  %v505 = vunpack.c.l.b16 %v458
  %v506 = vunpack.c.l.b16 %v459
  %v507 = vunpack.c.l.b16 %v460
  %v508 = vunpack.c.l.b16 %v461
  %v509 = vunpack.c.l.b16 %v462
  %v510 = vunpack.c.l.b16 %v463
  %v511 = vunpack.c.l.b16 %v464
  %v512 = vunpack.c.l.b16 %v465
  %v513 = vunpack.c.l.b16 %v466
  %v514 = vpack.c.b16 %v499, %v498
  %v515 = vpack.c.b16 %v501, %v500
  %v516 = vpack.c.b16 %v503, %v502
  %v517 = vpack.c.b16 %v505, %v504
  %v518 = vpack.c.b16 %v507, %v506
  %v519 = vpack.c.b16 %v509, %v508
  %v520 = vpack.c.b16 %v511, %v510
  %v521 = vpack.c.b16 %v513, %v512
  %530 = vmatprep.subr.bf16.mxu0 0
  %531 = vmatpush1.bf16.msra.mxu0 %v514
  %532 = vmatprep.subr.bf16.mxu0 0
  %533 = vmatpush1.bf16.msra.mxu0 %v515
  %534 = vmatprep.subr.bf16.mxu0 0
  %535 = vmatpush1.bf16.msra.mxu0 %v516
  %536 = vmatprep.subr.bf16.mxu0 0
  %537 = vmatpush1.bf16.msra.mxu0 %v517
  %538 = vmatprep.subr.bf16.mxu0 0
  %539 = vmatpush1.bf16.msra.mxu0 %v518
  %540 = vmatprep.subr.bf16.mxu0 0
  %541 = vmatpush1.bf16.msra.mxu0 %v519
  %542 = vmatprep.subr.bf16.mxu0 0
  %543 = vmatpush1.bf16.msra.mxu0 %v520
  %544 = vmatprep.subr.bf16.mxu0 0
  %545 = vmatpush1.bf16.msra.mxu0 %v521
  %546 = vmatprep.subr.bf16.mxu0 0
  %547 = vmatpush1.bf16.msra.mxu0 0
  %548 = vmatprep.subr.bf16.mxu0 0
  %549 = vmatpush1.bf16.msra.mxu0 0
  %550 = vmatprep.subr.bf16.mxu0 0
  %551 = vmatpush1.bf16.msra.mxu0 0
  %552 = vmatprep.subr.bf16.mxu0 0
  %553 = vmatpush1.bf16.msra.mxu0 0
  %554 = vmatprep.subr.bf16.mxu0 0
  %555 = vmatpush1.bf16.msra.mxu0 0
  %556 = vmatprep.subr.bf16.mxu0 0
  %557 = vmatpush1.bf16.msra.mxu0 0
  %558 = vmatprep.subr.bf16.mxu0 0
  %559 = vmatpush1.bf16.msra.mxu0 0
  %560 = vmatprep.subr.bf16.mxu0 0
  %561 = vmatpush1.bf16.msra.mxu0 0
  %562 = vmatprep.mubr.bf16.mxu0 0
  %563 = vmatmul.mubr.bf16.gmra.mrb[0].mxu0 %v468
  %v564 = vpop.f32.mrb[0].mxu0
  %v565 = vadd.f32 %v480, %v564
  %v566 = vpop.f32.mrb[0].mxu0
  %v567 = vpop.f32.mrb[0].mxu0
  %v568 = vadd.f32 %v480, %v567
  %v569 = vpop.f32.mrb[0].mxu0
  %570 = vmatprep.mubr.bf16.mxu0 0
  %571 = vmatmul.mubr.bf16.gmra.mrb[0].mxu0 %v469
  %v572 = vpop.f32.mrb[0].mxu0
  %v573 = vadd.f32 %v480, %v572
  %v574 = vpop.f32.mrb[0].mxu0
  %v575 = vpop.f32.mrb[0].mxu0
  %v576 = vadd.f32 %v480, %v575
  %v577 = vpop.f32.mrb[0].mxu0
  %578 = vmatprep.mubr.bf16.mxu0 0
  %579 = vmatmul.mubr.bf16.gmra.mrb[0].mxu0 %v470
  %v580 = vpop.f32.mrb[0].mxu0
  %v581 = vadd.f32 %v480, %v580
  %v582 = vpop.f32.mrb[0].mxu0
  %v583 = vpop.f32.mrb[0].mxu0
  %v584 = vadd.f32 %v480, %v583
  %v585 = vpop.f32.mrb[0].mxu0
  %586 = vmatprep.mubr.bf16.mxu0 0
  %587 = vmatmul.mubr.bf16.gmra.mrb[0].mxu0 %v471
  %v588 = vpop.f32.mrb[0].mxu0
  %v589 = vadd.f32 %v480, %v588
  %v590 = vpop.f32.mrb[0].mxu0
  %v591 = vpop.f32.mrb[0].mxu0
  %v592 = vadd.f32 %v480, %v591
  %v593 = vpop.f32.mrb[0].mxu0
  %594 = vmatprep.mubr.bf16.mxu0 0
  %595 = vmatmul.mubr.bf16.gmra.mrb[0].mxu0 %v472
  %v596 = vpop.f32.mrb[0].mxu0
  %v597 = vadd.f32 %v480, %v596
  %v598 = vpop.f32.mrb[0].mxu0
  %v599 = vpop.f32.mrb[0].mxu0
  %v600 = vadd.f32 %v480, %v599
  %v601 = vpop.f32.mrb[0].mxu0
  %602 = vmatprep.mubr.bf16.mxu0 0
  %603 = vmatmul.mubr.bf16.gmra.mrb[0].mxu0 %v473
  %v604 = vpop.f32.mrb[0].mxu0
  %v605 = vadd.f32 %v480, %v604
  %v606 = vpop.f32.mrb[0].mxu0
  %v607 = vpop.f32.mrb[0].mxu0
  %v608 = vadd.f32 %v480, %v607
  %v609 = vpop.f32.mrb[0].mxu0
  %610 = vmatprep.mubr.bf16.mxu0 0
  %611 = vmatmul.mubr.bf16.gmra.mrb[0].mxu0 %v474
  %v612 = vpop.f32.mrb[0].mxu0
  %v613 = vadd.f32 %v480, %v612
  %v614 = vpop.f32.mrb[0].mxu0
  %v615 = vpop.f32.mrb[0].mxu0
  %v616 = vadd.f32 %v480, %v615
  %v617 = vpop.f32.mrb[0].mxu0
  %618 = vmatprep.mubr.bf16.mxu0 0
  %619 = vmatmul.mubr.bf16.gmra.mrb[0].mxu0 %v475
  %v620 = vpop.f32.mrb[0].mxu0
  %v621 = vadd.f32 %v480, %v620
  %v622 = vpop.f32.mrb[0].mxu0
  %v623 = vpop.f32.mrb[0].mxu0
  %v624 = vadd.f32 %v480, %v623
  %v625 = vpop.f32.mrb[0].mxu0
  %626 = vdwg.mxu0
  %v627 = vmax.f32 %v565, 0.0
  %v628 = vmax.f32 %v568, 0.0
  %v629 = vmax.f32 %v573, 0.0
  %v630 = vmax.f32 %v576, 0.0
  %v631 = vmax.f32 %v581, 0.0
  %v632 = vmax.f32 %v584, 0.0
  %v633 = vmax.f32 %v589, 0.0
  %v634 = vmax.f32 %v592, 0.0
  %v635 = vmax.f32 %v597, 0.0
  %v636 = vmax.f32 %v600, 0.0
  %v637 = vmax.f32 %v605, 0.0
  %v638 = vmax.f32 %v608, 0.0
  %v639 = vmax.f32 %v613, 0.0
  %v640 = vmax.f32 %v616, 0.0
  %v641 = vmax.f32 %v621, 0.0
  %v642 = vmax.f32 %v624, 0.0
  %v643 = vld [vmem:[%s7] sm:$0xff]
  %v644 = vld [vmem:[%s7 + $0x8] sm:$0xff]
  %v645 = vld [vmem:[%s7 + $0x10] sm:$0xff]
  %v646 = vld [vmem:[%s7 + $0x18] sm:$0xff]
  %v647 = vld [vmem:[%s7 + $0x20] sm:$0xff]
  %v648 = vld [vmem:[%s7 + $0x28] sm:$0xff]
  %v649 = vld [vmem:[%s7 + $0x30] sm:$0xff]
  %v650 = vld [vmem:[%s7 + $0x38] sm:$0xff]
  %v651 = vld [vmem:[%s7 + $0x40] sm:$0xff]
  %v652 = vld [vmem:[%s7 + $0x48] sm:$0xff]
  %v653 = vld [vmem:[%s7 + $0x50] sm:$0xff]
  %v654 = vld [vmem:[%s7 + $0x58] sm:$0xff]
  %v655 = vld [vmem:[%s7 + $0x60] sm:$0xff]
  %v656 = vld [vmem:[%s7 + $0x68] sm:$0xff]
  %v657 = vld [vmem:[%s7 + $0x70] sm:$0xff]
  %v658 = vld [vmem:[%s7 + $0x78] sm:$0xff]
  %v659 = vld [vmem:[%s8] sm:$0x3]
  %v660 = vpack.c.bf16 %v628, %v627
  %v661 = vpack.c.bf16 %v630, %v629
  %v662 = vpack.c.bf16 %v632, %v631
  %v663 = vpack.c.bf16 %v634, %v633
  %v664 = vpack.c.bf16 %v636, %v635
  %v665 = vpack.c.bf16 %v638, %v637
  %v666 = vpack.c.bf16 %v640, %v639
  %v667 = vpack.c.bf16 %v642, %v641
  %v669 = vlaneseq
  %v670 = vshrl.u32 %v669, 7
  %v671 = vsub.s32 0, %v670
  %v672 = vrot.slane %v659, %v671
  %v673 = vlaneseq
  %v674 = vshrl.u32 %v673, 7
  %v675 = vsub.s32 1, %v674
  %v676 = vrot.slane %v659, %v675
  %v695 = vunpack.c.l.b16 %v643
  %v696 = vunpack.c.h.b16 %v643
  %v697 = vunpack.c.l.b16 %v644
  %v698 = vunpack.c.h.b16 %v644
  %v699 = vunpack.c.l.b16 %v645
  %v700 = vunpack.c.h.b16 %v645
  %v701 = vunpack.c.l.b16 %v646
  %v702 = vunpack.c.h.b16 %v646
  %v703 = vunpack.c.l.b16 %v647
  %v704 = vunpack.c.h.b16 %v647
  %v705 = vunpack.c.l.b16 %v648
  %v706 = vunpack.c.h.b16 %v648
  %v707 = vunpack.c.l.b16 %v649
  %v708 = vunpack.c.h.b16 %v649
  %v709 = vunpack.c.l.b16 %v650
  %v710 = vunpack.c.h.b16 %v650
  %v711 = vunpack.c.l.b16 %v651
  %v712 = vunpack.c.h.b16 %v651
  %v713 = vunpack.c.l.b16 %v652
  %v714 = vunpack.c.h.b16 %v652
  %v715 = vunpack.c.l.b16 %v653
  %v716 = vunpack.c.h.b16 %v653
  %v717 = vunpack.c.l.b16 %v654
  %v718 = vunpack.c.h.b16 %v654
  %v719 = vunpack.c.l.b16 %v655
  %v720 = vunpack.c.h.b16 %v655
  %v721 = vunpack.c.l.b16 %v656
  %v722 = vunpack.c.h.b16 %v656
  %v723 = vunpack.c.l.b16 %v657
  %v724 = vunpack.c.h.b16 %v657
  %v725 = vunpack.c.l.b16 %v658
  %v726 = vunpack.c.h.b16 %v658
  %v727 = vpack.c.b16 %v697, %v695
  %v728 = vpack.c.b16 %v698, %v696
  %v729 = vpack.c.b16 %v701, %v699
  %v730 = vpack.c.b16 %v702, %v700
  %v731 = vpack.c.b16 %v705, %v703
  %v732 = vpack.c.b16 %v706, %v704
  %v733 = vpack.c.b16 %v709, %v707
  %v734 = vpack.c.b16 %v710, %v708
  %v735 = vpack.c.b16 %v713, %v711
  %v736 = vpack.c.b16 %v714, %v712
  %v737 = vpack.c.b16 %v717, %v715
  %v738 = vpack.c.b16 %v718, %v716
  %v739 = vpack.c.b16 %v721, %v719
  %v740 = vpack.c.b16 %v722, %v720
  %v741 = vpack.c.b16 %v725, %v723
  %v742 = vpack.c.b16 %v726, %v724
  %759 = vmatprep.subr.bf16.mxu0 %v728
  %760 = vmatpush1.bf16.msra.mxu0 %v727
  %761 = vmatprep.subr.bf16.mxu0 %v730
  %762 = vmatpush1.bf16.msra.mxu0 %v729
  %763 = vmatprep.subr.bf16.mxu0 %v732
  %764 = vmatpush1.bf16.msra.mxu0 %v731
  %765 = vmatprep.subr.bf16.mxu0 %v734
  %766 = vmatpush1.bf16.msra.mxu0 %v733
  %767 = vmatprep.subr.bf16.mxu0 %v736
  %768 = vmatpush1.bf16.msra.mxu0 %v735
  %769 = vmatprep.subr.bf16.mxu0 %v738
  %770 = vmatpush1.bf16.msra.mxu0 %v737
  %771 = vmatprep.subr.bf16.mxu0 %v740
  %772 = vmatpush1.bf16.msra.mxu0 %v739
  %773 = vmatprep.subr.bf16.mxu0 %v742
  %774 = vmatpush1.bf16.msra.mxu0 %v741
  %775 = vmatprep.subr.bf16.mxu0 0
  %776 = vmatpush1.bf16.msra.mxu0 0
  %777 = vmatprep.subr.bf16.mxu0 0
  %778 = vmatpush1.bf16.msra.mxu0 0
  %779 = vmatprep.subr.bf16.mxu0 0
  %780 = vmatpush1.bf16.msra.mxu0 0
  %781 = vmatprep.subr.bf16.mxu0 0
  %782 = vmatpush1.bf16.msra.mxu0 0
  %783 = vmatprep.subr.bf16.mxu0 0
  %784 = vmatpush1.bf16.msra.mxu0 0
  %785 = vmatprep.subr.bf16.mxu0 0
  %786 = vmatpush1.bf16.msra.mxu0 0
  %787 = vmatprep.subr.bf16.mxu0 0
  %788 = vmatpush1.bf16.msra.mxu0 0
  %789 = vmatprep.subr.bf16.mxu0 0
  %790 = vmatpush1.bf16.msra.mxu0 0
  %791 = vmatprep.mubr.bf16.mxu0 0
  %792 = vmatmul.mubr.bf16.gmra.mrb[0].mxu0 %v660
  %v793 = vpop.f32.mrb[0].mxu0
  %v794 = vadd.f32 %v672, %v793
  %v795 = vpop.f32.mrb[0].mxu0
  %v796 = vadd.f32 %v676, %v795
  %v797 = vpop.f32.mrb[0].mxu0
  %v798 = vadd.f32 %v672, %v797
  %v799 = vpop.f32.mrb[0].mxu0
  %v800 = vadd.f32 %v676, %v799
  %801 = vmatprep.mubr.bf16.mxu0 0
  %802 = vmatmul.mubr.bf16.gmra.mrb[0].mxu0 %v661
  %v803 = vpop.f32.mrb[0].mxu0
  %v804 = vadd.f32 %v672, %v803
  %v805 = vpop.f32.mrb[0].mxu0
  %v806 = vadd.f32 %v676, %v805
  %v807 = vpop.f32.mrb[0].mxu0
  %v808 = vadd.f32 %v672, %v807
  %v809 = vpop.f32.mrb[0].mxu0
  %v810 = vadd.f32 %v676, %v809
  %811 = vmatprep.mubr.bf16.mxu0 0
  %812 = vmatmul.mubr.bf16.gmra.mrb[0].mxu0 %v662
  %v813 = vpop.f32.mrb[0].mxu0
  %v814 = vadd.f32 %v672, %v813
  %v815 = vpop.f32.mrb[0].mxu0
  %v816 = vadd.f32 %v676, %v815
  %v817 = vpop.f32.mrb[0].mxu0
  %v818 = vadd.f32 %v672, %v817
  %v819 = vpop.f32.mrb[0].mxu0
  %v820 = vadd.f32 %v676, %v819
  %821 = vmatprep.mubr.bf16.mxu0 0
  %822 = vmatmul.mubr.bf16.gmra.mrb[0].mxu0 %v663
  %v823 = vpop.f32.mrb[0].mxu0
  %v824 = vadd.f32 %v672, %v823
  %v825 = vpop.f32.mrb[0].mxu0
  %v826 = vadd.f32 %v676, %v825
  %v827 = vpop.f32.mrb[0].mxu0
  %v828 = vadd.f32 %v672, %v827
  %v829 = vpop.f32.mrb[0].mxu0
  %v830 = vadd.f32 %v676, %v829
  %831 = vmatprep.mubr.bf16.mxu0 0
  %832 = vmatmul.mubr.bf16.gmra.mrb[0].mxu0 %v664
  %v833 = vpop.f32.mrb[0].mxu0
  %v834 = vadd.f32 %v672, %v833
  %v835 = vpop.f32.mrb[0].mxu0
  %v836 = vadd.f32 %v676, %v835
  %v837 = vpop.f32.mrb[0].mxu0
  %v838 = vadd.f32 %v672, %v837
  %v839 = vpop.f32.mrb[0].mxu0
  %v840 = vadd.f32 %v676, %v839
  %841 = vmatprep.mubr.bf16.mxu0 0
  %842 = vmatmul.mubr.bf16.gmra.mrb[0].mxu0 %v665
  %v843 = vpop.f32.mrb[0].mxu0
  %v844 = vadd.f32 %v672, %v843
  %v845 = vpop.f32.mrb[0].mxu0
  %v846 = vadd.f32 %v676, %v845
  %v847 = vpop.f32.mrb[0].mxu0
  %v848 = vadd.f32 %v672, %v847
  %v849 = vpop.f32.mrb[0].mxu0
  %v850 = vadd.f32 %v676, %v849
  %851 = vmatprep.mubr.bf16.mxu0 0
  %852 = vmatmul.mubr.bf16.gmra.mrb[0].mxu0 %v666
  %v853 = vpop.f32.mrb[0].mxu0
  %v854 = vadd.f32 %v672, %v853
  %v855 = vpop.f32.mrb[0].mxu0
  %v856 = vadd.f32 %v676, %v855
  %v857 = vpop.f32.mrb[0].mxu0
  %v858 = vadd.f32 %v672, %v857
  %v859 = vpop.f32.mrb[0].mxu0
  %v860 = vadd.f32 %v676, %v859
  %861 = vmatprep.mubr.bf16.mxu0 0
  %862 = vmatmul.mubr.bf16.gmra.mrb[0].mxu0 %v667
  %v863 = vpop.f32.mrb[0].mxu0
  %v864 = vadd.f32 %v672, %v863
  %v865 = vpop.f32.mrb[0].mxu0
  %v866 = vadd.f32 %v676, %v865
  %v867 = vpop.f32.mrb[0].mxu0
  %v868 = vadd.f32 %v672, %v867
  %v869 = vpop.f32.mrb[0].mxu0
  %v870 = vadd.f32 %v676, %v869
  %871 = vdwg.mxu0
  %v872 = vmax.f32 %v794, 0.0
  %v873 = vmax.f32 %v796, 0.0
  %v874 = vmax.f32 %v798, 0.0
  %v875 = vmax.f32 %v800, 0.0
  %v876 = vmax.f32 %v804, 0.0
  %v877 = vmax.f32 %v806, 0.0
  %v878 = vmax.f32 %v808, 0.0
  %v879 = vmax.f32 %v810, 0.0
  %v880 = vmax.f32 %v814, 0.0
  %v881 = vmax.f32 %v816, 0.0
  %v882 = vmax.f32 %v818, 0.0
  %v883 = vmax.f32 %v820, 0.0
  %v884 = vmax.f32 %v824, 0.0
  %v885 = vmax.f32 %v826, 0.0
  %v886 = vmax.f32 %v828, 0.0
  %v887 = vmax.f32 %v830, 0.0
  %v888 = vmax.f32 %v834, 0.0
  %v889 = vmax.f32 %v836, 0.0
  %v890 = vmax.f32 %v838, 0.0
  %v891 = vmax.f32 %v840, 0.0
  %v892 = vmax.f32 %v844, 0.0
  %v893 = vmax.f32 %v846, 0.0
  %v894 = vmax.f32 %v848, 0.0
  %v895 = vmax.f32 %v850, 0.0
  %v896 = vmax.f32 %v854, 0.0
  %v897 = vmax.f32 %v856, 0.0
  %v898 = vmax.f32 %v858, 0.0
  %v899 = vmax.f32 %v860, 0.0
  %v900 = vmax.f32 %v864, 0.0
  %v901 = vmax.f32 %v866, 0.0
  %v902 = vmax.f32 %v868, 0.0
  %v903 = vmax.f32 %v870, 0.0
  %v904 = vrot.slane %v872, 4
  %v905 = vmax.f32 %v872, %v904
  %v906 = vrot.slane %v905, 2
  %v907 = vmax.f32 %v905, %v906
  %v908 = vrot.slane %v907, 1
  %v909 = vmax.f32 %v907, %v908
  %v910 = vrot.slane %v873, 4
  %v911 = vmax.f32 %v873, %v910
  %v912 = vrot.slane %v911, 2
  %v913 = vmax.f32 %v911, %v912
  %v914 = vrot.slane %v913, 1
  %v915 = vmax.f32 %v913, %v914
  %v916 = vrot.slane %v874, 4
  %v917 = vmax.f32 %v874, %v916
  %v918 = vrot.slane %v917, 2
  %v919 = vmax.f32 %v917, %v918
  %v920 = vrot.slane %v919, 1
  %v921 = vmax.f32 %v919, %v920
  %v922 = vrot.slane %v875, 4
  %v923 = vmax.f32 %v875, %v922
  %v924 = vrot.slane %v923, 2
  %v925 = vmax.f32 %v923, %v924
  %v926 = vrot.slane %v925, 1
  %v927 = vmax.f32 %v925, %v926
  %v928 = vrot.slane %v876, 4
  %v929 = vmax.f32 %v876, %v928
  %v930 = vrot.slane %v929, 2
  %v931 = vmax.f32 %v929, %v930
  %v932 = vrot.slane %v931, 1
  %v933 = vmax.f32 %v931, %v932
  %v934 = vrot.slane %v877, 4
  %v935 = vmax.f32 %v877, %v934
  %v936 = vrot.slane %v935, 2
  %v937 = vmax.f32 %v935, %v936
  %v938 = vrot.slane %v937, 1
  %v939 = vmax.f32 %v937, %v938
  %v940 = vrot.slane %v878, 4
  %v941 = vmax.f32 %v878, %v940
  %v942 = vrot.slane %v941, 2
  %v943 = vmax.f32 %v941, %v942
  %v944 = vrot.slane %v943, 1
  %v945 = vmax.f32 %v943, %v944
  %v946 = vrot.slane %v879, 4
  %v947 = vmax.f32 %v879, %v946
  %v948 = vrot.slane %v947, 2
  %v949 = vmax.f32 %v947, %v948
  %v950 = vrot.slane %v949, 1
  %v951 = vmax.f32 %v949, %v950
  %v952 = vrot.slane %v880, 4
  %v953 = vmax.f32 %v880, %v952
  %v954 = vrot.slane %v953, 2
  %v955 = vmax.f32 %v953, %v954
  %v956 = vrot.slane %v955, 1
  %v957 = vmax.f32 %v955, %v956
  %v958 = vrot.slane %v881, 4
  %v959 = vmax.f32 %v881, %v958
  %v960 = vrot.slane %v959, 2
  %v961 = vmax.f32 %v959, %v960
  %v962 = vrot.slane %v961, 1
  %v963 = vmax.f32 %v961, %v962
  %v964 = vrot.slane %v882, 4
  %v965 = vmax.f32 %v882, %v964
  %v966 = vrot.slane %v965, 2
  %v967 = vmax.f32 %v965, %v966
  %v968 = vrot.slane %v967, 1
  %v969 = vmax.f32 %v967, %v968
  %v970 = vrot.slane %v883, 4
  %v971 = vmax.f32 %v883, %v970
  %v972 = vrot.slane %v971, 2
  %v973 = vmax.f32 %v971, %v972
  %v974 = vrot.slane %v973, 1
  %v975 = vmax.f32 %v973, %v974
  %v976 = vrot.slane %v884, 4
  %v977 = vmax.f32 %v884, %v976
  %v978 = vrot.slane %v977, 2
  %v979 = vmax.f32 %v977, %v978
  %v980 = vrot.slane %v979, 1
  %v981 = vmax.f32 %v979, %v980
  %v982 = vrot.slane %v885, 4
  %v983 = vmax.f32 %v885, %v982
  %v984 = vrot.slane %v983, 2
  %v985 = vmax.f32 %v983, %v984
  %v986 = vrot.slane %v985, 1
  %v987 = vmax.f32 %v985, %v986
  %v988 = vrot.slane %v886, 4
  %v989 = vmax.f32 %v886, %v988
  %v990 = vrot.slane %v989, 2
  %v991 = vmax.f32 %v989, %v990
  %v992 = vrot.slane %v991, 1
  %v993 = vmax.f32 %v991, %v992
  %v994 = vrot.slane %v887, 4
  %v995 = vmax.f32 %v887, %v994
  %v996 = vrot.slane %v995, 2
  %v997 = vmax.f32 %v995, %v996
  %v998 = vrot.slane %v997, 1
  %v999 = vmax.f32 %v997, %v998
  %v1000 = vrot.slane %v888, 4
  %v1001 = vmax.f32 %v888, %v1000
  %v1002 = vrot.slane %v1001, 2
  %v1003 = vmax.f32 %v1001, %v1002
  %v1004 = vrot.slane %v1003, 1
  %v1005 = vmax.f32 %v1003, %v1004
  %v1006 = vrot.slane %v889, 4
  %v1007 = vmax.f32 %v889, %v1006
  %v1008 = vrot.slane %v1007, 2
  %v1009 = vmax.f32 %v1007, %v1008
  %v1010 = vrot.slane %v1009, 1
  %v1011 = vmax.f32 %v1009, %v1010
  %v1012 = vrot.slane %v890, 4
  %v1013 = vmax.f32 %v890, %v1012
  %v1014 = vrot.slane %v1013, 2
  %v1015 = vmax.f32 %v1013, %v1014
  %v1016 = vrot.slane %v1015, 1
  %v1017 = vmax.f32 %v1015, %v1016
  %v1018 = vrot.slane %v891, 4
  %v1019 = vmax.f32 %v891, %v1018
  %v1020 = vrot.slane %v1019, 2
  %v1021 = vmax.f32 %v1019, %v1020
  %v1022 = vrot.slane %v1021, 1
  %v1023 = vmax.f32 %v1021, %v1022
  %v1024 = vrot.slane %v892, 4
  %v1025 = vmax.f32 %v892, %v1024
  %v1026 = vrot.slane %v1025, 2
  %v1027 = vmax.f32 %v1025, %v1026
  %v1028 = vrot.slane %v1027, 1
  %v1029 = vmax.f32 %v1027, %v1028
  %v1030 = vrot.slane %v893, 4
  %v1031 = vmax.f32 %v893, %v1030
  %v1032 = vrot.slane %v1031, 2
  %v1033 = vmax.f32 %v1031, %v1032
  %v1034 = vrot.slane %v1033, 1
  %v1035 = vmax.f32 %v1033, %v1034
  %v1036 = vrot.slane %v894, 4
  %v1037 = vmax.f32 %v894, %v1036
  %v1038 = vrot.slane %v1037, 2
  %v1039 = vmax.f32 %v1037, %v1038
  %v1040 = vrot.slane %v1039, 1
  %v1041 = vmax.f32 %v1039, %v1040
  %v1042 = vrot.slane %v895, 4
  %v1043 = vmax.f32 %v895, %v1042
  %v1044 = vrot.slane %v1043, 2
  %v1045 = vmax.f32 %v1043, %v1044
  %v1046 = vrot.slane %v1045, 1
  %v1047 = vmax.f32 %v1045, %v1046
  %v1048 = vrot.slane %v896, 4
  %v1049 = vmax.f32 %v896, %v1048
  %v1050 = vrot.slane %v1049, 2
  %v1051 = vmax.f32 %v1049, %v1050
  %v1052 = vrot.slane %v1051, 1
  %v1053 = vmax.f32 %v1051, %v1052
  %v1054 = vrot.slane %v897, 4
  %v1055 = vmax.f32 %v897, %v1054
  %v1056 = vrot.slane %v1055, 2
  %v1057 = vmax.f32 %v1055, %v1056
  %v1058 = vrot.slane %v1057, 1
  %v1059 = vmax.f32 %v1057, %v1058
  %v1060 = vrot.slane %v898, 4
  %v1061 = vmax.f32 %v898, %v1060
  %v1062 = vrot.slane %v1061, 2
  %v1063 = vmax.f32 %v1061, %v1062
  %v1064 = vrot.slane %v1063, 1
  %v1065 = vmax.f32 %v1063, %v1064
  %v1066 = vrot.slane %v899, 4
  %v1067 = vmax.f32 %v899, %v1066
  %v1068 = vrot.slane %v1067, 2
  %v1069 = vmax.f32 %v1067, %v1068
  %v1070 = vrot.slane %v1069, 1
  %v1071 = vmax.f32 %v1069, %v1070
  %v1072 = vrot.slane %v900, 4
  %v1073 = vmax.f32 %v900, %v1072
  %v1074 = vrot.slane %v1073, 2
  %v1075 = vmax.f32 %v1073, %v1074
  %v1076 = vrot.slane %v1075, 1
  %v1077 = vmax.f32 %v1075, %v1076
  %v1078 = vrot.slane %v901, 4
  %v1079 = vmax.f32 %v901, %v1078
  %v1080 = vrot.slane %v1079, 2
  %v1081 = vmax.f32 %v1079, %v1080
  %v1082 = vrot.slane %v1081, 1
  %v1083 = vmax.f32 %v1081, %v1082
  %v1084 = vrot.slane %v902, 4
  %v1085 = vmax.f32 %v902, %v1084
  %v1086 = vrot.slane %v1085, 2
  %v1087 = vmax.f32 %v1085, %v1086
  %v1088 = vrot.slane %v1087, 1
  %v1089 = vmax.f32 %v1087, %v1088
  %v1090 = vrot.slane %v903, 4
  %v1091 = vmax.f32 %v903, %v1090
  %v1092 = vrot.slane %v1091, 2
  %v1093 = vmax.f32 %v1091, %v1092
  %v1094 = vrot.slane %v1093, 1
  %v1095 = vmax.f32 %v1093, %v1094
  %v1096 = vpack.c.bf16 %v909, %v909
  %v1097 = vpack.c.bf16 %v915, %v915
  %v1098 = vpack.c.bf16 %v921, %v921
  %v1099 = vpack.c.bf16 %v927, %v927
  %v1100 = vpack.c.bf16 %v933, %v933
  %v1101 = vpack.c.bf16 %v939, %v939
  %v1102 = vpack.c.bf16 %v945, %v945
  %v1103 = vpack.c.bf16 %v951, %v951
  %v1104 = vpack.c.bf16 %v957, %v957
  %v1105 = vpack.c.bf16 %v963, %v963
  %v1106 = vpack.c.bf16 %v969, %v969
  %v1107 = vpack.c.bf16 %v975, %v975
  %v1108 = vpack.c.bf16 %v981, %v981
  %v1109 = vpack.c.bf16 %v987, %v987
  %v1110 = vpack.c.bf16 %v993, %v993
  %v1111 = vpack.c.bf16 %v999, %v999
  %v1112 = vpack.c.bf16 %v1005, %v1005
  %v1113 = vpack.c.bf16 %v1011, %v1011
  %v1114 = vpack.c.bf16 %v1017, %v1017
  %v1115 = vpack.c.bf16 %v1023, %v1023
  %v1116 = vpack.c.bf16 %v1029, %v1029
  %v1117 = vpack.c.bf16 %v1035, %v1035
  %v1118 = vpack.c.bf16 %v1041, %v1041
  %v1119 = vpack.c.bf16 %v1047, %v1047
  %v1120 = vpack.c.bf16 %v1053, %v1053
  %v1121 = vpack.c.bf16 %v1059, %v1059
  %v1122 = vpack.c.bf16 %v1065, %v1065
  %v1123 = vpack.c.bf16 %v1071, %v1071
  %v1124 = vpack.c.bf16 %v1077, %v1077
  %v1125 = vpack.c.bf16 %v1083, %v1083
  %v1126 = vpack.c.bf16 %v1089, %v1089
  %v1127 = vpack.c.bf16 %v1095, %v1095
  %v1160 = vunpack.c.l.b16 %v1096
  %v1161 = vunpack.c.l.b16 %v1097
  %v1162 = vunpack.c.l.b16 %v1098
  %v1163 = vunpack.c.l.b16 %v1099
  %v1164 = vunpack.c.l.b16 %v1100
  %v1165 = vunpack.c.l.b16 %v1101
  %v1166 = vunpack.c.l.b16 %v1102
  %v1167 = vunpack.c.l.b16 %v1103
  %v1168 = vunpack.c.l.b16 %v1104
  %v1169 = vunpack.c.l.b16 %v1105
  %v1170 = vunpack.c.l.b16 %v1106
  %v1171 = vunpack.c.l.b16 %v1107
  %v1172 = vunpack.c.l.b16 %v1108
  %v1173 = vunpack.c.l.b16 %v1109
  %v1174 = vunpack.c.l.b16 %v1110
  %v1175 = vunpack.c.l.b16 %v1111
  %v1176 = vunpack.c.l.b16 %v1112
  %v1177 = vunpack.c.l.b16 %v1113
  %v1178 = vunpack.c.l.b16 %v1114
  %v1179 = vunpack.c.l.b16 %v1115
  %v1180 = vunpack.c.l.b16 %v1116
  %v1181 = vunpack.c.l.b16 %v1117
  %v1182 = vunpack.c.l.b16 %v1118
  %v1183 = vunpack.c.l.b16 %v1119
  %v1184 = vunpack.c.l.b16 %v1120
  %v1185 = vunpack.c.l.b16 %v1121
  %v1186 = vunpack.c.l.b16 %v1122
  %v1187 = vunpack.c.l.b16 %v1123
  %v1188 = vunpack.c.l.b16 %v1124
  %v1189 = vunpack.c.l.b16 %v1125
  %v1190 = vunpack.c.l.b16 %v1126
  %v1191 = vunpack.c.l.b16 %v1127
  %v1192 = vpack.c.b16 %v1161, %v1160
  %v1193 = vpack.c.b16 %v1163, %v1162
  %v1194 = vpack.c.b16 %v1165, %v1164
  %v1195 = vpack.c.b16 %v1167, %v1166
  %v1196 = vpack.c.b16 %v1169, %v1168
  %v1197 = vpack.c.b16 %v1171, %v1170
  %v1198 = vpack.c.b16 %v1173, %v1172
  %v1199 = vpack.c.b16 %v1175, %v1174
  %v1200 = vpack.c.b16 %v1177, %v1176
  %v1201 = vpack.c.b16 %v1179, %v1178
  %v1202 = vpack.c.b16 %v1181, %v1180
  %v1203 = vpack.c.b16 %v1183, %v1182
  %v1204 = vpack.c.b16 %v1185, %v1184
  %v1205 = vpack.c.b16 %v1187, %v1186
  %v1206 = vpack.c.b16 %v1189, %v1188
  %v1207 = vpack.c.b16 %v1191, %v1190
  %v1208 = vunpack.c.l.b16 %v1192
  %v1209 = vunpack.c.h.b16 %v1192
  %v1210 = vunpack.c.l.b16 %v1193
  %v1211 = vunpack.c.h.b16 %v1193
  %v1212 = vunpack.c.l.b16 %v1194
  %v1213 = vunpack.c.h.b16 %v1194
  %v1214 = vunpack.c.l.b16 %v1195
  %v1215 = vunpack.c.h.b16 %v1195
  %v1216 = vunpack.c.l.b16 %v1196
  %v1217 = vunpack.c.h.b16 %v1196
  %v1218 = vunpack.c.l.b16 %v1197
  %v1219 = vunpack.c.h.b16 %v1197
  %v1220 = vunpack.c.l.b16 %v1198
  %v1221 = vunpack.c.h.b16 %v1198
  %v1222 = vunpack.c.l.b16 %v1199
  %v1223 = vunpack.c.h.b16 %v1199
  %v1224 = vunpack.c.l.b16 %v1200
  %v1225 = vunpack.c.h.b16 %v1200
  %v1226 = vunpack.c.l.b16 %v1201
  %v1227 = vunpack.c.h.b16 %v1201
  %v1228 = vunpack.c.l.b16 %v1202
  %v1229 = vunpack.c.h.b16 %v1202
  %v1230 = vunpack.c.l.b16 %v1203
  %v1231 = vunpack.c.h.b16 %v1203
  %v1232 = vunpack.c.l.b16 %v1204
  %v1233 = vunpack.c.h.b16 %v1204
  %v1234 = vunpack.c.l.b16 %v1205
  %v1235 = vunpack.c.h.b16 %v1205
  %v1236 = vunpack.c.l.b16 %v1206
  %v1237 = vunpack.c.h.b16 %v1206
  %v1238 = vunpack.c.l.b16 %v1207
  %v1239 = vunpack.c.h.b16 %v1207
  %vm1240 = vcmask 1041409
  %v1241 = vsel %vm1240, %v1210, %v1208
  %vm1242 = vcmask 1042434
  %v1243 = vsel %vm1242, %v1212, %v1241
  %vm1244 = vcmask 1043459
  %v1245 = vsel %vm1244, %v1214, %v1243
  %vm1246 = vcmask 1044484
  %v1247 = vsel %vm1246, %v1216, %v1245
  %vm1248 = vcmask 1045509
  %v1249 = vsel %vm1248, %v1218, %v1247
  %vm1250 = vcmask 1046534
  %v1251 = vsel %vm1250, %v1220, %v1249
  %vm1252 = vcmask 1047559
  %v1253 = vsel %vm1252, %v1222, %v1251
  %v1254 = vsel %vm1240, %v1211, %v1209
  %v1255 = vsel %vm1242, %v1213, %v1254
  %v1256 = vsel %vm1244, %v1215, %v1255
  %v1257 = vsel %vm1246, %v1217, %v1256
  %v1258 = vsel %vm1248, %v1219, %v1257
  %v1259 = vsel %vm1250, %v1221, %v1258
  %v1260 = vsel %vm1252, %v1223, %v1259
  %v1261 = vsel %vm1240, %v1226, %v1224
  %v1262 = vsel %vm1242, %v1228, %v1261
  %v1263 = vsel %vm1244, %v1230, %v1262
  %v1264 = vsel %vm1246, %v1232, %v1263
  %v1265 = vsel %vm1248, %v1234, %v1264
  %v1266 = vsel %vm1250, %v1236, %v1265
  %v1267 = vsel %vm1252, %v1238, %v1266
  %v1268 = vsel %vm1240, %v1227, %v1225
  %v1269 = vsel %vm1242, %v1229, %v1268
  %v1270 = vsel %vm1244, %v1231, %v1269
  %v1271 = vsel %vm1246, %v1233, %v1270
  %v1272 = vsel %vm1248, %v1235, %v1271
  %v1273 = vsel %vm1250, %v1237, %v1272
  %v1274 = vsel %vm1252, %v1239, %v1273
  %v1275 = vpack.c.b16 %v1260, %v1253
  %v1276 = vpack.c.b16 %v1274, %v1267
  %1279 = vst [vmem:[%s9] sm:$0xff] %v1275
  %1280 = vst [vmem:[%s9 + $0x8] sm:$0xff] %v1276
  // Predicated region
  $region38: #{pointnet2_forward.10} parent=0 // pred_check
    _
  $region39: #{pointnet2_forward.10} parent=0 // pred_check_branch
    %1282 = sbr.rel (0) target = $region41
  $region40: #{pointnet2_forward.10} parent=0 // pred_region
    _
  $region41: #{pointnet2_forward.10} parent=0 // pred_fallthru
    _
  // Predicated region
  $region42: #{pointnet2_forward.10} parent=0 // pred_check
    _
  $region43: #{pointnet2_forward.10} parent=0 // pred_check_branch
    %1284 = sbr.rel (0) target = $region45
  $region44: #{pointnet2_forward.10} parent=0 // pred_region
    _
  $region45: #{pointnet2_forward.10} parent=0 // pred_fallthru
    _

// kernel: neg.23
$region0: #{neg.23}
  #allocation0 [shape = 's32[1]{0}', space=sflag, size = 0x4, scoped, tag = 'scoped memory for neg.23']
  %s0 = inlined_call_operand.vmem [shape: s32[2,4,8], index: 0, kind: input, shape index: {}]
  %s1 = inlined_call_operand.vmem [shape: s32[2,4,8], index: 1, kind: output, shape index: {}]
  %v2 = vld [vmem:[%s0] sm:$0xf]
  %3 = xla_tuple %v2
  %4 = xla_tuple %3
  %v5 = vsub.s32 0, %v2
  %6 = xla_tuple %v5
  %7 = vst [vmem:[%s1] sm:$0xf] %v5
  %s8 = scalar_lea.vmem %s0, 4
  %v9 = vld [vmem:[%s8] sm:$0xf]
  %10 = xla_tuple %v9
  %11 = xla_tuple %10
  %v12 = vsub.s32 0, %v9
  %13 = xla_tuple %v12
  %s14 = scalar_lea.vmem %s1, 4
  %15 = vst [vmem:[%s14] sm:$0xf] %v12

// kernel: pointnet2_forward.11
$region0: #{pointnet2_forward.11}
  #allocation0 [shape = 'u32[]', space=smem, size = 0x4, offset = 0x4, fixed_abs, tag = 'smem constant byte address 0x4 - core index']
  #allocation1 [shape = 'u32[144,128]{1,0:T(1,128)}', space=vmem, size = 0x12000, scoped, tag = 'internal scratch']
  %s0 = inlined_call_operand.vmem [shape: f32[64,3], index: 0, kind: input, shape index: {}]
  %s1 = inlined_call_operand.vmem [shape: bf16[64,256], index: 1, kind: input, shape index: {}]
  %s2 = inlined_call_operand.vmem [shape: bf16[3,128], index: 2, kind: input, shape index: {}]
  %s3 = inlined_call_operand.vmem [shape: bf16[256,128], index: 3, kind: input, shape index: {}]
  %s4 = inlined_call_operand.vmem [shape: f32[1,128], index: 4, kind: input, shape index: {}]
  %s5 = inlined_call_operand.vmem [shape: bf16[128,128], index: 5, kind: input, shape index: {}]
  %s6 = inlined_call_operand.vmem [shape: f32[1,128], index: 6, kind: input, shape index: {}]
  %s7 = inlined_call_operand.vmem [shape: bf16[128,256], index: 7, kind: input, shape index: {}]
  %s8 = inlined_call_operand.vmem [shape: f32[1,256], index: 8, kind: input, shape index: {}]
  %s9 = inlined_call_operand.vmem [shape: bf16[8,256], index: 9, kind: output, shape index: {}]
  %s10 = sld [smem:[#allocation0]]
  $region46: #{pointnet2_forward.11} parent=0
    _
  %s12 = ssub.s32 1, %s10
  %s13 = scalar_select 0, %s12, %s10
  // Predicated region
  $region2: #{pointnet2_forward.11} parent=0 // pred_check
    _
  $region3: #{pointnet2_forward.11} parent=0 // pred_check_branch
    %15 = sbr.rel (0) target = $region5
  $region4: #{pointnet2_forward.11} parent=0 // pred_region
    _
  $region5: #{pointnet2_forward.11} parent=0 // pred_fallthru
    _
  // Predicated region
  $region6: #{pointnet2_forward.11} parent=0 // pred_check
    _
  $region7: #{pointnet2_forward.11} parent=0 // pred_check_branch
    %17 = sbr.rel (0) target = $region9
  $region8: #{pointnet2_forward.11} parent=0 // pred_region
    _
  $region9: #{pointnet2_forward.11} parent=0 // pred_fallthru
    _
  // Predicated region
  $region10: #{pointnet2_forward.11} parent=0 // pred_check
    _
  $region11: #{pointnet2_forward.11} parent=0 // pred_check_branch
    %19 = sbr.rel (0) target = $region13
  $region12: #{pointnet2_forward.11} parent=0 // pred_region
    _
  $region13: #{pointnet2_forward.11} parent=0 // pred_fallthru
    _
  // Predicated region
  $region14: #{pointnet2_forward.11} parent=0 // pred_check
    _
  $region15: #{pointnet2_forward.11} parent=0 // pred_check_branch
    %21 = sbr.rel (0) target = $region17
  $region16: #{pointnet2_forward.11} parent=0 // pred_region
    _
  $region17: #{pointnet2_forward.11} parent=0 // pred_fallthru
    _
  // Predicated region
  $region18: #{pointnet2_forward.11} parent=0 // pred_check
    _
  $region19: #{pointnet2_forward.11} parent=0 // pred_check_branch
    %23 = sbr.rel (0) target = $region21
  $region20: #{pointnet2_forward.11} parent=0 // pred_region
    _
  $region21: #{pointnet2_forward.11} parent=0 // pred_fallthru
    _
  // Predicated region
  $region22: #{pointnet2_forward.11} parent=0 // pred_check
    _
  $region23: #{pointnet2_forward.11} parent=0 // pred_check_branch
    %25 = sbr.rel (0) target = $region25
  $region24: #{pointnet2_forward.11} parent=0 // pred_region
    _
  $region25: #{pointnet2_forward.11} parent=0 // pred_fallthru
    _
  // Predicated region
  $region26: #{pointnet2_forward.11} parent=0 // pred_check
    _
  $region27: #{pointnet2_forward.11} parent=0 // pred_check_branch
    %27 = sbr.rel (0) target = $region29
  $region28: #{pointnet2_forward.11} parent=0 // pred_region
    _
  $region29: #{pointnet2_forward.11} parent=0 // pred_fallthru
    _
  // Predicated region
  $region30: #{pointnet2_forward.11} parent=0 // pred_check
    _
  $region31: #{pointnet2_forward.11} parent=0 // pred_check_branch
    %29 = sbr.rel (0) target = $region33
  $region32: #{pointnet2_forward.11} parent=0 // pred_region
    _
  $region33: #{pointnet2_forward.11} parent=0 // pred_fallthru
    _
  // Predicated region
  $region34: #{pointnet2_forward.11} parent=0 // pred_check
    _
  $region35: #{pointnet2_forward.11} parent=0 // pred_check_branch
    %31 = sbr.rel (0) target = $region37
  $region36: #{pointnet2_forward.11} parent=0 // pred_region
    _
  $region37: #{pointnet2_forward.11} parent=0 // pred_fallthru
    _
  %v33 = vld [vmem:[%s0] sm:$0xff]
  %v34 = vld [vmem:[%s0 + $0x8] sm:$0xff]
  %v35 = vld [vmem:[%s0 + $0x10] sm:$0xff]
  %v36 = vld [vmem:[%s0 + $0x18] sm:$0xff]
  %v37 = vld [vmem:[%s0 + $0x20] sm:$0xff]
  %v38 = vld [vmem:[%s0 + $0x28] sm:$0xff]
  %v39 = vld [vmem:[%s0 + $0x30] sm:$0xff]
  %v40 = vld [vmem:[%s0 + $0x38] sm:$0xff]
  %v41 = vld [vmem:[%s1] sm:$0xff]
  %v42 = vld [vmem:[%s1 + $0x8] sm:$0xff]
  %v43 = vld [vmem:[%s1 + $0x10] sm:$0xff]
  %v44 = vld [vmem:[%s1 + $0x18] sm:$0xff]
  %v45 = vld [vmem:[%s1 + $0x20] sm:$0xff]
  %v46 = vld [vmem:[%s1 + $0x28] sm:$0xff]
  %v47 = vld [vmem:[%s1 + $0x30] sm:$0xff]
  %v48 = vld [vmem:[%s1 + $0x38] sm:$0xff]
  %v49 = vld [vmem:[%s2] sm:$0x3]
  %v50 = vld [vmem:[%s3] sm:$0xf]
  %v51 = vld [vmem:[%s3 + $0x4] sm:$0xf]
  %v52 = vld [vmem:[%s3 + $0x8] sm:$0xf]
  %v53 = vld [vmem:[%s3 + $0xc] sm:$0xf]
  %v54 = vld [vmem:[%s3 + $0x10] sm:$0xf]
  %v55 = vld [vmem:[%s3 + $0x14] sm:$0xf]
  %v56 = vld [vmem:[%s3 + $0x18] sm:$0xf]
  %v57 = vld [vmem:[%s3 + $0x1c] sm:$0xf]
  %v58 = vld [vmem:[%s3 + $0x20] sm:$0xf]
  %v59 = vld [vmem:[%s3 + $0x24] sm:$0xf]
  %v60 = vld [vmem:[%s3 + $0x28] sm:$0xf]
  %v61 = vld [vmem:[%s3 + $0x2c] sm:$0xf]
  %v62 = vld [vmem:[%s3 + $0x30] sm:$0xf]
  %v63 = vld [vmem:[%s3 + $0x34] sm:$0xf]
  %v64 = vld [vmem:[%s3 + $0x38] sm:$0xf]
  %v65 = vld [vmem:[%s3 + $0x3c] sm:$0xf]
  %v66 = vld [vmem:[%s3 + $0x40] sm:$0xf]
  %v67 = vld [vmem:[%s3 + $0x44] sm:$0xf]
  %v68 = vld [vmem:[%s3 + $0x48] sm:$0xf]
  %v69 = vld [vmem:[%s3 + $0x4c] sm:$0xf]
  %v70 = vld [vmem:[%s3 + $0x50] sm:$0xf]
  %v71 = vld [vmem:[%s3 + $0x54] sm:$0xf]
  %v72 = vld [vmem:[%s3 + $0x58] sm:$0xf]
  %v73 = vld [vmem:[%s3 + $0x5c] sm:$0xf]
  %v74 = vld [vmem:[%s3 + $0x60] sm:$0xf]
  %v75 = vld [vmem:[%s3 + $0x64] sm:$0xf]
  %v76 = vld [vmem:[%s3 + $0x68] sm:$0xf]
  %v77 = vld [vmem:[%s3 + $0x6c] sm:$0xf]
  %v78 = vld [vmem:[%s3 + $0x70] sm:$0xf]
  %v79 = vld [vmem:[%s3 + $0x74] sm:$0xf]
  %v80 = vld [vmem:[%s3 + $0x78] sm:$0xf]
  %v81 = vld [vmem:[%s3 + $0x7c] sm:$0xf]
  %v82 = vld [vmem:[%s4] sm:$0x1]
  %v83 = vpack.c.bf16 %v34, %v33
  %v84 = vpack.c.bf16 %v36, %v35
  %v85 = vpack.c.bf16 %v38, %v37
  %v86 = vpack.c.bf16 %v40, %v39
  %v95 = vunpack.c.l.b16 %v41
  %v96 = vunpack.c.h.b16 %v41
  %v97 = vunpack.c.l.b16 %v42
  %v98 = vunpack.c.h.b16 %v42
  %v99 = vunpack.c.l.b16 %v43
  %v100 = vunpack.c.h.b16 %v43
  %v101 = vunpack.c.l.b16 %v44
  %v102 = vunpack.c.h.b16 %v44
  %v103 = vunpack.c.l.b16 %v45
  %v104 = vunpack.c.h.b16 %v45
  %v105 = vunpack.c.l.b16 %v46
  %v106 = vunpack.c.h.b16 %v46
  %v107 = vunpack.c.l.b16 %v47
  %v108 = vunpack.c.h.b16 %v47
  %v109 = vunpack.c.l.b16 %v48
  %v110 = vunpack.c.h.b16 %v48
  %v111 = vpack.c.b16 %v97, %v95
  %v112 = vpack.c.b16 %v98, %v96
  %v113 = vpack.c.b16 %v101, %v99
  %v114 = vpack.c.b16 %v102, %v100
  %v115 = vpack.c.b16 %v105, %v103
  %v116 = vpack.c.b16 %v106, %v104
  %v117 = vpack.c.b16 %v109, %v107
  %v118 = vpack.c.b16 %v110, %v108
  %v159 = vunpack.c.l.b16 %v50
  %v160 = vunpack.c.l.b16 %v51
  %v161 = vunpack.c.l.b16 %v52
  %v162 = vunpack.c.l.b16 %v53
  %v163 = vunpack.c.l.b16 %v54
  %v164 = vunpack.c.l.b16 %v55
  %v165 = vunpack.c.l.b16 %v56
  %v166 = vunpack.c.l.b16 %v57
  %v167 = vunpack.c.l.b16 %v58
  %v168 = vunpack.c.l.b16 %v59
  %v169 = vunpack.c.l.b16 %v60
  %v170 = vunpack.c.l.b16 %v61
  %v171 = vunpack.c.l.b16 %v62
  %v172 = vunpack.c.l.b16 %v63
  %v173 = vunpack.c.l.b16 %v64
  %v174 = vunpack.c.l.b16 %v65
  %v175 = vunpack.c.l.b16 %v66
  %v176 = vunpack.c.l.b16 %v67
  %v177 = vunpack.c.l.b16 %v68
  %v178 = vunpack.c.l.b16 %v69
  %v179 = vunpack.c.l.b16 %v70
  %v180 = vunpack.c.l.b16 %v71
  %v181 = vunpack.c.l.b16 %v72
  %v182 = vunpack.c.l.b16 %v73
  %v183 = vunpack.c.l.b16 %v74
  %v184 = vunpack.c.l.b16 %v75
  %v185 = vunpack.c.l.b16 %v76
  %v186 = vunpack.c.l.b16 %v77
  %v187 = vunpack.c.l.b16 %v78
  %v188 = vunpack.c.l.b16 %v79
  %v189 = vunpack.c.l.b16 %v80
  %v190 = vunpack.c.l.b16 %v81
  %v191 = vpack.c.b16 %v160, %v159
  %v192 = vpack.c.b16 %v162, %v161
  %v193 = vpack.c.b16 %v164, %v163
  %v194 = vpack.c.b16 %v166, %v165
  %v195 = vpack.c.b16 %v168, %v167
  %v196 = vpack.c.b16 %v170, %v169
  %v197 = vpack.c.b16 %v172, %v171
  %v198 = vpack.c.b16 %v174, %v173
  %v199 = vpack.c.b16 %v176, %v175
  %v200 = vpack.c.b16 %v178, %v177
  %v201 = vpack.c.b16 %v180, %v179
  %v202 = vpack.c.b16 %v182, %v181
  %v203 = vpack.c.b16 %v184, %v183
  %v204 = vpack.c.b16 %v186, %v185
  %v205 = vpack.c.b16 %v188, %v187
  %v206 = vpack.c.b16 %v190, %v189
  %223 = vmatprep.subr.bf16.mxu0 0
  %224 = vmatpush1.bf16.msra.mxu0 %v191
  %225 = vmatprep.subr.bf16.mxu0 0
  %226 = vmatpush1.bf16.msra.mxu0 %v192
  %227 = vmatprep.subr.bf16.mxu0 0
  %228 = vmatpush1.bf16.msra.mxu0 %v193
  %229 = vmatprep.subr.bf16.mxu0 0
  %230 = vmatpush1.bf16.msra.mxu0 %v194
  %231 = vmatprep.subr.bf16.mxu0 0
  %232 = vmatpush1.bf16.msra.mxu0 %v195
  %233 = vmatprep.subr.bf16.mxu0 0
  %234 = vmatpush1.bf16.msra.mxu0 %v196
  %235 = vmatprep.subr.bf16.mxu0 0
  %236 = vmatpush1.bf16.msra.mxu0 %v197
  %237 = vmatprep.subr.bf16.mxu0 0
  %238 = vmatpush1.bf16.msra.mxu0 %v198
  %239 = vmatprep.subr.bf16.mxu0 0
  %240 = vmatpush1.bf16.msra.mxu0 %v199
  %241 = vmatprep.subr.bf16.mxu0 0
  %242 = vmatpush1.bf16.msra.mxu0 %v200
  %243 = vmatprep.subr.bf16.mxu0 0
  %244 = vmatpush1.bf16.msra.mxu0 %v201
  %245 = vmatprep.subr.bf16.mxu0 0
  %246 = vmatpush1.bf16.msra.mxu0 %v202
  %247 = vmatprep.subr.bf16.mxu0 0
  %248 = vmatpush1.bf16.msra.mxu0 %v203
  %249 = vmatprep.subr.bf16.mxu0 0
  %250 = vmatpush1.bf16.msra.mxu0 %v204
  %251 = vmatprep.subr.bf16.mxu0 0
  %252 = vmatpush1.bf16.msra.mxu0 %v205
  %253 = vmatprep.subr.bf16.mxu0 0
  %254 = vmatpush1.bf16.msra.mxu0 %v206
  %255 = vmatprep.mubr.bf16.mxu0 %v112
  %256 = vmatmul.mubr.bf16.gmra.mrb[0].mxu0 %v111
  %v257 = vpop.f32.mrb[0].mxu0
  %v258 = vadd.f32 0.0, %v257
  %v259 = vpop.f32.mrb[0].mxu0
  %v260 = vpop.f32.mrb[0].mxu0
  %v261 = vadd.f32 0.0, %v260
  %v262 = vpop.f32.mrb[0].mxu0
  %263 = vmatprep.mubr.bf16.mxu0 %v114
  %264 = vmatmul.mubr.bf16.gmra.mrb[0].mxu0 %v113
  %v265 = vpop.f32.mrb[0].mxu0
  %v266 = vadd.f32 0.0, %v265
  %v267 = vpop.f32.mrb[0].mxu0
  %v268 = vpop.f32.mrb[0].mxu0
  %v269 = vadd.f32 0.0, %v268
  %v270 = vpop.f32.mrb[0].mxu0
  %271 = vmatprep.mubr.bf16.mxu0 %v116
  %272 = vmatmul.mubr.bf16.gmra.mrb[0].mxu0 %v115
  %v273 = vpop.f32.mrb[0].mxu0
  %v274 = vadd.f32 0.0, %v273
  %v275 = vpop.f32.mrb[0].mxu0
  %v276 = vpop.f32.mrb[0].mxu0
  %v277 = vadd.f32 0.0, %v276
  %v278 = vpop.f32.mrb[0].mxu0
  %279 = vmatprep.mubr.bf16.mxu0 %v118
  %280 = vmatmul.mubr.bf16.gmra.mrb[0].mxu0 %v117
  %v281 = vpop.f32.mrb[0].mxu0
  %v282 = vadd.f32 0.0, %v281
  %v283 = vpop.f32.mrb[0].mxu0
  %v284 = vpop.f32.mrb[0].mxu0
  %v285 = vadd.f32 0.0, %v284
  %v286 = vpop.f32.mrb[0].mxu0
  %287 = vdwg.mxu0
  %vm288 = vcmask 23552
  %v290 = vsel %vm288, %v83, 0
  %v293 = vsel %vm288, %v84, 0
  %v296 = vsel %vm288, %v85, 0
  %v299 = vsel %vm288, %v86, 0
  %vm301 = vcmask 1040384
  %vm302 = vcmask 1041408
  %v303 = vsel %vm301, 4294967295, 65535
  %v304 = vsel %vm302, %v303, 0
  %v306 = vand.u32 %v49, %v304
  %308 = vmatprep.subr.bf16.mxu0 0
  %309 = vmatpush1.bf16.msra.mxu0 %v306
  %310 = vmatprep.subr.bf16.mxu0 0
  %311 = vmatpush1.bf16.msra.mxu0 0
  %312 = vmatprep.subr.bf16.mxu0 0
  %313 = vmatpush1.bf16.msra.mxu0 0
  %314 = vmatprep.subr.bf16.mxu0 0
  %315 = vmatpush1.bf16.msra.mxu0 0
  %316 = vmatprep.subr.bf16.mxu0 0
  %317 = vmatpush1.bf16.msra.mxu0 0
  %318 = vmatprep.subr.bf16.mxu0 0
  %319 = vmatpush1.bf16.msra.mxu0 0
  %320 = vmatprep.subr.bf16.mxu0 0
  %321 = vmatpush1.bf16.msra.mxu0 0
  %322 = vmatprep.subr.bf16.mxu0 0
  %323 = vmatpush1.bf16.msra.mxu0 0
  %324 = vmatprep.subr.bf16.mxu0 0
  %325 = vmatpush1.bf16.msra.mxu0 0
  %326 = vmatprep.subr.bf16.mxu0 0
  %327 = vmatpush1.bf16.msra.mxu0 0
  %328 = vmatprep.subr.bf16.mxu0 0
  %329 = vmatpush1.bf16.msra.mxu0 0
  %330 = vmatprep.subr.bf16.mxu0 0
  %331 = vmatpush1.bf16.msra.mxu0 0
  %332 = vmatprep.subr.bf16.mxu0 0
  %333 = vmatpush1.bf16.msra.mxu0 0
  %334 = vmatprep.subr.bf16.mxu0 0
  %335 = vmatpush1.bf16.msra.mxu0 0
  %336 = vmatprep.subr.bf16.mxu0 0
  %337 = vmatpush1.bf16.msra.mxu0 0
  %338 = vmatprep.subr.bf16.mxu0 0
  %339 = vmatpush1.bf16.msra.mxu0 0
  %340 = vmatprep.mubr.bf16.mxu0 0
  %341 = vmatmul.mubr.bf16.gmra.mrb[0].mxu0 %v290
  %v342 = vpop.f32.mrb[0].mxu0
  %v343 = vadd.f32 %v258, %v342
  %v344 = vpop.f32.mrb[0].mxu0
  %v345 = vpop.f32.mrb[0].mxu0
  %v346 = vadd.f32 %v261, %v345
  %v347 = vpop.f32.mrb[0].mxu0
  %348 = vmatprep.mubr.bf16.mxu0 0
  %349 = vmatmul.mubr.bf16.gmra.mrb[0].mxu0 %v293
  %v350 = vpop.f32.mrb[0].mxu0
  %v351 = vadd.f32 %v266, %v350
  %v352 = vpop.f32.mrb[0].mxu0
  %v353 = vpop.f32.mrb[0].mxu0
  %v354 = vadd.f32 %v269, %v353
  %v355 = vpop.f32.mrb[0].mxu0
  %356 = vmatprep.mubr.bf16.mxu0 0
  %357 = vmatmul.mubr.bf16.gmra.mrb[0].mxu0 %v296
  %v358 = vpop.f32.mrb[0].mxu0
  %v359 = vadd.f32 %v274, %v358
  %v360 = vpop.f32.mrb[0].mxu0
  %v361 = vpop.f32.mrb[0].mxu0
  %v362 = vadd.f32 %v277, %v361
  %v363 = vpop.f32.mrb[0].mxu0
  %364 = vmatprep.mubr.bf16.mxu0 0
  %365 = vmatmul.mubr.bf16.gmra.mrb[0].mxu0 %v299
  %v366 = vpop.f32.mrb[0].mxu0
  %v367 = vadd.f32 %v282, %v366
  %v368 = vpop.f32.mrb[0].mxu0
  %v369 = vpop.f32.mrb[0].mxu0
  %v370 = vadd.f32 %v285, %v369
  %v371 = vpop.f32.mrb[0].mxu0
  %372 = vdwg.mxu0
  %v374 = vlaneseq
  %v375 = vshrl.u32 %v374, 7
  %v376 = vsub.s32 0, %v375
  %v377 = vrot.slane %v82, %v376
  %v379 = vadd.f32 %v343, %v377
  %v380 = vadd.f32 %v346, %v377
  %v381 = vadd.f32 %v351, %v377
  %v382 = vadd.f32 %v354, %v377
  %v383 = vadd.f32 %v359, %v377
  %v384 = vadd.f32 %v362, %v377
  %v385 = vadd.f32 %v367, %v377
  %v386 = vadd.f32 %v370, %v377
  %v387 = vmax.f32 %v379, 0.0
  %v388 = vmax.f32 %v380, 0.0
  %v389 = vmax.f32 %v381, 0.0
  %v390 = vmax.f32 %v382, 0.0
  %v391 = vmax.f32 %v383, 0.0
  %v392 = vmax.f32 %v384, 0.0
  %v393 = vmax.f32 %v385, 0.0
  %v394 = vmax.f32 %v386, 0.0
  %v395 = vld [vmem:[%s5] sm:$0xf]
  %v396 = vld [vmem:[%s5 + $0x4] sm:$0xf]
  %v397 = vld [vmem:[%s5 + $0x8] sm:$0xf]
  %v398 = vld [vmem:[%s5 + $0xc] sm:$0xf]
  %v399 = vld [vmem:[%s5 + $0x10] sm:$0xf]
  %v400 = vld [vmem:[%s5 + $0x14] sm:$0xf]
  %v401 = vld [vmem:[%s5 + $0x18] sm:$0xf]
  %v402 = vld [vmem:[%s5 + $0x1c] sm:$0xf]
  %v403 = vld [vmem:[%s5 + $0x20] sm:$0xf]
  %v404 = vld [vmem:[%s5 + $0x24] sm:$0xf]
  %v405 = vld [vmem:[%s5 + $0x28] sm:$0xf]
  %v406 = vld [vmem:[%s5 + $0x2c] sm:$0xf]
  %v407 = vld [vmem:[%s5 + $0x30] sm:$0xf]
  %v408 = vld [vmem:[%s5 + $0x34] sm:$0xf]
  %v409 = vld [vmem:[%s5 + $0x38] sm:$0xf]
  %v410 = vld [vmem:[%s5 + $0x3c] sm:$0xf]
  %v411 = vld [vmem:[%s6] sm:$0x1]
  %v412 = vpack.c.bf16 %v388, %v387
  %v413 = vpack.c.bf16 %v390, %v389
  %v414 = vpack.c.bf16 %v392, %v391
  %v415 = vpack.c.bf16 %v394, %v393
  %v417 = vlaneseq
  %v418 = vshrl.u32 %v417, 7
  %v419 = vsub.s32 0, %v418
  %v420 = vrot.slane %v411, %v419
  %v438 = vunpack.c.l.b16 %v395
  %v439 = vunpack.c.l.b16 %v396
  %v440 = vunpack.c.l.b16 %v397
  %v441 = vunpack.c.l.b16 %v398
  %v442 = vunpack.c.l.b16 %v399
  %v443 = vunpack.c.l.b16 %v400
  %v444 = vunpack.c.l.b16 %v401
  %v445 = vunpack.c.l.b16 %v402
  %v446 = vunpack.c.l.b16 %v403
  %v447 = vunpack.c.l.b16 %v404
  %v448 = vunpack.c.l.b16 %v405
  %v449 = vunpack.c.l.b16 %v406
  %v450 = vunpack.c.l.b16 %v407
  %v451 = vunpack.c.l.b16 %v408
  %v452 = vunpack.c.l.b16 %v409
  %v453 = vunpack.c.l.b16 %v410
  %v454 = vpack.c.b16 %v439, %v438
  %v455 = vpack.c.b16 %v441, %v440
  %v456 = vpack.c.b16 %v443, %v442
  %v457 = vpack.c.b16 %v445, %v444
  %v458 = vpack.c.b16 %v447, %v446
  %v459 = vpack.c.b16 %v449, %v448
  %v460 = vpack.c.b16 %v451, %v450
  %v461 = vpack.c.b16 %v453, %v452
  %470 = vmatprep.subr.bf16.mxu0 0
  %471 = vmatpush1.bf16.msra.mxu0 %v454
  %472 = vmatprep.subr.bf16.mxu0 0
  %473 = vmatpush1.bf16.msra.mxu0 %v455
  %474 = vmatprep.subr.bf16.mxu0 0
  %475 = vmatpush1.bf16.msra.mxu0 %v456
  %476 = vmatprep.subr.bf16.mxu0 0
  %477 = vmatpush1.bf16.msra.mxu0 %v457
  %478 = vmatprep.subr.bf16.mxu0 0
  %479 = vmatpush1.bf16.msra.mxu0 %v458
  %480 = vmatprep.subr.bf16.mxu0 0
  %481 = vmatpush1.bf16.msra.mxu0 %v459
  %482 = vmatprep.subr.bf16.mxu0 0
  %483 = vmatpush1.bf16.msra.mxu0 %v460
  %484 = vmatprep.subr.bf16.mxu0 0
  %485 = vmatpush1.bf16.msra.mxu0 %v461
  %486 = vmatprep.subr.bf16.mxu0 0
  %487 = vmatpush1.bf16.msra.mxu0 0
  %488 = vmatprep.subr.bf16.mxu0 0
  %489 = vmatpush1.bf16.msra.mxu0 0
  %490 = vmatprep.subr.bf16.mxu0 0
  %491 = vmatpush1.bf16.msra.mxu0 0
  %492 = vmatprep.subr.bf16.mxu0 0
  %493 = vmatpush1.bf16.msra.mxu0 0
  %494 = vmatprep.subr.bf16.mxu0 0
  %495 = vmatpush1.bf16.msra.mxu0 0
  %496 = vmatprep.subr.bf16.mxu0 0
  %497 = vmatpush1.bf16.msra.mxu0 0
  %498 = vmatprep.subr.bf16.mxu0 0
  %499 = vmatpush1.bf16.msra.mxu0 0
  %500 = vmatprep.subr.bf16.mxu0 0
  %501 = vmatpush1.bf16.msra.mxu0 0
  %502 = vmatprep.mubr.bf16.mxu0 0
  %503 = vmatmul.mubr.bf16.gmra.mrb[0].mxu0 %v412
  %v504 = vpop.f32.mrb[0].mxu0
  %v505 = vadd.f32 %v420, %v504
  %v506 = vpop.f32.mrb[0].mxu0
  %v507 = vpop.f32.mrb[0].mxu0
  %v508 = vadd.f32 %v420, %v507
  %v509 = vpop.f32.mrb[0].mxu0
  %510 = vmatprep.mubr.bf16.mxu0 0
  %511 = vmatmul.mubr.bf16.gmra.mrb[0].mxu0 %v413
  %v512 = vpop.f32.mrb[0].mxu0
  %v513 = vadd.f32 %v420, %v512
  %v514 = vpop.f32.mrb[0].mxu0
  %v515 = vpop.f32.mrb[0].mxu0
  %v516 = vadd.f32 %v420, %v515
  %v517 = vpop.f32.mrb[0].mxu0
  %518 = vmatprep.mubr.bf16.mxu0 0
  %519 = vmatmul.mubr.bf16.gmra.mrb[0].mxu0 %v414
  %v520 = vpop.f32.mrb[0].mxu0
  %v521 = vadd.f32 %v420, %v520
  %v522 = vpop.f32.mrb[0].mxu0
  %v523 = vpop.f32.mrb[0].mxu0
  %v524 = vadd.f32 %v420, %v523
  %v525 = vpop.f32.mrb[0].mxu0
  %526 = vmatprep.mubr.bf16.mxu0 0
  %527 = vmatmul.mubr.bf16.gmra.mrb[0].mxu0 %v415
  %v528 = vpop.f32.mrb[0].mxu0
  %v529 = vadd.f32 %v420, %v528
  %v530 = vpop.f32.mrb[0].mxu0
  %v531 = vpop.f32.mrb[0].mxu0
  %v532 = vadd.f32 %v420, %v531
  %v533 = vpop.f32.mrb[0].mxu0
  %534 = vdwg.mxu0
  %v535 = vmax.f32 %v505, 0.0
  %v536 = vmax.f32 %v508, 0.0
  %v537 = vmax.f32 %v513, 0.0
  %v538 = vmax.f32 %v516, 0.0
  %v539 = vmax.f32 %v521, 0.0
  %v540 = vmax.f32 %v524, 0.0
  %v541 = vmax.f32 %v529, 0.0
  %v542 = vmax.f32 %v532, 0.0
  %v543 = vld [vmem:[%s7] sm:$0xff]
  %v544 = vld [vmem:[%s7 + $0x8] sm:$0xff]
  %v545 = vld [vmem:[%s7 + $0x10] sm:$0xff]
  %v546 = vld [vmem:[%s7 + $0x18] sm:$0xff]
  %v547 = vld [vmem:[%s7 + $0x20] sm:$0xff]
  %v548 = vld [vmem:[%s7 + $0x28] sm:$0xff]
  %v549 = vld [vmem:[%s7 + $0x30] sm:$0xff]
  %v550 = vld [vmem:[%s7 + $0x38] sm:$0xff]
  %v551 = vld [vmem:[%s7 + $0x40] sm:$0xff]
  %v552 = vld [vmem:[%s7 + $0x48] sm:$0xff]
  %v553 = vld [vmem:[%s7 + $0x50] sm:$0xff]
  %v554 = vld [vmem:[%s7 + $0x58] sm:$0xff]
  %v555 = vld [vmem:[%s7 + $0x60] sm:$0xff]
  %v556 = vld [vmem:[%s7 + $0x68] sm:$0xff]
  %v557 = vld [vmem:[%s7 + $0x70] sm:$0xff]
  %v558 = vld [vmem:[%s7 + $0x78] sm:$0xff]
  %v559 = vld [vmem:[%s8] sm:$0x3]
  %v560 = vpack.c.bf16 %v536, %v535
  %v561 = vpack.c.bf16 %v538, %v537
  %v562 = vpack.c.bf16 %v540, %v539
  %v563 = vpack.c.bf16 %v542, %v541
  %v565 = vlaneseq
  %v566 = vshrl.u32 %v565, 7
  %v567 = vsub.s32 0, %v566
  %v568 = vrot.slane %v559, %v567
  %v569 = vlaneseq
  %v570 = vshrl.u32 %v569, 7
  %v571 = vsub.s32 1, %v570
  %v572 = vrot.slane %v559, %v571
  %v591 = vunpack.c.l.b16 %v543
  %v592 = vunpack.c.h.b16 %v543
  %v593 = vunpack.c.l.b16 %v544
  %v594 = vunpack.c.h.b16 %v544
  %v595 = vunpack.c.l.b16 %v545
  %v596 = vunpack.c.h.b16 %v545
  %v597 = vunpack.c.l.b16 %v546
  %v598 = vunpack.c.h.b16 %v546
  %v599 = vunpack.c.l.b16 %v547
  %v600 = vunpack.c.h.b16 %v547
  %v601 = vunpack.c.l.b16 %v548
  %v602 = vunpack.c.h.b16 %v548
  %v603 = vunpack.c.l.b16 %v549
  %v604 = vunpack.c.h.b16 %v549
  %v605 = vunpack.c.l.b16 %v550
  %v606 = vunpack.c.h.b16 %v550
  %v607 = vunpack.c.l.b16 %v551
  %v608 = vunpack.c.h.b16 %v551
  %v609 = vunpack.c.l.b16 %v552
  %v610 = vunpack.c.h.b16 %v552
  %v611 = vunpack.c.l.b16 %v553
  %v612 = vunpack.c.h.b16 %v553
  %v613 = vunpack.c.l.b16 %v554
  %v614 = vunpack.c.h.b16 %v554
  %v615 = vunpack.c.l.b16 %v555
  %v616 = vunpack.c.h.b16 %v555
  %v617 = vunpack.c.l.b16 %v556
  %v618 = vunpack.c.h.b16 %v556
  %v619 = vunpack.c.l.b16 %v557
  %v620 = vunpack.c.h.b16 %v557
  %v621 = vunpack.c.l.b16 %v558
  %v622 = vunpack.c.h.b16 %v558
  %v623 = vpack.c.b16 %v593, %v591
  %v624 = vpack.c.b16 %v594, %v592
  %v625 = vpack.c.b16 %v597, %v595
  %v626 = vpack.c.b16 %v598, %v596
  %v627 = vpack.c.b16 %v601, %v599
  %v628 = vpack.c.b16 %v602, %v600
  %v629 = vpack.c.b16 %v605, %v603
  %v630 = vpack.c.b16 %v606, %v604
  %v631 = vpack.c.b16 %v609, %v607
  %v632 = vpack.c.b16 %v610, %v608
  %v633 = vpack.c.b16 %v613, %v611
  %v634 = vpack.c.b16 %v614, %v612
  %v635 = vpack.c.b16 %v617, %v615
  %v636 = vpack.c.b16 %v618, %v616
  %v637 = vpack.c.b16 %v621, %v619
  %v638 = vpack.c.b16 %v622, %v620
  %655 = vmatprep.subr.bf16.mxu0 %v624
  %656 = vmatpush1.bf16.msra.mxu0 %v623
  %657 = vmatprep.subr.bf16.mxu0 %v626
  %658 = vmatpush1.bf16.msra.mxu0 %v625
  %659 = vmatprep.subr.bf16.mxu0 %v628
  %660 = vmatpush1.bf16.msra.mxu0 %v627
  %661 = vmatprep.subr.bf16.mxu0 %v630
  %662 = vmatpush1.bf16.msra.mxu0 %v629
  %663 = vmatprep.subr.bf16.mxu0 %v632
  %664 = vmatpush1.bf16.msra.mxu0 %v631
  %665 = vmatprep.subr.bf16.mxu0 %v634
  %666 = vmatpush1.bf16.msra.mxu0 %v633
  %667 = vmatprep.subr.bf16.mxu0 %v636
  %668 = vmatpush1.bf16.msra.mxu0 %v635
  %669 = vmatprep.subr.bf16.mxu0 %v638
  %670 = vmatpush1.bf16.msra.mxu0 %v637
  %671 = vmatprep.subr.bf16.mxu0 0
  %672 = vmatpush1.bf16.msra.mxu0 0
  %673 = vmatprep.subr.bf16.mxu0 0
  %674 = vmatpush1.bf16.msra.mxu0 0
  %675 = vmatprep.subr.bf16.mxu0 0
  %676 = vmatpush1.bf16.msra.mxu0 0
  %677 = vmatprep.subr.bf16.mxu0 0
  %678 = vmatpush1.bf16.msra.mxu0 0
  %679 = vmatprep.subr.bf16.mxu0 0
  %680 = vmatpush1.bf16.msra.mxu0 0
  %681 = vmatprep.subr.bf16.mxu0 0
  %682 = vmatpush1.bf16.msra.mxu0 0
  %683 = vmatprep.subr.bf16.mxu0 0
  %684 = vmatpush1.bf16.msra.mxu0 0
  %685 = vmatprep.subr.bf16.mxu0 0
  %686 = vmatpush1.bf16.msra.mxu0 0
  %687 = vmatprep.mubr.bf16.mxu0 0
  %688 = vmatmul.mubr.bf16.gmra.mrb[0].mxu0 %v560
  %v689 = vpop.f32.mrb[0].mxu0
  %v690 = vadd.f32 %v568, %v689
  %v691 = vpop.f32.mrb[0].mxu0
  %v692 = vadd.f32 %v572, %v691
  %v693 = vpop.f32.mrb[0].mxu0
  %v694 = vadd.f32 %v568, %v693
  %v695 = vpop.f32.mrb[0].mxu0
  %v696 = vadd.f32 %v572, %v695
  %697 = vmatprep.mubr.bf16.mxu0 0
  %698 = vmatmul.mubr.bf16.gmra.mrb[0].mxu0 %v561
  %v699 = vpop.f32.mrb[0].mxu0
  %v700 = vadd.f32 %v568, %v699
  %v701 = vpop.f32.mrb[0].mxu0
  %v702 = vadd.f32 %v572, %v701
  %v703 = vpop.f32.mrb[0].mxu0
  %v704 = vadd.f32 %v568, %v703
  %v705 = vpop.f32.mrb[0].mxu0
  %v706 = vadd.f32 %v572, %v705
  %707 = vmatprep.mubr.bf16.mxu0 0
  %708 = vmatmul.mubr.bf16.gmra.mrb[0].mxu0 %v562
  %v709 = vpop.f32.mrb[0].mxu0
  %v710 = vadd.f32 %v568, %v709
  %v711 = vpop.f32.mrb[0].mxu0
  %v712 = vadd.f32 %v572, %v711
  %v713 = vpop.f32.mrb[0].mxu0
  %v714 = vadd.f32 %v568, %v713
  %v715 = vpop.f32.mrb[0].mxu0
  %v716 = vadd.f32 %v572, %v715
  %717 = vmatprep.mubr.bf16.mxu0 0
  %718 = vmatmul.mubr.bf16.gmra.mrb[0].mxu0 %v563
  %v719 = vpop.f32.mrb[0].mxu0
  %v720 = vadd.f32 %v568, %v719
  %v721 = vpop.f32.mrb[0].mxu0
  %v722 = vadd.f32 %v572, %v721
  %v723 = vpop.f32.mrb[0].mxu0
  %v724 = vadd.f32 %v568, %v723
  %v725 = vpop.f32.mrb[0].mxu0
  %v726 = vadd.f32 %v572, %v725
  %727 = vdwg.mxu0
  %v728 = vmax.f32 %v690, 0.0
  %v729 = vmax.f32 %v692, 0.0
  %v730 = vmax.f32 %v694, 0.0
  %v731 = vmax.f32 %v696, 0.0
  %v732 = vmax.f32 %v700, 0.0
  %v733 = vmax.f32 %v702, 0.0
  %v734 = vmax.f32 %v704, 0.0
  %v735 = vmax.f32 %v706, 0.0
  %v736 = vmax.f32 %v710, 0.0
  %v737 = vmax.f32 %v712, 0.0
  %v738 = vmax.f32 %v714, 0.0
  %v739 = vmax.f32 %v716, 0.0
  %v740 = vmax.f32 %v720, 0.0
  %v741 = vmax.f32 %v722, 0.0
  %v742 = vmax.f32 %v724, 0.0
  %v743 = vmax.f32 %v726, 0.0
  %v744 = vrot.slane %v728, 4
  %v745 = vmax.f32 %v728, %v744
  %v746 = vrot.slane %v745, 2
  %v747 = vmax.f32 %v745, %v746
  %v748 = vrot.slane %v747, 1
  %v749 = vmax.f32 %v747, %v748
  %v750 = vrot.slane %v729, 4
  %v751 = vmax.f32 %v729, %v750
  %v752 = vrot.slane %v751, 2
  %v753 = vmax.f32 %v751, %v752
  %v754 = vrot.slane %v753, 1
  %v755 = vmax.f32 %v753, %v754
  %v756 = vrot.slane %v730, 4
  %v757 = vmax.f32 %v730, %v756
  %v758 = vrot.slane %v757, 2
  %v759 = vmax.f32 %v757, %v758
  %v760 = vrot.slane %v759, 1
  %v761 = vmax.f32 %v759, %v760
  %v762 = vrot.slane %v731, 4
  %v763 = vmax.f32 %v731, %v762
  %v764 = vrot.slane %v763, 2
  %v765 = vmax.f32 %v763, %v764
  %v766 = vrot.slane %v765, 1
  %v767 = vmax.f32 %v765, %v766
  %v768 = vrot.slane %v732, 4
  %v769 = vmax.f32 %v732, %v768
  %v770 = vrot.slane %v769, 2
  %v771 = vmax.f32 %v769, %v770
  %v772 = vrot.slane %v771, 1
  %v773 = vmax.f32 %v771, %v772
  %v774 = vrot.slane %v733, 4
  %v775 = vmax.f32 %v733, %v774
  %v776 = vrot.slane %v775, 2
  %v777 = vmax.f32 %v775, %v776
  %v778 = vrot.slane %v777, 1
  %v779 = vmax.f32 %v777, %v778
  %v780 = vrot.slane %v734, 4
  %v781 = vmax.f32 %v734, %v780
  %v782 = vrot.slane %v781, 2
  %v783 = vmax.f32 %v781, %v782
  %v784 = vrot.slane %v783, 1
  %v785 = vmax.f32 %v783, %v784
  %v786 = vrot.slane %v735, 4
  %v787 = vmax.f32 %v735, %v786
  %v788 = vrot.slane %v787, 2
  %v789 = vmax.f32 %v787, %v788
  %v790 = vrot.slane %v789, 1
  %v791 = vmax.f32 %v789, %v790
  %v792 = vrot.slane %v736, 4
  %v793 = vmax.f32 %v736, %v792
  %v794 = vrot.slane %v793, 2
  %v795 = vmax.f32 %v793, %v794
  %v796 = vrot.slane %v795, 1
  %v797 = vmax.f32 %v795, %v796
  %v798 = vrot.slane %v737, 4
  %v799 = vmax.f32 %v737, %v798
  %v800 = vrot.slane %v799, 2
  %v801 = vmax.f32 %v799, %v800
  %v802 = vrot.slane %v801, 1
  %v803 = vmax.f32 %v801, %v802
  %v804 = vrot.slane %v738, 4
  %v805 = vmax.f32 %v738, %v804
  %v806 = vrot.slane %v805, 2
  %v807 = vmax.f32 %v805, %v806
  %v808 = vrot.slane %v807, 1
  %v809 = vmax.f32 %v807, %v808
  %v810 = vrot.slane %v739, 4
  %v811 = vmax.f32 %v739, %v810
  %v812 = vrot.slane %v811, 2
  %v813 = vmax.f32 %v811, %v812
  %v814 = vrot.slane %v813, 1
  %v815 = vmax.f32 %v813, %v814
  %v816 = vrot.slane %v740, 4
  %v817 = vmax.f32 %v740, %v816
  %v818 = vrot.slane %v817, 2
  %v819 = vmax.f32 %v817, %v818
  %v820 = vrot.slane %v819, 1
  %v821 = vmax.f32 %v819, %v820
  %v822 = vrot.slane %v741, 4
  %v823 = vmax.f32 %v741, %v822
  %v824 = vrot.slane %v823, 2
  %v825 = vmax.f32 %v823, %v824
  %v826 = vrot.slane %v825, 1
  %v827 = vmax.f32 %v825, %v826
  %v828 = vrot.slane %v742, 4
  %v829 = vmax.f32 %v742, %v828
  %v830 = vrot.slane %v829, 2
  %v831 = vmax.f32 %v829, %v830
  %v832 = vrot.slane %v831, 1
  %v833 = vmax.f32 %v831, %v832
  %v834 = vrot.slane %v743, 4
  %v835 = vmax.f32 %v743, %v834
  %v836 = vrot.slane %v835, 2
  %v837 = vmax.f32 %v835, %v836
  %v838 = vrot.slane %v837, 1
  %v839 = vmax.f32 %v837, %v838
  %v840 = vpack.c.bf16 %v749, %v749
  %v841 = vpack.c.bf16 %v755, %v755
  %v842 = vpack.c.bf16 %v761, %v761
  %v843 = vpack.c.bf16 %v767, %v767
  %v844 = vpack.c.bf16 %v773, %v773
  %v845 = vpack.c.bf16 %v779, %v779
  %v846 = vpack.c.bf16 %v785, %v785
  %v847 = vpack.c.bf16 %v791, %v791
  %v848 = vpack.c.bf16 %v797, %v797
  %v849 = vpack.c.bf16 %v803, %v803
  %v850 = vpack.c.bf16 %v809, %v809
  %v851 = vpack.c.bf16 %v815, %v815
  %v852 = vpack.c.bf16 %v821, %v821
  %v853 = vpack.c.bf16 %v827, %v827
  %v854 = vpack.c.bf16 %v833, %v833
  %v855 = vpack.c.bf16 %v839, %v839
  %v872 = vunpack.c.l.b16 %v840
  %v873 = vunpack.c.l.b16 %v841
  %v874 = vunpack.c.l.b16 %v842
  %v875 = vunpack.c.l.b16 %v843
  %v876 = vunpack.c.l.b16 %v844
  %v877 = vunpack.c.l.b16 %v845
  %v878 = vunpack.c.l.b16 %v846
  %v879 = vunpack.c.l.b16 %v847
  %v880 = vunpack.c.l.b16 %v848
  %v881 = vunpack.c.l.b16 %v849
  %v882 = vunpack.c.l.b16 %v850
  %v883 = vunpack.c.l.b16 %v851
  %v884 = vunpack.c.l.b16 %v852
  %v885 = vunpack.c.l.b16 %v853
  %v886 = vunpack.c.l.b16 %v854
  %v887 = vunpack.c.l.b16 %v855
  %v888 = vpack.c.b16 %v873, %v872
  %v889 = vpack.c.b16 %v875, %v874
  %v890 = vpack.c.b16 %v877, %v876
  %v891 = vpack.c.b16 %v879, %v878
  %v892 = vpack.c.b16 %v881, %v880
  %v893 = vpack.c.b16 %v883, %v882
  %v894 = vpack.c.b16 %v885, %v884
  %v895 = vpack.c.b16 %v887, %v886
  %v896 = vunpack.c.l.b16 %v888
  %v897 = vunpack.c.h.b16 %v888
  %v898 = vunpack.c.l.b16 %v889
  %v899 = vunpack.c.h.b16 %v889
  %v900 = vunpack.c.l.b16 %v890
  %v901 = vunpack.c.h.b16 %v890
  %v902 = vunpack.c.l.b16 %v891
  %v903 = vunpack.c.h.b16 %v891
  %v904 = vunpack.c.l.b16 %v892
  %v905 = vunpack.c.h.b16 %v892
  %v906 = vunpack.c.l.b16 %v893
  %v907 = vunpack.c.h.b16 %v893
  %v908 = vunpack.c.l.b16 %v894
  %v909 = vunpack.c.h.b16 %v894
  %v910 = vunpack.c.l.b16 %v895
  %v911 = vunpack.c.h.b16 %v895
  %vm912 = vcmask 1041409
  %v913 = vsel %vm912, %v898, %v896
  %vm914 = vcmask 1042434
  %v915 = vsel %vm914, %v900, %v913
  %vm916 = vcmask 1043459
  %v917 = vsel %vm916, %v902, %v915
  %vm918 = vcmask 1044484
  %v919 = vsel %vm918, %v904, %v917
  %vm920 = vcmask 1045509
  %v921 = vsel %vm920, %v906, %v919
  %vm922 = vcmask 1046534
  %v923 = vsel %vm922, %v908, %v921
  %vm924 = vcmask 1047559
  %v925 = vsel %vm924, %v910, %v923
  %v926 = vsel %vm912, %v899, %v897
  %v927 = vsel %vm914, %v901, %v926
  %v928 = vsel %vm916, %v903, %v927
  %v929 = vsel %vm918, %v905, %v928
  %v930 = vsel %vm920, %v907, %v929
  %v931 = vsel %vm922, %v909, %v930
  %v932 = vsel %vm924, %v911, %v931
  %v933 = vpack.c.b16 %v932, %v925
  %935 = vst [vmem:[%s9] sm:$0xff] %v933
  // Predicated region
  $region38: #{pointnet2_forward.11} parent=0 // pred_check
    _
  $region39: #{pointnet2_forward.11} parent=0 // pred_check_branch
    %937 = sbr.rel (0) target = $region41
  $region40: #{pointnet2_forward.11} parent=0 // pred_region
    _
  $region41: #{pointnet2_forward.11} parent=0 // pred_fallthru
    _
  // Predicated region
  $region42: #{pointnet2_forward.11} parent=0 // pred_check
    _
  $region43: #{pointnet2_forward.11} parent=0 // pred_check_branch
    %939 = sbr.rel (0) target = $region45
  $region44: #{pointnet2_forward.11} parent=0 // pred_region
    _
  $region45: #{pointnet2_forward.11} parent=0 // pred_fallthru
    _

// kernel: pointnet2_forward.12
$region0: #{pointnet2_forward.12}
  #allocation0 [shape = 'u32[]', space=smem, size = 0x4, offset = 0x4, fixed_abs, tag = 'smem constant byte address 0x4 - core index']
  #allocation1 [shape = 'u32[144,128]{1,0:T(1,128)}', space=vmem, size = 0x12000, scoped, tag = 'internal scratch']
  %s0 = inlined_call_operand.vmem [shape: bf16[16,256], index: 0, kind: input, shape index: {}]
  %s1 = inlined_call_operand.vmem [shape: bf16[16,256], index: 1, kind: input, shape index: {}]
  %s2 = inlined_call_operand.vmem [shape: bf16[256,256], index: 2, kind: input, shape index: {}]
  %s3 = inlined_call_operand.vmem [shape: bf16[256,256], index: 3, kind: input, shape index: {}]
  %s4 = inlined_call_operand.vmem [shape: f32[1,256], index: 4, kind: input, shape index: {}]
  %s5 = inlined_call_operand.vmem [shape: bf16[256,256], index: 5, kind: input, shape index: {}]
  %s6 = inlined_call_operand.vmem [shape: f32[1,256], index: 6, kind: input, shape index: {}]
  %s7 = inlined_call_operand.vmem [shape: bf16[16,256], index: 7, kind: output, shape index: {}]
  %s8 = sld [smem:[#allocation0]]
  $region38: #{pointnet2_forward.12} parent=0
    _
  %s10 = ssub.s32 1, %s8
  %s11 = scalar_select 0, %s10, %s8
  // Predicated region
  $region2: #{pointnet2_forward.12} parent=0 // pred_check
    _
  $region3: #{pointnet2_forward.12} parent=0 // pred_check_branch
    %13 = sbr.rel (0) target = $region5
  $region4: #{pointnet2_forward.12} parent=0 // pred_region
    _
  $region5: #{pointnet2_forward.12} parent=0 // pred_fallthru
    _
  // Predicated region
  $region6: #{pointnet2_forward.12} parent=0 // pred_check
    _
  $region7: #{pointnet2_forward.12} parent=0 // pred_check_branch
    %15 = sbr.rel (0) target = $region9
  $region8: #{pointnet2_forward.12} parent=0 // pred_region
    _
  $region9: #{pointnet2_forward.12} parent=0 // pred_fallthru
    _
  // Predicated region
  $region10: #{pointnet2_forward.12} parent=0 // pred_check
    _
  $region11: #{pointnet2_forward.12} parent=0 // pred_check_branch
    %17 = sbr.rel (0) target = $region13
  $region12: #{pointnet2_forward.12} parent=0 // pred_region
    _
  $region13: #{pointnet2_forward.12} parent=0 // pred_fallthru
    _
  // Predicated region
  $region14: #{pointnet2_forward.12} parent=0 // pred_check
    _
  $region15: #{pointnet2_forward.12} parent=0 // pred_check_branch
    %19 = sbr.rel (0) target = $region17
  $region16: #{pointnet2_forward.12} parent=0 // pred_region
    _
  $region17: #{pointnet2_forward.12} parent=0 // pred_fallthru
    _
  // Predicated region
  $region18: #{pointnet2_forward.12} parent=0 // pred_check
    _
  $region19: #{pointnet2_forward.12} parent=0 // pred_check_branch
    %21 = sbr.rel (0) target = $region21
  $region20: #{pointnet2_forward.12} parent=0 // pred_region
    _
  $region21: #{pointnet2_forward.12} parent=0 // pred_fallthru
    _
  // Predicated region
  $region22: #{pointnet2_forward.12} parent=0 // pred_check
    _
  $region23: #{pointnet2_forward.12} parent=0 // pred_check_branch
    %23 = sbr.rel (0) target = $region25
  $region24: #{pointnet2_forward.12} parent=0 // pred_region
    _
  $region25: #{pointnet2_forward.12} parent=0 // pred_fallthru
    _
  // Predicated region
  $region26: #{pointnet2_forward.12} parent=0 // pred_check
    _
  $region27: #{pointnet2_forward.12} parent=0 // pred_check_branch
    %25 = sbr.rel (0) target = $region29
  $region28: #{pointnet2_forward.12} parent=0 // pred_region
    _
  $region29: #{pointnet2_forward.12} parent=0 // pred_fallthru
    _
  %v26 = vld [vmem:[%s0] sm:$0xff]
  %v27 = vld [vmem:[%s0 + $0x8] sm:$0xff]
  %v28 = vld [vmem:[%s1] sm:$0xff]
  %v29 = vld [vmem:[%s1 + $0x8] sm:$0xff]
  %v30 = vld [vmem:[%s2] sm:$0xff]
  %v31 = vld [vmem:[%s2 + $0x8] sm:$0xff]
  %v32 = vld [vmem:[%s2 + $0x10] sm:$0xff]
  %v33 = vld [vmem:[%s2 + $0x18] sm:$0xff]
  %v34 = vld [vmem:[%s2 + $0x20] sm:$0xff]
  %v35 = vld [vmem:[%s2 + $0x28] sm:$0xff]
  %v36 = vld [vmem:[%s2 + $0x30] sm:$0xff]
  %v37 = vld [vmem:[%s2 + $0x38] sm:$0xff]
  %v38 = vld [vmem:[%s2 + $0x40] sm:$0xff]
  %v39 = vld [vmem:[%s2 + $0x48] sm:$0xff]
  %v40 = vld [vmem:[%s2 + $0x50] sm:$0xff]
  %v41 = vld [vmem:[%s2 + $0x58] sm:$0xff]
  %v42 = vld [vmem:[%s2 + $0x60] sm:$0xff]
  %v43 = vld [vmem:[%s2 + $0x68] sm:$0xff]
  %v44 = vld [vmem:[%s2 + $0x70] sm:$0xff]
  %v45 = vld [vmem:[%s2 + $0x78] sm:$0xff]
  %v46 = vld [vmem:[%s2 + $0x80] sm:$0xff]
  %v47 = vld [vmem:[%s2 + $0x88] sm:$0xff]
  %v48 = vld [vmem:[%s2 + $0x90] sm:$0xff]
  %v49 = vld [vmem:[%s2 + $0x98] sm:$0xff]
  %v50 = vld [vmem:[%s2 + $0xa0] sm:$0xff]
  %v51 = vld [vmem:[%s2 + $0xa8] sm:$0xff]
  %v52 = vld [vmem:[%s2 + $0xb0] sm:$0xff]
  %v53 = vld [vmem:[%s2 + $0xb8] sm:$0xff]
  %v54 = vld [vmem:[%s2 + $0xc0] sm:$0xff]
  %v55 = vld [vmem:[%s2 + $0xc8] sm:$0xff]
  %v56 = vld [vmem:[%s2 + $0xd0] sm:$0xff]
  %v57 = vld [vmem:[%s2 + $0xd8] sm:$0xff]
  %v58 = vld [vmem:[%s2 + $0xe0] sm:$0xff]
  %v59 = vld [vmem:[%s2 + $0xe8] sm:$0xff]
  %v60 = vld [vmem:[%s2 + $0xf0] sm:$0xff]
  %v61 = vld [vmem:[%s2 + $0xf8] sm:$0xff]
  %v62 = vld [vmem:[%s3] sm:$0xff]
  %v63 = vld [vmem:[%s3 + $0x8] sm:$0xff]
  %v64 = vld [vmem:[%s3 + $0x10] sm:$0xff]
  %v65 = vld [vmem:[%s3 + $0x18] sm:$0xff]
  %v66 = vld [vmem:[%s3 + $0x20] sm:$0xff]
  %v67 = vld [vmem:[%s3 + $0x28] sm:$0xff]
  %v68 = vld [vmem:[%s3 + $0x30] sm:$0xff]
  %v69 = vld [vmem:[%s3 + $0x38] sm:$0xff]
  %v70 = vld [vmem:[%s3 + $0x40] sm:$0xff]
  %v71 = vld [vmem:[%s3 + $0x48] sm:$0xff]
  %v72 = vld [vmem:[%s3 + $0x50] sm:$0xff]
  %v73 = vld [vmem:[%s3 + $0x58] sm:$0xff]
  %v74 = vld [vmem:[%s3 + $0x60] sm:$0xff]
  %v75 = vld [vmem:[%s3 + $0x68] sm:$0xff]
  %v76 = vld [vmem:[%s3 + $0x70] sm:$0xff]
  %v77 = vld [vmem:[%s3 + $0x78] sm:$0xff]
  %v78 = vld [vmem:[%s3 + $0x80] sm:$0xff]
  %v79 = vld [vmem:[%s3 + $0x88] sm:$0xff]
  %v80 = vld [vmem:[%s3 + $0x90] sm:$0xff]
  %v81 = vld [vmem:[%s3 + $0x98] sm:$0xff]
  %v82 = vld [vmem:[%s3 + $0xa0] sm:$0xff]
  %v83 = vld [vmem:[%s3 + $0xa8] sm:$0xff]
  %v84 = vld [vmem:[%s3 + $0xb0] sm:$0xff]
  %v85 = vld [vmem:[%s3 + $0xb8] sm:$0xff]
  %v86 = vld [vmem:[%s3 + $0xc0] sm:$0xff]
  %v87 = vld [vmem:[%s3 + $0xc8] sm:$0xff]
  %v88 = vld [vmem:[%s3 + $0xd0] sm:$0xff]
  %v89 = vld [vmem:[%s3 + $0xd8] sm:$0xff]
  %v90 = vld [vmem:[%s3 + $0xe0] sm:$0xff]
  %v91 = vld [vmem:[%s3 + $0xe8] sm:$0xff]
  %v92 = vld [vmem:[%s3 + $0xf0] sm:$0xff]
  %v93 = vld [vmem:[%s3 + $0xf8] sm:$0xff]
  %v94 = vld [vmem:[%s4] sm:$0x3]
  %v97 = vunpack.c.l.b16 %v28
  %v98 = vunpack.c.h.b16 %v28
  %v99 = vunpack.c.l.b16 %v29
  %v100 = vunpack.c.h.b16 %v29
  %v101 = vpack.c.b16 %v99, %v97
  %v102 = vpack.c.b16 %v100, %v98
  %v137 = vunpack.c.l.b16 %v62
  %v138 = vunpack.c.h.b16 %v62
  %v139 = vunpack.c.l.b16 %v63
  %v140 = vunpack.c.h.b16 %v63
  %v141 = vunpack.c.l.b16 %v64
  %v142 = vunpack.c.h.b16 %v64
  %v143 = vunpack.c.l.b16 %v65
  %v144 = vunpack.c.h.b16 %v65
  %v145 = vunpack.c.l.b16 %v66
  %v146 = vunpack.c.h.b16 %v66
  %v147 = vunpack.c.l.b16 %v67
  %v148 = vunpack.c.h.b16 %v67
  %v149 = vunpack.c.l.b16 %v68
  %v150 = vunpack.c.h.b16 %v68
  %v151 = vunpack.c.l.b16 %v69
  %v152 = vunpack.c.h.b16 %v69
  %v153 = vunpack.c.l.b16 %v70
  %v154 = vunpack.c.h.b16 %v70
  %v155 = vunpack.c.l.b16 %v71
  %v156 = vunpack.c.h.b16 %v71
  %v157 = vunpack.c.l.b16 %v72
  %v158 = vunpack.c.h.b16 %v72
  %v159 = vunpack.c.l.b16 %v73
  %v160 = vunpack.c.h.b16 %v73
  %v161 = vunpack.c.l.b16 %v74
  %v162 = vunpack.c.h.b16 %v74
  %v163 = vunpack.c.l.b16 %v75
  %v164 = vunpack.c.h.b16 %v75
  %v165 = vunpack.c.l.b16 %v76
  %v166 = vunpack.c.h.b16 %v76
  %v167 = vunpack.c.l.b16 %v77
  %v168 = vunpack.c.h.b16 %v77
  %v169 = vunpack.c.l.b16 %v78
  %v170 = vunpack.c.h.b16 %v78
  %v171 = vunpack.c.l.b16 %v79
  %v172 = vunpack.c.h.b16 %v79
  %v173 = vunpack.c.l.b16 %v80
  %v174 = vunpack.c.h.b16 %v80
  %v175 = vunpack.c.l.b16 %v81
  %v176 = vunpack.c.h.b16 %v81
  %v177 = vunpack.c.l.b16 %v82
  %v178 = vunpack.c.h.b16 %v82
  %v179 = vunpack.c.l.b16 %v83
  %v180 = vunpack.c.h.b16 %v83
  %v181 = vunpack.c.l.b16 %v84
  %v182 = vunpack.c.h.b16 %v84
  %v183 = vunpack.c.l.b16 %v85
  %v184 = vunpack.c.h.b16 %v85
  %v185 = vunpack.c.l.b16 %v86
  %v186 = vunpack.c.h.b16 %v86
  %v187 = vunpack.c.l.b16 %v87
  %v188 = vunpack.c.h.b16 %v87
  %v189 = vunpack.c.l.b16 %v88
  %v190 = vunpack.c.h.b16 %v88
  %v191 = vunpack.c.l.b16 %v89
  %v192 = vunpack.c.h.b16 %v89
  %v193 = vunpack.c.l.b16 %v90
  %v194 = vunpack.c.h.b16 %v90
  %v195 = vunpack.c.l.b16 %v91
  %v196 = vunpack.c.h.b16 %v91
  %v197 = vunpack.c.l.b16 %v92
  %v198 = vunpack.c.h.b16 %v92
  %v199 = vunpack.c.l.b16 %v93
  %v200 = vunpack.c.h.b16 %v93
  %v201 = vpack.c.b16 %v139, %v137
  %v202 = vpack.c.b16 %v140, %v138
  %v203 = vpack.c.b16 %v143, %v141
  %v204 = vpack.c.b16 %v144, %v142
  %v205 = vpack.c.b16 %v147, %v145
  %v206 = vpack.c.b16 %v148, %v146
  %v207 = vpack.c.b16 %v151, %v149
  %v208 = vpack.c.b16 %v152, %v150
  %v209 = vpack.c.b16 %v155, %v153
  %v210 = vpack.c.b16 %v156, %v154
  %v211 = vpack.c.b16 %v159, %v157
  %v212 = vpack.c.b16 %v160, %v158
  %v213 = vpack.c.b16 %v163, %v161
  %v214 = vpack.c.b16 %v164, %v162
  %v215 = vpack.c.b16 %v167, %v165
  %v216 = vpack.c.b16 %v168, %v166
  %v217 = vpack.c.b16 %v171, %v169
  %v218 = vpack.c.b16 %v172, %v170
  %v219 = vpack.c.b16 %v175, %v173
  %v220 = vpack.c.b16 %v176, %v174
  %v221 = vpack.c.b16 %v179, %v177
  %v222 = vpack.c.b16 %v180, %v178
  %v223 = vpack.c.b16 %v183, %v181
  %v224 = vpack.c.b16 %v184, %v182
  %v225 = vpack.c.b16 %v187, %v185
  %v226 = vpack.c.b16 %v188, %v186
  %v227 = vpack.c.b16 %v191, %v189
  %v228 = vpack.c.b16 %v192, %v190
  %v229 = vpack.c.b16 %v195, %v193
  %v230 = vpack.c.b16 %v196, %v194
  %v231 = vpack.c.b16 %v199, %v197
  %v232 = vpack.c.b16 %v200, %v198
  %265 = vmatprep.subr.bf16.mxu0 %v202
  %266 = vmatpush1.bf16.msra.mxu0 %v201
  %267 = vmatprep.subr.bf16.mxu0 %v204
  %268 = vmatpush1.bf16.msra.mxu0 %v203
  %269 = vmatprep.subr.bf16.mxu0 %v206
  %270 = vmatpush1.bf16.msra.mxu0 %v205
  %271 = vmatprep.subr.bf16.mxu0 %v208
  %272 = vmatpush1.bf16.msra.mxu0 %v207
  %273 = vmatprep.subr.bf16.mxu0 %v210
  %274 = vmatpush1.bf16.msra.mxu0 %v209
  %275 = vmatprep.subr.bf16.mxu0 %v212
  %276 = vmatpush1.bf16.msra.mxu0 %v211
  %277 = vmatprep.subr.bf16.mxu0 %v214
  %278 = vmatpush1.bf16.msra.mxu0 %v213
  %279 = vmatprep.subr.bf16.mxu0 %v216
  %280 = vmatpush1.bf16.msra.mxu0 %v215
  %281 = vmatprep.subr.bf16.mxu0 %v218
  %282 = vmatpush1.bf16.msra.mxu0 %v217
  %283 = vmatprep.subr.bf16.mxu0 %v220
  %284 = vmatpush1.bf16.msra.mxu0 %v219
  %285 = vmatprep.subr.bf16.mxu0 %v222
  %286 = vmatpush1.bf16.msra.mxu0 %v221
  %287 = vmatprep.subr.bf16.mxu0 %v224
  %288 = vmatpush1.bf16.msra.mxu0 %v223
  %289 = vmatprep.subr.bf16.mxu0 %v226
  %290 = vmatpush1.bf16.msra.mxu0 %v225
  %291 = vmatprep.subr.bf16.mxu0 %v228
  %292 = vmatpush1.bf16.msra.mxu0 %v227
  %293 = vmatprep.subr.bf16.mxu0 %v230
  %294 = vmatpush1.bf16.msra.mxu0 %v229
  %295 = vmatprep.subr.bf16.mxu0 %v232
  %296 = vmatpush1.bf16.msra.mxu0 %v231
  %297 = vmatprep.mubr.bf16.mxu0 %v102
  %298 = vmatmul.mubr.bf16.gmra.mrb[0].mxu0 %v101
  %v299 = vpop.f32.mrb[0].mxu0
  %v300 = vadd.f32 0.0, %v299
  %v301 = vpop.f32.mrb[0].mxu0
  %v302 = vadd.f32 0.0, %v301
  %v303 = vpop.f32.mrb[0].mxu0
  %v304 = vadd.f32 0.0, %v303
  %v305 = vpop.f32.mrb[0].mxu0
  %v306 = vadd.f32 0.0, %v305
  %307 = vdwg.mxu0
  %v310 = vunpack.c.l.b16 %v26
  %v311 = vunpack.c.h.b16 %v26
  %v312 = vunpack.c.l.b16 %v27
  %v313 = vunpack.c.h.b16 %v27
  %v314 = vpack.c.b16 %v312, %v310
  %v315 = vpack.c.b16 %v313, %v311
  %v350 = vunpack.c.l.b16 %v30
  %v351 = vunpack.c.h.b16 %v30
  %v352 = vunpack.c.l.b16 %v31
  %v353 = vunpack.c.h.b16 %v31
  %v354 = vunpack.c.l.b16 %v32
  %v355 = vunpack.c.h.b16 %v32
  %v356 = vunpack.c.l.b16 %v33
  %v357 = vunpack.c.h.b16 %v33
  %v358 = vunpack.c.l.b16 %v34
  %v359 = vunpack.c.h.b16 %v34
  %v360 = vunpack.c.l.b16 %v35
  %v361 = vunpack.c.h.b16 %v35
  %v362 = vunpack.c.l.b16 %v36
  %v363 = vunpack.c.h.b16 %v36
  %v364 = vunpack.c.l.b16 %v37
  %v365 = vunpack.c.h.b16 %v37
  %v366 = vunpack.c.l.b16 %v38
  %v367 = vunpack.c.h.b16 %v38
  %v368 = vunpack.c.l.b16 %v39
  %v369 = vunpack.c.h.b16 %v39
  %v370 = vunpack.c.l.b16 %v40
  %v371 = vunpack.c.h.b16 %v40
  %v372 = vunpack.c.l.b16 %v41
  %v373 = vunpack.c.h.b16 %v41
  %v374 = vunpack.c.l.b16 %v42
  %v375 = vunpack.c.h.b16 %v42
  %v376 = vunpack.c.l.b16 %v43
  %v377 = vunpack.c.h.b16 %v43
  %v378 = vunpack.c.l.b16 %v44
  %v379 = vunpack.c.h.b16 %v44
  %v380 = vunpack.c.l.b16 %v45
  %v381 = vunpack.c.h.b16 %v45
  %v382 = vunpack.c.l.b16 %v46
  %v383 = vunpack.c.h.b16 %v46
  %v384 = vunpack.c.l.b16 %v47
  %v385 = vunpack.c.h.b16 %v47
  %v386 = vunpack.c.l.b16 %v48
  %v387 = vunpack.c.h.b16 %v48
  %v388 = vunpack.c.l.b16 %v49
  %v389 = vunpack.c.h.b16 %v49
  %v390 = vunpack.c.l.b16 %v50
  %v391 = vunpack.c.h.b16 %v50
  %v392 = vunpack.c.l.b16 %v51
  %v393 = vunpack.c.h.b16 %v51
  %v394 = vunpack.c.l.b16 %v52
  %v395 = vunpack.c.h.b16 %v52
  %v396 = vunpack.c.l.b16 %v53
  %v397 = vunpack.c.h.b16 %v53
  %v398 = vunpack.c.l.b16 %v54
  %v399 = vunpack.c.h.b16 %v54
  %v400 = vunpack.c.l.b16 %v55
  %v401 = vunpack.c.h.b16 %v55
  %v402 = vunpack.c.l.b16 %v56
  %v403 = vunpack.c.h.b16 %v56
  %v404 = vunpack.c.l.b16 %v57
  %v405 = vunpack.c.h.b16 %v57
  %v406 = vunpack.c.l.b16 %v58
  %v407 = vunpack.c.h.b16 %v58
  %v408 = vunpack.c.l.b16 %v59
  %v409 = vunpack.c.h.b16 %v59
  %v410 = vunpack.c.l.b16 %v60
  %v411 = vunpack.c.h.b16 %v60
  %v412 = vunpack.c.l.b16 %v61
  %v413 = vunpack.c.h.b16 %v61
  %v414 = vpack.c.b16 %v352, %v350
  %v415 = vpack.c.b16 %v353, %v351
  %v416 = vpack.c.b16 %v356, %v354
  %v417 = vpack.c.b16 %v357, %v355
  %v418 = vpack.c.b16 %v360, %v358
  %v419 = vpack.c.b16 %v361, %v359
  %v420 = vpack.c.b16 %v364, %v362
  %v421 = vpack.c.b16 %v365, %v363
  %v422 = vpack.c.b16 %v368, %v366
  %v423 = vpack.c.b16 %v369, %v367
  %v424 = vpack.c.b16 %v372, %v370
  %v425 = vpack.c.b16 %v373, %v371
  %v426 = vpack.c.b16 %v376, %v374
  %v427 = vpack.c.b16 %v377, %v375
  %v428 = vpack.c.b16 %v380, %v378
  %v429 = vpack.c.b16 %v381, %v379
  %v430 = vpack.c.b16 %v384, %v382
  %v431 = vpack.c.b16 %v385, %v383
  %v432 = vpack.c.b16 %v388, %v386
  %v433 = vpack.c.b16 %v389, %v387
  %v434 = vpack.c.b16 %v392, %v390
  %v435 = vpack.c.b16 %v393, %v391
  %v436 = vpack.c.b16 %v396, %v394
  %v437 = vpack.c.b16 %v397, %v395
  %v438 = vpack.c.b16 %v400, %v398
  %v439 = vpack.c.b16 %v401, %v399
  %v440 = vpack.c.b16 %v404, %v402
  %v441 = vpack.c.b16 %v405, %v403
  %v442 = vpack.c.b16 %v408, %v406
  %v443 = vpack.c.b16 %v409, %v407
  %v444 = vpack.c.b16 %v412, %v410
  %v445 = vpack.c.b16 %v413, %v411
  %478 = vmatprep.subr.bf16.mxu0 %v415
  %479 = vmatpush1.bf16.msra.mxu0 %v414
  %480 = vmatprep.subr.bf16.mxu0 %v417
  %481 = vmatpush1.bf16.msra.mxu0 %v416
  %482 = vmatprep.subr.bf16.mxu0 %v419
  %483 = vmatpush1.bf16.msra.mxu0 %v418
  %484 = vmatprep.subr.bf16.mxu0 %v421
  %485 = vmatpush1.bf16.msra.mxu0 %v420
  %486 = vmatprep.subr.bf16.mxu0 %v423
  %487 = vmatpush1.bf16.msra.mxu0 %v422
  %488 = vmatprep.subr.bf16.mxu0 %v425
  %489 = vmatpush1.bf16.msra.mxu0 %v424
  %490 = vmatprep.subr.bf16.mxu0 %v427
  %491 = vmatpush1.bf16.msra.mxu0 %v426
  %492 = vmatprep.subr.bf16.mxu0 %v429
  %493 = vmatpush1.bf16.msra.mxu0 %v428
  %494 = vmatprep.subr.bf16.mxu0 %v431
  %495 = vmatpush1.bf16.msra.mxu0 %v430
  %496 = vmatprep.subr.bf16.mxu0 %v433
  %497 = vmatpush1.bf16.msra.mxu0 %v432
  %498 = vmatprep.subr.bf16.mxu0 %v435
  %499 = vmatpush1.bf16.msra.mxu0 %v434
  %500 = vmatprep.subr.bf16.mxu0 %v437
  %501 = vmatpush1.bf16.msra.mxu0 %v436
  %502 = vmatprep.subr.bf16.mxu0 %v439
  %503 = vmatpush1.bf16.msra.mxu0 %v438
  %504 = vmatprep.subr.bf16.mxu0 %v441
  %505 = vmatpush1.bf16.msra.mxu0 %v440
  %506 = vmatprep.subr.bf16.mxu0 %v443
  %507 = vmatpush1.bf16.msra.mxu0 %v442
  %508 = vmatprep.subr.bf16.mxu0 %v445
  %509 = vmatpush1.bf16.msra.mxu0 %v444
  %510 = vmatprep.mubr.bf16.mxu0 %v315
  %511 = vmatmul.mubr.bf16.gmra.mrb[0].mxu0 %v314
  %v512 = vpop.f32.mrb[0].mxu0
  %v513 = vadd.f32 %v300, %v512
  %v514 = vpop.f32.mrb[0].mxu0
  %v515 = vadd.f32 %v302, %v514
  %v516 = vpop.f32.mrb[0].mxu0
  %v517 = vadd.f32 %v304, %v516
  %v518 = vpop.f32.mrb[0].mxu0
  %v519 = vadd.f32 %v306, %v518
  %520 = vdwg.mxu0
  %v522 = vlaneseq
  %v523 = vshrl.u32 %v522, 7
  %v524 = vsub.s32 0, %v523
  %v525 = vrot.slane %v94, %v524
  %v526 = vlaneseq
  %v527 = vshrl.u32 %v526, 7
  %v528 = vsub.s32 1, %v527
  %v529 = vrot.slane %v94, %v528
  %v532 = vadd.f32 %v513, %v525
  %v533 = vadd.f32 %v515, %v529
  %v534 = vadd.f32 %v517, %v525
  %v535 = vadd.f32 %v519, %v529
  %v536 = vmax.f32 %v532, 0.0
  %v537 = vmax.f32 %v533, 0.0
  %v538 = vmax.f32 %v534, 0.0
  %v539 = vmax.f32 %v535, 0.0
  %v540 = vld [vmem:[%s5] sm:$0xff]
  %v541 = vld [vmem:[%s5 + $0x8] sm:$0xff]
  %v542 = vld [vmem:[%s5 + $0x10] sm:$0xff]
  %v543 = vld [vmem:[%s5 + $0x18] sm:$0xff]
  %v544 = vld [vmem:[%s5 + $0x20] sm:$0xff]
  %v545 = vld [vmem:[%s5 + $0x28] sm:$0xff]
  %v546 = vld [vmem:[%s5 + $0x30] sm:$0xff]
  %v547 = vld [vmem:[%s5 + $0x38] sm:$0xff]
  %v548 = vld [vmem:[%s5 + $0x40] sm:$0xff]
  %v549 = vld [vmem:[%s5 + $0x48] sm:$0xff]
  %v550 = vld [vmem:[%s5 + $0x50] sm:$0xff]
  %v551 = vld [vmem:[%s5 + $0x58] sm:$0xff]
  %v552 = vld [vmem:[%s5 + $0x60] sm:$0xff]
  %v553 = vld [vmem:[%s5 + $0x68] sm:$0xff]
  %v554 = vld [vmem:[%s5 + $0x70] sm:$0xff]
  %v555 = vld [vmem:[%s5 + $0x78] sm:$0xff]
  %v556 = vld [vmem:[%s5 + $0x80] sm:$0xff]
  %v557 = vld [vmem:[%s5 + $0x88] sm:$0xff]
  %v558 = vld [vmem:[%s5 + $0x90] sm:$0xff]
  %v559 = vld [vmem:[%s5 + $0x98] sm:$0xff]
  %v560 = vld [vmem:[%s5 + $0xa0] sm:$0xff]
  %v561 = vld [vmem:[%s5 + $0xa8] sm:$0xff]
  %v562 = vld [vmem:[%s5 + $0xb0] sm:$0xff]
  %v563 = vld [vmem:[%s5 + $0xb8] sm:$0xff]
  %v564 = vld [vmem:[%s5 + $0xc0] sm:$0xff]
  %v565 = vld [vmem:[%s5 + $0xc8] sm:$0xff]
  %v566 = vld [vmem:[%s5 + $0xd0] sm:$0xff]
  %v567 = vld [vmem:[%s5 + $0xd8] sm:$0xff]
  %v568 = vld [vmem:[%s5 + $0xe0] sm:$0xff]
  %v569 = vld [vmem:[%s5 + $0xe8] sm:$0xff]
  %v570 = vld [vmem:[%s5 + $0xf0] sm:$0xff]
  %v571 = vld [vmem:[%s5 + $0xf8] sm:$0xff]
  %v572 = vld [vmem:[%s6] sm:$0x3]
  %v573 = vpack.c.bf16 %v538, %v536
  %v574 = vpack.c.bf16 %v539, %v537
  %v576 = vlaneseq
  %v577 = vshrl.u32 %v576, 7
  %v578 = vsub.s32 0, %v577
  %v579 = vrot.slane %v572, %v578
  %v580 = vlaneseq
  %v581 = vshrl.u32 %v580, 7
  %v582 = vsub.s32 1, %v581
  %v583 = vrot.slane %v572, %v582
  %v618 = vunpack.c.l.b16 %v540
  %v619 = vunpack.c.h.b16 %v540
  %v620 = vunpack.c.l.b16 %v541
  %v621 = vunpack.c.h.b16 %v541
  %v622 = vunpack.c.l.b16 %v542
  %v623 = vunpack.c.h.b16 %v542
  %v624 = vunpack.c.l.b16 %v543
  %v625 = vunpack.c.h.b16 %v543
  %v626 = vunpack.c.l.b16 %v544
  %v627 = vunpack.c.h.b16 %v544
  %v628 = vunpack.c.l.b16 %v545
  %v629 = vunpack.c.h.b16 %v545
  %v630 = vunpack.c.l.b16 %v546
  %v631 = vunpack.c.h.b16 %v546
  %v632 = vunpack.c.l.b16 %v547
  %v633 = vunpack.c.h.b16 %v547
  %v634 = vunpack.c.l.b16 %v548
  %v635 = vunpack.c.h.b16 %v548
  %v636 = vunpack.c.l.b16 %v549
  %v637 = vunpack.c.h.b16 %v549
  %v638 = vunpack.c.l.b16 %v550
  %v639 = vunpack.c.h.b16 %v550
  %v640 = vunpack.c.l.b16 %v551
  %v641 = vunpack.c.h.b16 %v551
  %v642 = vunpack.c.l.b16 %v552
  %v643 = vunpack.c.h.b16 %v552
  %v644 = vunpack.c.l.b16 %v553
  %v645 = vunpack.c.h.b16 %v553
  %v646 = vunpack.c.l.b16 %v554
  %v647 = vunpack.c.h.b16 %v554
  %v648 = vunpack.c.l.b16 %v555
  %v649 = vunpack.c.h.b16 %v555
  %v650 = vunpack.c.l.b16 %v556
  %v651 = vunpack.c.h.b16 %v556
  %v652 = vunpack.c.l.b16 %v557
  %v653 = vunpack.c.h.b16 %v557
  %v654 = vunpack.c.l.b16 %v558
  %v655 = vunpack.c.h.b16 %v558
  %v656 = vunpack.c.l.b16 %v559
  %v657 = vunpack.c.h.b16 %v559
  %v658 = vunpack.c.l.b16 %v560
  %v659 = vunpack.c.h.b16 %v560
  %v660 = vunpack.c.l.b16 %v561
  %v661 = vunpack.c.h.b16 %v561
  %v662 = vunpack.c.l.b16 %v562
  %v663 = vunpack.c.h.b16 %v562
  %v664 = vunpack.c.l.b16 %v563
  %v665 = vunpack.c.h.b16 %v563
  %v666 = vunpack.c.l.b16 %v564
  %v667 = vunpack.c.h.b16 %v564
  %v668 = vunpack.c.l.b16 %v565
  %v669 = vunpack.c.h.b16 %v565
  %v670 = vunpack.c.l.b16 %v566
  %v671 = vunpack.c.h.b16 %v566
  %v672 = vunpack.c.l.b16 %v567
  %v673 = vunpack.c.h.b16 %v567
  %v674 = vunpack.c.l.b16 %v568
  %v675 = vunpack.c.h.b16 %v568
  %v676 = vunpack.c.l.b16 %v569
  %v677 = vunpack.c.h.b16 %v569
  %v678 = vunpack.c.l.b16 %v570
  %v679 = vunpack.c.h.b16 %v570
  %v680 = vunpack.c.l.b16 %v571
  %v681 = vunpack.c.h.b16 %v571
  %v682 = vpack.c.b16 %v620, %v618
  %v683 = vpack.c.b16 %v621, %v619
  %v684 = vpack.c.b16 %v624, %v622
  %v685 = vpack.c.b16 %v625, %v623
  %v686 = vpack.c.b16 %v628, %v626
  %v687 = vpack.c.b16 %v629, %v627
  %v688 = vpack.c.b16 %v632, %v630
  %v689 = vpack.c.b16 %v633, %v631
  %v690 = vpack.c.b16 %v636, %v634
  %v691 = vpack.c.b16 %v637, %v635
  %v692 = vpack.c.b16 %v640, %v638
  %v693 = vpack.c.b16 %v641, %v639
  %v694 = vpack.c.b16 %v644, %v642
  %v695 = vpack.c.b16 %v645, %v643
  %v696 = vpack.c.b16 %v648, %v646
  %v697 = vpack.c.b16 %v649, %v647
  %v698 = vpack.c.b16 %v652, %v650
  %v699 = vpack.c.b16 %v653, %v651
  %v700 = vpack.c.b16 %v656, %v654
  %v701 = vpack.c.b16 %v657, %v655
  %v702 = vpack.c.b16 %v660, %v658
  %v703 = vpack.c.b16 %v661, %v659
  %v704 = vpack.c.b16 %v664, %v662
  %v705 = vpack.c.b16 %v665, %v663
  %v706 = vpack.c.b16 %v668, %v666
  %v707 = vpack.c.b16 %v669, %v667
  %v708 = vpack.c.b16 %v672, %v670
  %v709 = vpack.c.b16 %v673, %v671
  %v710 = vpack.c.b16 %v676, %v674
  %v711 = vpack.c.b16 %v677, %v675
  %v712 = vpack.c.b16 %v680, %v678
  %v713 = vpack.c.b16 %v681, %v679
  %746 = vmatprep.subr.bf16.mxu0 %v683
  %747 = vmatpush1.bf16.msra.mxu0 %v682
  %748 = vmatprep.subr.bf16.mxu0 %v685
  %749 = vmatpush1.bf16.msra.mxu0 %v684
  %750 = vmatprep.subr.bf16.mxu0 %v687
  %751 = vmatpush1.bf16.msra.mxu0 %v686
  %752 = vmatprep.subr.bf16.mxu0 %v689
  %753 = vmatpush1.bf16.msra.mxu0 %v688
  %754 = vmatprep.subr.bf16.mxu0 %v691
  %755 = vmatpush1.bf16.msra.mxu0 %v690
  %756 = vmatprep.subr.bf16.mxu0 %v693
  %757 = vmatpush1.bf16.msra.mxu0 %v692
  %758 = vmatprep.subr.bf16.mxu0 %v695
  %759 = vmatpush1.bf16.msra.mxu0 %v694
  %760 = vmatprep.subr.bf16.mxu0 %v697
  %761 = vmatpush1.bf16.msra.mxu0 %v696
  %762 = vmatprep.subr.bf16.mxu0 %v699
  %763 = vmatpush1.bf16.msra.mxu0 %v698
  %764 = vmatprep.subr.bf16.mxu0 %v701
  %765 = vmatpush1.bf16.msra.mxu0 %v700
  %766 = vmatprep.subr.bf16.mxu0 %v703
  %767 = vmatpush1.bf16.msra.mxu0 %v702
  %768 = vmatprep.subr.bf16.mxu0 %v705
  %769 = vmatpush1.bf16.msra.mxu0 %v704
  %770 = vmatprep.subr.bf16.mxu0 %v707
  %771 = vmatpush1.bf16.msra.mxu0 %v706
  %772 = vmatprep.subr.bf16.mxu0 %v709
  %773 = vmatpush1.bf16.msra.mxu0 %v708
  %774 = vmatprep.subr.bf16.mxu0 %v711
  %775 = vmatpush1.bf16.msra.mxu0 %v710
  %776 = vmatprep.subr.bf16.mxu0 %v713
  %777 = vmatpush1.bf16.msra.mxu0 %v712
  %778 = vmatprep.mubr.bf16.mxu0 %v574
  %779 = vmatmul.mubr.bf16.gmra.mrb[0].mxu0 %v573
  %v780 = vpop.f32.mrb[0].mxu0
  %v781 = vadd.f32 %v579, %v780
  %v782 = vpop.f32.mrb[0].mxu0
  %v783 = vadd.f32 %v583, %v782
  %v784 = vpop.f32.mrb[0].mxu0
  %v785 = vadd.f32 %v579, %v784
  %v786 = vpop.f32.mrb[0].mxu0
  %v787 = vadd.f32 %v583, %v786
  %788 = vdwg.mxu0
  %v789 = vmax.f32 %v781, 0.0
  %v790 = vmax.f32 %v783, 0.0
  %v791 = vmax.f32 %v785, 0.0
  %v792 = vmax.f32 %v787, 0.0
  %v793 = vpack.c.bf16 %v791, %v789
  %v794 = vpack.c.bf16 %v792, %v790
  %v797 = vunpack.c.l.b16 %v793
  %v798 = vunpack.c.l.b16 %v794
  %v799 = vunpack.c.h.b16 %v793
  %v800 = vunpack.c.h.b16 %v794
  %v801 = vpack.c.b16 %v798, %v797
  %v802 = vpack.c.b16 %v800, %v799
  %805 = vst [vmem:[%s7] sm:$0xff] %v801
  %806 = vst [vmem:[%s7 + $0x8] sm:$0xff] %v802
  // Predicated region
  $region30: #{pointnet2_forward.12} parent=0 // pred_check
    _
  $region31: #{pointnet2_forward.12} parent=0 // pred_check_branch
    %808 = sbr.rel (0) target = $region33
  $region32: #{pointnet2_forward.12} parent=0 // pred_region
    _
  $region33: #{pointnet2_forward.12} parent=0 // pred_fallthru
    _
  // Predicated region
  $region34: #{pointnet2_forward.12} parent=0 // pred_check
    _
  $region35: #{pointnet2_forward.12} parent=0 // pred_check_branch
    %810 = sbr.rel (0) target = $region37
  $region36: #{pointnet2_forward.12} parent=0 // pred_region
    _
  $region37: #{pointnet2_forward.12} parent=0 // pred_fallthru
    _

// kernel: pointnet2_forward.13
$region0: #{pointnet2_forward.13}
  #allocation0 [shape = 'u32[]', space=smem, size = 0x4, offset = 0x4, fixed_abs, tag = 'smem constant byte address 0x4 - core index']
  #allocation1 [shape = 'u32[144,128]{1,0:T(1,128)}', space=vmem, size = 0x12000, scoped, tag = 'internal scratch']
  %s0 = inlined_call_operand.vmem [shape: bf16[32,128], index: 0, kind: input, shape index: {}]
  %s1 = inlined_call_operand.vmem [shape: bf16[32,256], index: 1, kind: input, shape index: {}]
  %s2 = inlined_call_operand.vmem [shape: bf16[128,256], index: 2, kind: input, shape index: {}]
  %s3 = inlined_call_operand.vmem [shape: bf16[256,256], index: 3, kind: input, shape index: {}]
  %s4 = inlined_call_operand.vmem [shape: f32[1,256], index: 4, kind: input, shape index: {}]
  %s5 = inlined_call_operand.vmem [shape: bf16[256,256], index: 5, kind: input, shape index: {}]
  %s6 = inlined_call_operand.vmem [shape: f32[1,256], index: 6, kind: input, shape index: {}]
  %s7 = inlined_call_operand.vmem [shape: bf16[32,256], index: 7, kind: output, shape index: {}]
  %s8 = sld [smem:[#allocation0]]
  $region38: #{pointnet2_forward.13} parent=0
    _
  %s10 = ssub.s32 1, %s8
  %s11 = scalar_select 0, %s10, %s8
  // Predicated region
  $region2: #{pointnet2_forward.13} parent=0 // pred_check
    _
  $region3: #{pointnet2_forward.13} parent=0 // pred_check_branch
    %13 = sbr.rel (0) target = $region5
  $region4: #{pointnet2_forward.13} parent=0 // pred_region
    _
  $region5: #{pointnet2_forward.13} parent=0 // pred_fallthru
    _
  // Predicated region
  $region6: #{pointnet2_forward.13} parent=0 // pred_check
    _
  $region7: #{pointnet2_forward.13} parent=0 // pred_check_branch
    %15 = sbr.rel (0) target = $region9
  $region8: #{pointnet2_forward.13} parent=0 // pred_region
    _
  $region9: #{pointnet2_forward.13} parent=0 // pred_fallthru
    _
  // Predicated region
  $region10: #{pointnet2_forward.13} parent=0 // pred_check
    _
  $region11: #{pointnet2_forward.13} parent=0 // pred_check_branch
    %17 = sbr.rel (0) target = $region13
  $region12: #{pointnet2_forward.13} parent=0 // pred_region
    _
  $region13: #{pointnet2_forward.13} parent=0 // pred_fallthru
    _
  // Predicated region
  $region14: #{pointnet2_forward.13} parent=0 // pred_check
    _
  $region15: #{pointnet2_forward.13} parent=0 // pred_check_branch
    %19 = sbr.rel (0) target = $region17
  $region16: #{pointnet2_forward.13} parent=0 // pred_region
    _
  $region17: #{pointnet2_forward.13} parent=0 // pred_fallthru
    _
  // Predicated region
  $region18: #{pointnet2_forward.13} parent=0 // pred_check
    _
  $region19: #{pointnet2_forward.13} parent=0 // pred_check_branch
    %21 = sbr.rel (0) target = $region21
  $region20: #{pointnet2_forward.13} parent=0 // pred_region
    _
  $region21: #{pointnet2_forward.13} parent=0 // pred_fallthru
    _
  // Predicated region
  $region22: #{pointnet2_forward.13} parent=0 // pred_check
    _
  $region23: #{pointnet2_forward.13} parent=0 // pred_check_branch
    %23 = sbr.rel (0) target = $region25
  $region24: #{pointnet2_forward.13} parent=0 // pred_region
    _
  $region25: #{pointnet2_forward.13} parent=0 // pred_fallthru
    _
  // Predicated region
  $region26: #{pointnet2_forward.13} parent=0 // pred_check
    _
  $region27: #{pointnet2_forward.13} parent=0 // pred_check_branch
    %25 = sbr.rel (0) target = $region29
  $region28: #{pointnet2_forward.13} parent=0 // pred_region
    _
  $region29: #{pointnet2_forward.13} parent=0 // pred_fallthru
    _
  %v27 = vld [vmem:[%s0] sm:$0xf]
  %v28 = vld [vmem:[%s0 + $0x4] sm:$0xf]
  %v29 = vld [vmem:[%s0 + $0x8] sm:$0xf]
  %v30 = vld [vmem:[%s0 + $0xc] sm:$0xf]
  %v31 = vld [vmem:[%s1] sm:$0xff]
  %v32 = vld [vmem:[%s1 + $0x8] sm:$0xff]
  %v33 = vld [vmem:[%s1 + $0x10] sm:$0xff]
  %v34 = vld [vmem:[%s1 + $0x18] sm:$0xff]
  %v35 = vld [vmem:[%s2] sm:$0xff]
  %v36 = vld [vmem:[%s2 + $0x8] sm:$0xff]
  %v37 = vld [vmem:[%s2 + $0x10] sm:$0xff]
  %v38 = vld [vmem:[%s2 + $0x18] sm:$0xff]
  %v39 = vld [vmem:[%s2 + $0x20] sm:$0xff]
  %v40 = vld [vmem:[%s2 + $0x28] sm:$0xff]
  %v41 = vld [vmem:[%s2 + $0x30] sm:$0xff]
  %v42 = vld [vmem:[%s2 + $0x38] sm:$0xff]
  %v43 = vld [vmem:[%s2 + $0x40] sm:$0xff]
  %v44 = vld [vmem:[%s2 + $0x48] sm:$0xff]
  %v45 = vld [vmem:[%s2 + $0x50] sm:$0xff]
  %v46 = vld [vmem:[%s2 + $0x58] sm:$0xff]
  %v47 = vld [vmem:[%s2 + $0x60] sm:$0xff]
  %v48 = vld [vmem:[%s2 + $0x68] sm:$0xff]
  %v49 = vld [vmem:[%s2 + $0x70] sm:$0xff]
  %v50 = vld [vmem:[%s2 + $0x78] sm:$0xff]
  %v51 = vld [vmem:[%s3] sm:$0xff]
  %v52 = vld [vmem:[%s3 + $0x8] sm:$0xff]
  %v53 = vld [vmem:[%s3 + $0x10] sm:$0xff]
  %v54 = vld [vmem:[%s3 + $0x18] sm:$0xff]
  %v55 = vld [vmem:[%s3 + $0x20] sm:$0xff]
  %v56 = vld [vmem:[%s3 + $0x28] sm:$0xff]
  %v57 = vld [vmem:[%s3 + $0x30] sm:$0xff]
  %v58 = vld [vmem:[%s3 + $0x38] sm:$0xff]
  %v59 = vld [vmem:[%s3 + $0x40] sm:$0xff]
  %v60 = vld [vmem:[%s3 + $0x48] sm:$0xff]
  %v61 = vld [vmem:[%s3 + $0x50] sm:$0xff]
  %v62 = vld [vmem:[%s3 + $0x58] sm:$0xff]
  %v63 = vld [vmem:[%s3 + $0x60] sm:$0xff]
  %v64 = vld [vmem:[%s3 + $0x68] sm:$0xff]
  %v65 = vld [vmem:[%s3 + $0x70] sm:$0xff]
  %v66 = vld [vmem:[%s3 + $0x78] sm:$0xff]
  %v67 = vld [vmem:[%s3 + $0x80] sm:$0xff]
  %v68 = vld [vmem:[%s3 + $0x88] sm:$0xff]
  %v69 = vld [vmem:[%s3 + $0x90] sm:$0xff]
  %v70 = vld [vmem:[%s3 + $0x98] sm:$0xff]
  %v71 = vld [vmem:[%s3 + $0xa0] sm:$0xff]
  %v72 = vld [vmem:[%s3 + $0xa8] sm:$0xff]
  %v73 = vld [vmem:[%s3 + $0xb0] sm:$0xff]
  %v74 = vld [vmem:[%s3 + $0xb8] sm:$0xff]
  %v75 = vld [vmem:[%s3 + $0xc0] sm:$0xff]
  %v76 = vld [vmem:[%s3 + $0xc8] sm:$0xff]
  %v77 = vld [vmem:[%s3 + $0xd0] sm:$0xff]
  %v78 = vld [vmem:[%s3 + $0xd8] sm:$0xff]
  %v79 = vld [vmem:[%s3 + $0xe0] sm:$0xff]
  %v80 = vld [vmem:[%s3 + $0xe8] sm:$0xff]
  %v81 = vld [vmem:[%s3 + $0xf0] sm:$0xff]
  %v82 = vld [vmem:[%s3 + $0xf8] sm:$0xff]
  %v83 = vld [vmem:[%s4] sm:$0x3]
  %v88 = vunpack.c.l.b16 %v31
  %v89 = vunpack.c.h.b16 %v31
  %v90 = vunpack.c.l.b16 %v32
  %v91 = vunpack.c.h.b16 %v32
  %v92 = vunpack.c.l.b16 %v33
  %v93 = vunpack.c.h.b16 %v33
  %v94 = vunpack.c.l.b16 %v34
  %v95 = vunpack.c.h.b16 %v34
  %v96 = vpack.c.b16 %v90, %v88
  %v97 = vpack.c.b16 %v91, %v89
  %v98 = vpack.c.b16 %v94, %v92
  %v99 = vpack.c.b16 %v95, %v93
  %v136 = vunpack.c.l.b16 %v51
  %v137 = vunpack.c.h.b16 %v51
  %v138 = vunpack.c.l.b16 %v52
  %v139 = vunpack.c.h.b16 %v52
  %v140 = vunpack.c.l.b16 %v53
  %v141 = vunpack.c.h.b16 %v53
  %v142 = vunpack.c.l.b16 %v54
  %v143 = vunpack.c.h.b16 %v54
  %v144 = vunpack.c.l.b16 %v55
  %v145 = vunpack.c.h.b16 %v55
  %v146 = vunpack.c.l.b16 %v56
  %v147 = vunpack.c.h.b16 %v56
  %v148 = vunpack.c.l.b16 %v57
  %v149 = vunpack.c.h.b16 %v57
  %v150 = vunpack.c.l.b16 %v58
  %v151 = vunpack.c.h.b16 %v58
  %v152 = vunpack.c.l.b16 %v59
  %v153 = vunpack.c.h.b16 %v59
  %v154 = vunpack.c.l.b16 %v60
  %v155 = vunpack.c.h.b16 %v60
  %v156 = vunpack.c.l.b16 %v61
  %v157 = vunpack.c.h.b16 %v61
  %v158 = vunpack.c.l.b16 %v62
  %v159 = vunpack.c.h.b16 %v62
  %v160 = vunpack.c.l.b16 %v63
  %v161 = vunpack.c.h.b16 %v63
  %v162 = vunpack.c.l.b16 %v64
  %v163 = vunpack.c.h.b16 %v64
  %v164 = vunpack.c.l.b16 %v65
  %v165 = vunpack.c.h.b16 %v65
  %v166 = vunpack.c.l.b16 %v66
  %v167 = vunpack.c.h.b16 %v66
  %v168 = vunpack.c.l.b16 %v67
  %v169 = vunpack.c.h.b16 %v67
  %v170 = vunpack.c.l.b16 %v68
  %v171 = vunpack.c.h.b16 %v68
  %v172 = vunpack.c.l.b16 %v69
  %v173 = vunpack.c.h.b16 %v69
  %v174 = vunpack.c.l.b16 %v70
  %v175 = vunpack.c.h.b16 %v70
  %v176 = vunpack.c.l.b16 %v71
  %v177 = vunpack.c.h.b16 %v71
  %v178 = vunpack.c.l.b16 %v72
  %v179 = vunpack.c.h.b16 %v72
  %v180 = vunpack.c.l.b16 %v73
  %v181 = vunpack.c.h.b16 %v73
  %v182 = vunpack.c.l.b16 %v74
  %v183 = vunpack.c.h.b16 %v74
  %v184 = vunpack.c.l.b16 %v75
  %v185 = vunpack.c.h.b16 %v75
  %v186 = vunpack.c.l.b16 %v76
  %v187 = vunpack.c.h.b16 %v76
  %v188 = vunpack.c.l.b16 %v77
  %v189 = vunpack.c.h.b16 %v77
  %v190 = vunpack.c.l.b16 %v78
  %v191 = vunpack.c.h.b16 %v78
  %v192 = vunpack.c.l.b16 %v79
  %v193 = vunpack.c.h.b16 %v79
  %v194 = vunpack.c.l.b16 %v80
  %v195 = vunpack.c.h.b16 %v80
  %v196 = vunpack.c.l.b16 %v81
  %v197 = vunpack.c.h.b16 %v81
  %v198 = vunpack.c.l.b16 %v82
  %v199 = vunpack.c.h.b16 %v82
  %v200 = vpack.c.b16 %v138, %v136
  %v201 = vpack.c.b16 %v139, %v137
  %v202 = vpack.c.b16 %v142, %v140
  %v203 = vpack.c.b16 %v143, %v141
  %v204 = vpack.c.b16 %v146, %v144
  %v205 = vpack.c.b16 %v147, %v145
  %v206 = vpack.c.b16 %v150, %v148
  %v207 = vpack.c.b16 %v151, %v149
  %v208 = vpack.c.b16 %v154, %v152
  %v209 = vpack.c.b16 %v155, %v153
  %v210 = vpack.c.b16 %v158, %v156
  %v211 = vpack.c.b16 %v159, %v157
  %v212 = vpack.c.b16 %v162, %v160
  %v213 = vpack.c.b16 %v163, %v161
  %v214 = vpack.c.b16 %v166, %v164
  %v215 = vpack.c.b16 %v167, %v165
  %v216 = vpack.c.b16 %v170, %v168
  %v217 = vpack.c.b16 %v171, %v169
  %v218 = vpack.c.b16 %v174, %v172
  %v219 = vpack.c.b16 %v175, %v173
  %v220 = vpack.c.b16 %v178, %v176
  %v221 = vpack.c.b16 %v179, %v177
  %v222 = vpack.c.b16 %v182, %v180
  %v223 = vpack.c.b16 %v183, %v181
  %v224 = vpack.c.b16 %v186, %v184
  %v225 = vpack.c.b16 %v187, %v185
  %v226 = vpack.c.b16 %v190, %v188
  %v227 = vpack.c.b16 %v191, %v189
  %v228 = vpack.c.b16 %v194, %v192
  %v229 = vpack.c.b16 %v195, %v193
  %v230 = vpack.c.b16 %v198, %v196
  %v231 = vpack.c.b16 %v199, %v197
  %264 = vmatprep.subr.bf16.mxu0 %v201
  %265 = vmatpush1.bf16.msra.mxu0 %v200
  %266 = vmatprep.subr.bf16.mxu0 %v203
  %267 = vmatpush1.bf16.msra.mxu0 %v202
  %268 = vmatprep.subr.bf16.mxu0 %v205
  %269 = vmatpush1.bf16.msra.mxu0 %v204
  %270 = vmatprep.subr.bf16.mxu0 %v207
  %271 = vmatpush1.bf16.msra.mxu0 %v206
  %272 = vmatprep.subr.bf16.mxu0 %v209
  %273 = vmatpush1.bf16.msra.mxu0 %v208
  %274 = vmatprep.subr.bf16.mxu0 %v211
  %275 = vmatpush1.bf16.msra.mxu0 %v210
  %276 = vmatprep.subr.bf16.mxu0 %v213
  %277 = vmatpush1.bf16.msra.mxu0 %v212
  %278 = vmatprep.subr.bf16.mxu0 %v215
  %279 = vmatpush1.bf16.msra.mxu0 %v214
  %280 = vmatprep.subr.bf16.mxu0 %v217
  %281 = vmatpush1.bf16.msra.mxu0 %v216
  %282 = vmatprep.subr.bf16.mxu0 %v219
  %283 = vmatpush1.bf16.msra.mxu0 %v218
  %284 = vmatprep.subr.bf16.mxu0 %v221
  %285 = vmatpush1.bf16.msra.mxu0 %v220
  %286 = vmatprep.subr.bf16.mxu0 %v223
  %287 = vmatpush1.bf16.msra.mxu0 %v222
  %288 = vmatprep.subr.bf16.mxu0 %v225
  %289 = vmatpush1.bf16.msra.mxu0 %v224
  %290 = vmatprep.subr.bf16.mxu0 %v227
  %291 = vmatpush1.bf16.msra.mxu0 %v226
  %292 = vmatprep.subr.bf16.mxu0 %v229
  %293 = vmatpush1.bf16.msra.mxu0 %v228
  %294 = vmatprep.subr.bf16.mxu0 %v231
  %295 = vmatpush1.bf16.msra.mxu0 %v230
  %296 = vmatprep.mubr.bf16.mxu0 %v97
  %297 = vmatmul.mubr.bf16.gmra.mrb[0].mxu0 %v96
  %v298 = vpop.f32.mrb[0].mxu0
  %v299 = vadd.f32 0.0, %v298
  %v300 = vpop.f32.mrb[0].mxu0
  %v301 = vadd.f32 0.0, %v300
  %v302 = vpop.f32.mrb[0].mxu0
  %v303 = vadd.f32 0.0, %v302
  %v304 = vpop.f32.mrb[0].mxu0
  %v305 = vadd.f32 0.0, %v304
  %306 = vmatprep.mubr.bf16.mxu0 %v99
  %307 = vmatmul.mubr.bf16.gmra.mrb[0].mxu0 %v98
  %v308 = vpop.f32.mrb[0].mxu0
  %v309 = vadd.f32 0.0, %v308
  %v310 = vpop.f32.mrb[0].mxu0
  %v311 = vadd.f32 0.0, %v310
  %v312 = vpop.f32.mrb[0].mxu0
  %v313 = vadd.f32 0.0, %v312
  %v314 = vpop.f32.mrb[0].mxu0
  %v315 = vadd.f32 0.0, %v314
  %316 = vdwg.mxu0
  %v321 = vunpack.c.l.b16 %v27
  %v322 = vunpack.c.l.b16 %v28
  %v323 = vunpack.c.l.b16 %v29
  %v324 = vunpack.c.l.b16 %v30
  %v325 = vpack.c.b16 %v322, %v321
  %v326 = vpack.c.b16 %v324, %v323
  %v345 = vunpack.c.l.b16 %v35
  %v346 = vunpack.c.h.b16 %v35
  %v347 = vunpack.c.l.b16 %v36
  %v348 = vunpack.c.h.b16 %v36
  %v349 = vunpack.c.l.b16 %v37
  %v350 = vunpack.c.h.b16 %v37
  %v351 = vunpack.c.l.b16 %v38
  %v352 = vunpack.c.h.b16 %v38
  %v353 = vunpack.c.l.b16 %v39
  %v354 = vunpack.c.h.b16 %v39
  %v355 = vunpack.c.l.b16 %v40
  %v356 = vunpack.c.h.b16 %v40
  %v357 = vunpack.c.l.b16 %v41
  %v358 = vunpack.c.h.b16 %v41
  %v359 = vunpack.c.l.b16 %v42
  %v360 = vunpack.c.h.b16 %v42
  %v361 = vunpack.c.l.b16 %v43
  %v362 = vunpack.c.h.b16 %v43
  %v363 = vunpack.c.l.b16 %v44
  %v364 = vunpack.c.h.b16 %v44
  %v365 = vunpack.c.l.b16 %v45
  %v366 = vunpack.c.h.b16 %v45
  %v367 = vunpack.c.l.b16 %v46
  %v368 = vunpack.c.h.b16 %v46
  %v369 = vunpack.c.l.b16 %v47
  %v370 = vunpack.c.h.b16 %v47
  %v371 = vunpack.c.l.b16 %v48
  %v372 = vunpack.c.h.b16 %v48
  %v373 = vunpack.c.l.b16 %v49
  %v374 = vunpack.c.h.b16 %v49
  %v375 = vunpack.c.l.b16 %v50
  %v376 = vunpack.c.h.b16 %v50
  %v377 = vpack.c.b16 %v347, %v345
  %v378 = vpack.c.b16 %v348, %v346
  %v379 = vpack.c.b16 %v351, %v349
  %v380 = vpack.c.b16 %v352, %v350
  %v381 = vpack.c.b16 %v355, %v353
  %v382 = vpack.c.b16 %v356, %v354
  %v383 = vpack.c.b16 %v359, %v357
  %v384 = vpack.c.b16 %v360, %v358
  %v385 = vpack.c.b16 %v363, %v361
  %v386 = vpack.c.b16 %v364, %v362
  %v387 = vpack.c.b16 %v367, %v365
  %v388 = vpack.c.b16 %v368, %v366
  %v389 = vpack.c.b16 %v371, %v369
  %v390 = vpack.c.b16 %v372, %v370
  %v391 = vpack.c.b16 %v375, %v373
  %v392 = vpack.c.b16 %v376, %v374
  %409 = vmatprep.subr.bf16.mxu0 %v378
  %410 = vmatpush1.bf16.msra.mxu0 %v377
  %411 = vmatprep.subr.bf16.mxu0 %v380
  %412 = vmatpush1.bf16.msra.mxu0 %v379
  %413 = vmatprep.subr.bf16.mxu0 %v382
  %414 = vmatpush1.bf16.msra.mxu0 %v381
  %415 = vmatprep.subr.bf16.mxu0 %v384
  %416 = vmatpush1.bf16.msra.mxu0 %v383
  %417 = vmatprep.subr.bf16.mxu0 %v386
  %418 = vmatpush1.bf16.msra.mxu0 %v385
  %419 = vmatprep.subr.bf16.mxu0 %v388
  %420 = vmatpush1.bf16.msra.mxu0 %v387
  %421 = vmatprep.subr.bf16.mxu0 %v390
  %422 = vmatpush1.bf16.msra.mxu0 %v389
  %423 = vmatprep.subr.bf16.mxu0 %v392
  %424 = vmatpush1.bf16.msra.mxu0 %v391
  %425 = vmatprep.subr.bf16.mxu0 0
  %426 = vmatpush1.bf16.msra.mxu0 0
  %427 = vmatprep.subr.bf16.mxu0 0
  %428 = vmatpush1.bf16.msra.mxu0 0
  %429 = vmatprep.subr.bf16.mxu0 0
  %430 = vmatpush1.bf16.msra.mxu0 0
  %431 = vmatprep.subr.bf16.mxu0 0
  %432 = vmatpush1.bf16.msra.mxu0 0
  %433 = vmatprep.subr.bf16.mxu0 0
  %434 = vmatpush1.bf16.msra.mxu0 0
  %435 = vmatprep.subr.bf16.mxu0 0
  %436 = vmatpush1.bf16.msra.mxu0 0
  %437 = vmatprep.subr.bf16.mxu0 0
  %438 = vmatpush1.bf16.msra.mxu0 0
  %439 = vmatprep.subr.bf16.mxu0 0
  %440 = vmatpush1.bf16.msra.mxu0 0
  %441 = vmatprep.mubr.bf16.mxu0 0
  %442 = vmatmul.mubr.bf16.gmra.mrb[0].mxu0 %v325
  %v443 = vpop.f32.mrb[0].mxu0
  %v444 = vadd.f32 %v299, %v443
  %v445 = vpop.f32.mrb[0].mxu0
  %v446 = vadd.f32 %v301, %v445
  %v447 = vpop.f32.mrb[0].mxu0
  %v448 = vadd.f32 %v303, %v447
  %v449 = vpop.f32.mrb[0].mxu0
  %v450 = vadd.f32 %v305, %v449
  %451 = vmatprep.mubr.bf16.mxu0 0
  %452 = vmatmul.mubr.bf16.gmra.mrb[0].mxu0 %v326
  %v453 = vpop.f32.mrb[0].mxu0
  %v454 = vadd.f32 %v309, %v453
  %v455 = vpop.f32.mrb[0].mxu0
  %v456 = vadd.f32 %v311, %v455
  %v457 = vpop.f32.mrb[0].mxu0
  %v458 = vadd.f32 %v313, %v457
  %v459 = vpop.f32.mrb[0].mxu0
  %v460 = vadd.f32 %v315, %v459
  %461 = vdwg.mxu0
  %v463 = vlaneseq
  %v464 = vshrl.u32 %v463, 7
  %v465 = vsub.s32 0, %v464
  %v466 = vrot.slane %v83, %v465
  %v467 = vlaneseq
  %v468 = vshrl.u32 %v467, 7
  %v469 = vsub.s32 1, %v468
  %v470 = vrot.slane %v83, %v469
  %v473 = vadd.f32 %v444, %v466
  %v474 = vadd.f32 %v446, %v470
  %v475 = vadd.f32 %v448, %v466
  %v476 = vadd.f32 %v450, %v470
  %v477 = vadd.f32 %v454, %v466
  %v478 = vadd.f32 %v456, %v470
  %v479 = vadd.f32 %v458, %v466
  %v480 = vadd.f32 %v460, %v470
  %v481 = vmax.f32 %v473, 0.0
  %v482 = vmax.f32 %v474, 0.0
  %v483 = vmax.f32 %v475, 0.0
  %v484 = vmax.f32 %v476, 0.0
  %v485 = vmax.f32 %v477, 0.0
  %v486 = vmax.f32 %v478, 0.0
  %v487 = vmax.f32 %v479, 0.0
  %v488 = vmax.f32 %v480, 0.0
  %v489 = vld [vmem:[%s5] sm:$0xff]
  %v490 = vld [vmem:[%s5 + $0x8] sm:$0xff]
  %v491 = vld [vmem:[%s5 + $0x10] sm:$0xff]
  %v492 = vld [vmem:[%s5 + $0x18] sm:$0xff]
  %v493 = vld [vmem:[%s5 + $0x20] sm:$0xff]
  %v494 = vld [vmem:[%s5 + $0x28] sm:$0xff]
  %v495 = vld [vmem:[%s5 + $0x30] sm:$0xff]
  %v496 = vld [vmem:[%s5 + $0x38] sm:$0xff]
  %v497 = vld [vmem:[%s5 + $0x40] sm:$0xff]
  %v498 = vld [vmem:[%s5 + $0x48] sm:$0xff]
  %v499 = vld [vmem:[%s5 + $0x50] sm:$0xff]
  %v500 = vld [vmem:[%s5 + $0x58] sm:$0xff]
  %v501 = vld [vmem:[%s5 + $0x60] sm:$0xff]
  %v502 = vld [vmem:[%s5 + $0x68] sm:$0xff]
  %v503 = vld [vmem:[%s5 + $0x70] sm:$0xff]
  %v504 = vld [vmem:[%s5 + $0x78] sm:$0xff]
  %v505 = vld [vmem:[%s5 + $0x80] sm:$0xff]
  %v506 = vld [vmem:[%s5 + $0x88] sm:$0xff]
  %v507 = vld [vmem:[%s5 + $0x90] sm:$0xff]
  %v508 = vld [vmem:[%s5 + $0x98] sm:$0xff]
  %v509 = vld [vmem:[%s5 + $0xa0] sm:$0xff]
  %v510 = vld [vmem:[%s5 + $0xa8] sm:$0xff]
  %v511 = vld [vmem:[%s5 + $0xb0] sm:$0xff]
  %v512 = vld [vmem:[%s5 + $0xb8] sm:$0xff]
  %v513 = vld [vmem:[%s5 + $0xc0] sm:$0xff]
  %v514 = vld [vmem:[%s5 + $0xc8] sm:$0xff]
  %v515 = vld [vmem:[%s5 + $0xd0] sm:$0xff]
  %v516 = vld [vmem:[%s5 + $0xd8] sm:$0xff]
  %v517 = vld [vmem:[%s5 + $0xe0] sm:$0xff]
  %v518 = vld [vmem:[%s5 + $0xe8] sm:$0xff]
  %v519 = vld [vmem:[%s5 + $0xf0] sm:$0xff]
  %v520 = vld [vmem:[%s5 + $0xf8] sm:$0xff]
  %v521 = vld [vmem:[%s6] sm:$0x3]
  %v522 = vpack.c.bf16 %v483, %v481
  %v523 = vpack.c.bf16 %v484, %v482
  %v524 = vpack.c.bf16 %v487, %v485
  %v525 = vpack.c.bf16 %v488, %v486
  %v527 = vlaneseq
  %v528 = vshrl.u32 %v527, 7
  %v529 = vsub.s32 0, %v528
  %v530 = vrot.slane %v521, %v529
  %v531 = vlaneseq
  %v532 = vshrl.u32 %v531, 7
  %v533 = vsub.s32 1, %v532
  %v534 = vrot.slane %v521, %v533
  %v569 = vunpack.c.l.b16 %v489
  %v570 = vunpack.c.h.b16 %v489
  %v571 = vunpack.c.l.b16 %v490
  %v572 = vunpack.c.h.b16 %v490
  %v573 = vunpack.c.l.b16 %v491
  %v574 = vunpack.c.h.b16 %v491
  %v575 = vunpack.c.l.b16 %v492
  %v576 = vunpack.c.h.b16 %v492
  %v577 = vunpack.c.l.b16 %v493
  %v578 = vunpack.c.h.b16 %v493
  %v579 = vunpack.c.l.b16 %v494
  %v580 = vunpack.c.h.b16 %v494
  %v581 = vunpack.c.l.b16 %v495
  %v582 = vunpack.c.h.b16 %v495
  %v583 = vunpack.c.l.b16 %v496
  %v584 = vunpack.c.h.b16 %v496
  %v585 = vunpack.c.l.b16 %v497
  %v586 = vunpack.c.h.b16 %v497
  %v587 = vunpack.c.l.b16 %v498
  %v588 = vunpack.c.h.b16 %v498
  %v589 = vunpack.c.l.b16 %v499
  %v590 = vunpack.c.h.b16 %v499
  %v591 = vunpack.c.l.b16 %v500
  %v592 = vunpack.c.h.b16 %v500
  %v593 = vunpack.c.l.b16 %v501
  %v594 = vunpack.c.h.b16 %v501
  %v595 = vunpack.c.l.b16 %v502
  %v596 = vunpack.c.h.b16 %v502
  %v597 = vunpack.c.l.b16 %v503
  %v598 = vunpack.c.h.b16 %v503
  %v599 = vunpack.c.l.b16 %v504
  %v600 = vunpack.c.h.b16 %v504
  %v601 = vunpack.c.l.b16 %v505
  %v602 = vunpack.c.h.b16 %v505
  %v603 = vunpack.c.l.b16 %v506
  %v604 = vunpack.c.h.b16 %v506
  %v605 = vunpack.c.l.b16 %v507
  %v606 = vunpack.c.h.b16 %v507
  %v607 = vunpack.c.l.b16 %v508
  %v608 = vunpack.c.h.b16 %v508
  %v609 = vunpack.c.l.b16 %v509
  %v610 = vunpack.c.h.b16 %v509
  %v611 = vunpack.c.l.b16 %v510
  %v612 = vunpack.c.h.b16 %v510
  %v613 = vunpack.c.l.b16 %v511
  %v614 = vunpack.c.h.b16 %v511
  %v615 = vunpack.c.l.b16 %v512
  %v616 = vunpack.c.h.b16 %v512
  %v617 = vunpack.c.l.b16 %v513
  %v618 = vunpack.c.h.b16 %v513
  %v619 = vunpack.c.l.b16 %v514
  %v620 = vunpack.c.h.b16 %v514
  %v621 = vunpack.c.l.b16 %v515
  %v622 = vunpack.c.h.b16 %v515
  %v623 = vunpack.c.l.b16 %v516
  %v624 = vunpack.c.h.b16 %v516
  %v625 = vunpack.c.l.b16 %v517
  %v626 = vunpack.c.h.b16 %v517
  %v627 = vunpack.c.l.b16 %v518
  %v628 = vunpack.c.h.b16 %v518
  %v629 = vunpack.c.l.b16 %v519
  %v630 = vunpack.c.h.b16 %v519
  %v631 = vunpack.c.l.b16 %v520
  %v632 = vunpack.c.h.b16 %v520
  %v633 = vpack.c.b16 %v571, %v569
  %v634 = vpack.c.b16 %v572, %v570
  %v635 = vpack.c.b16 %v575, %v573
  %v636 = vpack.c.b16 %v576, %v574
  %v637 = vpack.c.b16 %v579, %v577
  %v638 = vpack.c.b16 %v580, %v578
  %v639 = vpack.c.b16 %v583, %v581
  %v640 = vpack.c.b16 %v584, %v582
  %v641 = vpack.c.b16 %v587, %v585
  %v642 = vpack.c.b16 %v588, %v586
  %v643 = vpack.c.b16 %v591, %v589
  %v644 = vpack.c.b16 %v592, %v590
  %v645 = vpack.c.b16 %v595, %v593
  %v646 = vpack.c.b16 %v596, %v594
  %v647 = vpack.c.b16 %v599, %v597
  %v648 = vpack.c.b16 %v600, %v598
  %v649 = vpack.c.b16 %v603, %v601
  %v650 = vpack.c.b16 %v604, %v602
  %v651 = vpack.c.b16 %v607, %v605
  %v652 = vpack.c.b16 %v608, %v606
  %v653 = vpack.c.b16 %v611, %v609
  %v654 = vpack.c.b16 %v612, %v610
  %v655 = vpack.c.b16 %v615, %v613
  %v656 = vpack.c.b16 %v616, %v614
  %v657 = vpack.c.b16 %v619, %v617
  %v658 = vpack.c.b16 %v620, %v618
  %v659 = vpack.c.b16 %v623, %v621
  %v660 = vpack.c.b16 %v624, %v622
  %v661 = vpack.c.b16 %v627, %v625
  %v662 = vpack.c.b16 %v628, %v626
  %v663 = vpack.c.b16 %v631, %v629
  %v664 = vpack.c.b16 %v632, %v630
  %697 = vmatprep.subr.bf16.mxu0 %v634
  %698 = vmatpush1.bf16.msra.mxu0 %v633
  %699 = vmatprep.subr.bf16.mxu0 %v636
  %700 = vmatpush1.bf16.msra.mxu0 %v635
  %701 = vmatprep.subr.bf16.mxu0 %v638
  %702 = vmatpush1.bf16.msra.mxu0 %v637
  %703 = vmatprep.subr.bf16.mxu0 %v640
  %704 = vmatpush1.bf16.msra.mxu0 %v639
  %705 = vmatprep.subr.bf16.mxu0 %v642
  %706 = vmatpush1.bf16.msra.mxu0 %v641
  %707 = vmatprep.subr.bf16.mxu0 %v644
  %708 = vmatpush1.bf16.msra.mxu0 %v643
  %709 = vmatprep.subr.bf16.mxu0 %v646
  %710 = vmatpush1.bf16.msra.mxu0 %v645
  %711 = vmatprep.subr.bf16.mxu0 %v648
  %712 = vmatpush1.bf16.msra.mxu0 %v647
  %713 = vmatprep.subr.bf16.mxu0 %v650
  %714 = vmatpush1.bf16.msra.mxu0 %v649
  %715 = vmatprep.subr.bf16.mxu0 %v652
  %716 = vmatpush1.bf16.msra.mxu0 %v651
  %717 = vmatprep.subr.bf16.mxu0 %v654
  %718 = vmatpush1.bf16.msra.mxu0 %v653
  %719 = vmatprep.subr.bf16.mxu0 %v656
  %720 = vmatpush1.bf16.msra.mxu0 %v655
  %721 = vmatprep.subr.bf16.mxu0 %v658
  %722 = vmatpush1.bf16.msra.mxu0 %v657
  %723 = vmatprep.subr.bf16.mxu0 %v660
  %724 = vmatpush1.bf16.msra.mxu0 %v659
  %725 = vmatprep.subr.bf16.mxu0 %v662
  %726 = vmatpush1.bf16.msra.mxu0 %v661
  %727 = vmatprep.subr.bf16.mxu0 %v664
  %728 = vmatpush1.bf16.msra.mxu0 %v663
  %729 = vmatprep.mubr.bf16.mxu0 %v523
  %730 = vmatmul.mubr.bf16.gmra.mrb[0].mxu0 %v522
  %v731 = vpop.f32.mrb[0].mxu0
  %v732 = vadd.f32 %v530, %v731
  %v733 = vpop.f32.mrb[0].mxu0
  %v734 = vadd.f32 %v534, %v733
  %v735 = vpop.f32.mrb[0].mxu0
  %v736 = vadd.f32 %v530, %v735
  %v737 = vpop.f32.mrb[0].mxu0
  %v738 = vadd.f32 %v534, %v737
  %739 = vmatprep.mubr.bf16.mxu0 %v525
  %740 = vmatmul.mubr.bf16.gmra.mrb[0].mxu0 %v524
  %v741 = vpop.f32.mrb[0].mxu0
  %v742 = vadd.f32 %v530, %v741
  %v743 = vpop.f32.mrb[0].mxu0
  %v744 = vadd.f32 %v534, %v743
  %v745 = vpop.f32.mrb[0].mxu0
  %v746 = vadd.f32 %v530, %v745
  %v747 = vpop.f32.mrb[0].mxu0
  %v748 = vadd.f32 %v534, %v747
  %749 = vdwg.mxu0
  %v750 = vmax.f32 %v732, 0.0
  %v751 = vmax.f32 %v734, 0.0
  %v752 = vmax.f32 %v736, 0.0
  %v753 = vmax.f32 %v738, 0.0
  %v754 = vmax.f32 %v742, 0.0
  %v755 = vmax.f32 %v744, 0.0
  %v756 = vmax.f32 %v746, 0.0
  %v757 = vmax.f32 %v748, 0.0
  %v758 = vpack.c.bf16 %v752, %v750
  %v759 = vpack.c.bf16 %v753, %v751
  %v760 = vpack.c.bf16 %v756, %v754
  %v761 = vpack.c.bf16 %v757, %v755
  %v766 = vunpack.c.l.b16 %v758
  %v767 = vunpack.c.l.b16 %v759
  %v768 = vunpack.c.h.b16 %v758
  %v769 = vunpack.c.h.b16 %v759
  %v770 = vunpack.c.l.b16 %v760
  %v771 = vunpack.c.l.b16 %v761
  %v772 = vunpack.c.h.b16 %v760
  %v773 = vunpack.c.h.b16 %v761
  %v774 = vpack.c.b16 %v767, %v766
  %v775 = vpack.c.b16 %v769, %v768
  %v776 = vpack.c.b16 %v771, %v770
  %v777 = vpack.c.b16 %v773, %v772
  %782 = vst [vmem:[%s7] sm:$0xff] %v774
  %783 = vst [vmem:[%s7 + $0x8] sm:$0xff] %v775
  %784 = vst [vmem:[%s7 + $0x10] sm:$0xff] %v776
  %785 = vst [vmem:[%s7 + $0x18] sm:$0xff] %v777
  // Predicated region
  $region30: #{pointnet2_forward.13} parent=0 // pred_check
    _
  $region31: #{pointnet2_forward.13} parent=0 // pred_check_branch
    %787 = sbr.rel (0) target = $region33
  $region32: #{pointnet2_forward.13} parent=0 // pred_region
    _
  $region33: #{pointnet2_forward.13} parent=0 // pred_fallthru
    _
  // Predicated region
  $region34: #{pointnet2_forward.13} parent=0 // pred_check
    _
  $region35: #{pointnet2_forward.13} parent=0 // pred_check_branch
    %789 = sbr.rel (0) target = $region37
  $region36: #{pointnet2_forward.13} parent=0 // pred_region
    _
  $region37: #{pointnet2_forward.13} parent=0 // pred_fallthru
    _

// kernel: pointnet2_forward.14
$region0: #{pointnet2_forward.14}
  #allocation0 [shape = 'u32[]', space=smem, size = 0x4, offset = 0x4, fixed_abs, tag = 'smem constant byte address 0x4 - core index']
  #allocation1 [shape = 'u32[144,128]{1,0:T(1,128)}', space=vmem, size = 0x12000, scoped, tag = 'internal scratch']
  %s0 = inlined_call_operand.vmem [shape: bf16[64,128], index: 0, kind: input, shape index: {}]
  %s1 = inlined_call_operand.vmem [shape: bf16[64,256], index: 1, kind: input, shape index: {}]
  %s2 = inlined_call_operand.vmem [shape: bf16[128,128], index: 2, kind: input, shape index: {}]
  %s3 = inlined_call_operand.vmem [shape: bf16[256,128], index: 3, kind: input, shape index: {}]
  %s4 = inlined_call_operand.vmem [shape: f32[1,128], index: 4, kind: input, shape index: {}]
  %s5 = inlined_call_operand.vmem [shape: bf16[128,128], index: 5, kind: input, shape index: {}]
  %s6 = inlined_call_operand.vmem [shape: f32[1,128], index: 6, kind: input, shape index: {}]
  %s7 = inlined_call_operand.vmem [shape: bf16[64,128], index: 7, kind: output, shape index: {}]
  %s8 = sld [smem:[#allocation0]]
  $region38: #{pointnet2_forward.14} parent=0
    _
  %s10 = ssub.s32 1, %s8
  %s11 = scalar_select 0, %s10, %s8
  // Predicated region
  $region2: #{pointnet2_forward.14} parent=0 // pred_check
    _
  $region3: #{pointnet2_forward.14} parent=0 // pred_check_branch
    %13 = sbr.rel (0) target = $region5
  $region4: #{pointnet2_forward.14} parent=0 // pred_region
    _
  $region5: #{pointnet2_forward.14} parent=0 // pred_fallthru
    _
  // Predicated region
  $region6: #{pointnet2_forward.14} parent=0 // pred_check
    _
  $region7: #{pointnet2_forward.14} parent=0 // pred_check_branch
    %15 = sbr.rel (0) target = $region9
  $region8: #{pointnet2_forward.14} parent=0 // pred_region
    _
  $region9: #{pointnet2_forward.14} parent=0 // pred_fallthru
    _
  // Predicated region
  $region10: #{pointnet2_forward.14} parent=0 // pred_check
    _
  $region11: #{pointnet2_forward.14} parent=0 // pred_check_branch
    %17 = sbr.rel (0) target = $region13
  $region12: #{pointnet2_forward.14} parent=0 // pred_region
    _
  $region13: #{pointnet2_forward.14} parent=0 // pred_fallthru
    _
  // Predicated region
  $region14: #{pointnet2_forward.14} parent=0 // pred_check
    _
  $region15: #{pointnet2_forward.14} parent=0 // pred_check_branch
    %19 = sbr.rel (0) target = $region17
  $region16: #{pointnet2_forward.14} parent=0 // pred_region
    _
  $region17: #{pointnet2_forward.14} parent=0 // pred_fallthru
    _
  // Predicated region
  $region18: #{pointnet2_forward.14} parent=0 // pred_check
    _
  $region19: #{pointnet2_forward.14} parent=0 // pred_check_branch
    %21 = sbr.rel (0) target = $region21
  $region20: #{pointnet2_forward.14} parent=0 // pred_region
    _
  $region21: #{pointnet2_forward.14} parent=0 // pred_fallthru
    _
  // Predicated region
  $region22: #{pointnet2_forward.14} parent=0 // pred_check
    _
  $region23: #{pointnet2_forward.14} parent=0 // pred_check_branch
    %23 = sbr.rel (0) target = $region25
  $region24: #{pointnet2_forward.14} parent=0 // pred_region
    _
  $region25: #{pointnet2_forward.14} parent=0 // pred_fallthru
    _
  // Predicated region
  $region26: #{pointnet2_forward.14} parent=0 // pred_check
    _
  $region27: #{pointnet2_forward.14} parent=0 // pred_check_branch
    %25 = sbr.rel (0) target = $region29
  $region28: #{pointnet2_forward.14} parent=0 // pred_region
    _
  $region29: #{pointnet2_forward.14} parent=0 // pred_fallthru
    _
  %v27 = vld [vmem:[%s0] sm:$0xf]
  %v28 = vld [vmem:[%s0 + $0x4] sm:$0xf]
  %v29 = vld [vmem:[%s0 + $0x8] sm:$0xf]
  %v30 = vld [vmem:[%s0 + $0xc] sm:$0xf]
  %v31 = vld [vmem:[%s0 + $0x10] sm:$0xf]
  %v32 = vld [vmem:[%s0 + $0x14] sm:$0xf]
  %v33 = vld [vmem:[%s0 + $0x18] sm:$0xf]
  %v34 = vld [vmem:[%s0 + $0x1c] sm:$0xf]
  %v35 = vld [vmem:[%s1] sm:$0xff]
  %v36 = vld [vmem:[%s1 + $0x8] sm:$0xff]
  %v37 = vld [vmem:[%s1 + $0x10] sm:$0xff]
  %v38 = vld [vmem:[%s1 + $0x18] sm:$0xff]
  %v39 = vld [vmem:[%s1 + $0x20] sm:$0xff]
  %v40 = vld [vmem:[%s1 + $0x28] sm:$0xff]
  %v41 = vld [vmem:[%s1 + $0x30] sm:$0xff]
  %v42 = vld [vmem:[%s1 + $0x38] sm:$0xff]
  %v43 = vld [vmem:[%s2] sm:$0xf]
  %v44 = vld [vmem:[%s2 + $0x4] sm:$0xf]
  %v45 = vld [vmem:[%s2 + $0x8] sm:$0xf]
  %v46 = vld [vmem:[%s2 + $0xc] sm:$0xf]
  %v47 = vld [vmem:[%s2 + $0x10] sm:$0xf]
  %v48 = vld [vmem:[%s2 + $0x14] sm:$0xf]
  %v49 = vld [vmem:[%s2 + $0x18] sm:$0xf]
  %v50 = vld [vmem:[%s2 + $0x1c] sm:$0xf]
  %v51 = vld [vmem:[%s2 + $0x20] sm:$0xf]
  %v52 = vld [vmem:[%s2 + $0x24] sm:$0xf]
  %v53 = vld [vmem:[%s2 + $0x28] sm:$0xf]
  %v54 = vld [vmem:[%s2 + $0x2c] sm:$0xf]
  %v55 = vld [vmem:[%s2 + $0x30] sm:$0xf]
  %v56 = vld [vmem:[%s2 + $0x34] sm:$0xf]
  %v57 = vld [vmem:[%s2 + $0x38] sm:$0xf]
  %v58 = vld [vmem:[%s2 + $0x3c] sm:$0xf]
  %v59 = vld [vmem:[%s3] sm:$0xf]
  %v60 = vld [vmem:[%s3 + $0x4] sm:$0xf]
  %v61 = vld [vmem:[%s3 + $0x8] sm:$0xf]
  %v62 = vld [vmem:[%s3 + $0xc] sm:$0xf]
  %v63 = vld [vmem:[%s3 + $0x10] sm:$0xf]
  %v64 = vld [vmem:[%s3 + $0x14] sm:$0xf]
  %v65 = vld [vmem:[%s3 + $0x18] sm:$0xf]
  %v66 = vld [vmem:[%s3 + $0x1c] sm:$0xf]
  %v67 = vld [vmem:[%s3 + $0x20] sm:$0xf]
  %v68 = vld [vmem:[%s3 + $0x24] sm:$0xf]
  %v69 = vld [vmem:[%s3 + $0x28] sm:$0xf]
  %v70 = vld [vmem:[%s3 + $0x2c] sm:$0xf]
  %v71 = vld [vmem:[%s3 + $0x30] sm:$0xf]
  %v72 = vld [vmem:[%s3 + $0x34] sm:$0xf]
  %v73 = vld [vmem:[%s3 + $0x38] sm:$0xf]
  %v74 = vld [vmem:[%s3 + $0x3c] sm:$0xf]
  %v75 = vld [vmem:[%s3 + $0x40] sm:$0xf]
  %v76 = vld [vmem:[%s3 + $0x44] sm:$0xf]
  %v77 = vld [vmem:[%s3 + $0x48] sm:$0xf]
  %v78 = vld [vmem:[%s3 + $0x4c] sm:$0xf]
  %v79 = vld [vmem:[%s3 + $0x50] sm:$0xf]
  %v80 = vld [vmem:[%s3 + $0x54] sm:$0xf]
  %v81 = vld [vmem:[%s3 + $0x58] sm:$0xf]
  %v82 = vld [vmem:[%s3 + $0x5c] sm:$0xf]
  %v83 = vld [vmem:[%s3 + $0x60] sm:$0xf]
  %v84 = vld [vmem:[%s3 + $0x64] sm:$0xf]
  %v85 = vld [vmem:[%s3 + $0x68] sm:$0xf]
  %v86 = vld [vmem:[%s3 + $0x6c] sm:$0xf]
  %v87 = vld [vmem:[%s3 + $0x70] sm:$0xf]
  %v88 = vld [vmem:[%s3 + $0x74] sm:$0xf]
  %v89 = vld [vmem:[%s3 + $0x78] sm:$0xf]
  %v90 = vld [vmem:[%s3 + $0x7c] sm:$0xf]
  %v91 = vld [vmem:[%s4] sm:$0x1]
  %v100 = vunpack.c.l.b16 %v35
  %v101 = vunpack.c.h.b16 %v35
  %v102 = vunpack.c.l.b16 %v36
  %v103 = vunpack.c.h.b16 %v36
  %v104 = vunpack.c.l.b16 %v37
  %v105 = vunpack.c.h.b16 %v37
  %v106 = vunpack.c.l.b16 %v38
  %v107 = vunpack.c.h.b16 %v38
  %v108 = vunpack.c.l.b16 %v39
  %v109 = vunpack.c.h.b16 %v39
  %v110 = vunpack.c.l.b16 %v40
  %v111 = vunpack.c.h.b16 %v40
  %v112 = vunpack.c.l.b16 %v41
  %v113 = vunpack.c.h.b16 %v41
  %v114 = vunpack.c.l.b16 %v42
  %v115 = vunpack.c.h.b16 %v42
  %v116 = vpack.c.b16 %v102, %v100
  %v117 = vpack.c.b16 %v103, %v101
  %v118 = vpack.c.b16 %v106, %v104
  %v119 = vpack.c.b16 %v107, %v105
  %v120 = vpack.c.b16 %v110, %v108
  %v121 = vpack.c.b16 %v111, %v109
  %v122 = vpack.c.b16 %v114, %v112
  %v123 = vpack.c.b16 %v115, %v113
  %v164 = vunpack.c.l.b16 %v59
  %v165 = vunpack.c.l.b16 %v60
  %v166 = vunpack.c.l.b16 %v61
  %v167 = vunpack.c.l.b16 %v62
  %v168 = vunpack.c.l.b16 %v63
  %v169 = vunpack.c.l.b16 %v64
  %v170 = vunpack.c.l.b16 %v65
  %v171 = vunpack.c.l.b16 %v66
  %v172 = vunpack.c.l.b16 %v67
  %v173 = vunpack.c.l.b16 %v68
  %v174 = vunpack.c.l.b16 %v69
  %v175 = vunpack.c.l.b16 %v70
  %v176 = vunpack.c.l.b16 %v71
  %v177 = vunpack.c.l.b16 %v72
  %v178 = vunpack.c.l.b16 %v73
  %v179 = vunpack.c.l.b16 %v74
  %v180 = vunpack.c.l.b16 %v75
  %v181 = vunpack.c.l.b16 %v76
  %v182 = vunpack.c.l.b16 %v77
  %v183 = vunpack.c.l.b16 %v78
  %v184 = vunpack.c.l.b16 %v79
  %v185 = vunpack.c.l.b16 %v80
  %v186 = vunpack.c.l.b16 %v81
  %v187 = vunpack.c.l.b16 %v82
  %v188 = vunpack.c.l.b16 %v83
  %v189 = vunpack.c.l.b16 %v84
  %v190 = vunpack.c.l.b16 %v85
  %v191 = vunpack.c.l.b16 %v86
  %v192 = vunpack.c.l.b16 %v87
  %v193 = vunpack.c.l.b16 %v88
  %v194 = vunpack.c.l.b16 %v89
  %v195 = vunpack.c.l.b16 %v90
  %v196 = vpack.c.b16 %v165, %v164
  %v197 = vpack.c.b16 %v167, %v166
  %v198 = vpack.c.b16 %v169, %v168
  %v199 = vpack.c.b16 %v171, %v170
  %v200 = vpack.c.b16 %v173, %v172
  %v201 = vpack.c.b16 %v175, %v174
  %v202 = vpack.c.b16 %v177, %v176
  %v203 = vpack.c.b16 %v179, %v178
  %v204 = vpack.c.b16 %v181, %v180
  %v205 = vpack.c.b16 %v183, %v182
  %v206 = vpack.c.b16 %v185, %v184
  %v207 = vpack.c.b16 %v187, %v186
  %v208 = vpack.c.b16 %v189, %v188
  %v209 = vpack.c.b16 %v191, %v190
  %v210 = vpack.c.b16 %v193, %v192
  %v211 = vpack.c.b16 %v195, %v194
  %228 = vmatprep.subr.bf16.mxu0 0
  %229 = vmatpush1.bf16.msra.mxu0 %v196
  %230 = vmatprep.subr.bf16.mxu0 0
  %231 = vmatpush1.bf16.msra.mxu0 %v197
  %232 = vmatprep.subr.bf16.mxu0 0
  %233 = vmatpush1.bf16.msra.mxu0 %v198
  %234 = vmatprep.subr.bf16.mxu0 0
  %235 = vmatpush1.bf16.msra.mxu0 %v199
  %236 = vmatprep.subr.bf16.mxu0 0
  %237 = vmatpush1.bf16.msra.mxu0 %v200
  %238 = vmatprep.subr.bf16.mxu0 0
  %239 = vmatpush1.bf16.msra.mxu0 %v201
  %240 = vmatprep.subr.bf16.mxu0 0
  %241 = vmatpush1.bf16.msra.mxu0 %v202
  %242 = vmatprep.subr.bf16.mxu0 0
  %243 = vmatpush1.bf16.msra.mxu0 %v203
  %244 = vmatprep.subr.bf16.mxu0 0
  %245 = vmatpush1.bf16.msra.mxu0 %v204
  %246 = vmatprep.subr.bf16.mxu0 0
  %247 = vmatpush1.bf16.msra.mxu0 %v205
  %248 = vmatprep.subr.bf16.mxu0 0
  %249 = vmatpush1.bf16.msra.mxu0 %v206
  %250 = vmatprep.subr.bf16.mxu0 0
  %251 = vmatpush1.bf16.msra.mxu0 %v207
  %252 = vmatprep.subr.bf16.mxu0 0
  %253 = vmatpush1.bf16.msra.mxu0 %v208
  %254 = vmatprep.subr.bf16.mxu0 0
  %255 = vmatpush1.bf16.msra.mxu0 %v209
  %256 = vmatprep.subr.bf16.mxu0 0
  %257 = vmatpush1.bf16.msra.mxu0 %v210
  %258 = vmatprep.subr.bf16.mxu0 0
  %259 = vmatpush1.bf16.msra.mxu0 %v211
  %260 = vmatprep.mubr.bf16.mxu0 %v117
  %261 = vmatmul.mubr.bf16.gmra.mrb[0].mxu0 %v116
  %v262 = vpop.f32.mrb[0].mxu0
  %v263 = vadd.f32 0.0, %v262
  %v264 = vpop.f32.mrb[0].mxu0
  %v265 = vpop.f32.mrb[0].mxu0
  %v266 = vadd.f32 0.0, %v265
  %v267 = vpop.f32.mrb[0].mxu0
  %268 = vmatprep.mubr.bf16.mxu0 %v119
  %269 = vmatmul.mubr.bf16.gmra.mrb[0].mxu0 %v118
  %v270 = vpop.f32.mrb[0].mxu0
  %v271 = vadd.f32 0.0, %v270
  %v272 = vpop.f32.mrb[0].mxu0
  %v273 = vpop.f32.mrb[0].mxu0
  %v274 = vadd.f32 0.0, %v273
  %v275 = vpop.f32.mrb[0].mxu0
  %276 = vmatprep.mubr.bf16.mxu0 %v121
  %277 = vmatmul.mubr.bf16.gmra.mrb[0].mxu0 %v120
  %v278 = vpop.f32.mrb[0].mxu0
  %v279 = vadd.f32 0.0, %v278
  %v280 = vpop.f32.mrb[0].mxu0
  %v281 = vpop.f32.mrb[0].mxu0
  %v282 = vadd.f32 0.0, %v281
  %v283 = vpop.f32.mrb[0].mxu0
  %284 = vmatprep.mubr.bf16.mxu0 %v123
  %285 = vmatmul.mubr.bf16.gmra.mrb[0].mxu0 %v122
  %v286 = vpop.f32.mrb[0].mxu0
  %v287 = vadd.f32 0.0, %v286
  %v288 = vpop.f32.mrb[0].mxu0
  %v289 = vpop.f32.mrb[0].mxu0
  %v290 = vadd.f32 0.0, %v289
  %v291 = vpop.f32.mrb[0].mxu0
  %292 = vdwg.mxu0
  %v301 = vunpack.c.l.b16 %v27
  %v302 = vunpack.c.l.b16 %v28
  %v303 = vunpack.c.l.b16 %v29
  %v304 = vunpack.c.l.b16 %v30
  %v305 = vunpack.c.l.b16 %v31
  %v306 = vunpack.c.l.b16 %v32
  %v307 = vunpack.c.l.b16 %v33
  %v308 = vunpack.c.l.b16 %v34
  %v309 = vpack.c.b16 %v302, %v301
  %v310 = vpack.c.b16 %v304, %v303
  %v311 = vpack.c.b16 %v306, %v305
  %v312 = vpack.c.b16 %v308, %v307
  %v333 = vunpack.c.l.b16 %v43
  %v334 = vunpack.c.l.b16 %v44
  %v335 = vunpack.c.l.b16 %v45
  %v336 = vunpack.c.l.b16 %v46
  %v337 = vunpack.c.l.b16 %v47
  %v338 = vunpack.c.l.b16 %v48
  %v339 = vunpack.c.l.b16 %v49
  %v340 = vunpack.c.l.b16 %v50
  %v341 = vunpack.c.l.b16 %v51
  %v342 = vunpack.c.l.b16 %v52
  %v343 = vunpack.c.l.b16 %v53
  %v344 = vunpack.c.l.b16 %v54
  %v345 = vunpack.c.l.b16 %v55
  %v346 = vunpack.c.l.b16 %v56
  %v347 = vunpack.c.l.b16 %v57
  %v348 = vunpack.c.l.b16 %v58
  %v349 = vpack.c.b16 %v334, %v333
  %v350 = vpack.c.b16 %v336, %v335
  %v351 = vpack.c.b16 %v338, %v337
  %v352 = vpack.c.b16 %v340, %v339
  %v353 = vpack.c.b16 %v342, %v341
  %v354 = vpack.c.b16 %v344, %v343
  %v355 = vpack.c.b16 %v346, %v345
  %v356 = vpack.c.b16 %v348, %v347
  %365 = vmatprep.subr.bf16.mxu0 0
  %366 = vmatpush1.bf16.msra.mxu0 %v349
  %367 = vmatprep.subr.bf16.mxu0 0
  %368 = vmatpush1.bf16.msra.mxu0 %v350
  %369 = vmatprep.subr.bf16.mxu0 0
  %370 = vmatpush1.bf16.msra.mxu0 %v351
  %371 = vmatprep.subr.bf16.mxu0 0
  %372 = vmatpush1.bf16.msra.mxu0 %v352
  %373 = vmatprep.subr.bf16.mxu0 0
  %374 = vmatpush1.bf16.msra.mxu0 %v353
  %375 = vmatprep.subr.bf16.mxu0 0
  %376 = vmatpush1.bf16.msra.mxu0 %v354
  %377 = vmatprep.subr.bf16.mxu0 0
  %378 = vmatpush1.bf16.msra.mxu0 %v355
  %379 = vmatprep.subr.bf16.mxu0 0
  %380 = vmatpush1.bf16.msra.mxu0 %v356
  %381 = vmatprep.subr.bf16.mxu0 0
  %382 = vmatpush1.bf16.msra.mxu0 0
  %383 = vmatprep.subr.bf16.mxu0 0
  %384 = vmatpush1.bf16.msra.mxu0 0
  %385 = vmatprep.subr.bf16.mxu0 0
  %386 = vmatpush1.bf16.msra.mxu0 0
  %387 = vmatprep.subr.bf16.mxu0 0
  %388 = vmatpush1.bf16.msra.mxu0 0
  %389 = vmatprep.subr.bf16.mxu0 0
  %390 = vmatpush1.bf16.msra.mxu0 0
  %391 = vmatprep.subr.bf16.mxu0 0
  %392 = vmatpush1.bf16.msra.mxu0 0
  %393 = vmatprep.subr.bf16.mxu0 0
  %394 = vmatpush1.bf16.msra.mxu0 0
  %395 = vmatprep.subr.bf16.mxu0 0
  %396 = vmatpush1.bf16.msra.mxu0 0
  %397 = vmatprep.mubr.bf16.mxu0 0
  %398 = vmatmul.mubr.bf16.gmra.mrb[0].mxu0 %v309
  %v399 = vpop.f32.mrb[0].mxu0
  %v400 = vadd.f32 %v263, %v399
  %v401 = vpop.f32.mrb[0].mxu0
  %v402 = vpop.f32.mrb[0].mxu0
  %v403 = vadd.f32 %v266, %v402
  %v404 = vpop.f32.mrb[0].mxu0
  %405 = vmatprep.mubr.bf16.mxu0 0
  %406 = vmatmul.mubr.bf16.gmra.mrb[0].mxu0 %v310
  %v407 = vpop.f32.mrb[0].mxu0
  %v408 = vadd.f32 %v271, %v407
  %v409 = vpop.f32.mrb[0].mxu0
  %v410 = vpop.f32.mrb[0].mxu0
  %v411 = vadd.f32 %v274, %v410
  %v412 = vpop.f32.mrb[0].mxu0
  %413 = vmatprep.mubr.bf16.mxu0 0
  %414 = vmatmul.mubr.bf16.gmra.mrb[0].mxu0 %v311
  %v415 = vpop.f32.mrb[0].mxu0
  %v416 = vadd.f32 %v279, %v415
  %v417 = vpop.f32.mrb[0].mxu0
  %v418 = vpop.f32.mrb[0].mxu0
  %v419 = vadd.f32 %v282, %v418
  %v420 = vpop.f32.mrb[0].mxu0
  %421 = vmatprep.mubr.bf16.mxu0 0
  %422 = vmatmul.mubr.bf16.gmra.mrb[0].mxu0 %v312
  %v423 = vpop.f32.mrb[0].mxu0
  %v424 = vadd.f32 %v287, %v423
  %v425 = vpop.f32.mrb[0].mxu0
  %v426 = vpop.f32.mrb[0].mxu0
  %v427 = vadd.f32 %v290, %v426
  %v428 = vpop.f32.mrb[0].mxu0
  %429 = vdwg.mxu0
  %v431 = vlaneseq
  %v432 = vshrl.u32 %v431, 7
  %v433 = vsub.s32 0, %v432
  %v434 = vrot.slane %v91, %v433
  %v436 = vadd.f32 %v400, %v434
  %v437 = vadd.f32 %v403, %v434
  %v438 = vadd.f32 %v408, %v434
  %v439 = vadd.f32 %v411, %v434
  %v440 = vadd.f32 %v416, %v434
  %v441 = vadd.f32 %v419, %v434
  %v442 = vadd.f32 %v424, %v434
  %v443 = vadd.f32 %v427, %v434
  %v444 = vmax.f32 %v436, 0.0
  %v445 = vmax.f32 %v437, 0.0
  %v446 = vmax.f32 %v438, 0.0
  %v447 = vmax.f32 %v439, 0.0
  %v448 = vmax.f32 %v440, 0.0
  %v449 = vmax.f32 %v441, 0.0
  %v450 = vmax.f32 %v442, 0.0
  %v451 = vmax.f32 %v443, 0.0
  %v452 = vld [vmem:[%s5] sm:$0xf]
  %v453 = vld [vmem:[%s5 + $0x4] sm:$0xf]
  %v454 = vld [vmem:[%s5 + $0x8] sm:$0xf]
  %v455 = vld [vmem:[%s5 + $0xc] sm:$0xf]
  %v456 = vld [vmem:[%s5 + $0x10] sm:$0xf]
  %v457 = vld [vmem:[%s5 + $0x14] sm:$0xf]
  %v458 = vld [vmem:[%s5 + $0x18] sm:$0xf]
  %v459 = vld [vmem:[%s5 + $0x1c] sm:$0xf]
  %v460 = vld [vmem:[%s5 + $0x20] sm:$0xf]
  %v461 = vld [vmem:[%s5 + $0x24] sm:$0xf]
  %v462 = vld [vmem:[%s5 + $0x28] sm:$0xf]
  %v463 = vld [vmem:[%s5 + $0x2c] sm:$0xf]
  %v464 = vld [vmem:[%s5 + $0x30] sm:$0xf]
  %v465 = vld [vmem:[%s5 + $0x34] sm:$0xf]
  %v466 = vld [vmem:[%s5 + $0x38] sm:$0xf]
  %v467 = vld [vmem:[%s5 + $0x3c] sm:$0xf]
  %v468 = vld [vmem:[%s6] sm:$0x1]
  %v469 = vpack.c.bf16 %v445, %v444
  %v470 = vpack.c.bf16 %v447, %v446
  %v471 = vpack.c.bf16 %v449, %v448
  %v472 = vpack.c.bf16 %v451, %v450
  %v474 = vlaneseq
  %v475 = vshrl.u32 %v474, 7
  %v476 = vsub.s32 0, %v475
  %v477 = vrot.slane %v468, %v476
  %v495 = vunpack.c.l.b16 %v452
  %v496 = vunpack.c.l.b16 %v453
  %v497 = vunpack.c.l.b16 %v454
  %v498 = vunpack.c.l.b16 %v455
  %v499 = vunpack.c.l.b16 %v456
  %v500 = vunpack.c.l.b16 %v457
  %v501 = vunpack.c.l.b16 %v458
  %v502 = vunpack.c.l.b16 %v459
  %v503 = vunpack.c.l.b16 %v460
  %v504 = vunpack.c.l.b16 %v461
  %v505 = vunpack.c.l.b16 %v462
  %v506 = vunpack.c.l.b16 %v463
  %v507 = vunpack.c.l.b16 %v464
  %v508 = vunpack.c.l.b16 %v465
  %v509 = vunpack.c.l.b16 %v466
  %v510 = vunpack.c.l.b16 %v467
  %v511 = vpack.c.b16 %v496, %v495
  %v512 = vpack.c.b16 %v498, %v497
  %v513 = vpack.c.b16 %v500, %v499
  %v514 = vpack.c.b16 %v502, %v501
  %v515 = vpack.c.b16 %v504, %v503
  %v516 = vpack.c.b16 %v506, %v505
  %v517 = vpack.c.b16 %v508, %v507
  %v518 = vpack.c.b16 %v510, %v509
  %527 = vmatprep.subr.bf16.mxu0 0
  %528 = vmatpush1.bf16.msra.mxu0 %v511
  %529 = vmatprep.subr.bf16.mxu0 0
  %530 = vmatpush1.bf16.msra.mxu0 %v512
  %531 = vmatprep.subr.bf16.mxu0 0
  %532 = vmatpush1.bf16.msra.mxu0 %v513
  %533 = vmatprep.subr.bf16.mxu0 0
  %534 = vmatpush1.bf16.msra.mxu0 %v514
  %535 = vmatprep.subr.bf16.mxu0 0
  %536 = vmatpush1.bf16.msra.mxu0 %v515
  %537 = vmatprep.subr.bf16.mxu0 0
  %538 = vmatpush1.bf16.msra.mxu0 %v516
  %539 = vmatprep.subr.bf16.mxu0 0
  %540 = vmatpush1.bf16.msra.mxu0 %v517
  %541 = vmatprep.subr.bf16.mxu0 0
  %542 = vmatpush1.bf16.msra.mxu0 %v518
  %543 = vmatprep.subr.bf16.mxu0 0
  %544 = vmatpush1.bf16.msra.mxu0 0
  %545 = vmatprep.subr.bf16.mxu0 0
  %546 = vmatpush1.bf16.msra.mxu0 0
  %547 = vmatprep.subr.bf16.mxu0 0
  %548 = vmatpush1.bf16.msra.mxu0 0
  %549 = vmatprep.subr.bf16.mxu0 0
  %550 = vmatpush1.bf16.msra.mxu0 0
  %551 = vmatprep.subr.bf16.mxu0 0
  %552 = vmatpush1.bf16.msra.mxu0 0
  %553 = vmatprep.subr.bf16.mxu0 0
  %554 = vmatpush1.bf16.msra.mxu0 0
  %555 = vmatprep.subr.bf16.mxu0 0
  %556 = vmatpush1.bf16.msra.mxu0 0
  %557 = vmatprep.subr.bf16.mxu0 0
  %558 = vmatpush1.bf16.msra.mxu0 0
  %559 = vmatprep.mubr.bf16.mxu0 0
  %560 = vmatmul.mubr.bf16.gmra.mrb[0].mxu0 %v469
  %v561 = vpop.f32.mrb[0].mxu0
  %v562 = vadd.f32 %v477, %v561
  %v563 = vpop.f32.mrb[0].mxu0
  %v564 = vpop.f32.mrb[0].mxu0
  %v565 = vadd.f32 %v477, %v564
  %v566 = vpop.f32.mrb[0].mxu0
  %567 = vmatprep.mubr.bf16.mxu0 0
  %568 = vmatmul.mubr.bf16.gmra.mrb[0].mxu0 %v470
  %v569 = vpop.f32.mrb[0].mxu0
  %v570 = vadd.f32 %v477, %v569
  %v571 = vpop.f32.mrb[0].mxu0
  %v572 = vpop.f32.mrb[0].mxu0
  %v573 = vadd.f32 %v477, %v572
  %v574 = vpop.f32.mrb[0].mxu0
  %575 = vmatprep.mubr.bf16.mxu0 0
  %576 = vmatmul.mubr.bf16.gmra.mrb[0].mxu0 %v471
  %v577 = vpop.f32.mrb[0].mxu0
  %v578 = vadd.f32 %v477, %v577
  %v579 = vpop.f32.mrb[0].mxu0
  %v580 = vpop.f32.mrb[0].mxu0
  %v581 = vadd.f32 %v477, %v580
  %v582 = vpop.f32.mrb[0].mxu0
  %583 = vmatprep.mubr.bf16.mxu0 0
  %584 = vmatmul.mubr.bf16.gmra.mrb[0].mxu0 %v472
  %v585 = vpop.f32.mrb[0].mxu0
  %v586 = vadd.f32 %v477, %v585
  %v587 = vpop.f32.mrb[0].mxu0
  %v588 = vpop.f32.mrb[0].mxu0
  %v589 = vadd.f32 %v477, %v588
  %v590 = vpop.f32.mrb[0].mxu0
  %591 = vdwg.mxu0
  %v592 = vmax.f32 %v562, 0.0
  %v593 = vmax.f32 %v565, 0.0
  %v594 = vmax.f32 %v570, 0.0
  %v595 = vmax.f32 %v573, 0.0
  %v596 = vmax.f32 %v578, 0.0
  %v597 = vmax.f32 %v581, 0.0
  %v598 = vmax.f32 %v586, 0.0
  %v599 = vmax.f32 %v589, 0.0
  %v600 = vpack.c.bf16 %v593, %v592
  %v601 = vpack.c.bf16 %v595, %v594
  %v602 = vpack.c.bf16 %v597, %v596
  %v603 = vpack.c.bf16 %v599, %v598
  %v608 = vunpack.c.l.b16 %v600
  %v609 = vunpack.c.h.b16 %v600
  %v610 = vunpack.c.l.b16 %v601
  %v611 = vunpack.c.h.b16 %v601
  %v612 = vunpack.c.l.b16 %v602
  %v613 = vunpack.c.h.b16 %v602
  %v614 = vunpack.c.l.b16 %v603
  %v615 = vunpack.c.h.b16 %v603
  %v616 = vpack.c.b16 %v608, %v608
  %v617 = vpack.c.b16 %v609, %v609
  %v618 = vpack.c.b16 %v610, %v610
  %v619 = vpack.c.b16 %v611, %v611
  %v620 = vpack.c.b16 %v612, %v612
  %v621 = vpack.c.b16 %v613, %v613
  %v622 = vpack.c.b16 %v614, %v614
  %v623 = vpack.c.b16 %v615, %v615
  %632 = vst [vmem:[%s7] sm:$0xf] %v616
  %633 = vst [vmem:[%s7 + $0x4] sm:$0xf] %v617
  %634 = vst [vmem:[%s7 + $0x8] sm:$0xf] %v618
  %635 = vst [vmem:[%s7 + $0xc] sm:$0xf] %v619
  %636 = vst [vmem:[%s7 + $0x10] sm:$0xf] %v620
  %637 = vst [vmem:[%s7 + $0x14] sm:$0xf] %v621
  %638 = vst [vmem:[%s7 + $0x18] sm:$0xf] %v622
  %639 = vst [vmem:[%s7 + $0x1c] sm:$0xf] %v623
  // Predicated region
  $region30: #{pointnet2_forward.14} parent=0 // pred_check
    _
  $region31: #{pointnet2_forward.14} parent=0 // pred_check_branch
    %641 = sbr.rel (0) target = $region33
  $region32: #{pointnet2_forward.14} parent=0 // pred_region
    _
  $region33: #{pointnet2_forward.14} parent=0 // pred_fallthru
    _
  // Predicated region
  $region34: #{pointnet2_forward.14} parent=0 // pred_check
    _
  $region35: #{pointnet2_forward.14} parent=0 // pred_check_branch
    %643 = sbr.rel (0) target = $region37
  $region36: #{pointnet2_forward.14} parent=0 // pred_region
    _
  $region37: #{pointnet2_forward.14} parent=0 // pred_fallthru
    _

// kernel: pointnet2_forward.15
$region0: #{pointnet2_forward.15}
  #allocation0 [shape = 'u32[]', space=smem, size = 0x4, offset = 0x4, fixed_abs, tag = 'smem constant byte address 0x4 - core index']
  #allocation1 [shape = 'u32[144,128]{1,0:T(1,128)}', space=vmem, size = 0x12000, scoped, tag = 'internal scratch']
  %s0 = inlined_call_operand.vmem [shape: f32[128,5], index: 0, kind: input, shape index: {}]
  %s1 = inlined_call_operand.vmem [shape: bf16[128,128], index: 1, kind: input, shape index: {}]
  %s2 = inlined_call_operand.vmem [shape: bf16[5,128], index: 2, kind: input, shape index: {}]
  %s3 = inlined_call_operand.vmem [shape: bf16[128,128], index: 3, kind: input, shape index: {}]
  %s4 = inlined_call_operand.vmem [shape: f32[1,128], index: 4, kind: input, shape index: {}]
  %s5 = inlined_call_operand.vmem [shape: bf16[128,64], index: 5, kind: input, shape index: {}]
  %s6 = inlined_call_operand.vmem [shape: f32[1,64], index: 6, kind: input, shape index: {}]
  %s7 = inlined_call_operand.vmem [shape: bf16[64,64], index: 7, kind: input, shape index: {}]
  %s8 = inlined_call_operand.vmem [shape: f32[1,64], index: 8, kind: input, shape index: {}]
  %s9 = inlined_call_operand.vmem [shape: bf16[64,128], index: 9, kind: input, shape index: {}]
  %s10 = inlined_call_operand.vmem [shape: f32[1,128], index: 10, kind: input, shape index: {}]
  %s11 = inlined_call_operand.vmem [shape: f32[128,128], index: 11, kind: output, shape index: {}]
  %s12 = sld [smem:[#allocation0]]
  $region54: #{pointnet2_forward.15} parent=0
    _
  %s14 = ssub.s32 1, %s12
  %s15 = scalar_select 0, %s14, %s12
  // Predicated region
  $region2: #{pointnet2_forward.15} parent=0 // pred_check
    _
  $region3: #{pointnet2_forward.15} parent=0 // pred_check_branch
    %17 = sbr.rel (0) target = $region5
  $region4: #{pointnet2_forward.15} parent=0 // pred_region
    _
  $region5: #{pointnet2_forward.15} parent=0 // pred_fallthru
    _
  // Predicated region
  $region6: #{pointnet2_forward.15} parent=0 // pred_check
    _
  $region7: #{pointnet2_forward.15} parent=0 // pred_check_branch
    %19 = sbr.rel (0) target = $region9
  $region8: #{pointnet2_forward.15} parent=0 // pred_region
    _
  $region9: #{pointnet2_forward.15} parent=0 // pred_fallthru
    _
  // Predicated region
  $region10: #{pointnet2_forward.15} parent=0 // pred_check
    _
  $region11: #{pointnet2_forward.15} parent=0 // pred_check_branch
    %21 = sbr.rel (0) target = $region13
  $region12: #{pointnet2_forward.15} parent=0 // pred_region
    _
  $region13: #{pointnet2_forward.15} parent=0 // pred_fallthru
    _
  // Predicated region
  $region14: #{pointnet2_forward.15} parent=0 // pred_check
    _
  $region15: #{pointnet2_forward.15} parent=0 // pred_check_branch
    %23 = sbr.rel (0) target = $region17
  $region16: #{pointnet2_forward.15} parent=0 // pred_region
    _
  $region17: #{pointnet2_forward.15} parent=0 // pred_fallthru
    _
  // Predicated region
  $region18: #{pointnet2_forward.15} parent=0 // pred_check
    _
  $region19: #{pointnet2_forward.15} parent=0 // pred_check_branch
    %25 = sbr.rel (0) target = $region21
  $region20: #{pointnet2_forward.15} parent=0 // pred_region
    _
  $region21: #{pointnet2_forward.15} parent=0 // pred_fallthru
    _
  // Predicated region
  $region22: #{pointnet2_forward.15} parent=0 // pred_check
    _
  $region23: #{pointnet2_forward.15} parent=0 // pred_check_branch
    %27 = sbr.rel (0) target = $region25
  $region24: #{pointnet2_forward.15} parent=0 // pred_region
    _
  $region25: #{pointnet2_forward.15} parent=0 // pred_fallthru
    _
  // Predicated region
  $region26: #{pointnet2_forward.15} parent=0 // pred_check
    _
  $region27: #{pointnet2_forward.15} parent=0 // pred_check_branch
    %29 = sbr.rel (0) target = $region29
  $region28: #{pointnet2_forward.15} parent=0 // pred_region
    _
  $region29: #{pointnet2_forward.15} parent=0 // pred_fallthru
    _
  // Predicated region
  $region30: #{pointnet2_forward.15} parent=0 // pred_check
    _
  $region31: #{pointnet2_forward.15} parent=0 // pred_check_branch
    %31 = sbr.rel (0) target = $region33
  $region32: #{pointnet2_forward.15} parent=0 // pred_region
    _
  $region33: #{pointnet2_forward.15} parent=0 // pred_fallthru
    _
  // Predicated region
  $region34: #{pointnet2_forward.15} parent=0 // pred_check
    _
  $region35: #{pointnet2_forward.15} parent=0 // pred_check_branch
    %33 = sbr.rel (0) target = $region37
  $region36: #{pointnet2_forward.15} parent=0 // pred_region
    _
  $region37: #{pointnet2_forward.15} parent=0 // pred_fallthru
    _
  // Predicated region
  $region38: #{pointnet2_forward.15} parent=0 // pred_check
    _
  $region39: #{pointnet2_forward.15} parent=0 // pred_check_branch
    %35 = sbr.rel (0) target = $region41
  $region40: #{pointnet2_forward.15} parent=0 // pred_region
    _
  $region41: #{pointnet2_forward.15} parent=0 // pred_fallthru
    _
  // Predicated region
  $region42: #{pointnet2_forward.15} parent=0 // pred_check
    _
  $region43: #{pointnet2_forward.15} parent=0 // pred_check_branch
    %37 = sbr.rel (0) target = $region45
  $region44: #{pointnet2_forward.15} parent=0 // pred_region
    _
  $region45: #{pointnet2_forward.15} parent=0 // pred_fallthru
    _
  %v39 = vld [vmem:[%s0] sm:$0xff]
  %v40 = vld [vmem:[%s0 + $0x8] sm:$0xff]
  %v41 = vld [vmem:[%s0 + $0x10] sm:$0xff]
  %v42 = vld [vmem:[%s0 + $0x18] sm:$0xff]
  %v43 = vld [vmem:[%s0 + $0x20] sm:$0xff]
  %v44 = vld [vmem:[%s0 + $0x28] sm:$0xff]
  %v45 = vld [vmem:[%s0 + $0x30] sm:$0xff]
  %v46 = vld [vmem:[%s0 + $0x38] sm:$0xff]
  %v47 = vld [vmem:[%s0 + $0x40] sm:$0xff]
  %v48 = vld [vmem:[%s0 + $0x48] sm:$0xff]
  %v49 = vld [vmem:[%s0 + $0x50] sm:$0xff]
  %v50 = vld [vmem:[%s0 + $0x58] sm:$0xff]
  %v51 = vld [vmem:[%s0 + $0x60] sm:$0xff]
  %v52 = vld [vmem:[%s0 + $0x68] sm:$0xff]
  %v53 = vld [vmem:[%s0 + $0x70] sm:$0xff]
  %v54 = vld [vmem:[%s0 + $0x78] sm:$0xff]
  %v55 = vld [vmem:[%s1] sm:$0xf]
  %v56 = vld [vmem:[%s1 + $0x4] sm:$0xf]
  %v57 = vld [vmem:[%s1 + $0x8] sm:$0xf]
  %v58 = vld [vmem:[%s1 + $0xc] sm:$0xf]
  %v59 = vld [vmem:[%s1 + $0x10] sm:$0xf]
  %v60 = vld [vmem:[%s1 + $0x14] sm:$0xf]
  %v61 = vld [vmem:[%s1 + $0x18] sm:$0xf]
  %v62 = vld [vmem:[%s1 + $0x1c] sm:$0xf]
  %v63 = vld [vmem:[%s1 + $0x20] sm:$0xf]
  %v64 = vld [vmem:[%s1 + $0x24] sm:$0xf]
  %v65 = vld [vmem:[%s1 + $0x28] sm:$0xf]
  %v66 = vld [vmem:[%s1 + $0x2c] sm:$0xf]
  %v67 = vld [vmem:[%s1 + $0x30] sm:$0xf]
  %v68 = vld [vmem:[%s1 + $0x34] sm:$0xf]
  %v69 = vld [vmem:[%s1 + $0x38] sm:$0xf]
  %v70 = vld [vmem:[%s1 + $0x3c] sm:$0xf]
  %v71 = vld [vmem:[%s2] sm:$0x7]
  %v72 = vld [vmem:[%s3] sm:$0xf]
  %v73 = vld [vmem:[%s3 + $0x4] sm:$0xf]
  %v74 = vld [vmem:[%s3 + $0x8] sm:$0xf]
  %v75 = vld [vmem:[%s3 + $0xc] sm:$0xf]
  %v76 = vld [vmem:[%s3 + $0x10] sm:$0xf]
  %v77 = vld [vmem:[%s3 + $0x14] sm:$0xf]
  %v78 = vld [vmem:[%s3 + $0x18] sm:$0xf]
  %v79 = vld [vmem:[%s3 + $0x1c] sm:$0xf]
  %v80 = vld [vmem:[%s3 + $0x20] sm:$0xf]
  %v81 = vld [vmem:[%s3 + $0x24] sm:$0xf]
  %v82 = vld [vmem:[%s3 + $0x28] sm:$0xf]
  %v83 = vld [vmem:[%s3 + $0x2c] sm:$0xf]
  %v84 = vld [vmem:[%s3 + $0x30] sm:$0xf]
  %v85 = vld [vmem:[%s3 + $0x34] sm:$0xf]
  %v86 = vld [vmem:[%s3 + $0x38] sm:$0xf]
  %v87 = vld [vmem:[%s3 + $0x3c] sm:$0xf]
  %v88 = vld [vmem:[%s4] sm:$0x1]
  %v89 = vpack.c.bf16 %v40, %v39
  %v90 = vpack.c.bf16 %v42, %v41
  %v91 = vpack.c.bf16 %v44, %v43
  %v92 = vpack.c.bf16 %v46, %v45
  %v93 = vpack.c.bf16 %v48, %v47
  %v94 = vpack.c.bf16 %v50, %v49
  %v95 = vpack.c.bf16 %v52, %v51
  %v96 = vpack.c.bf16 %v54, %v53
  %v113 = vunpack.c.l.b16 %v55
  %v114 = vunpack.c.l.b16 %v56
  %v115 = vunpack.c.l.b16 %v57
  %v116 = vunpack.c.l.b16 %v58
  %v117 = vunpack.c.l.b16 %v59
  %v118 = vunpack.c.l.b16 %v60
  %v119 = vunpack.c.l.b16 %v61
  %v120 = vunpack.c.l.b16 %v62
  %v121 = vunpack.c.l.b16 %v63
  %v122 = vunpack.c.l.b16 %v64
  %v123 = vunpack.c.l.b16 %v65
  %v124 = vunpack.c.l.b16 %v66
  %v125 = vunpack.c.l.b16 %v67
  %v126 = vunpack.c.l.b16 %v68
  %v127 = vunpack.c.l.b16 %v69
  %v128 = vunpack.c.l.b16 %v70
  %v129 = vpack.c.b16 %v114, %v113
  %v130 = vpack.c.b16 %v116, %v115
  %v131 = vpack.c.b16 %v118, %v117
  %v132 = vpack.c.b16 %v120, %v119
  %v133 = vpack.c.b16 %v122, %v121
  %v134 = vpack.c.b16 %v124, %v123
  %v135 = vpack.c.b16 %v126, %v125
  %v136 = vpack.c.b16 %v128, %v127
  %v161 = vunpack.c.l.b16 %v72
  %v162 = vunpack.c.l.b16 %v73
  %v163 = vunpack.c.l.b16 %v74
  %v164 = vunpack.c.l.b16 %v75
  %v165 = vunpack.c.l.b16 %v76
  %v166 = vunpack.c.l.b16 %v77
  %v167 = vunpack.c.l.b16 %v78
  %v168 = vunpack.c.l.b16 %v79
  %v169 = vunpack.c.l.b16 %v80
  %v170 = vunpack.c.l.b16 %v81
  %v171 = vunpack.c.l.b16 %v82
  %v172 = vunpack.c.l.b16 %v83
  %v173 = vunpack.c.l.b16 %v84
  %v174 = vunpack.c.l.b16 %v85
  %v175 = vunpack.c.l.b16 %v86
  %v176 = vunpack.c.l.b16 %v87
  %v177 = vpack.c.b16 %v162, %v161
  %v178 = vpack.c.b16 %v164, %v163
  %v179 = vpack.c.b16 %v166, %v165
  %v180 = vpack.c.b16 %v168, %v167
  %v181 = vpack.c.b16 %v170, %v169
  %v182 = vpack.c.b16 %v172, %v171
  %v183 = vpack.c.b16 %v174, %v173
  %v184 = vpack.c.b16 %v176, %v175
  %193 = vmatprep.subr.bf16.mxu0 0
  %194 = vmatpush1.bf16.msra.mxu0 %v177
  %195 = vmatprep.subr.bf16.mxu0 0
  %196 = vmatpush1.bf16.msra.mxu0 %v178
  %197 = vmatprep.subr.bf16.mxu0 0
  %198 = vmatpush1.bf16.msra.mxu0 %v179
  %199 = vmatprep.subr.bf16.mxu0 0
  %200 = vmatpush1.bf16.msra.mxu0 %v180
  %201 = vmatprep.subr.bf16.mxu0 0
  %202 = vmatpush1.bf16.msra.mxu0 %v181
  %203 = vmatprep.subr.bf16.mxu0 0
  %204 = vmatpush1.bf16.msra.mxu0 %v182
  %205 = vmatprep.subr.bf16.mxu0 0
  %206 = vmatpush1.bf16.msra.mxu0 %v183
  %207 = vmatprep.subr.bf16.mxu0 0
  %208 = vmatpush1.bf16.msra.mxu0 %v184
  %209 = vmatprep.subr.bf16.mxu0 0
  %210 = vmatpush1.bf16.msra.mxu0 0
  %211 = vmatprep.subr.bf16.mxu0 0
  %212 = vmatpush1.bf16.msra.mxu0 0
  %213 = vmatprep.subr.bf16.mxu0 0
  %214 = vmatpush1.bf16.msra.mxu0 0
  %215 = vmatprep.subr.bf16.mxu0 0
  %216 = vmatpush1.bf16.msra.mxu0 0
  %217 = vmatprep.subr.bf16.mxu0 0
  %218 = vmatpush1.bf16.msra.mxu0 0
  %219 = vmatprep.subr.bf16.mxu0 0
  %220 = vmatpush1.bf16.msra.mxu0 0
  %221 = vmatprep.subr.bf16.mxu0 0
  %222 = vmatpush1.bf16.msra.mxu0 0
  %223 = vmatprep.subr.bf16.mxu0 0
  %224 = vmatpush1.bf16.msra.mxu0 0
  %225 = vmatprep.mubr.bf16.mxu0 0
  %226 = vmatmul.mubr.bf16.gmra.mrb[0].mxu0 %v129
  %v227 = vpop.f32.mrb[0].mxu0
  %v228 = vadd.f32 0.0, %v227
  %v229 = vpop.f32.mrb[0].mxu0
  %v230 = vpop.f32.mrb[0].mxu0
  %v231 = vadd.f32 0.0, %v230
  %v232 = vpop.f32.mrb[0].mxu0
  %233 = vmatprep.mubr.bf16.mxu0 0
  %234 = vmatmul.mubr.bf16.gmra.mrb[0].mxu0 %v130
  %v235 = vpop.f32.mrb[0].mxu0
  %v236 = vadd.f32 0.0, %v235
  %v237 = vpop.f32.mrb[0].mxu0
  %v238 = vpop.f32.mrb[0].mxu0
  %v239 = vadd.f32 0.0, %v238
  %v240 = vpop.f32.mrb[0].mxu0
  %241 = vmatprep.mubr.bf16.mxu0 0
  %242 = vmatmul.mubr.bf16.gmra.mrb[0].mxu0 %v131
  %v243 = vpop.f32.mrb[0].mxu0
  %v244 = vadd.f32 0.0, %v243
  %v245 = vpop.f32.mrb[0].mxu0
  %v246 = vpop.f32.mrb[0].mxu0
  %v247 = vadd.f32 0.0, %v246
  %v248 = vpop.f32.mrb[0].mxu0
  %249 = vmatprep.mubr.bf16.mxu0 0
  %250 = vmatmul.mubr.bf16.gmra.mrb[0].mxu0 %v132
  %v251 = vpop.f32.mrb[0].mxu0
  %v252 = vadd.f32 0.0, %v251
  %v253 = vpop.f32.mrb[0].mxu0
  %v254 = vpop.f32.mrb[0].mxu0
  %v255 = vadd.f32 0.0, %v254
  %v256 = vpop.f32.mrb[0].mxu0
  %257 = vmatprep.mubr.bf16.mxu0 0
  %258 = vmatmul.mubr.bf16.gmra.mrb[0].mxu0 %v133
  %v259 = vpop.f32.mrb[0].mxu0
  %v260 = vadd.f32 0.0, %v259
  %v261 = vpop.f32.mrb[0].mxu0
  %v262 = vpop.f32.mrb[0].mxu0
  %v263 = vadd.f32 0.0, %v262
  %v264 = vpop.f32.mrb[0].mxu0
  %265 = vmatprep.mubr.bf16.mxu0 0
  %266 = vmatmul.mubr.bf16.gmra.mrb[0].mxu0 %v134
  %v267 = vpop.f32.mrb[0].mxu0
  %v268 = vadd.f32 0.0, %v267
  %v269 = vpop.f32.mrb[0].mxu0
  %v270 = vpop.f32.mrb[0].mxu0
  %v271 = vadd.f32 0.0, %v270
  %v272 = vpop.f32.mrb[0].mxu0
  %273 = vmatprep.mubr.bf16.mxu0 0
  %274 = vmatmul.mubr.bf16.gmra.mrb[0].mxu0 %v135
  %v275 = vpop.f32.mrb[0].mxu0
  %v276 = vadd.f32 0.0, %v275
  %v277 = vpop.f32.mrb[0].mxu0
  %v278 = vpop.f32.mrb[0].mxu0
  %v279 = vadd.f32 0.0, %v278
  %v280 = vpop.f32.mrb[0].mxu0
  %281 = vmatprep.mubr.bf16.mxu0 0
  %282 = vmatmul.mubr.bf16.gmra.mrb[0].mxu0 %v136
  %v283 = vpop.f32.mrb[0].mxu0
  %v284 = vadd.f32 0.0, %v283
  %v285 = vpop.f32.mrb[0].mxu0
  %v286 = vpop.f32.mrb[0].mxu0
  %v287 = vadd.f32 0.0, %v286
  %v288 = vpop.f32.mrb[0].mxu0
  %289 = vdwg.mxu0
  %vm290 = vcmask 39936
  %v292 = vsel %vm290, %v89, 0
  %v295 = vsel %vm290, %v90, 0
  %v298 = vsel %vm290, %v91, 0
  %v301 = vsel %vm290, %v92, 0
  %v304 = vsel %vm290, %v93, 0
  %v307 = vsel %vm290, %v94, 0
  %v310 = vsel %vm290, %v95, 0
  %v313 = vsel %vm290, %v96, 0
  %vm315 = vcmask 1041408
  %vm316 = vcmask 1042432
  %v317 = vsel %vm315, 4294967295, 65535
  %v318 = vsel %vm316, %v317, 0
  %v320 = vand.u32 %v71, %v318
  %322 = vmatprep.subr.bf16.mxu0 0
  %323 = vmatpush1.bf16.msra.mxu0 %v320
  %324 = vmatprep.subr.bf16.mxu0 0
  %325 = vmatpush1.bf16.msra.mxu0 0
  %326 = vmatprep.subr.bf16.mxu0 0
  %327 = vmatpush1.bf16.msra.mxu0 0
  %328 = vmatprep.subr.bf16.mxu0 0
  %329 = vmatpush1.bf16.msra.mxu0 0
  %330 = vmatprep.subr.bf16.mxu0 0
  %331 = vmatpush1.bf16.msra.mxu0 0
  %332 = vmatprep.subr.bf16.mxu0 0
  %333 = vmatpush1.bf16.msra.mxu0 0
  %334 = vmatprep.subr.bf16.mxu0 0
  %335 = vmatpush1.bf16.msra.mxu0 0
  %336 = vmatprep.subr.bf16.mxu0 0
  %337 = vmatpush1.bf16.msra.mxu0 0
  %338 = vmatprep.subr.bf16.mxu0 0
  %339 = vmatpush1.bf16.msra.mxu0 0
  %340 = vmatprep.subr.bf16.mxu0 0
  %341 = vmatpush1.bf16.msra.mxu0 0
  %342 = vmatprep.subr.bf16.mxu0 0
  %343 = vmatpush1.bf16.msra.mxu0 0
  %344 = vmatprep.subr.bf16.mxu0 0
  %345 = vmatpush1.bf16.msra.mxu0 0
  %346 = vmatprep.subr.bf16.mxu0 0
  %347 = vmatpush1.bf16.msra.mxu0 0
  %348 = vmatprep.subr.bf16.mxu0 0
  %349 = vmatpush1.bf16.msra.mxu0 0
  %350 = vmatprep.subr.bf16.mxu0 0
  %351 = vmatpush1.bf16.msra.mxu0 0
  %352 = vmatprep.subr.bf16.mxu0 0
  %353 = vmatpush1.bf16.msra.mxu0 0
  %354 = vmatprep.mubr.bf16.mxu0 0
  %355 = vmatmul.mubr.bf16.gmra.mrb[0].mxu0 %v292
  %v356 = vpop.f32.mrb[0].mxu0
  %v357 = vadd.f32 %v228, %v356
  %v358 = vpop.f32.mrb[0].mxu0
  %v359 = vpop.f32.mrb[0].mxu0
  %v360 = vadd.f32 %v231, %v359
  %v361 = vpop.f32.mrb[0].mxu0
  %362 = vmatprep.mubr.bf16.mxu0 0
  %363 = vmatmul.mubr.bf16.gmra.mrb[0].mxu0 %v295
  %v364 = vpop.f32.mrb[0].mxu0
  %v365 = vadd.f32 %v236, %v364
  %v366 = vpop.f32.mrb[0].mxu0
  %v367 = vpop.f32.mrb[0].mxu0
  %v368 = vadd.f32 %v239, %v367
  %v369 = vpop.f32.mrb[0].mxu0
  %370 = vmatprep.mubr.bf16.mxu0 0
  %371 = vmatmul.mubr.bf16.gmra.mrb[0].mxu0 %v298
  %v372 = vpop.f32.mrb[0].mxu0
  %v373 = vadd.f32 %v244, %v372
  %v374 = vpop.f32.mrb[0].mxu0
  %v375 = vpop.f32.mrb[0].mxu0
  %v376 = vadd.f32 %v247, %v375
  %v377 = vpop.f32.mrb[0].mxu0
  %378 = vmatprep.mubr.bf16.mxu0 0
  %379 = vmatmul.mubr.bf16.gmra.mrb[0].mxu0 %v301
  %v380 = vpop.f32.mrb[0].mxu0
  %v381 = vadd.f32 %v252, %v380
  %v382 = vpop.f32.mrb[0].mxu0
  %v383 = vpop.f32.mrb[0].mxu0
  %v384 = vadd.f32 %v255, %v383
  %v385 = vpop.f32.mrb[0].mxu0
  %386 = vmatprep.mubr.bf16.mxu0 0
  %387 = vmatmul.mubr.bf16.gmra.mrb[0].mxu0 %v304
  %v388 = vpop.f32.mrb[0].mxu0
  %v389 = vadd.f32 %v260, %v388
  %v390 = vpop.f32.mrb[0].mxu0
  %v391 = vpop.f32.mrb[0].mxu0
  %v392 = vadd.f32 %v263, %v391
  %v393 = vpop.f32.mrb[0].mxu0
  %394 = vmatprep.mubr.bf16.mxu0 0
  %395 = vmatmul.mubr.bf16.gmra.mrb[0].mxu0 %v307
  %v396 = vpop.f32.mrb[0].mxu0
  %v397 = vadd.f32 %v268, %v396
  %v398 = vpop.f32.mrb[0].mxu0
  %v399 = vpop.f32.mrb[0].mxu0
  %v400 = vadd.f32 %v271, %v399
  %v401 = vpop.f32.mrb[0].mxu0
  %402 = vmatprep.mubr.bf16.mxu0 0
  %403 = vmatmul.mubr.bf16.gmra.mrb[0].mxu0 %v310
  %v404 = vpop.f32.mrb[0].mxu0
  %v405 = vadd.f32 %v276, %v404
  %v406 = vpop.f32.mrb[0].mxu0
  %v407 = vpop.f32.mrb[0].mxu0
  %v408 = vadd.f32 %v279, %v407
  %v409 = vpop.f32.mrb[0].mxu0
  %410 = vmatprep.mubr.bf16.mxu0 0
  %411 = vmatmul.mubr.bf16.gmra.mrb[0].mxu0 %v313
  %v412 = vpop.f32.mrb[0].mxu0
  %v413 = vadd.f32 %v284, %v412
  %v414 = vpop.f32.mrb[0].mxu0
  %v415 = vpop.f32.mrb[0].mxu0
  %v416 = vadd.f32 %v287, %v415
  %v417 = vpop.f32.mrb[0].mxu0
  %418 = vdwg.mxu0
  %v420 = vlaneseq
  %v421 = vshrl.u32 %v420, 7
  %v422 = vsub.s32 0, %v421
  %v423 = vrot.slane %v88, %v422
  %v425 = vadd.f32 %v357, %v423
  %v426 = vadd.f32 %v360, %v423
  %v427 = vadd.f32 %v365, %v423
  %v428 = vadd.f32 %v368, %v423
  %v429 = vadd.f32 %v373, %v423
  %v430 = vadd.f32 %v376, %v423
  %v431 = vadd.f32 %v381, %v423
  %v432 = vadd.f32 %v384, %v423
  %v433 = vadd.f32 %v389, %v423
  %v434 = vadd.f32 %v392, %v423
  %v435 = vadd.f32 %v397, %v423
  %v436 = vadd.f32 %v400, %v423
  %v437 = vadd.f32 %v405, %v423
  %v438 = vadd.f32 %v408, %v423
  %v439 = vadd.f32 %v413, %v423
  %v440 = vadd.f32 %v416, %v423
  %v441 = vmax.f32 %v425, 0.0
  %v442 = vmax.f32 %v426, 0.0
  %v443 = vmax.f32 %v427, 0.0
  %v444 = vmax.f32 %v428, 0.0
  %v445 = vmax.f32 %v429, 0.0
  %v446 = vmax.f32 %v430, 0.0
  %v447 = vmax.f32 %v431, 0.0
  %v448 = vmax.f32 %v432, 0.0
  %v449 = vmax.f32 %v433, 0.0
  %v450 = vmax.f32 %v434, 0.0
  %v451 = vmax.f32 %v435, 0.0
  %v452 = vmax.f32 %v436, 0.0
  %v453 = vmax.f32 %v437, 0.0
  %v454 = vmax.f32 %v438, 0.0
  %v455 = vmax.f32 %v439, 0.0
  %v456 = vmax.f32 %v440, 0.0
  %v457 = vld [vmem:[%s5] sm:$0xf]
  %v458 = vld [vmem:[%s5 + $0x4] sm:$0xf]
  %v459 = vld [vmem:[%s5 + $0x8] sm:$0xf]
  %v460 = vld [vmem:[%s5 + $0xc] sm:$0xf]
  %v461 = vld [vmem:[%s5 + $0x10] sm:$0xf]
  %v462 = vld [vmem:[%s5 + $0x14] sm:$0xf]
  %v463 = vld [vmem:[%s5 + $0x18] sm:$0xf]
  %v464 = vld [vmem:[%s5 + $0x1c] sm:$0xf]
  %v465 = vld [vmem:[%s5 + $0x20] sm:$0xf]
  %v466 = vld [vmem:[%s5 + $0x24] sm:$0xf]
  %v467 = vld [vmem:[%s5 + $0x28] sm:$0xf]
  %v468 = vld [vmem:[%s5 + $0x2c] sm:$0xf]
  %v469 = vld [vmem:[%s5 + $0x30] sm:$0xf]
  %v470 = vld [vmem:[%s5 + $0x34] sm:$0xf]
  %v471 = vld [vmem:[%s5 + $0x38] sm:$0xf]
  %v472 = vld [vmem:[%s5 + $0x3c] sm:$0xf]
  %v473 = vld [vmem:[%s6] sm:$0x1]
  %v474 = vpack.c.bf16 %v442, %v441
  %v475 = vpack.c.bf16 %v444, %v443
  %v476 = vpack.c.bf16 %v446, %v445
  %v477 = vpack.c.bf16 %v448, %v447
  %v478 = vpack.c.bf16 %v450, %v449
  %v479 = vpack.c.bf16 %v452, %v451
  %v480 = vpack.c.bf16 %v454, %v453
  %v481 = vpack.c.bf16 %v456, %v455
  %v483 = vlaneseq
  %v484 = vshrl.u32 %v483, 7
  %v485 = vsub.s32 0, %v484
  %v486 = vrot.slane %v473, %v485
  %v504 = vunpack.c.l.b16 %v457
  %v505 = vunpack.c.l.b16 %v458
  %v506 = vunpack.c.l.b16 %v459
  %v507 = vunpack.c.l.b16 %v460
  %v508 = vunpack.c.l.b16 %v461
  %v509 = vunpack.c.l.b16 %v462
  %v510 = vunpack.c.l.b16 %v463
  %v511 = vunpack.c.l.b16 %v464
  %v512 = vunpack.c.l.b16 %v465
  %v513 = vunpack.c.l.b16 %v466
  %v514 = vunpack.c.l.b16 %v467
  %v515 = vunpack.c.l.b16 %v468
  %v516 = vunpack.c.l.b16 %v469
  %v517 = vunpack.c.l.b16 %v470
  %v518 = vunpack.c.l.b16 %v471
  %v519 = vunpack.c.l.b16 %v472
  %v520 = vpack.c.b16 %v505, %v504
  %v521 = vpack.c.b16 %v507, %v506
  %v522 = vpack.c.b16 %v509, %v508
  %v523 = vpack.c.b16 %v511, %v510
  %v524 = vpack.c.b16 %v513, %v512
  %v525 = vpack.c.b16 %v515, %v514
  %v526 = vpack.c.b16 %v517, %v516
  %v527 = vpack.c.b16 %v519, %v518
  %536 = vmatprep.subr.bf16.mxu0 0
  %537 = vmatpush1.bf16.msra.mxu0 %v520
  %538 = vmatprep.subr.bf16.mxu0 0
  %539 = vmatpush1.bf16.msra.mxu0 %v521
  %540 = vmatprep.subr.bf16.mxu0 0
  %541 = vmatpush1.bf16.msra.mxu0 %v522
  %542 = vmatprep.subr.bf16.mxu0 0
  %543 = vmatpush1.bf16.msra.mxu0 %v523
  %544 = vmatprep.subr.bf16.mxu0 0
  %545 = vmatpush1.bf16.msra.mxu0 %v524
  %546 = vmatprep.subr.bf16.mxu0 0
  %547 = vmatpush1.bf16.msra.mxu0 %v525
  %548 = vmatprep.subr.bf16.mxu0 0
  %549 = vmatpush1.bf16.msra.mxu0 %v526
  %550 = vmatprep.subr.bf16.mxu0 0
  %551 = vmatpush1.bf16.msra.mxu0 %v527
  %552 = vmatprep.subr.bf16.mxu0 0
  %553 = vmatpush1.bf16.msra.mxu0 0
  %554 = vmatprep.subr.bf16.mxu0 0
  %555 = vmatpush1.bf16.msra.mxu0 0
  %556 = vmatprep.subr.bf16.mxu0 0
  %557 = vmatpush1.bf16.msra.mxu0 0
  %558 = vmatprep.subr.bf16.mxu0 0
  %559 = vmatpush1.bf16.msra.mxu0 0
  %560 = vmatprep.subr.bf16.mxu0 0
  %561 = vmatpush1.bf16.msra.mxu0 0
  %562 = vmatprep.subr.bf16.mxu0 0
  %563 = vmatpush1.bf16.msra.mxu0 0
  %564 = vmatprep.subr.bf16.mxu0 0
  %565 = vmatpush1.bf16.msra.mxu0 0
  %566 = vmatprep.subr.bf16.mxu0 0
  %567 = vmatpush1.bf16.msra.mxu0 0
  %568 = vmatprep.mubr.bf16.mxu0 0
  %569 = vmatmul.mubr.bf16.gmra.mrb[0].mxu0 %v474
  %v570 = vpop.f32.mrb[0].mxu0
  %v571 = vadd.f32 %v486, %v570
  %v572 = vpop.f32.mrb[0].mxu0
  %v573 = vpop.f32.mrb[0].mxu0
  %v574 = vadd.f32 %v486, %v573
  %v575 = vpop.f32.mrb[0].mxu0
  %576 = vmatprep.mubr.bf16.mxu0 0
  %577 = vmatmul.mubr.bf16.gmra.mrb[0].mxu0 %v475
  %v578 = vpop.f32.mrb[0].mxu0
  %v579 = vadd.f32 %v486, %v578
  %v580 = vpop.f32.mrb[0].mxu0
  %v581 = vpop.f32.mrb[0].mxu0
  %v582 = vadd.f32 %v486, %v581
  %v583 = vpop.f32.mrb[0].mxu0
  %584 = vmatprep.mubr.bf16.mxu0 0
  %585 = vmatmul.mubr.bf16.gmra.mrb[0].mxu0 %v476
  %v586 = vpop.f32.mrb[0].mxu0
  %v587 = vadd.f32 %v486, %v586
  %v588 = vpop.f32.mrb[0].mxu0
  %v589 = vpop.f32.mrb[0].mxu0
  %v590 = vadd.f32 %v486, %v589
  %v591 = vpop.f32.mrb[0].mxu0
  %592 = vmatprep.mubr.bf16.mxu0 0
  %593 = vmatmul.mubr.bf16.gmra.mrb[0].mxu0 %v477
  %v594 = vpop.f32.mrb[0].mxu0
  %v595 = vadd.f32 %v486, %v594
  %v596 = vpop.f32.mrb[0].mxu0
  %v597 = vpop.f32.mrb[0].mxu0
  %v598 = vadd.f32 %v486, %v597
  %v599 = vpop.f32.mrb[0].mxu0
  %600 = vmatprep.mubr.bf16.mxu0 0
  %601 = vmatmul.mubr.bf16.gmra.mrb[0].mxu0 %v478
  %v602 = vpop.f32.mrb[0].mxu0
  %v603 = vadd.f32 %v486, %v602
  %v604 = vpop.f32.mrb[0].mxu0
  %v605 = vpop.f32.mrb[0].mxu0
  %v606 = vadd.f32 %v486, %v605
  %v607 = vpop.f32.mrb[0].mxu0
  %608 = vmatprep.mubr.bf16.mxu0 0
  %609 = vmatmul.mubr.bf16.gmra.mrb[0].mxu0 %v479
  %v610 = vpop.f32.mrb[0].mxu0
  %v611 = vadd.f32 %v486, %v610
  %v612 = vpop.f32.mrb[0].mxu0
  %v613 = vpop.f32.mrb[0].mxu0
  %v614 = vadd.f32 %v486, %v613
  %v615 = vpop.f32.mrb[0].mxu0
  %616 = vmatprep.mubr.bf16.mxu0 0
  %617 = vmatmul.mubr.bf16.gmra.mrb[0].mxu0 %v480
  %v618 = vpop.f32.mrb[0].mxu0
  %v619 = vadd.f32 %v486, %v618
  %v620 = vpop.f32.mrb[0].mxu0
  %v621 = vpop.f32.mrb[0].mxu0
  %v622 = vadd.f32 %v486, %v621
  %v623 = vpop.f32.mrb[0].mxu0
  %624 = vmatprep.mubr.bf16.mxu0 0
  %625 = vmatmul.mubr.bf16.gmra.mrb[0].mxu0 %v481
  %v626 = vpop.f32.mrb[0].mxu0
  %v627 = vadd.f32 %v486, %v626
  %v628 = vpop.f32.mrb[0].mxu0
  %v629 = vpop.f32.mrb[0].mxu0
  %v630 = vadd.f32 %v486, %v629
  %v631 = vpop.f32.mrb[0].mxu0
  %632 = vdwg.mxu0
  %v633 = vmax.f32 %v571, 0.0
  %v634 = vmax.f32 %v574, 0.0
  %v635 = vmax.f32 %v579, 0.0
  %v636 = vmax.f32 %v582, 0.0
  %v637 = vmax.f32 %v587, 0.0
  %v638 = vmax.f32 %v590, 0.0
  %v639 = vmax.f32 %v595, 0.0
  %v640 = vmax.f32 %v598, 0.0
  %v641 = vmax.f32 %v603, 0.0
  %v642 = vmax.f32 %v606, 0.0
  %v643 = vmax.f32 %v611, 0.0
  %v644 = vmax.f32 %v614, 0.0
  %v645 = vmax.f32 %v619, 0.0
  %v646 = vmax.f32 %v622, 0.0
  %v647 = vmax.f32 %v627, 0.0
  %v648 = vmax.f32 %v630, 0.0
  %v649 = vld [vmem:[%s7] sm:$0xf]
  %v650 = vld [vmem:[%s7 + $0x4] sm:$0xf]
  %v651 = vld [vmem:[%s7 + $0x8] sm:$0xf]
  %v652 = vld [vmem:[%s7 + $0xc] sm:$0xf]
  %v653 = vld [vmem:[%s7 + $0x10] sm:$0xf]
  %v654 = vld [vmem:[%s7 + $0x14] sm:$0xf]
  %v655 = vld [vmem:[%s7 + $0x18] sm:$0xf]
  %v656 = vld [vmem:[%s7 + $0x1c] sm:$0xf]
  %v657 = vld [vmem:[%s8] sm:$0x1]
  %v658 = vpack.c.bf16 %v634, %v633
  %v659 = vpack.c.bf16 %v636, %v635
  %v660 = vpack.c.bf16 %v638, %v637
  %v661 = vpack.c.bf16 %v640, %v639
  %v662 = vpack.c.bf16 %v642, %v641
  %v663 = vpack.c.bf16 %v644, %v643
  %v664 = vpack.c.bf16 %v646, %v645
  %v665 = vpack.c.bf16 %v648, %v647
  %v667 = vlaneseq
  %v668 = vshrl.u32 %v667, 7
  %v669 = vsub.s32 0, %v668
  %v670 = vrot.slane %v657, %v669
  %v680 = vunpack.c.l.b16 %v649
  %v681 = vunpack.c.l.b16 %v650
  %v682 = vunpack.c.l.b16 %v651
  %v683 = vunpack.c.l.b16 %v652
  %v684 = vunpack.c.l.b16 %v653
  %v685 = vunpack.c.l.b16 %v654
  %v686 = vunpack.c.l.b16 %v655
  %v687 = vunpack.c.l.b16 %v656
  %v688 = vpack.c.b16 %v681, %v680
  %v689 = vpack.c.b16 %v683, %v682
  %v690 = vpack.c.b16 %v685, %v684
  %v691 = vpack.c.b16 %v687, %v686
  %vm696 = vcmask 523264
  %v698 = vsel %vm696, %v658, 0
  %v701 = vsel %vm696, %v659, 0
  %v704 = vsel %vm696, %v660, 0
  %v707 = vsel %vm696, %v661, 0
  %v710 = vsel %vm696, %v662, 0
  %v713 = vsel %vm696, %v663, 0
  %v716 = vsel %vm696, %v664, 0
  %v719 = vsel %vm696, %v665, 0
  %721 = vmatprep.subr.bf16.mxu0 0
  %722 = vmatpush1.bf16.msra.mxu0 %v688
  %723 = vmatprep.subr.bf16.mxu0 0
  %724 = vmatpush1.bf16.msra.mxu0 %v689
  %725 = vmatprep.subr.bf16.mxu0 0
  %726 = vmatpush1.bf16.msra.mxu0 %v690
  %727 = vmatprep.subr.bf16.mxu0 0
  %728 = vmatpush1.bf16.msra.mxu0 %v691
  %729 = vmatprep.subr.bf16.mxu0 0
  %730 = vmatpush1.bf16.msra.mxu0 0
  %731 = vmatprep.subr.bf16.mxu0 0
  %732 = vmatpush1.bf16.msra.mxu0 0
  %733 = vmatprep.subr.bf16.mxu0 0
  %734 = vmatpush1.bf16.msra.mxu0 0
  %735 = vmatprep.subr.bf16.mxu0 0
  %736 = vmatpush1.bf16.msra.mxu0 0
  %737 = vmatprep.subr.bf16.mxu0 0
  %738 = vmatpush1.bf16.msra.mxu0 0
  %739 = vmatprep.subr.bf16.mxu0 0
  %740 = vmatpush1.bf16.msra.mxu0 0
  %741 = vmatprep.subr.bf16.mxu0 0
  %742 = vmatpush1.bf16.msra.mxu0 0
  %743 = vmatprep.subr.bf16.mxu0 0
  %744 = vmatpush1.bf16.msra.mxu0 0
  %745 = vmatprep.subr.bf16.mxu0 0
  %746 = vmatpush1.bf16.msra.mxu0 0
  %747 = vmatprep.subr.bf16.mxu0 0
  %748 = vmatpush1.bf16.msra.mxu0 0
  %749 = vmatprep.subr.bf16.mxu0 0
  %750 = vmatpush1.bf16.msra.mxu0 0
  %751 = vmatprep.subr.bf16.mxu0 0
  %752 = vmatpush1.bf16.msra.mxu0 0
  %753 = vmatprep.mubr.bf16.mxu0 0
  %754 = vmatmul.mubr.bf16.gmra.mrb[0].mxu0 %v698
  %v755 = vpop.f32.mrb[0].mxu0
  %v756 = vadd.f32 %v670, %v755
  %v757 = vpop.f32.mrb[0].mxu0
  %v758 = vpop.f32.mrb[0].mxu0
  %v759 = vadd.f32 %v670, %v758
  %v760 = vpop.f32.mrb[0].mxu0
  %761 = vmatprep.mubr.bf16.mxu0 0
  %762 = vmatmul.mubr.bf16.gmra.mrb[0].mxu0 %v701
  %v763 = vpop.f32.mrb[0].mxu0
  %v764 = vadd.f32 %v670, %v763
  %v765 = vpop.f32.mrb[0].mxu0
  %v766 = vpop.f32.mrb[0].mxu0
  %v767 = vadd.f32 %v670, %v766
  %v768 = vpop.f32.mrb[0].mxu0
  %769 = vmatprep.mubr.bf16.mxu0 0
  %770 = vmatmul.mubr.bf16.gmra.mrb[0].mxu0 %v704
  %v771 = vpop.f32.mrb[0].mxu0
  %v772 = vadd.f32 %v670, %v771
  %v773 = vpop.f32.mrb[0].mxu0
  %v774 = vpop.f32.mrb[0].mxu0
  %v775 = vadd.f32 %v670, %v774
  %v776 = vpop.f32.mrb[0].mxu0
  %777 = vmatprep.mubr.bf16.mxu0 0
  %778 = vmatmul.mubr.bf16.gmra.mrb[0].mxu0 %v707
  %v779 = vpop.f32.mrb[0].mxu0
  %v780 = vadd.f32 %v670, %v779
  %v781 = vpop.f32.mrb[0].mxu0
  %v782 = vpop.f32.mrb[0].mxu0
  %v783 = vadd.f32 %v670, %v782
  %v784 = vpop.f32.mrb[0].mxu0
  %785 = vmatprep.mubr.bf16.mxu0 0
  %786 = vmatmul.mubr.bf16.gmra.mrb[0].mxu0 %v710
  %v787 = vpop.f32.mrb[0].mxu0
  %v788 = vadd.f32 %v670, %v787
  %v789 = vpop.f32.mrb[0].mxu0
  %v790 = vpop.f32.mrb[0].mxu0
  %v791 = vadd.f32 %v670, %v790
  %v792 = vpop.f32.mrb[0].mxu0
  %793 = vmatprep.mubr.bf16.mxu0 0
  %794 = vmatmul.mubr.bf16.gmra.mrb[0].mxu0 %v713
  %v795 = vpop.f32.mrb[0].mxu0
  %v796 = vadd.f32 %v670, %v795
  %v797 = vpop.f32.mrb[0].mxu0
  %v798 = vpop.f32.mrb[0].mxu0
  %v799 = vadd.f32 %v670, %v798
  %v800 = vpop.f32.mrb[0].mxu0
  %801 = vmatprep.mubr.bf16.mxu0 0
  %802 = vmatmul.mubr.bf16.gmra.mrb[0].mxu0 %v716
  %v803 = vpop.f32.mrb[0].mxu0
  %v804 = vadd.f32 %v670, %v803
  %v805 = vpop.f32.mrb[0].mxu0
  %v806 = vpop.f32.mrb[0].mxu0
  %v807 = vadd.f32 %v670, %v806
  %v808 = vpop.f32.mrb[0].mxu0
  %809 = vmatprep.mubr.bf16.mxu0 0
  %810 = vmatmul.mubr.bf16.gmra.mrb[0].mxu0 %v719
  %v811 = vpop.f32.mrb[0].mxu0
  %v812 = vadd.f32 %v670, %v811
  %v813 = vpop.f32.mrb[0].mxu0
  %v814 = vpop.f32.mrb[0].mxu0
  %v815 = vadd.f32 %v670, %v814
  %v816 = vpop.f32.mrb[0].mxu0
  %817 = vdwg.mxu0
  %v818 = vmax.f32 %v756, 0.0
  %v819 = vmax.f32 %v759, 0.0
  %v820 = vmax.f32 %v764, 0.0
  %v821 = vmax.f32 %v767, 0.0
  %v822 = vmax.f32 %v772, 0.0
  %v823 = vmax.f32 %v775, 0.0
  %v824 = vmax.f32 %v780, 0.0
  %v825 = vmax.f32 %v783, 0.0
  %v826 = vmax.f32 %v788, 0.0
  %v827 = vmax.f32 %v791, 0.0
  %v828 = vmax.f32 %v796, 0.0
  %v829 = vmax.f32 %v799, 0.0
  %v830 = vmax.f32 %v804, 0.0
  %v831 = vmax.f32 %v807, 0.0
  %v832 = vmax.f32 %v812, 0.0
  %v833 = vmax.f32 %v815, 0.0
  %v834 = vld [vmem:[%s9] sm:$0xf]
  %v835 = vld [vmem:[%s9 + $0x4] sm:$0xf]
  %v836 = vld [vmem:[%s9 + $0x8] sm:$0xf]
  %v837 = vld [vmem:[%s9 + $0xc] sm:$0xf]
  %v838 = vld [vmem:[%s9 + $0x10] sm:$0xf]
  %v839 = vld [vmem:[%s9 + $0x14] sm:$0xf]
  %v840 = vld [vmem:[%s9 + $0x18] sm:$0xf]
  %v841 = vld [vmem:[%s9 + $0x1c] sm:$0xf]
  %v842 = vld [vmem:[%s10] sm:$0x1]
  %v843 = vpack.c.bf16 %v819, %v818
  %v844 = vpack.c.bf16 %v821, %v820
  %v845 = vpack.c.bf16 %v823, %v822
  %v846 = vpack.c.bf16 %v825, %v824
  %v847 = vpack.c.bf16 %v827, %v826
  %v848 = vpack.c.bf16 %v829, %v828
  %v849 = vpack.c.bf16 %v831, %v830
  %v850 = vpack.c.bf16 %v833, %v832
  %v852 = vlaneseq
  %v853 = vshrl.u32 %v852, 7
  %v854 = vsub.s32 0, %v853
  %v855 = vrot.slane %v842, %v854
  %v865 = vunpack.c.l.b16 %v834
  %v866 = vunpack.c.l.b16 %v835
  %v867 = vunpack.c.l.b16 %v836
  %v868 = vunpack.c.l.b16 %v837
  %v869 = vunpack.c.l.b16 %v838
  %v870 = vunpack.c.l.b16 %v839
  %v871 = vunpack.c.l.b16 %v840
  %v872 = vunpack.c.l.b16 %v841
  %v873 = vpack.c.b16 %v866, %v865
  %v874 = vpack.c.b16 %v868, %v867
  %v875 = vpack.c.b16 %v870, %v869
  %v876 = vpack.c.b16 %v872, %v871
  %v882 = vsel %vm696, %v843, 0
  %v885 = vsel %vm696, %v844, 0
  %v888 = vsel %vm696, %v845, 0
  %v891 = vsel %vm696, %v846, 0
  %v894 = vsel %vm696, %v847, 0
  %v897 = vsel %vm696, %v848, 0
  %v900 = vsel %vm696, %v849, 0
  %v903 = vsel %vm696, %v850, 0
  %905 = vmatprep.subr.bf16.mxu0 0
  %906 = vmatpush1.bf16.msra.mxu0 %v873
  %907 = vmatprep.subr.bf16.mxu0 0
  %908 = vmatpush1.bf16.msra.mxu0 %v874
  %909 = vmatprep.subr.bf16.mxu0 0
  %910 = vmatpush1.bf16.msra.mxu0 %v875
  %911 = vmatprep.subr.bf16.mxu0 0
  %912 = vmatpush1.bf16.msra.mxu0 %v876
  %913 = vmatprep.subr.bf16.mxu0 0
  %914 = vmatpush1.bf16.msra.mxu0 0
  %915 = vmatprep.subr.bf16.mxu0 0
  %916 = vmatpush1.bf16.msra.mxu0 0
  %917 = vmatprep.subr.bf16.mxu0 0
  %918 = vmatpush1.bf16.msra.mxu0 0
  %919 = vmatprep.subr.bf16.mxu0 0
  %920 = vmatpush1.bf16.msra.mxu0 0
  %921 = vmatprep.subr.bf16.mxu0 0
  %922 = vmatpush1.bf16.msra.mxu0 0
  %923 = vmatprep.subr.bf16.mxu0 0
  %924 = vmatpush1.bf16.msra.mxu0 0
  %925 = vmatprep.subr.bf16.mxu0 0
  %926 = vmatpush1.bf16.msra.mxu0 0
  %927 = vmatprep.subr.bf16.mxu0 0
  %928 = vmatpush1.bf16.msra.mxu0 0
  %929 = vmatprep.subr.bf16.mxu0 0
  %930 = vmatpush1.bf16.msra.mxu0 0
  %931 = vmatprep.subr.bf16.mxu0 0
  %932 = vmatpush1.bf16.msra.mxu0 0
  %933 = vmatprep.subr.bf16.mxu0 0
  %934 = vmatpush1.bf16.msra.mxu0 0
  %935 = vmatprep.subr.bf16.mxu0 0
  %936 = vmatpush1.bf16.msra.mxu0 0
  %937 = vmatprep.mubr.bf16.mxu0 0
  %938 = vmatmul.mubr.bf16.gmra.mrb[0].mxu0 %v882
  %v939 = vpop.f32.mrb[0].mxu0
  %v940 = vadd.f32 %v855, %v939
  %v941 = vpop.f32.mrb[0].mxu0
  %v942 = vpop.f32.mrb[0].mxu0
  %v943 = vadd.f32 %v855, %v942
  %v944 = vpop.f32.mrb[0].mxu0
  %945 = vmatprep.mubr.bf16.mxu0 0
  %946 = vmatmul.mubr.bf16.gmra.mrb[0].mxu0 %v885
  %v947 = vpop.f32.mrb[0].mxu0
  %v948 = vadd.f32 %v855, %v947
  %v949 = vpop.f32.mrb[0].mxu0
  %v950 = vpop.f32.mrb[0].mxu0
  %v951 = vadd.f32 %v855, %v950
  %v952 = vpop.f32.mrb[0].mxu0
  %953 = vmatprep.mubr.bf16.mxu0 0
  %954 = vmatmul.mubr.bf16.gmra.mrb[0].mxu0 %v888
  %v955 = vpop.f32.mrb[0].mxu0
  %v956 = vadd.f32 %v855, %v955
  %v957 = vpop.f32.mrb[0].mxu0
  %v958 = vpop.f32.mrb[0].mxu0
  %v959 = vadd.f32 %v855, %v958
  %v960 = vpop.f32.mrb[0].mxu0
  %961 = vmatprep.mubr.bf16.mxu0 0
  %962 = vmatmul.mubr.bf16.gmra.mrb[0].mxu0 %v891
  %v963 = vpop.f32.mrb[0].mxu0
  %v964 = vadd.f32 %v855, %v963
  %v965 = vpop.f32.mrb[0].mxu0
  %v966 = vpop.f32.mrb[0].mxu0
  %v967 = vadd.f32 %v855, %v966
  %v968 = vpop.f32.mrb[0].mxu0
  %969 = vmatprep.mubr.bf16.mxu0 0
  %970 = vmatmul.mubr.bf16.gmra.mrb[0].mxu0 %v894
  %v971 = vpop.f32.mrb[0].mxu0
  %v972 = vadd.f32 %v855, %v971
  %v973 = vpop.f32.mrb[0].mxu0
  %v974 = vpop.f32.mrb[0].mxu0
  %v975 = vadd.f32 %v855, %v974
  %v976 = vpop.f32.mrb[0].mxu0
  %977 = vmatprep.mubr.bf16.mxu0 0
  %978 = vmatmul.mubr.bf16.gmra.mrb[0].mxu0 %v897
  %v979 = vpop.f32.mrb[0].mxu0
  %v980 = vadd.f32 %v855, %v979
  %v981 = vpop.f32.mrb[0].mxu0
  %v982 = vpop.f32.mrb[0].mxu0
  %v983 = vadd.f32 %v855, %v982
  %v984 = vpop.f32.mrb[0].mxu0
  %985 = vmatprep.mubr.bf16.mxu0 0
  %986 = vmatmul.mubr.bf16.gmra.mrb[0].mxu0 %v900
  %v987 = vpop.f32.mrb[0].mxu0
  %v988 = vadd.f32 %v855, %v987
  %v989 = vpop.f32.mrb[0].mxu0
  %v990 = vpop.f32.mrb[0].mxu0
  %v991 = vadd.f32 %v855, %v990
  %v992 = vpop.f32.mrb[0].mxu0
  %993 = vmatprep.mubr.bf16.mxu0 0
  %994 = vmatmul.mubr.bf16.gmra.mrb[0].mxu0 %v903
  %v995 = vpop.f32.mrb[0].mxu0
  %v996 = vadd.f32 %v855, %v995
  %v997 = vpop.f32.mrb[0].mxu0
  %v998 = vpop.f32.mrb[0].mxu0
  %v999 = vadd.f32 %v855, %v998
  %v1000 = vpop.f32.mrb[0].mxu0
  %1001 = vdwg.mxu0
  %1002 = vst [vmem:[%s11] sm:$0xff] %v940
  %1003 = vst [vmem:[%s11 + $0x8] sm:$0xff] %v943
  %1004 = vst [vmem:[%s11 + $0x10] sm:$0xff] %v948
  %1005 = vst [vmem:[%s11 + $0x18] sm:$0xff] %v951
  %1006 = vst [vmem:[%s11 + $0x20] sm:$0xff] %v956
  %1007 = vst [vmem:[%s11 + $0x28] sm:$0xff] %v959
  %1008 = vst [vmem:[%s11 + $0x30] sm:$0xff] %v964
  %1009 = vst [vmem:[%s11 + $0x38] sm:$0xff] %v967
  %1010 = vst [vmem:[%s11 + $0x40] sm:$0xff] %v972
  %1011 = vst [vmem:[%s11 + $0x48] sm:$0xff] %v975
  %1012 = vst [vmem:[%s11 + $0x50] sm:$0xff] %v980
  %1013 = vst [vmem:[%s11 + $0x58] sm:$0xff] %v983
  %1014 = vst [vmem:[%s11 + $0x60] sm:$0xff] %v988
  %1015 = vst [vmem:[%s11 + $0x68] sm:$0xff] %v991
  %1016 = vst [vmem:[%s11 + $0x70] sm:$0xff] %v996
  %1017 = vst [vmem:[%s11 + $0x78] sm:$0xff] %v999
  // Predicated region
  $region46: #{pointnet2_forward.15} parent=0 // pred_check
    _
  $region47: #{pointnet2_forward.15} parent=0 // pred_check_branch
    %1019 = sbr.rel (0) target = $region49
  $region48: #{pointnet2_forward.15} parent=0 // pred_region
    _
  $region49: #{pointnet2_forward.15} parent=0 // pred_fallthru
    _
  // Predicated region
  $region50: #{pointnet2_forward.15} parent=0 // pred_check
    _
  $region51: #{pointnet2_forward.15} parent=0 // pred_check_branch
    %1021 = sbr.rel (0) target = $region53
  $region52: #{pointnet2_forward.15} parent=0 // pred_region
    _
  $region53: #{pointnet2_forward.15} parent=0 // pred_fallthru
    _

</llo_original>
